<compile_context>
chip_gen: v7x
topology: tpu7x:2x2x1
jax: 0.10.0
libtpu: 0.0.40
codegen_flags: <defaults>
</compile_context>

<pallas_src>
import jax
import jax.numpy as jnp
import numpy as np
from jax.experimental import pallas as pl
from jax.experimental.pallas import tpu as pltpu

K1, K2 = 5, 7                # conv1 / conv2 kernel sizes
P1, P2 = K1 // 2, K2 // 2    # 'same' padding for odd kernels


def _round_up(x, m):
    return (x + m - 1) // m * m


def _make_kernel(C, We, L1, L2):
    def kernel(x_ref, w1_ref, b1_ref, w2_ref, b2_ref, mask_ref, o_ref):
        x1 = x_ref[0]                    # (C, NIN)  lane-dense flat padded input
        w1v = w1_ref[...]                # (C, K1*K1*C)   column j <-> (kh, kw, ci)
        w2v = w2_ref[...]                # (C, K2*K2*C)

        # ---- conv1: VPU broadcast-FMA over (tap, ci), lane-dense accumulator ----
        acc1 = jnp.zeros((C, L1), jnp.float32)
        j = 0
        for kh in range(K1):
            for kw in range(K1):
                off = kh * We + kw
                xs = x1[:, off:off + L1]             # contiguous lane window
                for ci in range(C):
                    acc1 = acc1 + w1v[:, j:j + 1] * xs[ci:ci + 1, :]
                    j += 1

        # bias + ReLU in lane-dense layout; the mask zeroes every position that
        # is not a valid conv1 output, so h1 is exactly conv2's zero-padded input.
        h1 = jnp.maximum(acc1 + b1_ref[...], 0.0) * mask_ref[...]

        # ---- conv2: same fat broadcast-FMA structure ----
        acc2 = jnp.zeros((C, L2), jnp.float32)
        j = 0
        for kh in range(K2):
            for kw in range(K2):
                off = kh * We + kw
                xs = h1[:, off:off + L2]
                for ci in range(C):
                    acc2 = acc2 + w2v[:, j:j + 1] * xs[ci:ci + 1, :]
                    j += 1

        # single dense store (last dim = L2 >= 128)
        o_ref[0] = (acc2 + b2_ref[...]).astype(o_ref.dtype)

    return kernel


@jax.jit
def block_forward(x_nchw, w1_oihw, b1, w2_oihw, b2):
    """Pallas equivalent of Block.forward.  x_nchw: (B, C, H, W) float32."""
    B, C, H, W = x_nchw.shape
    PE = P1 + P2                       # single extended halo (5)
    He, We = H + 2 * PE, W + 2 * PE    # extended grid; We is the flat row stride

    L2 = H * We                                        # fat conv2 output length
    L1 = _round_up((K2 - 1) * We + (K2 - 1) + L2, 128)  # fat conv1 output length
    NIN = _round_up((K1 - 1) * We + (K1 - 1) + L1, 128)  # flat padded input length

    # Pad once (P1+P2 each side), flatten spatial onto lanes, zero-pad the tail
    # so every tap slice stays in bounds.
    x_ext = jnp.pad(x_nchw, ((0, 0), (0, 0), (PE, PE), (PE, PE)))   # (B,C,He,We)
    x_flat = jnp.pad(x_ext.reshape(B, C, He * We),
                     ((0, 0), (0, 0), (0, NIN - He * We)))           # (B,C,NIN)

    # Weights (Cout, Cin, K, K) -> (Cout, K*K*Cin); column j = (kh*K + kw)*C + ci.
    w1m = jnp.transpose(w1_oihw, (0, 2, 3, 1)).reshape(C, K1 * K1 * C)
    w2m = jnp.transpose(w2_oihw, (0, 2, 3, 1)).reshape(C, K2 * K2 * C)
    b1c = b1.reshape(C, 1).astype(jnp.float32)
    b2c = b2.reshape(C, 1).astype(jnp.float32)

    # Mask of valid conv1 outputs on the fat grid (fat pos (he,we): valid iff
    # he in [P2, P2+H) and we in [P2, P2+W)); computed host-side, constant.
    idx = np.arange(L1)
    he, we = idx // We, idx % We
    mask_np = ((he >= P2) & (he < P2 + H) & (we >= P2) & (we < P2 + W))
    mask = jnp.asarray(mask_np[None, :].astype(np.float32))          # (1, L1)

    kernel = _make_kernel(C, We, L1, L2)

    out_fat = pl.pallas_call(
        kernel,
        out_shape=jax.ShapeDtypeStruct((B, C, L2), x_nchw.dtype),
        grid_spec=pltpu.PrefetchScalarGridSpec(
            num_scalar_prefetch=0,
            grid=(B,),
            in_specs=[
                pl.BlockSpec((1, C, NIN), lambda b: (b, 0, 0)),
                pl.BlockSpec((C, K1 * K1 * C), lambda b: (0, 0)),
                pl.BlockSpec((C, 1), lambda b: (0, 0)),
                pl.BlockSpec((C, K2 * K2 * C), lambda b: (0, 0)),
                pl.BlockSpec((C, 1), lambda b: (0, 0)),
                pl.BlockSpec((1, L1), lambda b: (0, 0)),
            ],
            out_specs=pl.BlockSpec((1, C, L2), lambda b: (b, 0, 0)),
        ),
        compiler_params=pltpu.CompilerParams(
            dimension_semantics=("parallel",)),
    )(x_flat, w1m, b1c, w2m, b2c, mask)

    # Crop fat width (row stride We) back to W; output is already NCHW-ordered.
    return out_fat.reshape(B, C, H, We)[:, :, :, :W]


def _reference(x_nchw, w1_oihw, b1, w2_oihw, b2):
    """Pure-JAX (lax.conv) reference reproducing PyTorch semantics."""
    def conv(x, w, b, pad):
        y = jax.lax.conv_general_dilated(
            x, w, window_strides=(1, 1),
            padding=[(pad, pad), (pad, pad)],
            dimension_numbers=("NCHW", "OIHW", "NCHW"))
        return y + b[None, :, None, None]
    h = conv(x_nchw, w1_oihw, b1, P1)
    h = jnp.maximum(h, 0.0)
    return conv(h, w2_oihw, b2, P2)


if __name__ == "__main__":
    B, C, H, W = 2, 4, 16, 16  # out_ch = 4; conv1's input channel count == out_ch

    key = jax.random.PRNGKey(0)
    kx, k1, k2, k3, k4 = jax.random.split(key, 5)

    x = jax.random.normal(kx, (B, C, H, W), dtype=jnp.float32)
    w1 = jax.random.normal(k1, (C, C, K1, K1), dtype=jnp.float32) * 0.1  # OIHW
    b1 = jax.random.normal(k2, (C,), dtype=jnp.float32) * 0.1
    w2 = jax.random.normal(k3, (C, C, K2, K2), dtype=jnp.float32) * 0.1  # OIHW
    b2 = jax.random.normal(k4, (C,), dtype=jnp.float32) * 0.1

    out = jax.block_until_ready(block_forward(x, w1, b1, w2, b2))

    ref = jax.block_until_ready(_reference(x, w1, b1, w2, b2))
    np.testing.assert_allclose(np.asarray(out), np.asarray(ref),
                               rtol=1e-4, atol=1e-4)

    print("KERNEL_OK")
</pallas_src>

<mosaic_0001>
module attributes {stable_mosaic.version = 11 : i64} {
  func.func @kernel(%arg0: i32, %arg1: memref<1x4x768xf32, #tpu.memory_space<vmem>>, %arg2: memref<4x100xf32, #tpu.memory_space<vmem>>, %arg3: memref<4x1xf32, #tpu.memory_space<vmem>>, %arg4: memref<4x196xf32, #tpu.memory_space<vmem>>, %arg5: memref<4x1xf32, #tpu.memory_space<vmem>>, %arg6: memref<1x640xf32, #tpu.memory_space<vmem>>, %arg7: memref<1x4x416xf32, #tpu.memory_space<vmem>>) attributes {dimension_semantics = [#tpu.dimension_semantics<parallel>], iteration_bounds = array<i64: 2>, scalar_prefetch = 0 : i64, scratch_operands = 0 : i64, tpu.core_type = #tpu.core_type<tc>, window_params = [{transform_indices = @transform_0, window_bounds = array<i64: 1, 4, 768>}, {pipeline_mode = #tpu.pipeline_mode<synchronous>, transform_indices = @transform_1, window_bounds = array<i64: 4, 100>}, {pipeline_mode = #tpu.pipeline_mode<synchronous>, transform_indices = @transform_2, window_bounds = array<i64: 4, 1>}, {pipeline_mode = #tpu.pipeline_mode<synchronous>, transform_indices = @transform_3, window_bounds = array<i64: 4, 196>}, {pipeline_mode = #tpu.pipeline_mode<synchronous>, transform_indices = @transform_4, window_bounds = array<i64: 4, 1>}, {pipeline_mode = #tpu.pipeline_mode<synchronous>, transform_indices = @transform_5, window_bounds = array<i64: 1, 640>}, {transform_indices = @transform_6, window_bounds = array<i64: 1, 4, 416>}]} {
    %c0 = arith.constant 0 : index
    %c0_0 = arith.constant 0 : index
    %c0_1 = arith.constant 0 : index
    %0 = vector.load %arg1[%c0, %c0_0, %c0_1] : memref<1x4x768xf32, #tpu.memory_space<vmem>>, vector<1x4x768xf32>
    %1 = vector.shape_cast %0 : vector<1x4x768xf32> to vector<4x768xf32>
    %c0_2 = arith.constant 0 : index
    %c0_3 = arith.constant 0 : index
    %2 = vector.load %arg2[%c0_2, %c0_3] : memref<4x100xf32, #tpu.memory_space<vmem>>, vector<4x100xf32>
    %c0_4 = arith.constant 0 : index
    %c0_5 = arith.constant 0 : index
    %3 = vector.load %arg4[%c0_4, %c0_5] : memref<4x196xf32, #tpu.memory_space<vmem>>, vector<4x196xf32>
    %cst = arith.constant 0.000000e+00 : f32
    %4 = vector.broadcast %cst : f32 to vector<4x640xf32>
    %5 = vector.extract_strided_slice %1 {offsets = [0, 0], sizes = [4, 640], strides = [1, 1]} : vector<4x768xf32> to vector<4x640xf32>
    %6 = vector.extract_strided_slice %2 {offsets = [0, 0], sizes = [4, 1], strides = [1, 1]} : vector<4x100xf32> to vector<4x1xf32>
    %7 = vector.extract_strided_slice %5 {offsets = [0, 0], sizes = [1, 640], strides = [1, 1]} : vector<4x640xf32> to vector<1x640xf32>
    %8 = vector.broadcast %6 : vector<4x1xf32> to vector<4x640xf32>
    %9 = vector.broadcast %7 : vector<1x640xf32> to vector<4x640xf32>
    %10 = arith.mulf %8, %9 : vector<4x640xf32>
    %11 = arith.addf %4, %10 : vector<4x640xf32>
    %12 = vector.extract_strided_slice %2 {offsets = [0, 1], sizes = [4, 1], strides = [1, 1]} : vector<4x100xf32> to vector<4x1xf32>
    %13 = vector.extract_strided_slice %5 {offsets = [1, 0], sizes = [1, 640], strides = [1, 1]} : vector<4x640xf32> to vector<1x640xf32>
    %14 = vector.broadcast %12 : vector<4x1xf32> to vector<4x640xf32>
    %15 = vector.broadcast %13 : vector<1x640xf32> to vector<4x640xf32>
    %16 = arith.mulf %14, %15 : vector<4x640xf32>
    %17 = arith.addf %11, %16 : vector<4x640xf32>
    %18 = vector.extract_strided_slice %2 {offsets = [0, 2], sizes = [4, 1], strides = [1, 1]} : vector<4x100xf32> to vector<4x1xf32>
    %19 = vector.extract_strided_slice %5 {offsets = [2, 0], sizes = [1, 640], strides = [1, 1]} : vector<4x640xf32> to vector<1x640xf32>
    %20 = vector.broadcast %18 : vector<4x1xf32> to vector<4x640xf32>
    %21 = vector.broadcast %19 : vector<1x640xf32> to vector<4x640xf32>
    %22 = arith.mulf %20, %21 : vector<4x640xf32>
    %23 = arith.addf %17, %22 : vector<4x640xf32>
    %24 = vector.extract_strided_slice %2 {offsets = [0, 3], sizes = [4, 1], strides = [1, 1]} : vector<4x100xf32> to vector<4x1xf32>
    %25 = vector.extract_strided_slice %5 {offsets = [3, 0], sizes = [1, 640], strides = [1, 1]} : vector<4x640xf32> to vector<1x640xf32>
    %26 = vector.broadcast %24 : vector<4x1xf32> to vector<4x640xf32>
    %27 = vector.broadcast %25 : vector<1x640xf32> to vector<4x640xf32>
    %28 = arith.mulf %26, %27 : vector<4x640xf32>
    %29 = arith.addf %23, %28 : vector<4x640xf32>
    %30 = vector.extract_strided_slice %1 {offsets = [0, 1], sizes = [4, 640], strides = [1, 1]} : vector<4x768xf32> to vector<4x640xf32>
    %31 = vector.extract_strided_slice %2 {offsets = [0, 4], sizes = [4, 1], strides = [1, 1]} : vector<4x100xf32> to vector<4x1xf32>
    %32 = vector.extract_strided_slice %30 {offsets = [0, 0], sizes = [1, 640], strides = [1, 1]} : vector<4x640xf32> to vector<1x640xf32>
    %33 = vector.broadcast %31 : vector<4x1xf32> to vector<4x640xf32>
    %34 = vector.broadcast %32 : vector<1x640xf32> to vector<4x640xf32>
    %35 = arith.mulf %33, %34 : vector<4x640xf32>
    %36 = arith.addf %29, %35 : vector<4x640xf32>
    %37 = vector.extract_strided_slice %2 {offsets = [0, 5], sizes = [4, 1], strides = [1, 1]} : vector<4x100xf32> to vector<4x1xf32>
    %38 = vector.extract_strided_slice %30 {offsets = [1, 0], sizes = [1, 640], strides = [1, 1]} : vector<4x640xf32> to vector<1x640xf32>
    %39 = vector.broadcast %37 : vector<4x1xf32> to vector<4x640xf32>
    %40 = vector.broadcast %38 : vector<1x640xf32> to vector<4x640xf32>
    %41 = arith.mulf %39, %40 : vector<4x640xf32>
    %42 = arith.addf %36, %41 : vector<4x640xf32>
    %43 = vector.extract_strided_slice %2 {offsets = [0, 6], sizes = [4, 1], strides = [1, 1]} : vector<4x100xf32> to vector<4x1xf32>
    %44 = vector.extract_strided_slice %30 {offsets = [2, 0], sizes = [1, 640], strides = [1, 1]} : vector<4x640xf32> to vector<1x640xf32>
    %45 = vector.broadcast %43 : vector<4x1xf32> to vector<4x640xf32>
    %46 = vector.broadcast %44 : vector<1x640xf32> to vector<4x640xf32>
    %47 = arith.mulf %45, %46 : vector<4x640xf32>
    %48 = arith.addf %42, %47 : vector<4x640xf32>
    %49 = vector.extract_strided_slice %2 {offsets = [0, 7], sizes = [4, 1], strides = [1, 1]} : vector<4x100xf32> to vector<4x1xf32>
    %50 = vector.extract_strided_slice %30 {offsets = [3, 0], sizes = [1, 640], strides = [1, 1]} : vector<4x640xf32> to vector<1x640xf32>
    %51 = vector.broadcast %49 : vector<4x1xf32> to vector<4x640xf32>
    %52 = vector.broadcast %50 : vector<1x640xf32> to vector<4x640xf32>
    %53 = arith.mulf %51, %52 : vector<4x640xf32>
    %54 = arith.addf %48, %53 : vector<4x640xf32>
    %55 = vector.extract_strided_slice %1 {offsets = [0, 2], sizes = [4, 640], strides = [1, 1]} : vector<4x768xf32> to vector<4x640xf32>
    %56 = vector.extract_strided_slice %2 {offsets = [0, 8], sizes = [4, 1], strides = [1, 1]} : vector<4x100xf32> to vector<4x1xf32>
    %57 = vector.extract_strided_slice %55 {offsets = [0, 0], sizes = [1, 640], strides = [1, 1]} : vector<4x640xf32> to vector<1x640xf32>
    %58 = vector.broadcast %56 : vector<4x1xf32> to vector<4x640xf32>
    %59 = vector.broadcast %57 : vector<1x640xf32> to vector<4x640xf32>
    %60 = arith.mulf %58, %59 : vector<4x640xf32>
    %61 = arith.addf %54, %60 : vector<4x640xf32>
    %62 = vector.extract_strided_slice %2 {offsets = [0, 9], sizes = [4, 1], strides = [1, 1]} : vector<4x100xf32> to vector<4x1xf32>
    %63 = vector.extract_strided_slice %55 {offsets = [1, 0], sizes = [1, 640], strides = [1, 1]} : vector<4x640xf32> to vector<1x640xf32>
    %64 = vector.broadcast %62 : vector<4x1xf32> to vector<4x640xf32>
    %65 = vector.broadcast %63 : vector<1x640xf32> to vector<4x640xf32>
    %66 = arith.mulf %64, %65 : vector<4x640xf32>
    %67 = arith.addf %61, %66 : vector<4x640xf32>
    %68 = vector.extract_strided_slice %2 {offsets = [0, 10], sizes = [4, 1], strides = [1, 1]} : vector<4x100xf32> to vector<4x1xf32>
    %69 = vector.extract_strided_slice %55 {offsets = [2, 0], sizes = [1, 640], strides = [1, 1]} : vector<4x640xf32> to vector<1x640xf32>
    %70 = vector.broadcast %68 : vector<4x1xf32> to vector<4x640xf32>
    %71 = vector.broadcast %69 : vector<1x640xf32> to vector<4x640xf32>
    %72 = arith.mulf %70, %71 : vector<4x640xf32>
    %73 = arith.addf %67, %72 : vector<4x640xf32>
    %74 = vector.extract_strided_slice %2 {offsets = [0, 11], sizes = [4, 1], strides = [1, 1]} : vector<4x100xf32> to vector<4x1xf32>
    %75 = vector.extract_strided_slice %55 {offsets = [3, 0], sizes = [1, 640], strides = [1, 1]} : vector<4x640xf32> to vector<1x640xf32>
    %76 = vector.broadcast %74 : vector<4x1xf32> to vector<4x640xf32>
    %77 = vector.broadcast %75 : vector<1x640xf32> to vector<4x640xf32>
    %78 = arith.mulf %76, %77 : vector<4x640xf32>
    %79 = arith.addf %73, %78 : vector<4x640xf32>
    %80 = vector.extract_strided_slice %1 {offsets = [0, 3], sizes = [4, 640], strides = [1, 1]} : vector<4x768xf32> to vector<4x640xf32>
    %81 = vector.extract_strided_slice %2 {offsets = [0, 12], sizes = [4, 1], strides = [1, 1]} : vector<4x100xf32> to vector<4x1xf32>
    %82 = vector.extract_strided_slice %80 {offsets = [0, 0], sizes = [1, 640], strides = [1, 1]} : vector<4x640xf32> to vector<1x640xf32>
    %83 = vector.broadcast %81 : vector<4x1xf32> to vector<4x640xf32>
    %84 = vector.broadcast %82 : vector<1x640xf32> to vector<4x640xf32>
    %85 = arith.mulf %83, %84 : vector<4x640xf32>
    %86 = arith.addf %79, %85 : vector<4x640xf32>
    %87 = vector.extract_strided_slice %2 {offsets = [0, 13], sizes = [4, 1], strides = [1, 1]} : vector<4x100xf32> to vector<4x1xf32>
    %88 = vector.extract_strided_slice %80 {offsets = [1, 0], sizes = [1, 640], strides = [1, 1]} : vector<4x640xf32> to vector<1x640xf32>
    %89 = vector.broadcast %87 : vector<4x1xf32> to vector<4x640xf32>
    %90 = vector.broadcast %88 : vector<1x640xf32> to vector<4x640xf32>
    %91 = arith.mulf %89, %90 : vector<4x640xf32>
    %92 = arith.addf %86, %91 : vector<4x640xf32>
    %93 = vector.extract_strided_slice %2 {offsets = [0, 14], sizes = [4, 1], strides = [1, 1]} : vector<4x100xf32> to vector<4x1xf32>
    %94 = vector.extract_strided_slice %80 {offsets = [2, 0], sizes = [1, 640], strides = [1, 1]} : vector<4x640xf32> to vector<1x640xf32>
    %95 = vector.broadcast %93 : vector<4x1xf32> to vector<4x640xf32>
    %96 = vector.broadcast %94 : vector<1x640xf32> to vector<4x640xf32>
    %97 = arith.mulf %95, %96 : vector<4x640xf32>
    %98 = arith.addf %92, %97 : vector<4x640xf32>
    %99 = vector.extract_strided_slice %2 {offsets = [0, 15], sizes = [4, 1], strides = [1, 1]} : vector<4x100xf32> to vector<4x1xf32>
    %100 = vector.extract_strided_slice %80 {offsets = [3, 0], sizes = [1, 640], strides = [1, 1]} : vector<4x640xf32> to vector<1x640xf32>
    %101 = vector.broadcast %99 : vector<4x1xf32> to vector<4x640xf32>
    %102 = vector.broadcast %100 : vector<1x640xf32> to vector<4x640xf32>
    %103 = arith.mulf %101, %102 : vector<4x640xf32>
    %104 = arith.addf %98, %103 : vector<4x640xf32>
    %105 = vector.extract_strided_slice %1 {offsets = [0, 4], sizes = [4, 640], strides = [1, 1]} : vector<4x768xf32> to vector<4x640xf32>
    %106 = vector.extract_strided_slice %2 {offsets = [0, 16], sizes = [4, 1], strides = [1, 1]} : vector<4x100xf32> to vector<4x1xf32>
    %107 = vector.extract_strided_slice %105 {offsets = [0, 0], sizes = [1, 640], strides = [1, 1]} : vector<4x640xf32> to vector<1x640xf32>
    %108 = vector.broadcast %106 : vector<4x1xf32> to vector<4x640xf32>
    %109 = vector.broadcast %107 : vector<1x640xf32> to vector<4x640xf32>
    %110 = arith.mulf %108, %109 : vector<4x640xf32>
    %111 = arith.addf %104, %110 : vector<4x640xf32>
    %112 = vector.extract_strided_slice %2 {offsets = [0, 17], sizes = [4, 1], strides = [1, 1]} : vector<4x100xf32> to vector<4x1xf32>
    %113 = vector.extract_strided_slice %105 {offsets = [1, 0], sizes = [1, 640], strides = [1, 1]} : vector<4x640xf32> to vector<1x640xf32>
    %114 = vector.broadcast %112 : vector<4x1xf32> to vector<4x640xf32>
    %115 = vector.broadcast %113 : vector<1x640xf32> to vector<4x640xf32>
    %116 = arith.mulf %114, %115 : vector<4x640xf32>
    %117 = arith.addf %111, %116 : vector<4x640xf32>
    %118 = vector.extract_strided_slice %2 {offsets = [0, 18], sizes = [4, 1], strides = [1, 1]} : vector<4x100xf32> to vector<4x1xf32>
    %119 = vector.extract_strided_slice %105 {offsets = [2, 0], sizes = [1, 640], strides = [1, 1]} : vector<4x640xf32> to vector<1x640xf32>
    %120 = vector.broadcast %118 : vector<4x1xf32> to vector<4x640xf32>
    %121 = vector.broadcast %119 : vector<1x640xf32> to vector<4x640xf32>
    %122 = arith.mulf %120, %121 : vector<4x640xf32>
    %123 = arith.addf %117, %122 : vector<4x640xf32>
    %124 = vector.extract_strided_slice %2 {offsets = [0, 19], sizes = [4, 1], strides = [1, 1]} : vector<4x100xf32> to vector<4x1xf32>
    %125 = vector.extract_strided_slice %105 {offsets = [3, 0], sizes = [1, 640], strides = [1, 1]} : vector<4x640xf32> to vector<1x640xf32>
    %126 = vector.broadcast %124 : vector<4x1xf32> to vector<4x640xf32>
    %127 = vector.broadcast %125 : vector<1x640xf32> to vector<4x640xf32>
    %128 = arith.mulf %126, %127 : vector<4x640xf32>
    %129 = arith.addf %123, %128 : vector<4x640xf32>
    %130 = vector.extract_strided_slice %1 {offsets = [0, 26], sizes = [4, 640], strides = [1, 1]} : vector<4x768xf32> to vector<4x640xf32>
    %131 = vector.extract_strided_slice %2 {offsets = [0, 20], sizes = [4, 1], strides = [1, 1]} : vector<4x100xf32> to vector<4x1xf32>
    %132 = vector.extract_strided_slice %130 {offsets = [0, 0], sizes = [1, 640], strides = [1, 1]} : vector<4x640xf32> to vector<1x640xf32>
    %133 = vector.broadcast %131 : vector<4x1xf32> to vector<4x640xf32>
    %134 = vector.broadcast %132 : vector<1x640xf32> to vector<4x640xf32>
    %135 = arith.mulf %133, %134 : vector<4x640xf32>
    %136 = arith.addf %129, %135 : vector<4x640xf32>
    %137 = vector.extract_strided_slice %2 {offsets = [0, 21], sizes = [4, 1], strides = [1, 1]} : vector<4x100xf32> to vector<4x1xf32>
    %138 = vector.extract_strided_slice %130 {offsets = [1, 0], sizes = [1, 640], strides = [1, 1]} : vector<4x640xf32> to vector<1x640xf32>
    %139 = vector.broadcast %137 : vector<4x1xf32> to vector<4x640xf32>
    %140 = vector.broadcast %138 : vector<1x640xf32> to vector<4x640xf32>
    %141 = arith.mulf %139, %140 : vector<4x640xf32>
    %142 = arith.addf %136, %141 : vector<4x640xf32>
    %143 = vector.extract_strided_slice %2 {offsets = [0, 22], sizes = [4, 1], strides = [1, 1]} : vector<4x100xf32> to vector<4x1xf32>
    %144 = vector.extract_strided_slice %130 {offsets = [2, 0], sizes = [1, 640], strides = [1, 1]} : vector<4x640xf32> to vector<1x640xf32>
    %145 = vector.broadcast %143 : vector<4x1xf32> to vector<4x640xf32>
    %146 = vector.broadcast %144 : vector<1x640xf32> to vector<4x640xf32>
    %147 = arith.mulf %145, %146 : vector<4x640xf32>
    %148 = arith.addf %142, %147 : vector<4x640xf32>
    %149 = vector.extract_strided_slice %2 {offsets = [0, 23], sizes = [4, 1], strides = [1, 1]} : vector<4x100xf32> to vector<4x1xf32>
    %150 = vector.extract_strided_slice %130 {offsets = [3, 0], sizes = [1, 640], strides = [1, 1]} : vector<4x640xf32> to vector<1x640xf32>
    %151 = vector.broadcast %149 : vector<4x1xf32> to vector<4x640xf32>
    %152 = vector.broadcast %150 : vector<1x640xf32> to vector<4x640xf32>
    %153 = arith.mulf %151, %152 : vector<4x640xf32>
    %154 = arith.addf %148, %153 : vector<4x640xf32>
    %155 = vector.extract_strided_slice %1 {offsets = [0, 27], sizes = [4, 640], strides = [1, 1]} : vector<4x768xf32> to vector<4x640xf32>
    %156 = vector.extract_strided_slice %2 {offsets = [0, 24], sizes = [4, 1], strides = [1, 1]} : vector<4x100xf32> to vector<4x1xf32>
    %157 = vector.extract_strided_slice %155 {offsets = [0, 0], sizes = [1, 640], strides = [1, 1]} : vector<4x640xf32> to vector<1x640xf32>
    %158 = vector.broadcast %156 : vector<4x1xf32> to vector<4x640xf32>
    %159 = vector.broadcast %157 : vector<1x640xf32> to vector<4x640xf32>
    %160 = arith.mulf %158, %159 : vector<4x640xf32>
    %161 = arith.addf %154, %160 : vector<4x640xf32>
    %162 = vector.extract_strided_slice %2 {offsets = [0, 25], sizes = [4, 1], strides = [1, 1]} : vector<4x100xf32> to vector<4x1xf32>
    %163 = vector.extract_strided_slice %155 {offsets = [1, 0], sizes = [1, 640], strides = [1, 1]} : vector<4x640xf32> to vector<1x640xf32>
    %164 = vector.broadcast %162 : vector<4x1xf32> to vector<4x640xf32>
    %165 = vector.broadcast %163 : vector<1x640xf32> to vector<4x640xf32>
    %166 = arith.mulf %164, %165 : vector<4x640xf32>
    %167 = arith.addf %161, %166 : vector<4x640xf32>
    %168 = vector.extract_strided_slice %2 {offsets = [0, 26], sizes = [4, 1], strides = [1, 1]} : vector<4x100xf32> to vector<4x1xf32>
    %169 = vector.extract_strided_slice %155 {offsets = [2, 0], sizes = [1, 640], strides = [1, 1]} : vector<4x640xf32> to vector<1x640xf32>
    %170 = vector.broadcast %168 : vector<4x1xf32> to vector<4x640xf32>
    %171 = vector.broadcast %169 : vector<1x640xf32> to vector<4x640xf32>
    %172 = arith.mulf %170, %171 : vector<4x640xf32>
    %173 = arith.addf %167, %172 : vector<4x640xf32>
    %174 = vector.extract_strided_slice %2 {offsets = [0, 27], sizes = [4, 1], strides = [1, 1]} : vector<4x100xf32> to vector<4x1xf32>
    %175 = vector.extract_strided_slice %155 {offsets = [3, 0], sizes = [1, 640], strides = [1, 1]} : vector<4x640xf32> to vector<1x640xf32>
    %176 = vector.broadcast %174 : vector<4x1xf32> to vector<4x640xf32>
    %177 = vector.broadcast %175 : vector<1x640xf32> to vector<4x640xf32>
    %178 = arith.mulf %176, %177 : vector<4x640xf32>
    %179 = arith.addf %173, %178 : vector<4x640xf32>
    %180 = vector.extract_strided_slice %1 {offsets = [0, 28], sizes = [4, 640], strides = [1, 1]} : vector<4x768xf32> to vector<4x640xf32>
    %181 = vector.extract_strided_slice %2 {offsets = [0, 28], sizes = [4, 1], strides = [1, 1]} : vector<4x100xf32> to vector<4x1xf32>
    %182 = vector.extract_strided_slice %180 {offsets = [0, 0], sizes = [1, 640], strides = [1, 1]} : vector<4x640xf32> to vector<1x640xf32>
    %183 = vector.broadcast %181 : vector<4x1xf32> to vector<4x640xf32>
    %184 = vector.broadcast %182 : vector<1x640xf32> to vector<4x640xf32>
    %185 = arith.mulf %183, %184 : vector<4x640xf32>
    %186 = arith.addf %179, %185 : vector<4x640xf32>
    %187 = vector.extract_strided_slice %2 {offsets = [0, 29], sizes = [4, 1], strides = [1, 1]} : vector<4x100xf32> to vector<4x1xf32>
    %188 = vector.extract_strided_slice %180 {offsets = [1, 0], sizes = [1, 640], strides = [1, 1]} : vector<4x640xf32> to vector<1x640xf32>
    %189 = vector.broadcast %187 : vector<4x1xf32> to vector<4x640xf32>
    %190 = vector.broadcast %188 : vector<1x640xf32> to vector<4x640xf32>
    %191 = arith.mulf %189, %190 : vector<4x640xf32>
    %192 = arith.addf %186, %191 : vector<4x640xf32>
    %193 = vector.extract_strided_slice %2 {offsets = [0, 30], sizes = [4, 1], strides = [1, 1]} : vector<4x100xf32> to vector<4x1xf32>
    %194 = vector.extract_strided_slice %180 {offsets = [2, 0], sizes = [1, 640], strides = [1, 1]} : vector<4x640xf32> to vector<1x640xf32>
    %195 = vector.broadcast %193 : vector<4x1xf32> to vector<4x640xf32>
    %196 = vector.broadcast %194 : vector<1x640xf32> to vector<4x640xf32>
    %197 = arith.mulf %195, %196 : vector<4x640xf32>
    %198 = arith.addf %192, %197 : vector<4x640xf32>
    %199 = vector.extract_strided_slice %2 {offsets = [0, 31], sizes = [4, 1], strides = [1, 1]} : vector<4x100xf32> to vector<4x1xf32>
    %200 = vector.extract_strided_slice %180 {offsets = [3, 0], sizes = [1, 640], strides = [1, 1]} : vector<4x640xf32> to vector<1x640xf32>
    %201 = vector.broadcast %199 : vector<4x1xf32> to vector<4x640xf32>
    %202 = vector.broadcast %200 : vector<1x640xf32> to vector<4x640xf32>
    %203 = arith.mulf %201, %202 : vector<4x640xf32>
    %204 = arith.addf %198, %203 : vector<4x640xf32>
    %205 = vector.extract_strided_slice %1 {offsets = [0, 29], sizes = [4, 640], strides = [1, 1]} : vector<4x768xf32> to vector<4x640xf32>
    %206 = vector.extract_strided_slice %2 {offsets = [0, 32], sizes = [4, 1], strides = [1, 1]} : vector<4x100xf32> to vector<4x1xf32>
    %207 = vector.extract_strided_slice %205 {offsets = [0, 0], sizes = [1, 640], strides = [1, 1]} : vector<4x640xf32> to vector<1x640xf32>
    %208 = vector.broadcast %206 : vector<4x1xf32> to vector<4x640xf32>
    %209 = vector.broadcast %207 : vector<1x640xf32> to vector<4x640xf32>
    %210 = arith.mulf %208, %209 : vector<4x640xf32>
    %211 = arith.addf %204, %210 : vector<4x640xf32>
    %212 = vector.extract_strided_slice %2 {offsets = [0, 33], sizes = [4, 1], strides = [1, 1]} : vector<4x100xf32> to vector<4x1xf32>
    %213 = vector.extract_strided_slice %205 {offsets = [1, 0], sizes = [1, 640], strides = [1, 1]} : vector<4x640xf32> to vector<1x640xf32>
    %214 = vector.broadcast %212 : vector<4x1xf32> to vector<4x640xf32>
    %215 = vector.broadcast %213 : vector<1x640xf32> to vector<4x640xf32>
    %216 = arith.mulf %214, %215 : vector<4x640xf32>
    %217 = arith.addf %211, %216 : vector<4x640xf32>
    %218 = vector.extract_strided_slice %2 {offsets = [0, 34], sizes = [4, 1], strides = [1, 1]} : vector<4x100xf32> to vector<4x1xf32>
    %219 = vector.extract_strided_slice %205 {offsets = [2, 0], sizes = [1, 640], strides = [1, 1]} : vector<4x640xf32> to vector<1x640xf32>
    %220 = vector.broadcast %218 : vector<4x1xf32> to vector<4x640xf32>
    %221 = vector.broadcast %219 : vector<1x640xf32> to vector<4x640xf32>
    %222 = arith.mulf %220, %221 : vector<4x640xf32>
    %223 = arith.addf %217, %222 : vector<4x640xf32>
    %224 = vector.extract_strided_slice %2 {offsets = [0, 35], sizes = [4, 1], strides = [1, 1]} : vector<4x100xf32> to vector<4x1xf32>
    %225 = vector.extract_strided_slice %205 {offsets = [3, 0], sizes = [1, 640], strides = [1, 1]} : vector<4x640xf32> to vector<1x640xf32>
    %226 = vector.broadcast %224 : vector<4x1xf32> to vector<4x640xf32>
    %227 = vector.broadcast %225 : vector<1x640xf32> to vector<4x640xf32>
    %228 = arith.mulf %226, %227 : vector<4x640xf32>
    %229 = arith.addf %223, %228 : vector<4x640xf32>
    %230 = vector.extract_strided_slice %1 {offsets = [0, 30], sizes = [4, 640], strides = [1, 1]} : vector<4x768xf32> to vector<4x640xf32>
    %231 = vector.extract_strided_slice %2 {offsets = [0, 36], sizes = [4, 1], strides = [1, 1]} : vector<4x100xf32> to vector<4x1xf32>
    %232 = vector.extract_strided_slice %230 {offsets = [0, 0], sizes = [1, 640], strides = [1, 1]} : vector<4x640xf32> to vector<1x640xf32>
    %233 = vector.broadcast %231 : vector<4x1xf32> to vector<4x640xf32>
    %234 = vector.broadcast %232 : vector<1x640xf32> to vector<4x640xf32>
    %235 = arith.mulf %233, %234 : vector<4x640xf32>
    %236 = arith.addf %229, %235 : vector<4x640xf32>
    %237 = vector.extract_strided_slice %2 {offsets = [0, 37], sizes = [4, 1], strides = [1, 1]} : vector<4x100xf32> to vector<4x1xf32>
    %238 = vector.extract_strided_slice %230 {offsets = [1, 0], sizes = [1, 640], strides = [1, 1]} : vector<4x640xf32> to vector<1x640xf32>
    %239 = vector.broadcast %237 : vector<4x1xf32> to vector<4x640xf32>
    %240 = vector.broadcast %238 : vector<1x640xf32> to vector<4x640xf32>
    %241 = arith.mulf %239, %240 : vector<4x640xf32>
    %242 = arith.addf %236, %241 : vector<4x640xf32>
    %243 = vector.extract_strided_slice %2 {offsets = [0, 38], sizes = [4, 1], strides = [1, 1]} : vector<4x100xf32> to vector<4x1xf32>
    %244 = vector.extract_strided_slice %230 {offsets = [2, 0], sizes = [1, 640], strides = [1, 1]} : vector<4x640xf32> to vector<1x640xf32>
    %245 = vector.broadcast %243 : vector<4x1xf32> to vector<4x640xf32>
    %246 = vector.broadcast %244 : vector<1x640xf32> to vector<4x640xf32>
    %247 = arith.mulf %245, %246 : vector<4x640xf32>
    %248 = arith.addf %242, %247 : vector<4x640xf32>
    %249 = vector.extract_strided_slice %2 {offsets = [0, 39], sizes = [4, 1], strides = [1, 1]} : vector<4x100xf32> to vector<4x1xf32>
    %250 = vector.extract_strided_slice %230 {offsets = [3, 0], sizes = [1, 640], strides = [1, 1]} : vector<4x640xf32> to vector<1x640xf32>
    %251 = vector.broadcast %249 : vector<4x1xf32> to vector<4x640xf32>
    %252 = vector.broadcast %250 : vector<1x640xf32> to vector<4x640xf32>
    %253 = arith.mulf %251, %252 : vector<4x640xf32>
    %254 = arith.addf %248, %253 : vector<4x640xf32>
    %255 = vector.extract_strided_slice %1 {offsets = [0, 52], sizes = [4, 640], strides = [1, 1]} : vector<4x768xf32> to vector<4x640xf32>
    %256 = vector.extract_strided_slice %2 {offsets = [0, 40], sizes = [4, 1], strides = [1, 1]} : vector<4x100xf32> to vector<4x1xf32>
    %257 = vector.extract_strided_slice %255 {offsets = [0, 0], sizes = [1, 640], strides = [1, 1]} : vector<4x640xf32> to vector<1x640xf32>
    %258 = vector.broadcast %256 : vector<4x1xf32> to vector<4x640xf32>
    %259 = vector.broadcast %257 : vector<1x640xf32> to vector<4x640xf32>
    %260 = arith.mulf %258, %259 : vector<4x640xf32>
    %261 = arith.addf %254, %260 : vector<4x640xf32>
    %262 = vector.extract_strided_slice %2 {offsets = [0, 41], sizes = [4, 1], strides = [1, 1]} : vector<4x100xf32> to vector<4x1xf32>
    %263 = vector.extract_strided_slice %255 {offsets = [1, 0], sizes = [1, 640], strides = [1, 1]} : vector<4x640xf32> to vector<1x640xf32>
    %264 = vector.broadcast %262 : vector<4x1xf32> to vector<4x640xf32>
    %265 = vector.broadcast %263 : vector<1x640xf32> to vector<4x640xf32>
    %266 = arith.mulf %264, %265 : vector<4x640xf32>
    %267 = arith.addf %261, %266 : vector<4x640xf32>
    %268 = vector.extract_strided_slice %2 {offsets = [0, 42], sizes = [4, 1], strides = [1, 1]} : vector<4x100xf32> to vector<4x1xf32>
    %269 = vector.extract_strided_slice %255 {offsets = [2, 0], sizes = [1, 640], strides = [1, 1]} : vector<4x640xf32> to vector<1x640xf32>
    %270 = vector.broadcast %268 : vector<4x1xf32> to vector<4x640xf32>
    %271 = vector.broadcast %269 : vector<1x640xf32> to vector<4x640xf32>
    %272 = arith.mulf %270, %271 : vector<4x640xf32>
    %273 = arith.addf %267, %272 : vector<4x640xf32>
    %274 = vector.extract_strided_slice %2 {offsets = [0, 43], sizes = [4, 1], strides = [1, 1]} : vector<4x100xf32> to vector<4x1xf32>
    %275 = vector.extract_strided_slice %255 {offsets = [3, 0], sizes = [1, 640], strides = [1, 1]} : vector<4x640xf32> to vector<1x640xf32>
    %276 = vector.broadcast %274 : vector<4x1xf32> to vector<4x640xf32>
    %277 = vector.broadcast %275 : vector<1x640xf32> to vector<4x640xf32>
    %278 = arith.mulf %276, %277 : vector<4x640xf32>
    %279 = arith.addf %273, %278 : vector<4x640xf32>
    %280 = vector.extract_strided_slice %1 {offsets = [0, 53], sizes = [4, 640], strides = [1, 1]} : vector<4x768xf32> to vector<4x640xf32>
    %281 = vector.extract_strided_slice %2 {offsets = [0, 44], sizes = [4, 1], strides = [1, 1]} : vector<4x100xf32> to vector<4x1xf32>
    %282 = vector.extract_strided_slice %280 {offsets = [0, 0], sizes = [1, 640], strides = [1, 1]} : vector<4x640xf32> to vector<1x640xf32>
    %283 = vector.broadcast %281 : vector<4x1xf32> to vector<4x640xf32>
    %284 = vector.broadcast %282 : vector<1x640xf32> to vector<4x640xf32>
    %285 = arith.mulf %283, %284 : vector<4x640xf32>
    %286 = arith.addf %279, %285 : vector<4x640xf32>
    %287 = vector.extract_strided_slice %2 {offsets = [0, 45], sizes = [4, 1], strides = [1, 1]} : vector<4x100xf32> to vector<4x1xf32>
    %288 = vector.extract_strided_slice %280 {offsets = [1, 0], sizes = [1, 640], strides = [1, 1]} : vector<4x640xf32> to vector<1x640xf32>
    %289 = vector.broadcast %287 : vector<4x1xf32> to vector<4x640xf32>
    %290 = vector.broadcast %288 : vector<1x640xf32> to vector<4x640xf32>
    %291 = arith.mulf %289, %290 : vector<4x640xf32>
    %292 = arith.addf %286, %291 : vector<4x640xf32>
    %293 = vector.extract_strided_slice %2 {offsets = [0, 46], sizes = [4, 1], strides = [1, 1]} : vector<4x100xf32> to vector<4x1xf32>
    %294 = vector.extract_strided_slice %280 {offsets = [2, 0], sizes = [1, 640], strides = [1, 1]} : vector<4x640xf32> to vector<1x640xf32>
    %295 = vector.broadcast %293 : vector<4x1xf32> to vector<4x640xf32>
    %296 = vector.broadcast %294 : vector<1x640xf32> to vector<4x640xf32>
    %297 = arith.mulf %295, %296 : vector<4x640xf32>
    %298 = arith.addf %292, %297 : vector<4x640xf32>
    %299 = vector.extract_strided_slice %2 {offsets = [0, 47], sizes = [4, 1], strides = [1, 1]} : vector<4x100xf32> to vector<4x1xf32>
    %300 = vector.extract_strided_slice %280 {offsets = [3, 0], sizes = [1, 640], strides = [1, 1]} : vector<4x640xf32> to vector<1x640xf32>
    %301 = vector.broadcast %299 : vector<4x1xf32> to vector<4x640xf32>
    %302 = vector.broadcast %300 : vector<1x640xf32> to vector<4x640xf32>
    %303 = arith.mulf %301, %302 : vector<4x640xf32>
    %304 = arith.addf %298, %303 : vector<4x640xf32>
    %305 = vector.extract_strided_slice %1 {offsets = [0, 54], sizes = [4, 640], strides = [1, 1]} : vector<4x768xf32> to vector<4x640xf32>
    %306 = vector.extract_strided_slice %2 {offsets = [0, 48], sizes = [4, 1], strides = [1, 1]} : vector<4x100xf32> to vector<4x1xf32>
    %307 = vector.extract_strided_slice %305 {offsets = [0, 0], sizes = [1, 640], strides = [1, 1]} : vector<4x640xf32> to vector<1x640xf32>
    %308 = vector.broadcast %306 : vector<4x1xf32> to vector<4x640xf32>
    %309 = vector.broadcast %307 : vector<1x640xf32> to vector<4x640xf32>
    %310 = arith.mulf %308, %309 : vector<4x640xf32>
    %311 = arith.addf %304, %310 : vector<4x640xf32>
    %312 = vector.extract_strided_slice %2 {offsets = [0, 49], sizes = [4, 1], strides = [1, 1]} : vector<4x100xf32> to vector<4x1xf32>
    %313 = vector.extract_strided_slice %305 {offsets = [1, 0], sizes = [1, 640], strides = [1, 1]} : vector<4x640xf32> to vector<1x640xf32>
    %314 = vector.broadcast %312 : vector<4x1xf32> to vector<4x640xf32>
    %315 = vector.broadcast %313 : vector<1x640xf32> to vector<4x640xf32>
    %316 = arith.mulf %314, %315 : vector<4x640xf32>
    %317 = arith.addf %311, %316 : vector<4x640xf32>
    %318 = vector.extract_strided_slice %2 {offsets = [0, 50], sizes = [4, 1], strides = [1, 1]} : vector<4x100xf32> to vector<4x1xf32>
    %319 = vector.extract_strided_slice %305 {offsets = [2, 0], sizes = [1, 640], strides = [1, 1]} : vector<4x640xf32> to vector<1x640xf32>
    %320 = vector.broadcast %318 : vector<4x1xf32> to vector<4x640xf32>
    %321 = vector.broadcast %319 : vector<1x640xf32> to vector<4x640xf32>
    %322 = arith.mulf %320, %321 : vector<4x640xf32>
    %323 = arith.addf %317, %322 : vector<4x640xf32>
    %324 = vector.extract_strided_slice %2 {offsets = [0, 51], sizes = [4, 1], strides = [1, 1]} : vector<4x100xf32> to vector<4x1xf32>
    %325 = vector.extract_strided_slice %305 {offsets = [3, 0], sizes = [1, 640], strides = [1, 1]} : vector<4x640xf32> to vector<1x640xf32>
    %326 = vector.broadcast %324 : vector<4x1xf32> to vector<4x640xf32>
    %327 = vector.broadcast %325 : vector<1x640xf32> to vector<4x640xf32>
    %328 = arith.mulf %326, %327 : vector<4x640xf32>
    %329 = arith.addf %323, %328 : vector<4x640xf32>
    %330 = vector.extract_strided_slice %1 {offsets = [0, 55], sizes = [4, 640], strides = [1, 1]} : vector<4x768xf32> to vector<4x640xf32>
    %331 = vector.extract_strided_slice %2 {offsets = [0, 52], sizes = [4, 1], strides = [1, 1]} : vector<4x100xf32> to vector<4x1xf32>
    %332 = vector.extract_strided_slice %330 {offsets = [0, 0], sizes = [1, 640], strides = [1, 1]} : vector<4x640xf32> to vector<1x640xf32>
    %333 = vector.broadcast %331 : vector<4x1xf32> to vector<4x640xf32>
    %334 = vector.broadcast %332 : vector<1x640xf32> to vector<4x640xf32>
    %335 = arith.mulf %333, %334 : vector<4x640xf32>
    %336 = arith.addf %329, %335 : vector<4x640xf32>
    %337 = vector.extract_strided_slice %2 {offsets = [0, 53], sizes = [4, 1], strides = [1, 1]} : vector<4x100xf32> to vector<4x1xf32>
    %338 = vector.extract_strided_slice %330 {offsets = [1, 0], sizes = [1, 640], strides = [1, 1]} : vector<4x640xf32> to vector<1x640xf32>
    %339 = vector.broadcast %337 : vector<4x1xf32> to vector<4x640xf32>
    %340 = vector.broadcast %338 : vector<1x640xf32> to vector<4x640xf32>
    %341 = arith.mulf %339, %340 : vector<4x640xf32>
    %342 = arith.addf %336, %341 : vector<4x640xf32>
    %343 = vector.extract_strided_slice %2 {offsets = [0, 54], sizes = [4, 1], strides = [1, 1]} : vector<4x100xf32> to vector<4x1xf32>
    %344 = vector.extract_strided_slice %330 {offsets = [2, 0], sizes = [1, 640], strides = [1, 1]} : vector<4x640xf32> to vector<1x640xf32>
    %345 = vector.broadcast %343 : vector<4x1xf32> to vector<4x640xf32>
    %346 = vector.broadcast %344 : vector<1x640xf32> to vector<4x640xf32>
    %347 = arith.mulf %345, %346 : vector<4x640xf32>
    %348 = arith.addf %342, %347 : vector<4x640xf32>
    %349 = vector.extract_strided_slice %2 {offsets = [0, 55], sizes = [4, 1], strides = [1, 1]} : vector<4x100xf32> to vector<4x1xf32>
    %350 = vector.extract_strided_slice %330 {offsets = [3, 0], sizes = [1, 640], strides = [1, 1]} : vector<4x640xf32> to vector<1x640xf32>
    %351 = vector.broadcast %349 : vector<4x1xf32> to vector<4x640xf32>
    %352 = vector.broadcast %350 : vector<1x640xf32> to vector<4x640xf32>
    %353 = arith.mulf %351, %352 : vector<4x640xf32>
    %354 = arith.addf %348, %353 : vector<4x640xf32>
    %355 = vector.extract_strided_slice %1 {offsets = [0, 56], sizes = [4, 640], strides = [1, 1]} : vector<4x768xf32> to vector<4x640xf32>
    %356 = vector.extract_strided_slice %2 {offsets = [0, 56], sizes = [4, 1], strides = [1, 1]} : vector<4x100xf32> to vector<4x1xf32>
    %357 = vector.extract_strided_slice %355 {offsets = [0, 0], sizes = [1, 640], strides = [1, 1]} : vector<4x640xf32> to vector<1x640xf32>
    %358 = vector.broadcast %356 : vector<4x1xf32> to vector<4x640xf32>
    %359 = vector.broadcast %357 : vector<1x640xf32> to vector<4x640xf32>
    %360 = arith.mulf %358, %359 : vector<4x640xf32>
    %361 = arith.addf %354, %360 : vector<4x640xf32>
    %362 = vector.extract_strided_slice %2 {offsets = [0, 57], sizes = [4, 1], strides = [1, 1]} : vector<4x100xf32> to vector<4x1xf32>
    %363 = vector.extract_strided_slice %355 {offsets = [1, 0], sizes = [1, 640], strides = [1, 1]} : vector<4x640xf32> to vector<1x640xf32>
    %364 = vector.broadcast %362 : vector<4x1xf32> to vector<4x640xf32>
    %365 = vector.broadcast %363 : vector<1x640xf32> to vector<4x640xf32>
    %366 = arith.mulf %364, %365 : vector<4x640xf32>
    %367 = arith.addf %361, %366 : vector<4x640xf32>
    %368 = vector.extract_strided_slice %2 {offsets = [0, 58], sizes = [4, 1], strides = [1, 1]} : vector<4x100xf32> to vector<4x1xf32>
    %369 = vector.extract_strided_slice %355 {offsets = [2, 0], sizes = [1, 640], strides = [1, 1]} : vector<4x640xf32> to vector<1x640xf32>
    %370 = vector.broadcast %368 : vector<4x1xf32> to vector<4x640xf32>
    %371 = vector.broadcast %369 : vector<1x640xf32> to vector<4x640xf32>
    %372 = arith.mulf %370, %371 : vector<4x640xf32>
    %373 = arith.addf %367, %372 : vector<4x640xf32>
    %374 = vector.extract_strided_slice %2 {offsets = [0, 59], sizes = [4, 1], strides = [1, 1]} : vector<4x100xf32> to vector<4x1xf32>
    %375 = vector.extract_strided_slice %355 {offsets = [3, 0], sizes = [1, 640], strides = [1, 1]} : vector<4x640xf32> to vector<1x640xf32>
    %376 = vector.broadcast %374 : vector<4x1xf32> to vector<4x640xf32>
    %377 = vector.broadcast %375 : vector<1x640xf32> to vector<4x640xf32>
    %378 = arith.mulf %376, %377 : vector<4x640xf32>
    %379 = arith.addf %373, %378 : vector<4x640xf32>
    %380 = vector.extract_strided_slice %1 {offsets = [0, 78], sizes = [4, 640], strides = [1, 1]} : vector<4x768xf32> to vector<4x640xf32>
    %381 = vector.extract_strided_slice %2 {offsets = [0, 60], sizes = [4, 1], strides = [1, 1]} : vector<4x100xf32> to vector<4x1xf32>
    %382 = vector.extract_strided_slice %380 {offsets = [0, 0], sizes = [1, 640], strides = [1, 1]} : vector<4x640xf32> to vector<1x640xf32>
    %383 = vector.broadcast %381 : vector<4x1xf32> to vector<4x640xf32>
    %384 = vector.broadcast %382 : vector<1x640xf32> to vector<4x640xf32>
    %385 = arith.mulf %383, %384 : vector<4x640xf32>
    %386 = arith.addf %379, %385 : vector<4x640xf32>
    %387 = vector.extract_strided_slice %2 {offsets = [0, 61], sizes = [4, 1], strides = [1, 1]} : vector<4x100xf32> to vector<4x1xf32>
    %388 = vector.extract_strided_slice %380 {offsets = [1, 0], sizes = [1, 640], strides = [1, 1]} : vector<4x640xf32> to vector<1x640xf32>
    %389 = vector.broadcast %387 : vector<4x1xf32> to vector<4x640xf32>
    %390 = vector.broadcast %388 : vector<1x640xf32> to vector<4x640xf32>
    %391 = arith.mulf %389, %390 : vector<4x640xf32>
    %392 = arith.addf %386, %391 : vector<4x640xf32>
    %393 = vector.extract_strided_slice %2 {offsets = [0, 62], sizes = [4, 1], strides = [1, 1]} : vector<4x100xf32> to vector<4x1xf32>
    %394 = vector.extract_strided_slice %380 {offsets = [2, 0], sizes = [1, 640], strides = [1, 1]} : vector<4x640xf32> to vector<1x640xf32>
    %395 = vector.broadcast %393 : vector<4x1xf32> to vector<4x640xf32>
    %396 = vector.broadcast %394 : vector<1x640xf32> to vector<4x640xf32>
    %397 = arith.mulf %395, %396 : vector<4x640xf32>
    %398 = arith.addf %392, %397 : vector<4x640xf32>
    %399 = vector.extract_strided_slice %2 {offsets = [0, 63], sizes = [4, 1], strides = [1, 1]} : vector<4x100xf32> to vector<4x1xf32>
    %400 = vector.extract_strided_slice %380 {offsets = [3, 0], sizes = [1, 640], strides = [1, 1]} : vector<4x640xf32> to vector<1x640xf32>
    %401 = vector.broadcast %399 : vector<4x1xf32> to vector<4x640xf32>
    %402 = vector.broadcast %400 : vector<1x640xf32> to vector<4x640xf32>
    %403 = arith.mulf %401, %402 : vector<4x640xf32>
    %404 = arith.addf %398, %403 : vector<4x640xf32>
    %405 = vector.extract_strided_slice %1 {offsets = [0, 79], sizes = [4, 640], strides = [1, 1]} : vector<4x768xf32> to vector<4x640xf32>
    %406 = vector.extract_strided_slice %2 {offsets = [0, 64], sizes = [4, 1], strides = [1, 1]} : vector<4x100xf32> to vector<4x1xf32>
    %407 = vector.extract_strided_slice %405 {offsets = [0, 0], sizes = [1, 640], strides = [1, 1]} : vector<4x640xf32> to vector<1x640xf32>
    %408 = vector.broadcast %406 : vector<4x1xf32> to vector<4x640xf32>
    %409 = vector.broadcast %407 : vector<1x640xf32> to vector<4x640xf32>
    %410 = arith.mulf %408, %409 : vector<4x640xf32>
    %411 = arith.addf %404, %410 : vector<4x640xf32>
    %412 = vector.extract_strided_slice %2 {offsets = [0, 65], sizes = [4, 1], strides = [1, 1]} : vector<4x100xf32> to vector<4x1xf32>
    %413 = vector.extract_strided_slice %405 {offsets = [1, 0], sizes = [1, 640], strides = [1, 1]} : vector<4x640xf32> to vector<1x640xf32>
    %414 = vector.broadcast %412 : vector<4x1xf32> to vector<4x640xf32>
    %415 = vector.broadcast %413 : vector<1x640xf32> to vector<4x640xf32>
    %416 = arith.mulf %414, %415 : vector<4x640xf32>
    %417 = arith.addf %411, %416 : vector<4x640xf32>
    %418 = vector.extract_strided_slice %2 {offsets = [0, 66], sizes = [4, 1], strides = [1, 1]} : vector<4x100xf32> to vector<4x1xf32>
    %419 = vector.extract_strided_slice %405 {offsets = [2, 0], sizes = [1, 640], strides = [1, 1]} : vector<4x640xf32> to vector<1x640xf32>
    %420 = vector.broadcast %418 : vector<4x1xf32> to vector<4x640xf32>
    %421 = vector.broadcast %419 : vector<1x640xf32> to vector<4x640xf32>
    %422 = arith.mulf %420, %421 : vector<4x640xf32>
    %423 = arith.addf %417, %422 : vector<4x640xf32>
    %424 = vector.extract_strided_slice %2 {offsets = [0, 67], sizes = [4, 1], strides = [1, 1]} : vector<4x100xf32> to vector<4x1xf32>
    %425 = vector.extract_strided_slice %405 {offsets = [3, 0], sizes = [1, 640], strides = [1, 1]} : vector<4x640xf32> to vector<1x640xf32>
    %426 = vector.broadcast %424 : vector<4x1xf32> to vector<4x640xf32>
    %427 = vector.broadcast %425 : vector<1x640xf32> to vector<4x640xf32>
    %428 = arith.mulf %426, %427 : vector<4x640xf32>
    %429 = arith.addf %423, %428 : vector<4x640xf32>
    %430 = vector.extract_strided_slice %1 {offsets = [0, 80], sizes = [4, 640], strides = [1, 1]} : vector<4x768xf32> to vector<4x640xf32>
    %431 = vector.extract_strided_slice %2 {offsets = [0, 68], sizes = [4, 1], strides = [1, 1]} : vector<4x100xf32> to vector<4x1xf32>
    %432 = vector.extract_strided_slice %430 {offsets = [0, 0], sizes = [1, 640], strides = [1, 1]} : vector<4x640xf32> to vector<1x640xf32>
    %433 = vector.broadcast %431 : vector<4x1xf32> to vector<4x640xf32>
    %434 = vector.broadcast %432 : vector<1x640xf32> to vector<4x640xf32>
    %435 = arith.mulf %433, %434 : vector<4x640xf32>
    %436 = arith.addf %429, %435 : vector<4x640xf32>
    %437 = vector.extract_strided_slice %2 {offsets = [0, 69], sizes = [4, 1], strides = [1, 1]} : vector<4x100xf32> to vector<4x1xf32>
    %438 = vector.extract_strided_slice %430 {offsets = [1, 0], sizes = [1, 640], strides = [1, 1]} : vector<4x640xf32> to vector<1x640xf32>
    %439 = vector.broadcast %437 : vector<4x1xf32> to vector<4x640xf32>
    %440 = vector.broadcast %438 : vector<1x640xf32> to vector<4x640xf32>
    %441 = arith.mulf %439, %440 : vector<4x640xf32>
    %442 = arith.addf %436, %441 : vector<4x640xf32>
    %443 = vector.extract_strided_slice %2 {offsets = [0, 70], sizes = [4, 1], strides = [1, 1]} : vector<4x100xf32> to vector<4x1xf32>
    %444 = vector.extract_strided_slice %430 {offsets = [2, 0], sizes = [1, 640], strides = [1, 1]} : vector<4x640xf32> to vector<1x640xf32>
    %445 = vector.broadcast %443 : vector<4x1xf32> to vector<4x640xf32>
    %446 = vector.broadcast %444 : vector<1x640xf32> to vector<4x640xf32>
    %447 = arith.mulf %445, %446 : vector<4x640xf32>
    %448 = arith.addf %442, %447 : vector<4x640xf32>
    %449 = vector.extract_strided_slice %2 {offsets = [0, 71], sizes = [4, 1], strides = [1, 1]} : vector<4x100xf32> to vector<4x1xf32>
    %450 = vector.extract_strided_slice %430 {offsets = [3, 0], sizes = [1, 640], strides = [1, 1]} : vector<4x640xf32> to vector<1x640xf32>
    %451 = vector.broadcast %449 : vector<4x1xf32> to vector<4x640xf32>
    %452 = vector.broadcast %450 : vector<1x640xf32> to vector<4x640xf32>
    %453 = arith.mulf %451, %452 : vector<4x640xf32>
    %454 = arith.addf %448, %453 : vector<4x640xf32>
    %455 = vector.extract_strided_slice %1 {offsets = [0, 81], sizes = [4, 640], strides = [1, 1]} : vector<4x768xf32> to vector<4x640xf32>
    %456 = vector.extract_strided_slice %2 {offsets = [0, 72], sizes = [4, 1], strides = [1, 1]} : vector<4x100xf32> to vector<4x1xf32>
    %457 = vector.extract_strided_slice %455 {offsets = [0, 0], sizes = [1, 640], strides = [1, 1]} : vector<4x640xf32> to vector<1x640xf32>
    %458 = vector.broadcast %456 : vector<4x1xf32> to vector<4x640xf32>
    %459 = vector.broadcast %457 : vector<1x640xf32> to vector<4x640xf32>
    %460 = arith.mulf %458, %459 : vector<4x640xf32>
    %461 = arith.addf %454, %460 : vector<4x640xf32>
    %462 = vector.extract_strided_slice %2 {offsets = [0, 73], sizes = [4, 1], strides = [1, 1]} : vector<4x100xf32> to vector<4x1xf32>
    %463 = vector.extract_strided_slice %455 {offsets = [1, 0], sizes = [1, 640], strides = [1, 1]} : vector<4x640xf32> to vector<1x640xf32>
    %464 = vector.broadcast %462 : vector<4x1xf32> to vector<4x640xf32>
    %465 = vector.broadcast %463 : vector<1x640xf32> to vector<4x640xf32>
    %466 = arith.mulf %464, %465 : vector<4x640xf32>
    %467 = arith.addf %461, %466 : vector<4x640xf32>
    %468 = vector.extract_strided_slice %2 {offsets = [0, 74], sizes = [4, 1], strides = [1, 1]} : vector<4x100xf32> to vector<4x1xf32>
    %469 = vector.extract_strided_slice %455 {offsets = [2, 0], sizes = [1, 640], strides = [1, 1]} : vector<4x640xf32> to vector<1x640xf32>
    %470 = vector.broadcast %468 : vector<4x1xf32> to vector<4x640xf32>
    %471 = vector.broadcast %469 : vector<1x640xf32> to vector<4x640xf32>
    %472 = arith.mulf %470, %471 : vector<4x640xf32>
    %473 = arith.addf %467, %472 : vector<4x640xf32>
    %474 = vector.extract_strided_slice %2 {offsets = [0, 75], sizes = [4, 1], strides = [1, 1]} : vector<4x100xf32> to vector<4x1xf32>
    %475 = vector.extract_strided_slice %455 {offsets = [3, 0], sizes = [1, 640], strides = [1, 1]} : vector<4x640xf32> to vector<1x640xf32>
    %476 = vector.broadcast %474 : vector<4x1xf32> to vector<4x640xf32>
    %477 = vector.broadcast %475 : vector<1x640xf32> to vector<4x640xf32>
    %478 = arith.mulf %476, %477 : vector<4x640xf32>
    %479 = arith.addf %473, %478 : vector<4x640xf32>
    %480 = vector.extract_strided_slice %1 {offsets = [0, 82], sizes = [4, 640], strides = [1, 1]} : vector<4x768xf32> to vector<4x640xf32>
    %481 = vector.extract_strided_slice %2 {offsets = [0, 76], sizes = [4, 1], strides = [1, 1]} : vector<4x100xf32> to vector<4x1xf32>
    %482 = vector.extract_strided_slice %480 {offsets = [0, 0], sizes = [1, 640], strides = [1, 1]} : vector<4x640xf32> to vector<1x640xf32>
    %483 = vector.broadcast %481 : vector<4x1xf32> to vector<4x640xf32>
    %484 = vector.broadcast %482 : vector<1x640xf32> to vector<4x640xf32>
    %485 = arith.mulf %483, %484 : vector<4x640xf32>
    %486 = arith.addf %479, %485 : vector<4x640xf32>
    %487 = vector.extract_strided_slice %2 {offsets = [0, 77], sizes = [4, 1], strides = [1, 1]} : vector<4x100xf32> to vector<4x1xf32>
    %488 = vector.extract_strided_slice %480 {offsets = [1, 0], sizes = [1, 640], strides = [1, 1]} : vector<4x640xf32> to vector<1x640xf32>
    %489 = vector.broadcast %487 : vector<4x1xf32> to vector<4x640xf32>
    %490 = vector.broadcast %488 : vector<1x640xf32> to vector<4x640xf32>
    %491 = arith.mulf %489, %490 : vector<4x640xf32>
    %492 = arith.addf %486, %491 : vector<4x640xf32>
    %493 = vector.extract_strided_slice %2 {offsets = [0, 78], sizes = [4, 1], strides = [1, 1]} : vector<4x100xf32> to vector<4x1xf32>
    %494 = vector.extract_strided_slice %480 {offsets = [2, 0], sizes = [1, 640], strides = [1, 1]} : vector<4x640xf32> to vector<1x640xf32>
    %495 = vector.broadcast %493 : vector<4x1xf32> to vector<4x640xf32>
    %496 = vector.broadcast %494 : vector<1x640xf32> to vector<4x640xf32>
    %497 = arith.mulf %495, %496 : vector<4x640xf32>
    %498 = arith.addf %492, %497 : vector<4x640xf32>
    %499 = vector.extract_strided_slice %2 {offsets = [0, 79], sizes = [4, 1], strides = [1, 1]} : vector<4x100xf32> to vector<4x1xf32>
    %500 = vector.extract_strided_slice %480 {offsets = [3, 0], sizes = [1, 640], strides = [1, 1]} : vector<4x640xf32> to vector<1x640xf32>
    %501 = vector.broadcast %499 : vector<4x1xf32> to vector<4x640xf32>
    %502 = vector.broadcast %500 : vector<1x640xf32> to vector<4x640xf32>
    %503 = arith.mulf %501, %502 : vector<4x640xf32>
    %504 = arith.addf %498, %503 : vector<4x640xf32>
    %505 = vector.extract_strided_slice %1 {offsets = [0, 104], sizes = [4, 640], strides = [1, 1]} : vector<4x768xf32> to vector<4x640xf32>
    %506 = vector.extract_strided_slice %2 {offsets = [0, 80], sizes = [4, 1], strides = [1, 1]} : vector<4x100xf32> to vector<4x1xf32>
    %507 = vector.extract_strided_slice %505 {offsets = [0, 0], sizes = [1, 640], strides = [1, 1]} : vector<4x640xf32> to vector<1x640xf32>
    %508 = vector.broadcast %506 : vector<4x1xf32> to vector<4x640xf32>
    %509 = vector.broadcast %507 : vector<1x640xf32> to vector<4x640xf32>
    %510 = arith.mulf %508, %509 : vector<4x640xf32>
    %511 = arith.addf %504, %510 : vector<4x640xf32>
    %512 = vector.extract_strided_slice %2 {offsets = [0, 81], sizes = [4, 1], strides = [1, 1]} : vector<4x100xf32> to vector<4x1xf32>
    %513 = vector.extract_strided_slice %505 {offsets = [1, 0], sizes = [1, 640], strides = [1, 1]} : vector<4x640xf32> to vector<1x640xf32>
    %514 = vector.broadcast %512 : vector<4x1xf32> to vector<4x640xf32>
    %515 = vector.broadcast %513 : vector<1x640xf32> to vector<4x640xf32>
    %516 = arith.mulf %514, %515 : vector<4x640xf32>
    %517 = arith.addf %511, %516 : vector<4x640xf32>
    %518 = vector.extract_strided_slice %2 {offsets = [0, 82], sizes = [4, 1], strides = [1, 1]} : vector<4x100xf32> to vector<4x1xf32>
    %519 = vector.extract_strided_slice %505 {offsets = [2, 0], sizes = [1, 640], strides = [1, 1]} : vector<4x640xf32> to vector<1x640xf32>
    %520 = vector.broadcast %518 : vector<4x1xf32> to vector<4x640xf32>
    %521 = vector.broadcast %519 : vector<1x640xf32> to vector<4x640xf32>
    %522 = arith.mulf %520, %521 : vector<4x640xf32>
    %523 = arith.addf %517, %522 : vector<4x640xf32>
    %524 = vector.extract_strided_slice %2 {offsets = [0, 83], sizes = [4, 1], strides = [1, 1]} : vector<4x100xf32> to vector<4x1xf32>
    %525 = vector.extract_strided_slice %505 {offsets = [3, 0], sizes = [1, 640], strides = [1, 1]} : vector<4x640xf32> to vector<1x640xf32>
    %526 = vector.broadcast %524 : vector<4x1xf32> to vector<4x640xf32>
    %527 = vector.broadcast %525 : vector<1x640xf32> to vector<4x640xf32>
    %528 = arith.mulf %526, %527 : vector<4x640xf32>
    %529 = arith.addf %523, %528 : vector<4x640xf32>
    %530 = vector.extract_strided_slice %1 {offsets = [0, 105], sizes = [4, 640], strides = [1, 1]} : vector<4x768xf32> to vector<4x640xf32>
    %531 = vector.extract_strided_slice %2 {offsets = [0, 84], sizes = [4, 1], strides = [1, 1]} : vector<4x100xf32> to vector<4x1xf32>
    %532 = vector.extract_strided_slice %530 {offsets = [0, 0], sizes = [1, 640], strides = [1, 1]} : vector<4x640xf32> to vector<1x640xf32>
    %533 = vector.broadcast %531 : vector<4x1xf32> to vector<4x640xf32>
    %534 = vector.broadcast %532 : vector<1x640xf32> to vector<4x640xf32>
    %535 = arith.mulf %533, %534 : vector<4x640xf32>
    %536 = arith.addf %529, %535 : vector<4x640xf32>
    %537 = vector.extract_strided_slice %2 {offsets = [0, 85], sizes = [4, 1], strides = [1, 1]} : vector<4x100xf32> to vector<4x1xf32>
    %538 = vector.extract_strided_slice %530 {offsets = [1, 0], sizes = [1, 640], strides = [1, 1]} : vector<4x640xf32> to vector<1x640xf32>
    %539 = vector.broadcast %537 : vector<4x1xf32> to vector<4x640xf32>
    %540 = vector.broadcast %538 : vector<1x640xf32> to vector<4x640xf32>
    %541 = arith.mulf %539, %540 : vector<4x640xf32>
    %542 = arith.addf %536, %541 : vector<4x640xf32>
    %543 = vector.extract_strided_slice %2 {offsets = [0, 86], sizes = [4, 1], strides = [1, 1]} : vector<4x100xf32> to vector<4x1xf32>
    %544 = vector.extract_strided_slice %530 {offsets = [2, 0], sizes = [1, 640], strides = [1, 1]} : vector<4x640xf32> to vector<1x640xf32>
    %545 = vector.broadcast %543 : vector<4x1xf32> to vector<4x640xf32>
    %546 = vector.broadcast %544 : vector<1x640xf32> to vector<4x640xf32>
    %547 = arith.mulf %545, %546 : vector<4x640xf32>
    %548 = arith.addf %542, %547 : vector<4x640xf32>
    %549 = vector.extract_strided_slice %2 {offsets = [0, 87], sizes = [4, 1], strides = [1, 1]} : vector<4x100xf32> to vector<4x1xf32>
    %550 = vector.extract_strided_slice %530 {offsets = [3, 0], sizes = [1, 640], strides = [1, 1]} : vector<4x640xf32> to vector<1x640xf32>
    %551 = vector.broadcast %549 : vector<4x1xf32> to vector<4x640xf32>
    %552 = vector.broadcast %550 : vector<1x640xf32> to vector<4x640xf32>
    %553 = arith.mulf %551, %552 : vector<4x640xf32>
    %554 = arith.addf %548, %553 : vector<4x640xf32>
    %555 = vector.extract_strided_slice %1 {offsets = [0, 106], sizes = [4, 640], strides = [1, 1]} : vector<4x768xf32> to vector<4x640xf32>
    %556 = vector.extract_strided_slice %2 {offsets = [0, 88], sizes = [4, 1], strides = [1, 1]} : vector<4x100xf32> to vector<4x1xf32>
    %557 = vector.extract_strided_slice %555 {offsets = [0, 0], sizes = [1, 640], strides = [1, 1]} : vector<4x640xf32> to vector<1x640xf32>
    %558 = vector.broadcast %556 : vector<4x1xf32> to vector<4x640xf32>
    %559 = vector.broadcast %557 : vector<1x640xf32> to vector<4x640xf32>
    %560 = arith.mulf %558, %559 : vector<4x640xf32>
    %561 = arith.addf %554, %560 : vector<4x640xf32>
    %562 = vector.extract_strided_slice %2 {offsets = [0, 89], sizes = [4, 1], strides = [1, 1]} : vector<4x100xf32> to vector<4x1xf32>
    %563 = vector.extract_strided_slice %555 {offsets = [1, 0], sizes = [1, 640], strides = [1, 1]} : vector<4x640xf32> to vector<1x640xf32>
    %564 = vector.broadcast %562 : vector<4x1xf32> to vector<4x640xf32>
    %565 = vector.broadcast %563 : vector<1x640xf32> to vector<4x640xf32>
    %566 = arith.mulf %564, %565 : vector<4x640xf32>
    %567 = arith.addf %561, %566 : vector<4x640xf32>
    %568 = vector.extract_strided_slice %2 {offsets = [0, 90], sizes = [4, 1], strides = [1, 1]} : vector<4x100xf32> to vector<4x1xf32>
    %569 = vector.extract_strided_slice %555 {offsets = [2, 0], sizes = [1, 640], strides = [1, 1]} : vector<4x640xf32> to vector<1x640xf32>
    %570 = vector.broadcast %568 : vector<4x1xf32> to vector<4x640xf32>
    %571 = vector.broadcast %569 : vector<1x640xf32> to vector<4x640xf32>
    %572 = arith.mulf %570, %571 : vector<4x640xf32>
    %573 = arith.addf %567, %572 : vector<4x640xf32>
    %574 = vector.extract_strided_slice %2 {offsets = [0, 91], sizes = [4, 1], strides = [1, 1]} : vector<4x100xf32> to vector<4x1xf32>
    %575 = vector.extract_strided_slice %555 {offsets = [3, 0], sizes = [1, 640], strides = [1, 1]} : vector<4x640xf32> to vector<1x640xf32>
    %576 = vector.broadcast %574 : vector<4x1xf32> to vector<4x640xf32>
    %577 = vector.broadcast %575 : vector<1x640xf32> to vector<4x640xf32>
    %578 = arith.mulf %576, %577 : vector<4x640xf32>
    %579 = arith.addf %573, %578 : vector<4x640xf32>
    %580 = vector.extract_strided_slice %1 {offsets = [0, 107], sizes = [4, 640], strides = [1, 1]} : vector<4x768xf32> to vector<4x640xf32>
    %581 = vector.extract_strided_slice %2 {offsets = [0, 92], sizes = [4, 1], strides = [1, 1]} : vector<4x100xf32> to vector<4x1xf32>
    %582 = vector.extract_strided_slice %580 {offsets = [0, 0], sizes = [1, 640], strides = [1, 1]} : vector<4x640xf32> to vector<1x640xf32>
    %583 = vector.broadcast %581 : vector<4x1xf32> to vector<4x640xf32>
    %584 = vector.broadcast %582 : vector<1x640xf32> to vector<4x640xf32>
    %585 = arith.mulf %583, %584 : vector<4x640xf32>
    %586 = arith.addf %579, %585 : vector<4x640xf32>
    %587 = vector.extract_strided_slice %2 {offsets = [0, 93], sizes = [4, 1], strides = [1, 1]} : vector<4x100xf32> to vector<4x1xf32>
    %588 = vector.extract_strided_slice %580 {offsets = [1, 0], sizes = [1, 640], strides = [1, 1]} : vector<4x640xf32> to vector<1x640xf32>
    %589 = vector.broadcast %587 : vector<4x1xf32> to vector<4x640xf32>
    %590 = vector.broadcast %588 : vector<1x640xf32> to vector<4x640xf32>
    %591 = arith.mulf %589, %590 : vector<4x640xf32>
    %592 = arith.addf %586, %591 : vector<4x640xf32>
    %593 = vector.extract_strided_slice %2 {offsets = [0, 94], sizes = [4, 1], strides = [1, 1]} : vector<4x100xf32> to vector<4x1xf32>
    %594 = vector.extract_strided_slice %580 {offsets = [2, 0], sizes = [1, 640], strides = [1, 1]} : vector<4x640xf32> to vector<1x640xf32>
    %595 = vector.broadcast %593 : vector<4x1xf32> to vector<4x640xf32>
    %596 = vector.broadcast %594 : vector<1x640xf32> to vector<4x640xf32>
    %597 = arith.mulf %595, %596 : vector<4x640xf32>
    %598 = arith.addf %592, %597 : vector<4x640xf32>
    %599 = vector.extract_strided_slice %2 {offsets = [0, 95], sizes = [4, 1], strides = [1, 1]} : vector<4x100xf32> to vector<4x1xf32>
    %600 = vector.extract_strided_slice %580 {offsets = [3, 0], sizes = [1, 640], strides = [1, 1]} : vector<4x640xf32> to vector<1x640xf32>
    %601 = vector.broadcast %599 : vector<4x1xf32> to vector<4x640xf32>
    %602 = vector.broadcast %600 : vector<1x640xf32> to vector<4x640xf32>
    %603 = arith.mulf %601, %602 : vector<4x640xf32>
    %604 = arith.addf %598, %603 : vector<4x640xf32>
    %605 = vector.extract_strided_slice %1 {offsets = [0, 108], sizes = [4, 640], strides = [1, 1]} : vector<4x768xf32> to vector<4x640xf32>
    %606 = vector.extract_strided_slice %2 {offsets = [0, 96], sizes = [4, 1], strides = [1, 1]} : vector<4x100xf32> to vector<4x1xf32>
    %607 = vector.extract_strided_slice %605 {offsets = [0, 0], sizes = [1, 640], strides = [1, 1]} : vector<4x640xf32> to vector<1x640xf32>
    %608 = vector.broadcast %606 : vector<4x1xf32> to vector<4x640xf32>
    %609 = vector.broadcast %607 : vector<1x640xf32> to vector<4x640xf32>
    %610 = arith.mulf %608, %609 : vector<4x640xf32>
    %611 = arith.addf %604, %610 : vector<4x640xf32>
    %612 = vector.extract_strided_slice %2 {offsets = [0, 97], sizes = [4, 1], strides = [1, 1]} : vector<4x100xf32> to vector<4x1xf32>
    %613 = vector.extract_strided_slice %605 {offsets = [1, 0], sizes = [1, 640], strides = [1, 1]} : vector<4x640xf32> to vector<1x640xf32>
    %614 = vector.broadcast %612 : vector<4x1xf32> to vector<4x640xf32>
    %615 = vector.broadcast %613 : vector<1x640xf32> to vector<4x640xf32>
    %616 = arith.mulf %614, %615 : vector<4x640xf32>
    %617 = arith.addf %611, %616 : vector<4x640xf32>
    %618 = vector.extract_strided_slice %2 {offsets = [0, 98], sizes = [4, 1], strides = [1, 1]} : vector<4x100xf32> to vector<4x1xf32>
    %619 = vector.extract_strided_slice %605 {offsets = [2, 0], sizes = [1, 640], strides = [1, 1]} : vector<4x640xf32> to vector<1x640xf32>
    %620 = vector.broadcast %618 : vector<4x1xf32> to vector<4x640xf32>
    %621 = vector.broadcast %619 : vector<1x640xf32> to vector<4x640xf32>
    %622 = arith.mulf %620, %621 : vector<4x640xf32>
    %623 = arith.addf %617, %622 : vector<4x640xf32>
    %624 = vector.extract_strided_slice %2 {offsets = [0, 99], sizes = [4, 1], strides = [1, 1]} : vector<4x100xf32> to vector<4x1xf32>
    %625 = vector.extract_strided_slice %605 {offsets = [3, 0], sizes = [1, 640], strides = [1, 1]} : vector<4x640xf32> to vector<1x640xf32>
    %626 = vector.broadcast %624 : vector<4x1xf32> to vector<4x640xf32>
    %627 = vector.broadcast %625 : vector<1x640xf32> to vector<4x640xf32>
    %628 = arith.mulf %626, %627 : vector<4x640xf32>
    %629 = arith.addf %623, %628 : vector<4x640xf32>
    %c0_6 = arith.constant 0 : index
    %c0_7 = arith.constant 0 : index
    %630 = vector.load %arg3[%c0_6, %c0_7] : memref<4x1xf32, #tpu.memory_space<vmem>>, vector<4x1xf32>
    %631 = vector.broadcast %630 : vector<4x1xf32> to vector<4x640xf32>
    %632 = arith.addf %629, %631 : vector<4x640xf32>
    %cst_8 = arith.constant 0.000000e+00 : f32
    %633 = vector.broadcast %cst_8 : f32 to vector<4x640xf32>
    %634 = arith.maximumf %632, %633 : vector<4x640xf32>
    %c0_9 = arith.constant 0 : index
    %c0_10 = arith.constant 0 : index
    %635 = vector.load %arg6[%c0_9, %c0_10] : memref<1x640xf32, #tpu.memory_space<vmem>>, vector<1x640xf32>
    %636 = vector.broadcast %635 : vector<1x640xf32> to vector<4x640xf32>
    %637 = arith.mulf %634, %636 : vector<4x640xf32>
    %cst_11 = arith.constant 0.000000e+00 : f32
    %638 = vector.broadcast %cst_11 : f32 to vector<4x416xf32>
    %639 = vector.extract_strided_slice %637 {offsets = [0, 0], sizes = [4, 416], strides = [1, 1]} : vector<4x640xf32> to vector<4x416xf32>
    %640 = vector.extract_strided_slice %3 {offsets = [0, 0], sizes = [4, 1], strides = [1, 1]} : vector<4x196xf32> to vector<4x1xf32>
    %641 = vector.extract_strided_slice %639 {offsets = [0, 0], sizes = [1, 416], strides = [1, 1]} : vector<4x416xf32> to vector<1x416xf32>
    %642 = vector.broadcast %640 : vector<4x1xf32> to vector<4x416xf32>
    %643 = vector.broadcast %641 : vector<1x416xf32> to vector<4x416xf32>
    %644 = arith.mulf %642, %643 : vector<4x416xf32>
    %645 = arith.addf %638, %644 : vector<4x416xf32>
    %646 = vector.extract_strided_slice %3 {offsets = [0, 1], sizes = [4, 1], strides = [1, 1]} : vector<4x196xf32> to vector<4x1xf32>
    %647 = vector.extract_strided_slice %639 {offsets = [1, 0], sizes = [1, 416], strides = [1, 1]} : vector<4x416xf32> to vector<1x416xf32>
    %648 = vector.broadcast %646 : vector<4x1xf32> to vector<4x416xf32>
    %649 = vector.broadcast %647 : vector<1x416xf32> to vector<4x416xf32>
    %650 = arith.mulf %648, %649 : vector<4x416xf32>
    %651 = arith.addf %645, %650 : vector<4x416xf32>
    %652 = vector.extract_strided_slice %3 {offsets = [0, 2], sizes = [4, 1], strides = [1, 1]} : vector<4x196xf32> to vector<4x1xf32>
    %653 = vector.extract_strided_slice %639 {offsets = [2, 0], sizes = [1, 416], strides = [1, 1]} : vector<4x416xf32> to vector<1x416xf32>
    %654 = vector.broadcast %652 : vector<4x1xf32> to vector<4x416xf32>
    %655 = vector.broadcast %653 : vector<1x416xf32> to vector<4x416xf32>
    %656 = arith.mulf %654, %655 : vector<4x416xf32>
    %657 = arith.addf %651, %656 : vector<4x416xf32>
    %658 = vector.extract_strided_slice %3 {offsets = [0, 3], sizes = [4, 1], strides = [1, 1]} : vector<4x196xf32> to vector<4x1xf32>
    %659 = vector.extract_strided_slice %639 {offsets = [3, 0], sizes = [1, 416], strides = [1, 1]} : vector<4x416xf32> to vector<1x416xf32>
    %660 = vector.broadcast %658 : vector<4x1xf32> to vector<4x416xf32>
    %661 = vector.broadcast %659 : vector<1x416xf32> to vector<4x416xf32>
    %662 = arith.mulf %660, %661 : vector<4x416xf32>
    %663 = arith.addf %657, %662 : vector<4x416xf32>
    %664 = vector.extract_strided_slice %637 {offsets = [0, 1], sizes = [4, 416], strides = [1, 1]} : vector<4x640xf32> to vector<4x416xf32>
    %665 = vector.extract_strided_slice %3 {offsets = [0, 4], sizes = [4, 1], strides = [1, 1]} : vector<4x196xf32> to vector<4x1xf32>
    %666 = vector.extract_strided_slice %664 {offsets = [0, 0], sizes = [1, 416], strides = [1, 1]} : vector<4x416xf32> to vector<1x416xf32>
    %667 = vector.broadcast %665 : vector<4x1xf32> to vector<4x416xf32>
    %668 = vector.broadcast %666 : vector<1x416xf32> to vector<4x416xf32>
    %669 = arith.mulf %667, %668 : vector<4x416xf32>
    %670 = arith.addf %663, %669 : vector<4x416xf32>
    %671 = vector.extract_strided_slice %3 {offsets = [0, 5], sizes = [4, 1], strides = [1, 1]} : vector<4x196xf32> to vector<4x1xf32>
    %672 = vector.extract_strided_slice %664 {offsets = [1, 0], sizes = [1, 416], strides = [1, 1]} : vector<4x416xf32> to vector<1x416xf32>
    %673 = vector.broadcast %671 : vector<4x1xf32> to vector<4x416xf32>
    %674 = vector.broadcast %672 : vector<1x416xf32> to vector<4x416xf32>
    %675 = arith.mulf %673, %674 : vector<4x416xf32>
    %676 = arith.addf %670, %675 : vector<4x416xf32>
    %677 = vector.extract_strided_slice %3 {offsets = [0, 6], sizes = [4, 1], strides = [1, 1]} : vector<4x196xf32> to vector<4x1xf32>
    %678 = vector.extract_strided_slice %664 {offsets = [2, 0], sizes = [1, 416], strides = [1, 1]} : vector<4x416xf32> to vector<1x416xf32>
    %679 = vector.broadcast %677 : vector<4x1xf32> to vector<4x416xf32>
    %680 = vector.broadcast %678 : vector<1x416xf32> to vector<4x416xf32>
    %681 = arith.mulf %679, %680 : vector<4x416xf32>
    %682 = arith.addf %676, %681 : vector<4x416xf32>
    %683 = vector.extract_strided_slice %3 {offsets = [0, 7], sizes = [4, 1], strides = [1, 1]} : vector<4x196xf32> to vector<4x1xf32>
    %684 = vector.extract_strided_slice %664 {offsets = [3, 0], sizes = [1, 416], strides = [1, 1]} : vector<4x416xf32> to vector<1x416xf32>
    %685 = vector.broadcast %683 : vector<4x1xf32> to vector<4x416xf32>
    %686 = vector.broadcast %684 : vector<1x416xf32> to vector<4x416xf32>
    %687 = arith.mulf %685, %686 : vector<4x416xf32>
    %688 = arith.addf %682, %687 : vector<4x416xf32>
    %689 = vector.extract_strided_slice %637 {offsets = [0, 2], sizes = [4, 416], strides = [1, 1]} : vector<4x640xf32> to vector<4x416xf32>
    %690 = vector.extract_strided_slice %3 {offsets = [0, 8], sizes = [4, 1], strides = [1, 1]} : vector<4x196xf32> to vector<4x1xf32>
    %691 = vector.extract_strided_slice %689 {offsets = [0, 0], sizes = [1, 416], strides = [1, 1]} : vector<4x416xf32> to vector<1x416xf32>
    %692 = vector.broadcast %690 : vector<4x1xf32> to vector<4x416xf32>
    %693 = vector.broadcast %691 : vector<1x416xf32> to vector<4x416xf32>
    %694 = arith.mulf %692, %693 : vector<4x416xf32>
    %695 = arith.addf %688, %694 : vector<4x416xf32>
    %696 = vector.extract_strided_slice %3 {offsets = [0, 9], sizes = [4, 1], strides = [1, 1]} : vector<4x196xf32> to vector<4x1xf32>
    %697 = vector.extract_strided_slice %689 {offsets = [1, 0], sizes = [1, 416], strides = [1, 1]} : vector<4x416xf32> to vector<1x416xf32>
    %698 = vector.broadcast %696 : vector<4x1xf32> to vector<4x416xf32>
    %699 = vector.broadcast %697 : vector<1x416xf32> to vector<4x416xf32>
    %700 = arith.mulf %698, %699 : vector<4x416xf32>
    %701 = arith.addf %695, %700 : vector<4x416xf32>
    %702 = vector.extract_strided_slice %3 {offsets = [0, 10], sizes = [4, 1], strides = [1, 1]} : vector<4x196xf32> to vector<4x1xf32>
    %703 = vector.extract_strided_slice %689 {offsets = [2, 0], sizes = [1, 416], strides = [1, 1]} : vector<4x416xf32> to vector<1x416xf32>
    %704 = vector.broadcast %702 : vector<4x1xf32> to vector<4x416xf32>
    %705 = vector.broadcast %703 : vector<1x416xf32> to vector<4x416xf32>
    %706 = arith.mulf %704, %705 : vector<4x416xf32>
    %707 = arith.addf %701, %706 : vector<4x416xf32>
    %708 = vector.extract_strided_slice %3 {offsets = [0, 11], sizes = [4, 1], strides = [1, 1]} : vector<4x196xf32> to vector<4x1xf32>
    %709 = vector.extract_strided_slice %689 {offsets = [3, 0], sizes = [1, 416], strides = [1, 1]} : vector<4x416xf32> to vector<1x416xf32>
    %710 = vector.broadcast %708 : vector<4x1xf32> to vector<4x416xf32>
    %711 = vector.broadcast %709 : vector<1x416xf32> to vector<4x416xf32>
    %712 = arith.mulf %710, %711 : vector<4x416xf32>
    %713 = arith.addf %707, %712 : vector<4x416xf32>
    %714 = vector.extract_strided_slice %637 {offsets = [0, 3], sizes = [4, 416], strides = [1, 1]} : vector<4x640xf32> to vector<4x416xf32>
    %715 = vector.extract_strided_slice %3 {offsets = [0, 12], sizes = [4, 1], strides = [1, 1]} : vector<4x196xf32> to vector<4x1xf32>
    %716 = vector.extract_strided_slice %714 {offsets = [0, 0], sizes = [1, 416], strides = [1, 1]} : vector<4x416xf32> to vector<1x416xf32>
    %717 = vector.broadcast %715 : vector<4x1xf32> to vector<4x416xf32>
    %718 = vector.broadcast %716 : vector<1x416xf32> to vector<4x416xf32>
    %719 = arith.mulf %717, %718 : vector<4x416xf32>
    %720 = arith.addf %713, %719 : vector<4x416xf32>
    %721 = vector.extract_strided_slice %3 {offsets = [0, 13], sizes = [4, 1], strides = [1, 1]} : vector<4x196xf32> to vector<4x1xf32>
    %722 = vector.extract_strided_slice %714 {offsets = [1, 0], sizes = [1, 416], strides = [1, 1]} : vector<4x416xf32> to vector<1x416xf32>
    %723 = vector.broadcast %721 : vector<4x1xf32> to vector<4x416xf32>
    %724 = vector.broadcast %722 : vector<1x416xf32> to vector<4x416xf32>
    %725 = arith.mulf %723, %724 : vector<4x416xf32>
    %726 = arith.addf %720, %725 : vector<4x416xf32>
    %727 = vector.extract_strided_slice %3 {offsets = [0, 14], sizes = [4, 1], strides = [1, 1]} : vector<4x196xf32> to vector<4x1xf32>
    %728 = vector.extract_strided_slice %714 {offsets = [2, 0], sizes = [1, 416], strides = [1, 1]} : vector<4x416xf32> to vector<1x416xf32>
    %729 = vector.broadcast %727 : vector<4x1xf32> to vector<4x416xf32>
    %730 = vector.broadcast %728 : vector<1x416xf32> to vector<4x416xf32>
    %731 = arith.mulf %729, %730 : vector<4x416xf32>
    %732 = arith.addf %726, %731 : vector<4x416xf32>
    %733 = vector.extract_strided_slice %3 {offsets = [0, 15], sizes = [4, 1], strides = [1, 1]} : vector<4x196xf32> to vector<4x1xf32>
    %734 = vector.extract_strided_slice %714 {offsets = [3, 0], sizes = [1, 416], strides = [1, 1]} : vector<4x416xf32> to vector<1x416xf32>
    %735 = vector.broadcast %733 : vector<4x1xf32> to vector<4x416xf32>
    %736 = vector.broadcast %734 : vector<1x416xf32> to vector<4x416xf32>
    %737 = arith.mulf %735, %736 : vector<4x416xf32>
    %738 = arith.addf %732, %737 : vector<4x416xf32>
    %739 = vector.extract_strided_slice %637 {offsets = [0, 4], sizes = [4, 416], strides = [1, 1]} : vector<4x640xf32> to vector<4x416xf32>
    %740 = vector.extract_strided_slice %3 {offsets = [0, 16], sizes = [4, 1], strides = [1, 1]} : vector<4x196xf32> to vector<4x1xf32>
    %741 = vector.extract_strided_slice %739 {offsets = [0, 0], sizes = [1, 416], strides = [1, 1]} : vector<4x416xf32> to vector<1x416xf32>
    %742 = vector.broadcast %740 : vector<4x1xf32> to vector<4x416xf32>
    %743 = vector.broadcast %741 : vector<1x416xf32> to vector<4x416xf32>
    %744 = arith.mulf %742, %743 : vector<4x416xf32>
    %745 = arith.addf %738, %744 : vector<4x416xf32>
    %746 = vector.extract_strided_slice %3 {offsets = [0, 17], sizes = [4, 1], strides = [1, 1]} : vector<4x196xf32> to vector<4x1xf32>
    %747 = vector.extract_strided_slice %739 {offsets = [1, 0], sizes = [1, 416], strides = [1, 1]} : vector<4x416xf32> to vector<1x416xf32>
    %748 = vector.broadcast %746 : vector<4x1xf32> to vector<4x416xf32>
    %749 = vector.broadcast %747 : vector<1x416xf32> to vector<4x416xf32>
    %750 = arith.mulf %748, %749 : vector<4x416xf32>
    %751 = arith.addf %745, %750 : vector<4x416xf32>
    %752 = vector.extract_strided_slice %3 {offsets = [0, 18], sizes = [4, 1], strides = [1, 1]} : vector<4x196xf32> to vector<4x1xf32>
    %753 = vector.extract_strided_slice %739 {offsets = [2, 0], sizes = [1, 416], strides = [1, 1]} : vector<4x416xf32> to vector<1x416xf32>
    %754 = vector.broadcast %752 : vector<4x1xf32> to vector<4x416xf32>
    %755 = vector.broadcast %753 : vector<1x416xf32> to vector<4x416xf32>
    %756 = arith.mulf %754, %755 : vector<4x416xf32>
    %757 = arith.addf %751, %756 : vector<4x416xf32>
    %758 = vector.extract_strided_slice %3 {offsets = [0, 19], sizes = [4, 1], strides = [1, 1]} : vector<4x196xf32> to vector<4x1xf32>
    %759 = vector.extract_strided_slice %739 {offsets = [3, 0], sizes = [1, 416], strides = [1, 1]} : vector<4x416xf32> to vector<1x416xf32>
    %760 = vector.broadcast %758 : vector<4x1xf32> to vector<4x416xf32>
    %761 = vector.broadcast %759 : vector<1x416xf32> to vector<4x416xf32>
    %762 = arith.mulf %760, %761 : vector<4x416xf32>
    %763 = arith.addf %757, %762 : vector<4x416xf32>
    %764 = vector.extract_strided_slice %637 {offsets = [0, 5], sizes = [4, 416], strides = [1, 1]} : vector<4x640xf32> to vector<4x416xf32>
    %765 = vector.extract_strided_slice %3 {offsets = [0, 20], sizes = [4, 1], strides = [1, 1]} : vector<4x196xf32> to vector<4x1xf32>
    %766 = vector.extract_strided_slice %764 {offsets = [0, 0], sizes = [1, 416], strides = [1, 1]} : vector<4x416xf32> to vector<1x416xf32>
    %767 = vector.broadcast %765 : vector<4x1xf32> to vector<4x416xf32>
    %768 = vector.broadcast %766 : vector<1x416xf32> to vector<4x416xf32>
    %769 = arith.mulf %767, %768 : vector<4x416xf32>
    %770 = arith.addf %763, %769 : vector<4x416xf32>
    %771 = vector.extract_strided_slice %3 {offsets = [0, 21], sizes = [4, 1], strides = [1, 1]} : vector<4x196xf32> to vector<4x1xf32>
    %772 = vector.extract_strided_slice %764 {offsets = [1, 0], sizes = [1, 416], strides = [1, 1]} : vector<4x416xf32> to vector<1x416xf32>
    %773 = vector.broadcast %771 : vector<4x1xf32> to vector<4x416xf32>
    %774 = vector.broadcast %772 : vector<1x416xf32> to vector<4x416xf32>
    %775 = arith.mulf %773, %774 : vector<4x416xf32>
    %776 = arith.addf %770, %775 : vector<4x416xf32>
    %777 = vector.extract_strided_slice %3 {offsets = [0, 22], sizes = [4, 1], strides = [1, 1]} : vector<4x196xf32> to vector<4x1xf32>
    %778 = vector.extract_strided_slice %764 {offsets = [2, 0], sizes = [1, 416], strides = [1, 1]} : vector<4x416xf32> to vector<1x416xf32>
    %779 = vector.broadcast %777 : vector<4x1xf32> to vector<4x416xf32>
    %780 = vector.broadcast %778 : vector<1x416xf32> to vector<4x416xf32>
    %781 = arith.mulf %779, %780 : vector<4x416xf32>
    %782 = arith.addf %776, %781 : vector<4x416xf32>
    %783 = vector.extract_strided_slice %3 {offsets = [0, 23], sizes = [4, 1], strides = [1, 1]} : vector<4x196xf32> to vector<4x1xf32>
    %784 = vector.extract_strided_slice %764 {offsets = [3, 0], sizes = [1, 416], strides = [1, 1]} : vector<4x416xf32> to vector<1x416xf32>
    %785 = vector.broadcast %783 : vector<4x1xf32> to vector<4x416xf32>
    %786 = vector.broadcast %784 : vector<1x416xf32> to vector<4x416xf32>
    %787 = arith.mulf %785, %786 : vector<4x416xf32>
    %788 = arith.addf %782, %787 : vector<4x416xf32>
    %789 = vector.extract_strided_slice %637 {offsets = [0, 6], sizes = [4, 416], strides = [1, 1]} : vector<4x640xf32> to vector<4x416xf32>
    %790 = vector.extract_strided_slice %3 {offsets = [0, 24], sizes = [4, 1], strides = [1, 1]} : vector<4x196xf32> to vector<4x1xf32>
    %791 = vector.extract_strided_slice %789 {offsets = [0, 0], sizes = [1, 416], strides = [1, 1]} : vector<4x416xf32> to vector<1x416xf32>
    %792 = vector.broadcast %790 : vector<4x1xf32> to vector<4x416xf32>
    %793 = vector.broadcast %791 : vector<1x416xf32> to vector<4x416xf32>
    %794 = arith.mulf %792, %793 : vector<4x416xf32>
    %795 = arith.addf %788, %794 : vector<4x416xf32>
    %796 = vector.extract_strided_slice %3 {offsets = [0, 25], sizes = [4, 1], strides = [1, 1]} : vector<4x196xf32> to vector<4x1xf32>
    %797 = vector.extract_strided_slice %789 {offsets = [1, 0], sizes = [1, 416], strides = [1, 1]} : vector<4x416xf32> to vector<1x416xf32>
    %798 = vector.broadcast %796 : vector<4x1xf32> to vector<4x416xf32>
    %799 = vector.broadcast %797 : vector<1x416xf32> to vector<4x416xf32>
    %800 = arith.mulf %798, %799 : vector<4x416xf32>
    %801 = arith.addf %795, %800 : vector<4x416xf32>
    %802 = vector.extract_strided_slice %3 {offsets = [0, 26], sizes = [4, 1], strides = [1, 1]} : vector<4x196xf32> to vector<4x1xf32>
    %803 = vector.extract_strided_slice %789 {offsets = [2, 0], sizes = [1, 416], strides = [1, 1]} : vector<4x416xf32> to vector<1x416xf32>
    %804 = vector.broadcast %802 : vector<4x1xf32> to vector<4x416xf32>
    %805 = vector.broadcast %803 : vector<1x416xf32> to vector<4x416xf32>
    %806 = arith.mulf %804, %805 : vector<4x416xf32>
    %807 = arith.addf %801, %806 : vector<4x416xf32>
    %808 = vector.extract_strided_slice %3 {offsets = [0, 27], sizes = [4, 1], strides = [1, 1]} : vector<4x196xf32> to vector<4x1xf32>
    %809 = vector.extract_strided_slice %789 {offsets = [3, 0], sizes = [1, 416], strides = [1, 1]} : vector<4x416xf32> to vector<1x416xf32>
    %810 = vector.broadcast %808 : vector<4x1xf32> to vector<4x416xf32>
    %811 = vector.broadcast %809 : vector<1x416xf32> to vector<4x416xf32>
    %812 = arith.mulf %810, %811 : vector<4x416xf32>
    %813 = arith.addf %807, %812 : vector<4x416xf32>
    %814 = vector.extract_strided_slice %637 {offsets = [0, 26], sizes = [4, 416], strides = [1, 1]} : vector<4x640xf32> to vector<4x416xf32>
    %815 = vector.extract_strided_slice %3 {offsets = [0, 28], sizes = [4, 1], strides = [1, 1]} : vector<4x196xf32> to vector<4x1xf32>
    %816 = vector.extract_strided_slice %814 {offsets = [0, 0], sizes = [1, 416], strides = [1, 1]} : vector<4x416xf32> to vector<1x416xf32>
    %817 = vector.broadcast %815 : vector<4x1xf32> to vector<4x416xf32>
    %818 = vector.broadcast %816 : vector<1x416xf32> to vector<4x416xf32>
    %819 = arith.mulf %817, %818 : vector<4x416xf32>
    %820 = arith.addf %813, %819 : vector<4x416xf32>
    %821 = vector.extract_strided_slice %3 {offsets = [0, 29], sizes = [4, 1], strides = [1, 1]} : vector<4x196xf32> to vector<4x1xf32>
    %822 = vector.extract_strided_slice %814 {offsets = [1, 0], sizes = [1, 416], strides = [1, 1]} : vector<4x416xf32> to vector<1x416xf32>
    %823 = vector.broadcast %821 : vector<4x1xf32> to vector<4x416xf32>
    %824 = vector.broadcast %822 : vector<1x416xf32> to vector<4x416xf32>
    %825 = arith.mulf %823, %824 : vector<4x416xf32>
    %826 = arith.addf %820, %825 : vector<4x416xf32>
    %827 = vector.extract_strided_slice %3 {offsets = [0, 30], sizes = [4, 1], strides = [1, 1]} : vector<4x196xf32> to vector<4x1xf32>
    %828 = vector.extract_strided_slice %814 {offsets = [2, 0], sizes = [1, 416], strides = [1, 1]} : vector<4x416xf32> to vector<1x416xf32>
    %829 = vector.broadcast %827 : vector<4x1xf32> to vector<4x416xf32>
    %830 = vector.broadcast %828 : vector<1x416xf32> to vector<4x416xf32>
    %831 = arith.mulf %829, %830 : vector<4x416xf32>
    %832 = arith.addf %826, %831 : vector<4x416xf32>
    %833 = vector.extract_strided_slice %3 {offsets = [0, 31], sizes = [4, 1], strides = [1, 1]} : vector<4x196xf32> to vector<4x1xf32>
    %834 = vector.extract_strided_slice %814 {offsets = [3, 0], sizes = [1, 416], strides = [1, 1]} : vector<4x416xf32> to vector<1x416xf32>
    %835 = vector.broadcast %833 : vector<4x1xf32> to vector<4x416xf32>
    %836 = vector.broadcast %834 : vector<1x416xf32> to vector<4x416xf32>
    %837 = arith.mulf %835, %836 : vector<4x416xf32>
    %838 = arith.addf %832, %837 : vector<4x416xf32>
    %839 = vector.extract_strided_slice %637 {offsets = [0, 27], sizes = [4, 416], strides = [1, 1]} : vector<4x640xf32> to vector<4x416xf32>
    %840 = vector.extract_strided_slice %3 {offsets = [0, 32], sizes = [4, 1], strides = [1, 1]} : vector<4x196xf32> to vector<4x1xf32>
    %841 = vector.extract_strided_slice %839 {offsets = [0, 0], sizes = [1, 416], strides = [1, 1]} : vector<4x416xf32> to vector<1x416xf32>
    %842 = vector.broadcast %840 : vector<4x1xf32> to vector<4x416xf32>
    %843 = vector.broadcast %841 : vector<1x416xf32> to vector<4x416xf32>
    %844 = arith.mulf %842, %843 : vector<4x416xf32>
    %845 = arith.addf %838, %844 : vector<4x416xf32>
    %846 = vector.extract_strided_slice %3 {offsets = [0, 33], sizes = [4, 1], strides = [1, 1]} : vector<4x196xf32> to vector<4x1xf32>
    %847 = vector.extract_strided_slice %839 {offsets = [1, 0], sizes = [1, 416], strides = [1, 1]} : vector<4x416xf32> to vector<1x416xf32>
    %848 = vector.broadcast %846 : vector<4x1xf32> to vector<4x416xf32>
    %849 = vector.broadcast %847 : vector<1x416xf32> to vector<4x416xf32>
    %850 = arith.mulf %848, %849 : vector<4x416xf32>
    %851 = arith.addf %845, %850 : vector<4x416xf32>
    %852 = vector.extract_strided_slice %3 {offsets = [0, 34], sizes = [4, 1], strides = [1, 1]} : vector<4x196xf32> to vector<4x1xf32>
    %853 = vector.extract_strided_slice %839 {offsets = [2, 0], sizes = [1, 416], strides = [1, 1]} : vector<4x416xf32> to vector<1x416xf32>
    %854 = vector.broadcast %852 : vector<4x1xf32> to vector<4x416xf32>
    %855 = vector.broadcast %853 : vector<1x416xf32> to vector<4x416xf32>
    %856 = arith.mulf %854, %855 : vector<4x416xf32>
    %857 = arith.addf %851, %856 : vector<4x416xf32>
    %858 = vector.extract_strided_slice %3 {offsets = [0, 35], sizes = [4, 1], strides = [1, 1]} : vector<4x196xf32> to vector<4x1xf32>
    %859 = vector.extract_strided_slice %839 {offsets = [3, 0], sizes = [1, 416], strides = [1, 1]} : vector<4x416xf32> to vector<1x416xf32>
    %860 = vector.broadcast %858 : vector<4x1xf32> to vector<4x416xf32>
    %861 = vector.broadcast %859 : vector<1x416xf32> to vector<4x416xf32>
    %862 = arith.mulf %860, %861 : vector<4x416xf32>
    %863 = arith.addf %857, %862 : vector<4x416xf32>
    %864 = vector.extract_strided_slice %637 {offsets = [0, 28], sizes = [4, 416], strides = [1, 1]} : vector<4x640xf32> to vector<4x416xf32>
    %865 = vector.extract_strided_slice %3 {offsets = [0, 36], sizes = [4, 1], strides = [1, 1]} : vector<4x196xf32> to vector<4x1xf32>
    %866 = vector.extract_strided_slice %864 {offsets = [0, 0], sizes = [1, 416], strides = [1, 1]} : vector<4x416xf32> to vector<1x416xf32>
    %867 = vector.broadcast %865 : vector<4x1xf32> to vector<4x416xf32>
    %868 = vector.broadcast %866 : vector<1x416xf32> to vector<4x416xf32>
    %869 = arith.mulf %867, %868 : vector<4x416xf32>
    %870 = arith.addf %863, %869 : vector<4x416xf32>
    %871 = vector.extract_strided_slice %3 {offsets = [0, 37], sizes = [4, 1], strides = [1, 1]} : vector<4x196xf32> to vector<4x1xf32>
    %872 = vector.extract_strided_slice %864 {offsets = [1, 0], sizes = [1, 416], strides = [1, 1]} : vector<4x416xf32> to vector<1x416xf32>
    %873 = vector.broadcast %871 : vector<4x1xf32> to vector<4x416xf32>
    %874 = vector.broadcast %872 : vector<1x416xf32> to vector<4x416xf32>
    %875 = arith.mulf %873, %874 : vector<4x416xf32>
    %876 = arith.addf %870, %875 : vector<4x416xf32>
    %877 = vector.extract_strided_slice %3 {offsets = [0, 38], sizes = [4, 1], strides = [1, 1]} : vector<4x196xf32> to vector<4x1xf32>
    %878 = vector.extract_strided_slice %864 {offsets = [2, 0], sizes = [1, 416], strides = [1, 1]} : vector<4x416xf32> to vector<1x416xf32>
    %879 = vector.broadcast %877 : vector<4x1xf32> to vector<4x416xf32>
    %880 = vector.broadcast %878 : vector<1x416xf32> to vector<4x416xf32>
    %881 = arith.mulf %879, %880 : vector<4x416xf32>
    %882 = arith.addf %876, %881 : vector<4x416xf32>
    %883 = vector.extract_strided_slice %3 {offsets = [0, 39], sizes = [4, 1], strides = [1, 1]} : vector<4x196xf32> to vector<4x1xf32>
    %884 = vector.extract_strided_slice %864 {offsets = [3, 0], sizes = [1, 416], strides = [1, 1]} : vector<4x416xf32> to vector<1x416xf32>
    %885 = vector.broadcast %883 : vector<4x1xf32> to vector<4x416xf32>
    %886 = vector.broadcast %884 : vector<1x416xf32> to vector<4x416xf32>
    %887 = arith.mulf %885, %886 : vector<4x416xf32>
    %888 = arith.addf %882, %887 : vector<4x416xf32>
    %889 = vector.extract_strided_slice %637 {offsets = [0, 29], sizes = [4, 416], strides = [1, 1]} : vector<4x640xf32> to vector<4x416xf32>
    %890 = vector.extract_strided_slice %3 {offsets = [0, 40], sizes = [4, 1], strides = [1, 1]} : vector<4x196xf32> to vector<4x1xf32>
    %891 = vector.extract_strided_slice %889 {offsets = [0, 0], sizes = [1, 416], strides = [1, 1]} : vector<4x416xf32> to vector<1x416xf32>
    %892 = vector.broadcast %890 : vector<4x1xf32> to vector<4x416xf32>
    %893 = vector.broadcast %891 : vector<1x416xf32> to vector<4x416xf32>
    %894 = arith.mulf %892, %893 : vector<4x416xf32>
    %895 = arith.addf %888, %894 : vector<4x416xf32>
    %896 = vector.extract_strided_slice %3 {offsets = [0, 41], sizes = [4, 1], strides = [1, 1]} : vector<4x196xf32> to vector<4x1xf32>
    %897 = vector.extract_strided_slice %889 {offsets = [1, 0], sizes = [1, 416], strides = [1, 1]} : vector<4x416xf32> to vector<1x416xf32>
    %898 = vector.broadcast %896 : vector<4x1xf32> to vector<4x416xf32>
    %899 = vector.broadcast %897 : vector<1x416xf32> to vector<4x416xf32>
    %900 = arith.mulf %898, %899 : vector<4x416xf32>
    %901 = arith.addf %895, %900 : vector<4x416xf32>
    %902 = vector.extract_strided_slice %3 {offsets = [0, 42], sizes = [4, 1], strides = [1, 1]} : vector<4x196xf32> to vector<4x1xf32>
    %903 = vector.extract_strided_slice %889 {offsets = [2, 0], sizes = [1, 416], strides = [1, 1]} : vector<4x416xf32> to vector<1x416xf32>
    %904 = vector.broadcast %902 : vector<4x1xf32> to vector<4x416xf32>
    %905 = vector.broadcast %903 : vector<1x416xf32> to vector<4x416xf32>
    %906 = arith.mulf %904, %905 : vector<4x416xf32>
    %907 = arith.addf %901, %906 : vector<4x416xf32>
    %908 = vector.extract_strided_slice %3 {offsets = [0, 43], sizes = [4, 1], strides = [1, 1]} : vector<4x196xf32> to vector<4x1xf32>
    %909 = vector.extract_strided_slice %889 {offsets = [3, 0], sizes = [1, 416], strides = [1, 1]} : vector<4x416xf32> to vector<1x416xf32>
    %910 = vector.broadcast %908 : vector<4x1xf32> to vector<4x416xf32>
    %911 = vector.broadcast %909 : vector<1x416xf32> to vector<4x416xf32>
    %912 = arith.mulf %910, %911 : vector<4x416xf32>
    %913 = arith.addf %907, %912 : vector<4x416xf32>
    %914 = vector.extract_strided_slice %637 {offsets = [0, 30], sizes = [4, 416], strides = [1, 1]} : vector<4x640xf32> to vector<4x416xf32>
    %915 = vector.extract_strided_slice %3 {offsets = [0, 44], sizes = [4, 1], strides = [1, 1]} : vector<4x196xf32> to vector<4x1xf32>
    %916 = vector.extract_strided_slice %914 {offsets = [0, 0], sizes = [1, 416], strides = [1, 1]} : vector<4x416xf32> to vector<1x416xf32>
    %917 = vector.broadcast %915 : vector<4x1xf32> to vector<4x416xf32>
    %918 = vector.broadcast %916 : vector<1x416xf32> to vector<4x416xf32>
    %919 = arith.mulf %917, %918 : vector<4x416xf32>
    %920 = arith.addf %913, %919 : vector<4x416xf32>
    %921 = vector.extract_strided_slice %3 {offsets = [0, 45], sizes = [4, 1], strides = [1, 1]} : vector<4x196xf32> to vector<4x1xf32>
    %922 = vector.extract_strided_slice %914 {offsets = [1, 0], sizes = [1, 416], strides = [1, 1]} : vector<4x416xf32> to vector<1x416xf32>
    %923 = vector.broadcast %921 : vector<4x1xf32> to vector<4x416xf32>
    %924 = vector.broadcast %922 : vector<1x416xf32> to vector<4x416xf32>
    %925 = arith.mulf %923, %924 : vector<4x416xf32>
    %926 = arith.addf %920, %925 : vector<4x416xf32>
    %927 = vector.extract_strided_slice %3 {offsets = [0, 46], sizes = [4, 1], strides = [1, 1]} : vector<4x196xf32> to vector<4x1xf32>
    %928 = vector.extract_strided_slice %914 {offsets = [2, 0], sizes = [1, 416], strides = [1, 1]} : vector<4x416xf32> to vector<1x416xf32>
    %929 = vector.broadcast %927 : vector<4x1xf32> to vector<4x416xf32>
    %930 = vector.broadcast %928 : vector<1x416xf32> to vector<4x416xf32>
    %931 = arith.mulf %929, %930 : vector<4x416xf32>
    %932 = arith.addf %926, %931 : vector<4x416xf32>
    %933 = vector.extract_strided_slice %3 {offsets = [0, 47], sizes = [4, 1], strides = [1, 1]} : vector<4x196xf32> to vector<4x1xf32>
    %934 = vector.extract_strided_slice %914 {offsets = [3, 0], sizes = [1, 416], strides = [1, 1]} : vector<4x416xf32> to vector<1x416xf32>
    %935 = vector.broadcast %933 : vector<4x1xf32> to vector<4x416xf32>
    %936 = vector.broadcast %934 : vector<1x416xf32> to vector<4x416xf32>
    %937 = arith.mulf %935, %936 : vector<4x416xf32>
    %938 = arith.addf %932, %937 : vector<4x416xf32>
    %939 = vector.extract_strided_slice %637 {offsets = [0, 31], sizes = [4, 416], strides = [1, 1]} : vector<4x640xf32> to vector<4x416xf32>
    %940 = vector.extract_strided_slice %3 {offsets = [0, 48], sizes = [4, 1], strides = [1, 1]} : vector<4x196xf32> to vector<4x1xf32>
    %941 = vector.extract_strided_slice %939 {offsets = [0, 0], sizes = [1, 416], strides = [1, 1]} : vector<4x416xf32> to vector<1x416xf32>
    %942 = vector.broadcast %940 : vector<4x1xf32> to vector<4x416xf32>
    %943 = vector.broadcast %941 : vector<1x416xf32> to vector<4x416xf32>
    %944 = arith.mulf %942, %943 : vector<4x416xf32>
    %945 = arith.addf %938, %944 : vector<4x416xf32>
    %946 = vector.extract_strided_slice %3 {offsets = [0, 49], sizes = [4, 1], strides = [1, 1]} : vector<4x196xf32> to vector<4x1xf32>
    %947 = vector.extract_strided_slice %939 {offsets = [1, 0], sizes = [1, 416], strides = [1, 1]} : vector<4x416xf32> to vector<1x416xf32>
    %948 = vector.broadcast %946 : vector<4x1xf32> to vector<4x416xf32>
    %949 = vector.broadcast %947 : vector<1x416xf32> to vector<4x416xf32>
    %950 = arith.mulf %948, %949 : vector<4x416xf32>
    %951 = arith.addf %945, %950 : vector<4x416xf32>
    %952 = vector.extract_strided_slice %3 {offsets = [0, 50], sizes = [4, 1], strides = [1, 1]} : vector<4x196xf32> to vector<4x1xf32>
    %953 = vector.extract_strided_slice %939 {offsets = [2, 0], sizes = [1, 416], strides = [1, 1]} : vector<4x416xf32> to vector<1x416xf32>
    %954 = vector.broadcast %952 : vector<4x1xf32> to vector<4x416xf32>
    %955 = vector.broadcast %953 : vector<1x416xf32> to vector<4x416xf32>
    %956 = arith.mulf %954, %955 : vector<4x416xf32>
    %957 = arith.addf %951, %956 : vector<4x416xf32>
    %958 = vector.extract_strided_slice %3 {offsets = [0, 51], sizes = [4, 1], strides = [1, 1]} : vector<4x196xf32> to vector<4x1xf32>
    %959 = vector.extract_strided_slice %939 {offsets = [3, 0], sizes = [1, 416], strides = [1, 1]} : vector<4x416xf32> to vector<1x416xf32>
    %960 = vector.broadcast %958 : vector<4x1xf32> to vector<4x416xf32>
    %961 = vector.broadcast %959 : vector<1x416xf32> to vector<4x416xf32>
    %962 = arith.mulf %960, %961 : vector<4x416xf32>
    %963 = arith.addf %957, %962 : vector<4x416xf32>
    %964 = vector.extract_strided_slice %637 {offsets = [0, 32], sizes = [4, 416], strides = [1, 1]} : vector<4x640xf32> to vector<4x416xf32>
    %965 = vector.extract_strided_slice %3 {offsets = [0, 52], sizes = [4, 1], strides = [1, 1]} : vector<4x196xf32> to vector<4x1xf32>
    %966 = vector.extract_strided_slice %964 {offsets = [0, 0], sizes = [1, 416], strides = [1, 1]} : vector<4x416xf32> to vector<1x416xf32>
    %967 = vector.broadcast %965 : vector<4x1xf32> to vector<4x416xf32>
    %968 = vector.broadcast %966 : vector<1x416xf32> to vector<4x416xf32>
    %969 = arith.mulf %967, %968 : vector<4x416xf32>
    %970 = arith.addf %963, %969 : vector<4x416xf32>
    %971 = vector.extract_strided_slice %3 {offsets = [0, 53], sizes = [4, 1], strides = [1, 1]} : vector<4x196xf32> to vector<4x1xf32>
    %972 = vector.extract_strided_slice %964 {offsets = [1, 0], sizes = [1, 416], strides = [1, 1]} : vector<4x416xf32> to vector<1x416xf32>
    %973 = vector.broadcast %971 : vector<4x1xf32> to vector<4x416xf32>
    %974 = vector.broadcast %972 : vector<1x416xf32> to vector<4x416xf32>
    %975 = arith.mulf %973, %974 : vector<4x416xf32>
    %976 = arith.addf %970, %975 : vector<4x416xf32>
    %977 = vector.extract_strided_slice %3 {offsets = [0, 54], sizes = [4, 1], strides = [1, 1]} : vector<4x196xf32> to vector<4x1xf32>
    %978 = vector.extract_strided_slice %964 {offsets = [2, 0], sizes = [1, 416], strides = [1, 1]} : vector<4x416xf32> to vector<1x416xf32>
    %979 = vector.broadcast %977 : vector<4x1xf32> to vector<4x416xf32>
    %980 = vector.broadcast %978 : vector<1x416xf32> to vector<4x416xf32>
    %981 = arith.mulf %979, %980 : vector<4x416xf32>
    %982 = arith.addf %976, %981 : vector<4x416xf32>
    %983 = vector.extract_strided_slice %3 {offsets = [0, 55], sizes = [4, 1], strides = [1, 1]} : vector<4x196xf32> to vector<4x1xf32>
    %984 = vector.extract_strided_slice %964 {offsets = [3, 0], sizes = [1, 416], strides = [1, 1]} : vector<4x416xf32> to vector<1x416xf32>
    %985 = vector.broadcast %983 : vector<4x1xf32> to vector<4x416xf32>
    %986 = vector.broadcast %984 : vector<1x416xf32> to vector<4x416xf32>
    %987 = arith.mulf %985, %986 : vector<4x416xf32>
    %988 = arith.addf %982, %987 : vector<4x416xf32>
    %989 = vector.extract_strided_slice %637 {offsets = [0, 52], sizes = [4, 416], strides = [1, 1]} : vector<4x640xf32> to vector<4x416xf32>
    %990 = vector.extract_strided_slice %3 {offsets = [0, 56], sizes = [4, 1], strides = [1, 1]} : vector<4x196xf32> to vector<4x1xf32>
    %991 = vector.extract_strided_slice %989 {offsets = [0, 0], sizes = [1, 416], strides = [1, 1]} : vector<4x416xf32> to vector<1x416xf32>
    %992 = vector.broadcast %990 : vector<4x1xf32> to vector<4x416xf32>
    %993 = vector.broadcast %991 : vector<1x416xf32> to vector<4x416xf32>
    %994 = arith.mulf %992, %993 : vector<4x416xf32>
    %995 = arith.addf %988, %994 : vector<4x416xf32>
    %996 = vector.extract_strided_slice %3 {offsets = [0, 57], sizes = [4, 1], strides = [1, 1]} : vector<4x196xf32> to vector<4x1xf32>
    %997 = vector.extract_strided_slice %989 {offsets = [1, 0], sizes = [1, 416], strides = [1, 1]} : vector<4x416xf32> to vector<1x416xf32>
    %998 = vector.broadcast %996 : vector<4x1xf32> to vector<4x416xf32>
    %999 = vector.broadcast %997 : vector<1x416xf32> to vector<4x416xf32>
    %1000 = arith.mulf %998, %999 : vector<4x416xf32>
    %1001 = arith.addf %995, %1000 : vector<4x416xf32>
    %1002 = vector.extract_strided_slice %3 {offsets = [0, 58], sizes = [4, 1], strides = [1, 1]} : vector<4x196xf32> to vector<4x1xf32>
    %1003 = vector.extract_strided_slice %989 {offsets = [2, 0], sizes = [1, 416], strides = [1, 1]} : vector<4x416xf32> to vector<1x416xf32>
    %1004 = vector.broadcast %1002 : vector<4x1xf32> to vector<4x416xf32>
    %1005 = vector.broadcast %1003 : vector<1x416xf32> to vector<4x416xf32>
    %1006 = arith.mulf %1004, %1005 : vector<4x416xf32>
    %1007 = arith.addf %1001, %1006 : vector<4x416xf32>
    %1008 = vector.extract_strided_slice %3 {offsets = [0, 59], sizes = [4, 1], strides = [1, 1]} : vector<4x196xf32> to vector<4x1xf32>
    %1009 = vector.extract_strided_slice %989 {offsets = [3, 0], sizes = [1, 416], strides = [1, 1]} : vector<4x416xf32> to vector<1x416xf32>
    %1010 = vector.broadcast %1008 : vector<4x1xf32> to vector<4x416xf32>
    %1011 = vector.broadcast %1009 : vector<1x416xf32> to vector<4x416xf32>
    %1012 = arith.mulf %1010, %1011 : vector<4x416xf32>
    %1013 = arith.addf %1007, %1012 : vector<4x416xf32>
    %1014 = vector.extract_strided_slice %637 {offsets = [0, 53], sizes = [4, 416], strides = [1, 1]} : vector<4x640xf32> to vector<4x416xf32>
    %1015 = vector.extract_strided_slice %3 {offsets = [0, 60], sizes = [4, 1], strides = [1, 1]} : vector<4x196xf32> to vector<4x1xf32>
    %1016 = vector.extract_strided_slice %1014 {offsets = [0, 0], sizes = [1, 416], strides = [1, 1]} : vector<4x416xf32> to vector<1x416xf32>
    %1017 = vector.broadcast %1015 : vector<4x1xf32> to vector<4x416xf32>
    %1018 = vector.broadcast %1016 : vector<1x416xf32> to vector<4x416xf32>
    %1019 = arith.mulf %1017, %1018 : vector<4x416xf32>
    %1020 = arith.addf %1013, %1019 : vector<4x416xf32>
    %1021 = vector.extract_strided_slice %3 {offsets = [0, 61], sizes = [4, 1], strides = [1, 1]} : vector<4x196xf32> to vector<4x1xf32>
    %1022 = vector.extract_strided_slice %1014 {offsets = [1, 0], sizes = [1, 416], strides = [1, 1]} : vector<4x416xf32> to vector<1x416xf32>
    %1023 = vector.broadcast %1021 : vector<4x1xf32> to vector<4x416xf32>
    %1024 = vector.broadcast %1022 : vector<1x416xf32> to vector<4x416xf32>
    %1025 = arith.mulf %1023, %1024 : vector<4x416xf32>
    %1026 = arith.addf %1020, %1025 : vector<4x416xf32>
    %1027 = vector.extract_strided_slice %3 {offsets = [0, 62], sizes = [4, 1], strides = [1, 1]} : vector<4x196xf32> to vector<4x1xf32>
    %1028 = vector.extract_strided_slice %1014 {offsets = [2, 0], sizes = [1, 416], strides = [1, 1]} : vector<4x416xf32> to vector<1x416xf32>
    %1029 = vector.broadcast %1027 : vector<4x1xf32> to vector<4x416xf32>
    %1030 = vector.broadcast %1028 : vector<1x416xf32> to vector<4x416xf32>
    %1031 = arith.mulf %1029, %1030 : vector<4x416xf32>
    %1032 = arith.addf %1026, %1031 : vector<4x416xf32>
    %1033 = vector.extract_strided_slice %3 {offsets = [0, 63], sizes = [4, 1], strides = [1, 1]} : vector<4x196xf32> to vector<4x1xf32>
    %1034 = vector.extract_strided_slice %1014 {offsets = [3, 0], sizes = [1, 416], strides = [1, 1]} : vector<4x416xf32> to vector<1x416xf32>
    %1035 = vector.broadcast %1033 : vector<4x1xf32> to vector<4x416xf32>
    %1036 = vector.broadcast %1034 : vector<1x416xf32> to vector<4x416xf32>
    %1037 = arith.mulf %1035, %1036 : vector<4x416xf32>
    %1038 = arith.addf %1032, %1037 : vector<4x416xf32>
    %1039 = vector.extract_strided_slice %637 {offsets = [0, 54], sizes = [4, 416], strides = [1, 1]} : vector<4x640xf32> to vector<4x416xf32>
    %1040 = vector.extract_strided_slice %3 {offsets = [0, 64], sizes = [4, 1], strides = [1, 1]} : vector<4x196xf32> to vector<4x1xf32>
    %1041 = vector.extract_strided_slice %1039 {offsets = [0, 0], sizes = [1, 416], strides = [1, 1]} : vector<4x416xf32> to vector<1x416xf32>
    %1042 = vector.broadcast %1040 : vector<4x1xf32> to vector<4x416xf32>
    %1043 = vector.broadcast %1041 : vector<1x416xf32> to vector<4x416xf32>
    %1044 = arith.mulf %1042, %1043 : vector<4x416xf32>
    %1045 = arith.addf %1038, %1044 : vector<4x416xf32>
    %1046 = vector.extract_strided_slice %3 {offsets = [0, 65], sizes = [4, 1], strides = [1, 1]} : vector<4x196xf32> to vector<4x1xf32>
    %1047 = vector.extract_strided_slice %1039 {offsets = [1, 0], sizes = [1, 416], strides = [1, 1]} : vector<4x416xf32> to vector<1x416xf32>
    %1048 = vector.broadcast %1046 : vector<4x1xf32> to vector<4x416xf32>
    %1049 = vector.broadcast %1047 : vector<1x416xf32> to vector<4x416xf32>
    %1050 = arith.mulf %1048, %1049 : vector<4x416xf32>
    %1051 = arith.addf %1045, %1050 : vector<4x416xf32>
    %1052 = vector.extract_strided_slice %3 {offsets = [0, 66], sizes = [4, 1], strides = [1, 1]} : vector<4x196xf32> to vector<4x1xf32>
    %1053 = vector.extract_strided_slice %1039 {offsets = [2, 0], sizes = [1, 416], strides = [1, 1]} : vector<4x416xf32> to vector<1x416xf32>
    %1054 = vector.broadcast %1052 : vector<4x1xf32> to vector<4x416xf32>
    %1055 = vector.broadcast %1053 : vector<1x416xf32> to vector<4x416xf32>
    %1056 = arith.mulf %1054, %1055 : vector<4x416xf32>
    %1057 = arith.addf %1051, %1056 : vector<4x416xf32>
    %1058 = vector.extract_strided_slice %3 {offsets = [0, 67], sizes = [4, 1], strides = [1, 1]} : vector<4x196xf32> to vector<4x1xf32>
    %1059 = vector.extract_strided_slice %1039 {offsets = [3, 0], sizes = [1, 416], strides = [1, 1]} : vector<4x416xf32> to vector<1x416xf32>
    %1060 = vector.broadcast %1058 : vector<4x1xf32> to vector<4x416xf32>
    %1061 = vector.broadcast %1059 : vector<1x416xf32> to vector<4x416xf32>
    %1062 = arith.mulf %1060, %1061 : vector<4x416xf32>
    %1063 = arith.addf %1057, %1062 : vector<4x416xf32>
    %1064 = vector.extract_strided_slice %637 {offsets = [0, 55], sizes = [4, 416], strides = [1, 1]} : vector<4x640xf32> to vector<4x416xf32>
    %1065 = vector.extract_strided_slice %3 {offsets = [0, 68], sizes = [4, 1], strides = [1, 1]} : vector<4x196xf32> to vector<4x1xf32>
    %1066 = vector.extract_strided_slice %1064 {offsets = [0, 0], sizes = [1, 416], strides = [1, 1]} : vector<4x416xf32> to vector<1x416xf32>
    %1067 = vector.broadcast %1065 : vector<4x1xf32> to vector<4x416xf32>
    %1068 = vector.broadcast %1066 : vector<1x416xf32> to vector<4x416xf32>
    %1069 = arith.mulf %1067, %1068 : vector<4x416xf32>
    %1070 = arith.addf %1063, %1069 : vector<4x416xf32>
    %1071 = vector.extract_strided_slice %3 {offsets = [0, 69], sizes = [4, 1], strides = [1, 1]} : vector<4x196xf32> to vector<4x1xf32>
    %1072 = vector.extract_strided_slice %1064 {offsets = [1, 0], sizes = [1, 416], strides = [1, 1]} : vector<4x416xf32> to vector<1x416xf32>
    %1073 = vector.broadcast %1071 : vector<4x1xf32> to vector<4x416xf32>
    %1074 = vector.broadcast %1072 : vector<1x416xf32> to vector<4x416xf32>
    %1075 = arith.mulf %1073, %1074 : vector<4x416xf32>
    %1076 = arith.addf %1070, %1075 : vector<4x416xf32>
    %1077 = vector.extract_strided_slice %3 {offsets = [0, 70], sizes = [4, 1], strides = [1, 1]} : vector<4x196xf32> to vector<4x1xf32>
    %1078 = vector.extract_strided_slice %1064 {offsets = [2, 0], sizes = [1, 416], strides = [1, 1]} : vector<4x416xf32> to vector<1x416xf32>
    %1079 = vector.broadcast %1077 : vector<4x1xf32> to vector<4x416xf32>
    %1080 = vector.broadcast %1078 : vector<1x416xf32> to vector<4x416xf32>
    %1081 = arith.mulf %1079, %1080 : vector<4x416xf32>
    %1082 = arith.addf %1076, %1081 : vector<4x416xf32>
    %1083 = vector.extract_strided_slice %3 {offsets = [0, 71], sizes = [4, 1], strides = [1, 1]} : vector<4x196xf32> to vector<4x1xf32>
    %1084 = vector.extract_strided_slice %1064 {offsets = [3, 0], sizes = [1, 416], strides = [1, 1]} : vector<4x416xf32> to vector<1x416xf32>
    %1085 = vector.broadcast %1083 : vector<4x1xf32> to vector<4x416xf32>
    %1086 = vector.broadcast %1084 : vector<1x416xf32> to vector<4x416xf32>
    %1087 = arith.mulf %1085, %1086 : vector<4x416xf32>
    %1088 = arith.addf %1082, %1087 : vector<4x416xf32>
    %1089 = vector.extract_strided_slice %637 {offsets = [0, 56], sizes = [4, 416], strides = [1, 1]} : vector<4x640xf32> to vector<4x416xf32>
    %1090 = vector.extract_strided_slice %3 {offsets = [0, 72], sizes = [4, 1], strides = [1, 1]} : vector<4x196xf32> to vector<4x1xf32>
    %1091 = vector.extract_strided_slice %1089 {offsets = [0, 0], sizes = [1, 416], strides = [1, 1]} : vector<4x416xf32> to vector<1x416xf32>
    %1092 = vector.broadcast %1090 : vector<4x1xf32> to vector<4x416xf32>
    %1093 = vector.broadcast %1091 : vector<1x416xf32> to vector<4x416xf32>
    %1094 = arith.mulf %1092, %1093 : vector<4x416xf32>
    %1095 = arith.addf %1088, %1094 : vector<4x416xf32>
    %1096 = vector.extract_strided_slice %3 {offsets = [0, 73], sizes = [4, 1], strides = [1, 1]} : vector<4x196xf32> to vector<4x1xf32>
    %1097 = vector.extract_strided_slice %1089 {offsets = [1, 0], sizes = [1, 416], strides = [1, 1]} : vector<4x416xf32> to vector<1x416xf32>
    %1098 = vector.broadcast %1096 : vector<4x1xf32> to vector<4x416xf32>
    %1099 = vector.broadcast %1097 : vector<1x416xf32> to vector<4x416xf32>
    %1100 = arith.mulf %1098, %1099 : vector<4x416xf32>
    %1101 = arith.addf %1095, %1100 : vector<4x416xf32>
    %1102 = vector.extract_strided_slice %3 {offsets = [0, 74], sizes = [4, 1], strides = [1, 1]} : vector<4x196xf32> to vector<4x1xf32>
    %1103 = vector.extract_strided_slice %1089 {offsets = [2, 0], sizes = [1, 416], strides = [1, 1]} : vector<4x416xf32> to vector<1x416xf32>
    %1104 = vector.broadcast %1102 : vector<4x1xf32> to vector<4x416xf32>
    %1105 = vector.broadcast %1103 : vector<1x416xf32> to vector<4x416xf32>
    %1106 = arith.mulf %1104, %1105 : vector<4x416xf32>
    %1107 = arith.addf %1101, %1106 : vector<4x416xf32>
    %1108 = vector.extract_strided_slice %3 {offsets = [0, 75], sizes = [4, 1], strides = [1, 1]} : vector<4x196xf32> to vector<4x1xf32>
    %1109 = vector.extract_strided_slice %1089 {offsets = [3, 0], sizes = [1, 416], strides = [1, 1]} : vector<4x416xf32> to vector<1x416xf32>
    %1110 = vector.broadcast %1108 : vector<4x1xf32> to vector<4x416xf32>
    %1111 = vector.broadcast %1109 : vector<1x416xf32> to vector<4x416xf32>
    %1112 = arith.mulf %1110, %1111 : vector<4x416xf32>
    %1113 = arith.addf %1107, %1112 : vector<4x416xf32>
    %1114 = vector.extract_strided_slice %637 {offsets = [0, 57], sizes = [4, 416], strides = [1, 1]} : vector<4x640xf32> to vector<4x416xf32>
    %1115 = vector.extract_strided_slice %3 {offsets = [0, 76], sizes = [4, 1], strides = [1, 1]} : vector<4x196xf32> to vector<4x1xf32>
    %1116 = vector.extract_strided_slice %1114 {offsets = [0, 0], sizes = [1, 416], strides = [1, 1]} : vector<4x416xf32> to vector<1x416xf32>
    %1117 = vector.broadcast %1115 : vector<4x1xf32> to vector<4x416xf32>
    %1118 = vector.broadcast %1116 : vector<1x416xf32> to vector<4x416xf32>
    %1119 = arith.mulf %1117, %1118 : vector<4x416xf32>
    %1120 = arith.addf %1113, %1119 : vector<4x416xf32>
    %1121 = vector.extract_strided_slice %3 {offsets = [0, 77], sizes = [4, 1], strides = [1, 1]} : vector<4x196xf32> to vector<4x1xf32>
    %1122 = vector.extract_strided_slice %1114 {offsets = [1, 0], sizes = [1, 416], strides = [1, 1]} : vector<4x416xf32> to vector<1x416xf32>
    %1123 = vector.broadcast %1121 : vector<4x1xf32> to vector<4x416xf32>
    %1124 = vector.broadcast %1122 : vector<1x416xf32> to vector<4x416xf32>
    %1125 = arith.mulf %1123, %1124 : vector<4x416xf32>
    %1126 = arith.addf %1120, %1125 : vector<4x416xf32>
    %1127 = vector.extract_strided_slice %3 {offsets = [0, 78], sizes = [4, 1], strides = [1, 1]} : vector<4x196xf32> to vector<4x1xf32>
    %1128 = vector.extract_strided_slice %1114 {offsets = [2, 0], sizes = [1, 416], strides = [1, 1]} : vector<4x416xf32> to vector<1x416xf32>
    %1129 = vector.broadcast %1127 : vector<4x1xf32> to vector<4x416xf32>
    %1130 = vector.broadcast %1128 : vector<1x416xf32> to vector<4x416xf32>
    %1131 = arith.mulf %1129, %1130 : vector<4x416xf32>
    %1132 = arith.addf %1126, %1131 : vector<4x416xf32>
    %1133 = vector.extract_strided_slice %3 {offsets = [0, 79], sizes = [4, 1], strides = [1, 1]} : vector<4x196xf32> to vector<4x1xf32>
    %1134 = vector.extract_strided_slice %1114 {offsets = [3, 0], sizes = [1, 416], strides = [1, 1]} : vector<4x416xf32> to vector<1x416xf32>
    %1135 = vector.broadcast %1133 : vector<4x1xf32> to vector<4x416xf32>
    %1136 = vector.broadcast %1134 : vector<1x416xf32> to vector<4x416xf32>
    %1137 = arith.mulf %1135, %1136 : vector<4x416xf32>
    %1138 = arith.addf %1132, %1137 : vector<4x416xf32>
    %1139 = vector.extract_strided_slice %637 {offsets = [0, 58], sizes = [4, 416], strides = [1, 1]} : vector<4x640xf32> to vector<4x416xf32>
    %1140 = vector.extract_strided_slice %3 {offsets = [0, 80], sizes = [4, 1], strides = [1, 1]} : vector<4x196xf32> to vector<4x1xf32>
    %1141 = vector.extract_strided_slice %1139 {offsets = [0, 0], sizes = [1, 416], strides = [1, 1]} : vector<4x416xf32> to vector<1x416xf32>
    %1142 = vector.broadcast %1140 : vector<4x1xf32> to vector<4x416xf32>
    %1143 = vector.broadcast %1141 : vector<1x416xf32> to vector<4x416xf32>
    %1144 = arith.mulf %1142, %1143 : vector<4x416xf32>
    %1145 = arith.addf %1138, %1144 : vector<4x416xf32>
    %1146 = vector.extract_strided_slice %3 {offsets = [0, 81], sizes = [4, 1], strides = [1, 1]} : vector<4x196xf32> to vector<4x1xf32>
    %1147 = vector.extract_strided_slice %1139 {offsets = [1, 0], sizes = [1, 416], strides = [1, 1]} : vector<4x416xf32> to vector<1x416xf32>
    %1148 = vector.broadcast %1146 : vector<4x1xf32> to vector<4x416xf32>
    %1149 = vector.broadcast %1147 : vector<1x416xf32> to vector<4x416xf32>
    %1150 = arith.mulf %1148, %1149 : vector<4x416xf32>
    %1151 = arith.addf %1145, %1150 : vector<4x416xf32>
    %1152 = vector.extract_strided_slice %3 {offsets = [0, 82], sizes = [4, 1], strides = [1, 1]} : vector<4x196xf32> to vector<4x1xf32>
    %1153 = vector.extract_strided_slice %1139 {offsets = [2, 0], sizes = [1, 416], strides = [1, 1]} : vector<4x416xf32> to vector<1x416xf32>
    %1154 = vector.broadcast %1152 : vector<4x1xf32> to vector<4x416xf32>
    %1155 = vector.broadcast %1153 : vector<1x416xf32> to vector<4x416xf32>
    %1156 = arith.mulf %1154, %1155 : vector<4x416xf32>
    %1157 = arith.addf %1151, %1156 : vector<4x416xf32>
    %1158 = vector.extract_strided_slice %3 {offsets = [0, 83], sizes = [4, 1], strides = [1, 1]} : vector<4x196xf32> to vector<4x1xf32>
    %1159 = vector.extract_strided_slice %1139 {offsets = [3, 0], sizes = [1, 416], strides = [1, 1]} : vector<4x416xf32> to vector<1x416xf32>
    %1160 = vector.broadcast %1158 : vector<4x1xf32> to vector<4x416xf32>
    %1161 = vector.broadcast %1159 : vector<1x416xf32> to vector<4x416xf32>
    %1162 = arith.mulf %1160, %1161 : vector<4x416xf32>
    %1163 = arith.addf %1157, %1162 : vector<4x416xf32>
    %1164 = vector.extract_strided_slice %637 {offsets = [0, 78], sizes = [4, 416], strides = [1, 1]} : vector<4x640xf32> to vector<4x416xf32>
    %1165 = vector.extract_strided_slice %3 {offsets = [0, 84], sizes = [4, 1], strides = [1, 1]} : vector<4x196xf32> to vector<4x1xf32>
    %1166 = vector.extract_strided_slice %1164 {offsets = [0, 0], sizes = [1, 416], strides = [1, 1]} : vector<4x416xf32> to vector<1x416xf32>
    %1167 = vector.broadcast %1165 : vector<4x1xf32> to vector<4x416xf32>
    %1168 = vector.broadcast %1166 : vector<1x416xf32> to vector<4x416xf32>
    %1169 = arith.mulf %1167, %1168 : vector<4x416xf32>
    %1170 = arith.addf %1163, %1169 : vector<4x416xf32>
    %1171 = vector.extract_strided_slice %3 {offsets = [0, 85], sizes = [4, 1], strides = [1, 1]} : vector<4x196xf32> to vector<4x1xf32>
    %1172 = vector.extract_strided_slice %1164 {offsets = [1, 0], sizes = [1, 416], strides = [1, 1]} : vector<4x416xf32> to vector<1x416xf32>
    %1173 = vector.broadcast %1171 : vector<4x1xf32> to vector<4x416xf32>
    %1174 = vector.broadcast %1172 : vector<1x416xf32> to vector<4x416xf32>
    %1175 = arith.mulf %1173, %1174 : vector<4x416xf32>
    %1176 = arith.addf %1170, %1175 : vector<4x416xf32>
    %1177 = vector.extract_strided_slice %3 {offsets = [0, 86], sizes = [4, 1], strides = [1, 1]} : vector<4x196xf32> to vector<4x1xf32>
    %1178 = vector.extract_strided_slice %1164 {offsets = [2, 0], sizes = [1, 416], strides = [1, 1]} : vector<4x416xf32> to vector<1x416xf32>
    %1179 = vector.broadcast %1177 : vector<4x1xf32> to vector<4x416xf32>
    %1180 = vector.broadcast %1178 : vector<1x416xf32> to vector<4x416xf32>
    %1181 = arith.mulf %1179, %1180 : vector<4x416xf32>
    %1182 = arith.addf %1176, %1181 : vector<4x416xf32>
    %1183 = vector.extract_strided_slice %3 {offsets = [0, 87], sizes = [4, 1], strides = [1, 1]} : vector<4x196xf32> to vector<4x1xf32>
    %1184 = vector.extract_strided_slice %1164 {offsets = [3, 0], sizes = [1, 416], strides = [1, 1]} : vector<4x416xf32> to vector<1x416xf32>
    %1185 = vector.broadcast %1183 : vector<4x1xf32> to vector<4x416xf32>
    %1186 = vector.broadcast %1184 : vector<1x416xf32> to vector<4x416xf32>
    %1187 = arith.mulf %1185, %1186 : vector<4x416xf32>
    %1188 = arith.addf %1182, %1187 : vector<4x416xf32>
    %1189 = vector.extract_strided_slice %637 {offsets = [0, 79], sizes = [4, 416], strides = [1, 1]} : vector<4x640xf32> to vector<4x416xf32>
    %1190 = vector.extract_strided_slice %3 {offsets = [0, 88], sizes = [4, 1], strides = [1, 1]} : vector<4x196xf32> to vector<4x1xf32>
    %1191 = vector.extract_strided_slice %1189 {offsets = [0, 0], sizes = [1, 416], strides = [1, 1]} : vector<4x416xf32> to vector<1x416xf32>
    %1192 = vector.broadcast %1190 : vector<4x1xf32> to vector<4x416xf32>
    %1193 = vector.broadcast %1191 : vector<1x416xf32> to vector<4x416xf32>
    %1194 = arith.mulf %1192, %1193 : vector<4x416xf32>
    %1195 = arith.addf %1188, %1194 : vector<4x416xf32>
    %1196 = vector.extract_strided_slice %3 {offsets = [0, 89], sizes = [4, 1], strides = [1, 1]} : vector<4x196xf32> to vector<4x1xf32>
    %1197 = vector.extract_strided_slice %1189 {offsets = [1, 0], sizes = [1, 416], strides = [1, 1]} : vector<4x416xf32> to vector<1x416xf32>
    %1198 = vector.broadcast %1196 : vector<4x1xf32> to vector<4x416xf32>
    %1199 = vector.broadcast %1197 : vector<1x416xf32> to vector<4x416xf32>
    %1200 = arith.mulf %1198, %1199 : vector<4x416xf32>
    %1201 = arith.addf %1195, %1200 : vector<4x416xf32>
    %1202 = vector.extract_strided_slice %3 {offsets = [0, 90], sizes = [4, 1], strides = [1, 1]} : vector<4x196xf32> to vector<4x1xf32>
    %1203 = vector.extract_strided_slice %1189 {offsets = [2, 0], sizes = [1, 416], strides = [1, 1]} : vector<4x416xf32> to vector<1x416xf32>
    %1204 = vector.broadcast %1202 : vector<4x1xf32> to vector<4x416xf32>
    %1205 = vector.broadcast %1203 : vector<1x416xf32> to vector<4x416xf32>
    %1206 = arith.mulf %1204, %1205 : vector<4x416xf32>
    %1207 = arith.addf %1201, %1206 : vector<4x416xf32>
    %1208 = vector.extract_strided_slice %3 {offsets = [0, 91], sizes = [4, 1], strides = [1, 1]} : vector<4x196xf32> to vector<4x1xf32>
    %1209 = vector.extract_strided_slice %1189 {offsets = [3, 0], sizes = [1, 416], strides = [1, 1]} : vector<4x416xf32> to vector<1x416xf32>
    %1210 = vector.broadcast %1208 : vector<4x1xf32> to vector<4x416xf32>
    %1211 = vector.broadcast %1209 : vector<1x416xf32> to vector<4x416xf32>
    %1212 = arith.mulf %1210, %1211 : vector<4x416xf32>
    %1213 = arith.addf %1207, %1212 : vector<4x416xf32>
    %1214 = vector.extract_strided_slice %637 {offsets = [0, 80], sizes = [4, 416], strides = [1, 1]} : vector<4x640xf32> to vector<4x416xf32>
    %1215 = vector.extract_strided_slice %3 {offsets = [0, 92], sizes = [4, 1], strides = [1, 1]} : vector<4x196xf32> to vector<4x1xf32>
    %1216 = vector.extract_strided_slice %1214 {offsets = [0, 0], sizes = [1, 416], strides = [1, 1]} : vector<4x416xf32> to vector<1x416xf32>
    %1217 = vector.broadcast %1215 : vector<4x1xf32> to vector<4x416xf32>
    %1218 = vector.broadcast %1216 : vector<1x416xf32> to vector<4x416xf32>
    %1219 = arith.mulf %1217, %1218 : vector<4x416xf32>
    %1220 = arith.addf %1213, %1219 : vector<4x416xf32>
    %1221 = vector.extract_strided_slice %3 {offsets = [0, 93], sizes = [4, 1], strides = [1, 1]} : vector<4x196xf32> to vector<4x1xf32>
    %1222 = vector.extract_strided_slice %1214 {offsets = [1, 0], sizes = [1, 416], strides = [1, 1]} : vector<4x416xf32> to vector<1x416xf32>
    %1223 = vector.broadcast %1221 : vector<4x1xf32> to vector<4x416xf32>
    %1224 = vector.broadcast %1222 : vector<1x416xf32> to vector<4x416xf32>
    %1225 = arith.mulf %1223, %1224 : vector<4x416xf32>
    %1226 = arith.addf %1220, %1225 : vector<4x416xf32>
    %1227 = vector.extract_strided_slice %3 {offsets = [0, 94], sizes = [4, 1], strides = [1, 1]} : vector<4x196xf32> to vector<4x1xf32>
    %1228 = vector.extract_strided_slice %1214 {offsets = [2, 0], sizes = [1, 416], strides = [1, 1]} : vector<4x416xf32> to vector<1x416xf32>
    %1229 = vector.broadcast %1227 : vector<4x1xf32> to vector<4x416xf32>
    %1230 = vector.broadcast %1228 : vector<1x416xf32> to vector<4x416xf32>
    %1231 = arith.mulf %1229, %1230 : vector<4x416xf32>
    %1232 = arith.addf %1226, %1231 : vector<4x416xf32>
    %1233 = vector.extract_strided_slice %3 {offsets = [0, 95], sizes = [4, 1], strides = [1, 1]} : vector<4x196xf32> to vector<4x1xf32>
    %1234 = vector.extract_strided_slice %1214 {offsets = [3, 0], sizes = [1, 416], strides = [1, 1]} : vector<4x416xf32> to vector<1x416xf32>
    %1235 = vector.broadcast %1233 : vector<4x1xf32> to vector<4x416xf32>
    %1236 = vector.broadcast %1234 : vector<1x416xf32> to vector<4x416xf32>
    %1237 = arith.mulf %1235, %1236 : vector<4x416xf32>
    %1238 = arith.addf %1232, %1237 : vector<4x416xf32>
    %1239 = vector.extract_strided_slice %637 {offsets = [0, 81], sizes = [4, 416], strides = [1, 1]} : vector<4x640xf32> to vector<4x416xf32>
    %1240 = vector.extract_strided_slice %3 {offsets = [0, 96], sizes = [4, 1], strides = [1, 1]} : vector<4x196xf32> to vector<4x1xf32>
    %1241 = vector.extract_strided_slice %1239 {offsets = [0, 0], sizes = [1, 416], strides = [1, 1]} : vector<4x416xf32> to vector<1x416xf32>
    %1242 = vector.broadcast %1240 : vector<4x1xf32> to vector<4x416xf32>
    %1243 = vector.broadcast %1241 : vector<1x416xf32> to vector<4x416xf32>
    %1244 = arith.mulf %1242, %1243 : vector<4x416xf32>
    %1245 = arith.addf %1238, %1244 : vector<4x416xf32>
    %1246 = vector.extract_strided_slice %3 {offsets = [0, 97], sizes = [4, 1], strides = [1, 1]} : vector<4x196xf32> to vector<4x1xf32>
    %1247 = vector.extract_strided_slice %1239 {offsets = [1, 0], sizes = [1, 416], strides = [1, 1]} : vector<4x416xf32> to vector<1x416xf32>
    %1248 = vector.broadcast %1246 : vector<4x1xf32> to vector<4x416xf32>
    %1249 = vector.broadcast %1247 : vector<1x416xf32> to vector<4x416xf32>
    %1250 = arith.mulf %1248, %1249 : vector<4x416xf32>
    %1251 = arith.addf %1245, %1250 : vector<4x416xf32>
    %1252 = vector.extract_strided_slice %3 {offsets = [0, 98], sizes = [4, 1], strides = [1, 1]} : vector<4x196xf32> to vector<4x1xf32>
    %1253 = vector.extract_strided_slice %1239 {offsets = [2, 0], sizes = [1, 416], strides = [1, 1]} : vector<4x416xf32> to vector<1x416xf32>
    %1254 = vector.broadcast %1252 : vector<4x1xf32> to vector<4x416xf32>
    %1255 = vector.broadcast %1253 : vector<1x416xf32> to vector<4x416xf32>
    %1256 = arith.mulf %1254, %1255 : vector<4x416xf32>
    %1257 = arith.addf %1251, %1256 : vector<4x416xf32>
    %1258 = vector.extract_strided_slice %3 {offsets = [0, 99], sizes = [4, 1], strides = [1, 1]} : vector<4x196xf32> to vector<4x1xf32>
    %1259 = vector.extract_strided_slice %1239 {offsets = [3, 0], sizes = [1, 416], strides = [1, 1]} : vector<4x416xf32> to vector<1x416xf32>
    %1260 = vector.broadcast %1258 : vector<4x1xf32> to vector<4x416xf32>
    %1261 = vector.broadcast %1259 : vector<1x416xf32> to vector<4x416xf32>
    %1262 = arith.mulf %1260, %1261 : vector<4x416xf32>
    %1263 = arith.addf %1257, %1262 : vector<4x416xf32>
    %1264 = vector.extract_strided_slice %637 {offsets = [0, 82], sizes = [4, 416], strides = [1, 1]} : vector<4x640xf32> to vector<4x416xf32>
    %1265 = vector.extract_strided_slice %3 {offsets = [0, 100], sizes = [4, 1], strides = [1, 1]} : vector<4x196xf32> to vector<4x1xf32>
    %1266 = vector.extract_strided_slice %1264 {offsets = [0, 0], sizes = [1, 416], strides = [1, 1]} : vector<4x416xf32> to vector<1x416xf32>
    %1267 = vector.broadcast %1265 : vector<4x1xf32> to vector<4x416xf32>
    %1268 = vector.broadcast %1266 : vector<1x416xf32> to vector<4x416xf32>
    %1269 = arith.mulf %1267, %1268 : vector<4x416xf32>
    %1270 = arith.addf %1263, %1269 : vector<4x416xf32>
    %1271 = vector.extract_strided_slice %3 {offsets = [0, 101], sizes = [4, 1], strides = [1, 1]} : vector<4x196xf32> to vector<4x1xf32>
    %1272 = vector.extract_strided_slice %1264 {offsets = [1, 0], sizes = [1, 416], strides = [1, 1]} : vector<4x416xf32> to vector<1x416xf32>
    %1273 = vector.broadcast %1271 : vector<4x1xf32> to vector<4x416xf32>
    %1274 = vector.broadcast %1272 : vector<1x416xf32> to vector<4x416xf32>
    %1275 = arith.mulf %1273, %1274 : vector<4x416xf32>
    %1276 = arith.addf %1270, %1275 : vector<4x416xf32>
    %1277 = vector.extract_strided_slice %3 {offsets = [0, 102], sizes = [4, 1], strides = [1, 1]} : vector<4x196xf32> to vector<4x1xf32>
    %1278 = vector.extract_strided_slice %1264 {offsets = [2, 0], sizes = [1, 416], strides = [1, 1]} : vector<4x416xf32> to vector<1x416xf32>
    %1279 = vector.broadcast %1277 : vector<4x1xf32> to vector<4x416xf32>
    %1280 = vector.broadcast %1278 : vector<1x416xf32> to vector<4x416xf32>
    %1281 = arith.mulf %1279, %1280 : vector<4x416xf32>
    %1282 = arith.addf %1276, %1281 : vector<4x416xf32>
    %1283 = vector.extract_strided_slice %3 {offsets = [0, 103], sizes = [4, 1], strides = [1, 1]} : vector<4x196xf32> to vector<4x1xf32>
    %1284 = vector.extract_strided_slice %1264 {offsets = [3, 0], sizes = [1, 416], strides = [1, 1]} : vector<4x416xf32> to vector<1x416xf32>
    %1285 = vector.broadcast %1283 : vector<4x1xf32> to vector<4x416xf32>
    %1286 = vector.broadcast %1284 : vector<1x416xf32> to vector<4x416xf32>
    %1287 = arith.mulf %1285, %1286 : vector<4x416xf32>
    %1288 = arith.addf %1282, %1287 : vector<4x416xf32>
    %1289 = vector.extract_strided_slice %637 {offsets = [0, 83], sizes = [4, 416], strides = [1, 1]} : vector<4x640xf32> to vector<4x416xf32>
    %1290 = vector.extract_strided_slice %3 {offsets = [0, 104], sizes = [4, 1], strides = [1, 1]} : vector<4x196xf32> to vector<4x1xf32>
    %1291 = vector.extract_strided_slice %1289 {offsets = [0, 0], sizes = [1, 416], strides = [1, 1]} : vector<4x416xf32> to vector<1x416xf32>
    %1292 = vector.broadcast %1290 : vector<4x1xf32> to vector<4x416xf32>
    %1293 = vector.broadcast %1291 : vector<1x416xf32> to vector<4x416xf32>
    %1294 = arith.mulf %1292, %1293 : vector<4x416xf32>
    %1295 = arith.addf %1288, %1294 : vector<4x416xf32>
    %1296 = vector.extract_strided_slice %3 {offsets = [0, 105], sizes = [4, 1], strides = [1, 1]} : vector<4x196xf32> to vector<4x1xf32>
    %1297 = vector.extract_strided_slice %1289 {offsets = [1, 0], sizes = [1, 416], strides = [1, 1]} : vector<4x416xf32> to vector<1x416xf32>
    %1298 = vector.broadcast %1296 : vector<4x1xf32> to vector<4x416xf32>
    %1299 = vector.broadcast %1297 : vector<1x416xf32> to vector<4x416xf32>
    %1300 = arith.mulf %1298, %1299 : vector<4x416xf32>
    %1301 = arith.addf %1295, %1300 : vector<4x416xf32>
    %1302 = vector.extract_strided_slice %3 {offsets = [0, 106], sizes = [4, 1], strides = [1, 1]} : vector<4x196xf32> to vector<4x1xf32>
    %1303 = vector.extract_strided_slice %1289 {offsets = [2, 0], sizes = [1, 416], strides = [1, 1]} : vector<4x416xf32> to vector<1x416xf32>
    %1304 = vector.broadcast %1302 : vector<4x1xf32> to vector<4x416xf32>
    %1305 = vector.broadcast %1303 : vector<1x416xf32> to vector<4x416xf32>
    %1306 = arith.mulf %1304, %1305 : vector<4x416xf32>
    %1307 = arith.addf %1301, %1306 : vector<4x416xf32>
    %1308 = vector.extract_strided_slice %3 {offsets = [0, 107], sizes = [4, 1], strides = [1, 1]} : vector<4x196xf32> to vector<4x1xf32>
    %1309 = vector.extract_strided_slice %1289 {offsets = [3, 0], sizes = [1, 416], strides = [1, 1]} : vector<4x416xf32> to vector<1x416xf32>
    %1310 = vector.broadcast %1308 : vector<4x1xf32> to vector<4x416xf32>
    %1311 = vector.broadcast %1309 : vector<1x416xf32> to vector<4x416xf32>
    %1312 = arith.mulf %1310, %1311 : vector<4x416xf32>
    %1313 = arith.addf %1307, %1312 : vector<4x416xf32>
    %1314 = vector.extract_strided_slice %637 {offsets = [0, 84], sizes = [4, 416], strides = [1, 1]} : vector<4x640xf32> to vector<4x416xf32>
    %1315 = vector.extract_strided_slice %3 {offsets = [0, 108], sizes = [4, 1], strides = [1, 1]} : vector<4x196xf32> to vector<4x1xf32>
    %1316 = vector.extract_strided_slice %1314 {offsets = [0, 0], sizes = [1, 416], strides = [1, 1]} : vector<4x416xf32> to vector<1x416xf32>
    %1317 = vector.broadcast %1315 : vector<4x1xf32> to vector<4x416xf32>
    %1318 = vector.broadcast %1316 : vector<1x416xf32> to vector<4x416xf32>
    %1319 = arith.mulf %1317, %1318 : vector<4x416xf32>
    %1320 = arith.addf %1313, %1319 : vector<4x416xf32>
    %1321 = vector.extract_strided_slice %3 {offsets = [0, 109], sizes = [4, 1], strides = [1, 1]} : vector<4x196xf32> to vector<4x1xf32>
    %1322 = vector.extract_strided_slice %1314 {offsets = [1, 0], sizes = [1, 416], strides = [1, 1]} : vector<4x416xf32> to vector<1x416xf32>
    %1323 = vector.broadcast %1321 : vector<4x1xf32> to vector<4x416xf32>
    %1324 = vector.broadcast %1322 : vector<1x416xf32> to vector<4x416xf32>
    %1325 = arith.mulf %1323, %1324 : vector<4x416xf32>
    %1326 = arith.addf %1320, %1325 : vector<4x416xf32>
    %1327 = vector.extract_strided_slice %3 {offsets = [0, 110], sizes = [4, 1], strides = [1, 1]} : vector<4x196xf32> to vector<4x1xf32>
    %1328 = vector.extract_strided_slice %1314 {offsets = [2, 0], sizes = [1, 416], strides = [1, 1]} : vector<4x416xf32> to vector<1x416xf32>
    %1329 = vector.broadcast %1327 : vector<4x1xf32> to vector<4x416xf32>
    %1330 = vector.broadcast %1328 : vector<1x416xf32> to vector<4x416xf32>
    %1331 = arith.mulf %1329, %1330 : vector<4x416xf32>
    %1332 = arith.addf %1326, %1331 : vector<4x416xf32>
    %1333 = vector.extract_strided_slice %3 {offsets = [0, 111], sizes = [4, 1], strides = [1, 1]} : vector<4x196xf32> to vector<4x1xf32>
    %1334 = vector.extract_strided_slice %1314 {offsets = [3, 0], sizes = [1, 416], strides = [1, 1]} : vector<4x416xf32> to vector<1x416xf32>
    %1335 = vector.broadcast %1333 : vector<4x1xf32> to vector<4x416xf32>
    %1336 = vector.broadcast %1334 : vector<1x416xf32> to vector<4x416xf32>
    %1337 = arith.mulf %1335, %1336 : vector<4x416xf32>
    %1338 = arith.addf %1332, %1337 : vector<4x416xf32>
    %1339 = vector.extract_strided_slice %637 {offsets = [0, 104], sizes = [4, 416], strides = [1, 1]} : vector<4x640xf32> to vector<4x416xf32>
    %1340 = vector.extract_strided_slice %3 {offsets = [0, 112], sizes = [4, 1], strides = [1, 1]} : vector<4x196xf32> to vector<4x1xf32>
    %1341 = vector.extract_strided_slice %1339 {offsets = [0, 0], sizes = [1, 416], strides = [1, 1]} : vector<4x416xf32> to vector<1x416xf32>
    %1342 = vector.broadcast %1340 : vector<4x1xf32> to vector<4x416xf32>
    %1343 = vector.broadcast %1341 : vector<1x416xf32> to vector<4x416xf32>
    %1344 = arith.mulf %1342, %1343 : vector<4x416xf32>
    %1345 = arith.addf %1338, %1344 : vector<4x416xf32>
    %1346 = vector.extract_strided_slice %3 {offsets = [0, 113], sizes = [4, 1], strides = [1, 1]} : vector<4x196xf32> to vector<4x1xf32>
    %1347 = vector.extract_strided_slice %1339 {offsets = [1, 0], sizes = [1, 416], strides = [1, 1]} : vector<4x416xf32> to vector<1x416xf32>
    %1348 = vector.broadcast %1346 : vector<4x1xf32> to vector<4x416xf32>
    %1349 = vector.broadcast %1347 : vector<1x416xf32> to vector<4x416xf32>
    %1350 = arith.mulf %1348, %1349 : vector<4x416xf32>
    %1351 = arith.addf %1345, %1350 : vector<4x416xf32>
    %1352 = vector.extract_strided_slice %3 {offsets = [0, 114], sizes = [4, 1], strides = [1, 1]} : vector<4x196xf32> to vector<4x1xf32>
    %1353 = vector.extract_strided_slice %1339 {offsets = [2, 0], sizes = [1, 416], strides = [1, 1]} : vector<4x416xf32> to vector<1x416xf32>
    %1354 = vector.broadcast %1352 : vector<4x1xf32> to vector<4x416xf32>
    %1355 = vector.broadcast %1353 : vector<1x416xf32> to vector<4x416xf32>
    %1356 = arith.mulf %1354, %1355 : vector<4x416xf32>
    %1357 = arith.addf %1351, %1356 : vector<4x416xf32>
    %1358 = vector.extract_strided_slice %3 {offsets = [0, 115], sizes = [4, 1], strides = [1, 1]} : vector<4x196xf32> to vector<4x1xf32>
    %1359 = vector.extract_strided_slice %1339 {offsets = [3, 0], sizes = [1, 416], strides = [1, 1]} : vector<4x416xf32> to vector<1x416xf32>
    %1360 = vector.broadcast %1358 : vector<4x1xf32> to vector<4x416xf32>
    %1361 = vector.broadcast %1359 : vector<1x416xf32> to vector<4x416xf32>
    %1362 = arith.mulf %1360, %1361 : vector<4x416xf32>
    %1363 = arith.addf %1357, %1362 : vector<4x416xf32>
    %1364 = vector.extract_strided_slice %637 {offsets = [0, 105], sizes = [4, 416], strides = [1, 1]} : vector<4x640xf32> to vector<4x416xf32>
    %1365 = vector.extract_strided_slice %3 {offsets = [0, 116], sizes = [4, 1], strides = [1, 1]} : vector<4x196xf32> to vector<4x1xf32>
    %1366 = vector.extract_strided_slice %1364 {offsets = [0, 0], sizes = [1, 416], strides = [1, 1]} : vector<4x416xf32> to vector<1x416xf32>
    %1367 = vector.broadcast %1365 : vector<4x1xf32> to vector<4x416xf32>
    %1368 = vector.broadcast %1366 : vector<1x416xf32> to vector<4x416xf32>
    %1369 = arith.mulf %1367, %1368 : vector<4x416xf32>
    %1370 = arith.addf %1363, %1369 : vector<4x416xf32>
    %1371 = vector.extract_strided_slice %3 {offsets = [0, 117], sizes = [4, 1], strides = [1, 1]} : vector<4x196xf32> to vector<4x1xf32>
    %1372 = vector.extract_strided_slice %1364 {offsets = [1, 0], sizes = [1, 416], strides = [1, 1]} : vector<4x416xf32> to vector<1x416xf32>
    %1373 = vector.broadcast %1371 : vector<4x1xf32> to vector<4x416xf32>
    %1374 = vector.broadcast %1372 : vector<1x416xf32> to vector<4x416xf32>
    %1375 = arith.mulf %1373, %1374 : vector<4x416xf32>
    %1376 = arith.addf %1370, %1375 : vector<4x416xf32>
    %1377 = vector.extract_strided_slice %3 {offsets = [0, 118], sizes = [4, 1], strides = [1, 1]} : vector<4x196xf32> to vector<4x1xf32>
    %1378 = vector.extract_strided_slice %1364 {offsets = [2, 0], sizes = [1, 416], strides = [1, 1]} : vector<4x416xf32> to vector<1x416xf32>
    %1379 = vector.broadcast %1377 : vector<4x1xf32> to vector<4x416xf32>
    %1380 = vector.broadcast %1378 : vector<1x416xf32> to vector<4x416xf32>
    %1381 = arith.mulf %1379, %1380 : vector<4x416xf32>
    %1382 = arith.addf %1376, %1381 : vector<4x416xf32>
    %1383 = vector.extract_strided_slice %3 {offsets = [0, 119], sizes = [4, 1], strides = [1, 1]} : vector<4x196xf32> to vector<4x1xf32>
    %1384 = vector.extract_strided_slice %1364 {offsets = [3, 0], sizes = [1, 416], strides = [1, 1]} : vector<4x416xf32> to vector<1x416xf32>
    %1385 = vector.broadcast %1383 : vector<4x1xf32> to vector<4x416xf32>
    %1386 = vector.broadcast %1384 : vector<1x416xf32> to vector<4x416xf32>
    %1387 = arith.mulf %1385, %1386 : vector<4x416xf32>
    %1388 = arith.addf %1382, %1387 : vector<4x416xf32>
    %1389 = vector.extract_strided_slice %637 {offsets = [0, 106], sizes = [4, 416], strides = [1, 1]} : vector<4x640xf32> to vector<4x416xf32>
    %1390 = vector.extract_strided_slice %3 {offsets = [0, 120], sizes = [4, 1], strides = [1, 1]} : vector<4x196xf32> to vector<4x1xf32>
    %1391 = vector.extract_strided_slice %1389 {offsets = [0, 0], sizes = [1, 416], strides = [1, 1]} : vector<4x416xf32> to vector<1x416xf32>
    %1392 = vector.broadcast %1390 : vector<4x1xf32> to vector<4x416xf32>
    %1393 = vector.broadcast %1391 : vector<1x416xf32> to vector<4x416xf32>
    %1394 = arith.mulf %1392, %1393 : vector<4x416xf32>
    %1395 = arith.addf %1388, %1394 : vector<4x416xf32>
    %1396 = vector.extract_strided_slice %3 {offsets = [0, 121], sizes = [4, 1], strides = [1, 1]} : vector<4x196xf32> to vector<4x1xf32>
    %1397 = vector.extract_strided_slice %1389 {offsets = [1, 0], sizes = [1, 416], strides = [1, 1]} : vector<4x416xf32> to vector<1x416xf32>
    %1398 = vector.broadcast %1396 : vector<4x1xf32> to vector<4x416xf32>
    %1399 = vector.broadcast %1397 : vector<1x416xf32> to vector<4x416xf32>
    %1400 = arith.mulf %1398, %1399 : vector<4x416xf32>
    %1401 = arith.addf %1395, %1400 : vector<4x416xf32>
    %1402 = vector.extract_strided_slice %3 {offsets = [0, 122], sizes = [4, 1], strides = [1, 1]} : vector<4x196xf32> to vector<4x1xf32>
    %1403 = vector.extract_strided_slice %1389 {offsets = [2, 0], sizes = [1, 416], strides = [1, 1]} : vector<4x416xf32> to vector<1x416xf32>
    %1404 = vector.broadcast %1402 : vector<4x1xf32> to vector<4x416xf32>
    %1405 = vector.broadcast %1403 : vector<1x416xf32> to vector<4x416xf32>
    %1406 = arith.mulf %1404, %1405 : vector<4x416xf32>
    %1407 = arith.addf %1401, %1406 : vector<4x416xf32>
    %1408 = vector.extract_strided_slice %3 {offsets = [0, 123], sizes = [4, 1], strides = [1, 1]} : vector<4x196xf32> to vector<4x1xf32>
    %1409 = vector.extract_strided_slice %1389 {offsets = [3, 0], sizes = [1, 416], strides = [1, 1]} : vector<4x416xf32> to vector<1x416xf32>
    %1410 = vector.broadcast %1408 : vector<4x1xf32> to vector<4x416xf32>
    %1411 = vector.broadcast %1409 : vector<1x416xf32> to vector<4x416xf32>
    %1412 = arith.mulf %1410, %1411 : vector<4x416xf32>
    %1413 = arith.addf %1407, %1412 : vector<4x416xf32>
    %1414 = vector.extract_strided_slice %637 {offsets = [0, 107], sizes = [4, 416], strides = [1, 1]} : vector<4x640xf32> to vector<4x416xf32>
    %1415 = vector.extract_strided_slice %3 {offsets = [0, 124], sizes = [4, 1], strides = [1, 1]} : vector<4x196xf32> to vector<4x1xf32>
    %1416 = vector.extract_strided_slice %1414 {offsets = [0, 0], sizes = [1, 416], strides = [1, 1]} : vector<4x416xf32> to vector<1x416xf32>
    %1417 = vector.broadcast %1415 : vector<4x1xf32> to vector<4x416xf32>
    %1418 = vector.broadcast %1416 : vector<1x416xf32> to vector<4x416xf32>
    %1419 = arith.mulf %1417, %1418 : vector<4x416xf32>
    %1420 = arith.addf %1413, %1419 : vector<4x416xf32>
    %1421 = vector.extract_strided_slice %3 {offsets = [0, 125], sizes = [4, 1], strides = [1, 1]} : vector<4x196xf32> to vector<4x1xf32>
    %1422 = vector.extract_strided_slice %1414 {offsets = [1, 0], sizes = [1, 416], strides = [1, 1]} : vector<4x416xf32> to vector<1x416xf32>
    %1423 = vector.broadcast %1421 : vector<4x1xf32> to vector<4x416xf32>
    %1424 = vector.broadcast %1422 : vector<1x416xf32> to vector<4x416xf32>
    %1425 = arith.mulf %1423, %1424 : vector<4x416xf32>
    %1426 = arith.addf %1420, %1425 : vector<4x416xf32>
    %1427 = vector.extract_strided_slice %3 {offsets = [0, 126], sizes = [4, 1], strides = [1, 1]} : vector<4x196xf32> to vector<4x1xf32>
    %1428 = vector.extract_strided_slice %1414 {offsets = [2, 0], sizes = [1, 416], strides = [1, 1]} : vector<4x416xf32> to vector<1x416xf32>
    %1429 = vector.broadcast %1427 : vector<4x1xf32> to vector<4x416xf32>
    %1430 = vector.broadcast %1428 : vector<1x416xf32> to vector<4x416xf32>
    %1431 = arith.mulf %1429, %1430 : vector<4x416xf32>
    %1432 = arith.addf %1426, %1431 : vector<4x416xf32>
    %1433 = vector.extract_strided_slice %3 {offsets = [0, 127], sizes = [4, 1], strides = [1, 1]} : vector<4x196xf32> to vector<4x1xf32>
    %1434 = vector.extract_strided_slice %1414 {offsets = [3, 0], sizes = [1, 416], strides = [1, 1]} : vector<4x416xf32> to vector<1x416xf32>
    %1435 = vector.broadcast %1433 : vector<4x1xf32> to vector<4x416xf32>
    %1436 = vector.broadcast %1434 : vector<1x416xf32> to vector<4x416xf32>
    %1437 = arith.mulf %1435, %1436 : vector<4x416xf32>
    %1438 = arith.addf %1432, %1437 : vector<4x416xf32>
    %1439 = vector.extract_strided_slice %637 {offsets = [0, 108], sizes = [4, 416], strides = [1, 1]} : vector<4x640xf32> to vector<4x416xf32>
    %1440 = vector.extract_strided_slice %3 {offsets = [0, 128], sizes = [4, 1], strides = [1, 1]} : vector<4x196xf32> to vector<4x1xf32>
    %1441 = vector.extract_strided_slice %1439 {offsets = [0, 0], sizes = [1, 416], strides = [1, 1]} : vector<4x416xf32> to vector<1x416xf32>
    %1442 = vector.broadcast %1440 : vector<4x1xf32> to vector<4x416xf32>
    %1443 = vector.broadcast %1441 : vector<1x416xf32> to vector<4x416xf32>
    %1444 = arith.mulf %1442, %1443 : vector<4x416xf32>
    %1445 = arith.addf %1438, %1444 : vector<4x416xf32>
    %1446 = vector.extract_strided_slice %3 {offsets = [0, 129], sizes = [4, 1], strides = [1, 1]} : vector<4x196xf32> to vector<4x1xf32>
    %1447 = vector.extract_strided_slice %1439 {offsets = [1, 0], sizes = [1, 416], strides = [1, 1]} : vector<4x416xf32> to vector<1x416xf32>
    %1448 = vector.broadcast %1446 : vector<4x1xf32> to vector<4x416xf32>
    %1449 = vector.broadcast %1447 : vector<1x416xf32> to vector<4x416xf32>
    %1450 = arith.mulf %1448, %1449 : vector<4x416xf32>
    %1451 = arith.addf %1445, %1450 : vector<4x416xf32>
    %1452 = vector.extract_strided_slice %3 {offsets = [0, 130], sizes = [4, 1], strides = [1, 1]} : vector<4x196xf32> to vector<4x1xf32>
    %1453 = vector.extract_strided_slice %1439 {offsets = [2, 0], sizes = [1, 416], strides = [1, 1]} : vector<4x416xf32> to vector<1x416xf32>
    %1454 = vector.broadcast %1452 : vector<4x1xf32> to vector<4x416xf32>
    %1455 = vector.broadcast %1453 : vector<1x416xf32> to vector<4x416xf32>
    %1456 = arith.mulf %1454, %1455 : vector<4x416xf32>
    %1457 = arith.addf %1451, %1456 : vector<4x416xf32>
    %1458 = vector.extract_strided_slice %3 {offsets = [0, 131], sizes = [4, 1], strides = [1, 1]} : vector<4x196xf32> to vector<4x1xf32>
    %1459 = vector.extract_strided_slice %1439 {offsets = [3, 0], sizes = [1, 416], strides = [1, 1]} : vector<4x416xf32> to vector<1x416xf32>
    %1460 = vector.broadcast %1458 : vector<4x1xf32> to vector<4x416xf32>
    %1461 = vector.broadcast %1459 : vector<1x416xf32> to vector<4x416xf32>
    %1462 = arith.mulf %1460, %1461 : vector<4x416xf32>
    %1463 = arith.addf %1457, %1462 : vector<4x416xf32>
    %1464 = vector.extract_strided_slice %637 {offsets = [0, 109], sizes = [4, 416], strides = [1, 1]} : vector<4x640xf32> to vector<4x416xf32>
    %1465 = vector.extract_strided_slice %3 {offsets = [0, 132], sizes = [4, 1], strides = [1, 1]} : vector<4x196xf32> to vector<4x1xf32>
    %1466 = vector.extract_strided_slice %1464 {offsets = [0, 0], sizes = [1, 416], strides = [1, 1]} : vector<4x416xf32> to vector<1x416xf32>
    %1467 = vector.broadcast %1465 : vector<4x1xf32> to vector<4x416xf32>
    %1468 = vector.broadcast %1466 : vector<1x416xf32> to vector<4x416xf32>
    %1469 = arith.mulf %1467, %1468 : vector<4x416xf32>
    %1470 = arith.addf %1463, %1469 : vector<4x416xf32>
    %1471 = vector.extract_strided_slice %3 {offsets = [0, 133], sizes = [4, 1], strides = [1, 1]} : vector<4x196xf32> to vector<4x1xf32>
    %1472 = vector.extract_strided_slice %1464 {offsets = [1, 0], sizes = [1, 416], strides = [1, 1]} : vector<4x416xf32> to vector<1x416xf32>
    %1473 = vector.broadcast %1471 : vector<4x1xf32> to vector<4x416xf32>
    %1474 = vector.broadcast %1472 : vector<1x416xf32> to vector<4x416xf32>
    %1475 = arith.mulf %1473, %1474 : vector<4x416xf32>
    %1476 = arith.addf %1470, %1475 : vector<4x416xf32>
    %1477 = vector.extract_strided_slice %3 {offsets = [0, 134], sizes = [4, 1], strides = [1, 1]} : vector<4x196xf32> to vector<4x1xf32>
    %1478 = vector.extract_strided_slice %1464 {offsets = [2, 0], sizes = [1, 416], strides = [1, 1]} : vector<4x416xf32> to vector<1x416xf32>
    %1479 = vector.broadcast %1477 : vector<4x1xf32> to vector<4x416xf32>
    %1480 = vector.broadcast %1478 : vector<1x416xf32> to vector<4x416xf32>
    %1481 = arith.mulf %1479, %1480 : vector<4x416xf32>
    %1482 = arith.addf %1476, %1481 : vector<4x416xf32>
    %1483 = vector.extract_strided_slice %3 {offsets = [0, 135], sizes = [4, 1], strides = [1, 1]} : vector<4x196xf32> to vector<4x1xf32>
    %1484 = vector.extract_strided_slice %1464 {offsets = [3, 0], sizes = [1, 416], strides = [1, 1]} : vector<4x416xf32> to vector<1x416xf32>
    %1485 = vector.broadcast %1483 : vector<4x1xf32> to vector<4x416xf32>
    %1486 = vector.broadcast %1484 : vector<1x416xf32> to vector<4x416xf32>
    %1487 = arith.mulf %1485, %1486 : vector<4x416xf32>
    %1488 = arith.addf %1482, %1487 : vector<4x416xf32>
    %1489 = vector.extract_strided_slice %637 {offsets = [0, 110], sizes = [4, 416], strides = [1, 1]} : vector<4x640xf32> to vector<4x416xf32>
    %1490 = vector.extract_strided_slice %3 {offsets = [0, 136], sizes = [4, 1], strides = [1, 1]} : vector<4x196xf32> to vector<4x1xf32>
    %1491 = vector.extract_strided_slice %1489 {offsets = [0, 0], sizes = [1, 416], strides = [1, 1]} : vector<4x416xf32> to vector<1x416xf32>
    %1492 = vector.broadcast %1490 : vector<4x1xf32> to vector<4x416xf32>
    %1493 = vector.broadcast %1491 : vector<1x416xf32> to vector<4x416xf32>
    %1494 = arith.mulf %1492, %1493 : vector<4x416xf32>
    %1495 = arith.addf %1488, %1494 : vector<4x416xf32>
    %1496 = vector.extract_strided_slice %3 {offsets = [0, 137], sizes = [4, 1], strides = [1, 1]} : vector<4x196xf32> to vector<4x1xf32>
    %1497 = vector.extract_strided_slice %1489 {offsets = [1, 0], sizes = [1, 416], strides = [1, 1]} : vector<4x416xf32> to vector<1x416xf32>
    %1498 = vector.broadcast %1496 : vector<4x1xf32> to vector<4x416xf32>
    %1499 = vector.broadcast %1497 : vector<1x416xf32> to vector<4x416xf32>
    %1500 = arith.mulf %1498, %1499 : vector<4x416xf32>
    %1501 = arith.addf %1495, %1500 : vector<4x416xf32>
    %1502 = vector.extract_strided_slice %3 {offsets = [0, 138], sizes = [4, 1], strides = [1, 1]} : vector<4x196xf32> to vector<4x1xf32>
    %1503 = vector.extract_strided_slice %1489 {offsets = [2, 0], sizes = [1, 416], strides = [1, 1]} : vector<4x416xf32> to vector<1x416xf32>
    %1504 = vector.broadcast %1502 : vector<4x1xf32> to vector<4x416xf32>
    %1505 = vector.broadcast %1503 : vector<1x416xf32> to vector<4x416xf32>
    %1506 = arith.mulf %1504, %1505 : vector<4x416xf32>
    %1507 = arith.addf %1501, %1506 : vector<4x416xf32>
    %1508 = vector.extract_strided_slice %3 {offsets = [0, 139], sizes = [4, 1], strides = [1, 1]} : vector<4x196xf32> to vector<4x1xf32>
    %1509 = vector.extract_strided_slice %1489 {offsets = [3, 0], sizes = [1, 416], strides = [1, 1]} : vector<4x416xf32> to vector<1x416xf32>
    %1510 = vector.broadcast %1508 : vector<4x1xf32> to vector<4x416xf32>
    %1511 = vector.broadcast %1509 : vector<1x416xf32> to vector<4x416xf32>
    %1512 = arith.mulf %1510, %1511 : vector<4x416xf32>
    %1513 = arith.addf %1507, %1512 : vector<4x416xf32>
    %1514 = vector.extract_strided_slice %637 {offsets = [0, 130], sizes = [4, 416], strides = [1, 1]} : vector<4x640xf32> to vector<4x416xf32>
    %1515 = vector.extract_strided_slice %3 {offsets = [0, 140], sizes = [4, 1], strides = [1, 1]} : vector<4x196xf32> to vector<4x1xf32>
    %1516 = vector.extract_strided_slice %1514 {offsets = [0, 0], sizes = [1, 416], strides = [1, 1]} : vector<4x416xf32> to vector<1x416xf32>
    %1517 = vector.broadcast %1515 : vector<4x1xf32> to vector<4x416xf32>
    %1518 = vector.broadcast %1516 : vector<1x416xf32> to vector<4x416xf32>
    %1519 = arith.mulf %1517, %1518 : vector<4x416xf32>
    %1520 = arith.addf %1513, %1519 : vector<4x416xf32>
    %1521 = vector.extract_strided_slice %3 {offsets = [0, 141], sizes = [4, 1], strides = [1, 1]} : vector<4x196xf32> to vector<4x1xf32>
    %1522 = vector.extract_strided_slice %1514 {offsets = [1, 0], sizes = [1, 416], strides = [1, 1]} : vector<4x416xf32> to vector<1x416xf32>
    %1523 = vector.broadcast %1521 : vector<4x1xf32> to vector<4x416xf32>
    %1524 = vector.broadcast %1522 : vector<1x416xf32> to vector<4x416xf32>
    %1525 = arith.mulf %1523, %1524 : vector<4x416xf32>
    %1526 = arith.addf %1520, %1525 : vector<4x416xf32>
    %1527 = vector.extract_strided_slice %3 {offsets = [0, 142], sizes = [4, 1], strides = [1, 1]} : vector<4x196xf32> to vector<4x1xf32>
    %1528 = vector.extract_strided_slice %1514 {offsets = [2, 0], sizes = [1, 416], strides = [1, 1]} : vector<4x416xf32> to vector<1x416xf32>
    %1529 = vector.broadcast %1527 : vector<4x1xf32> to vector<4x416xf32>
    %1530 = vector.broadcast %1528 : vector<1x416xf32> to vector<4x416xf32>
    %1531 = arith.mulf %1529, %1530 : vector<4x416xf32>
    %1532 = arith.addf %1526, %1531 : vector<4x416xf32>
    %1533 = vector.extract_strided_slice %3 {offsets = [0, 143], sizes = [4, 1], strides = [1, 1]} : vector<4x196xf32> to vector<4x1xf32>
    %1534 = vector.extract_strided_slice %1514 {offsets = [3, 0], sizes = [1, 416], strides = [1, 1]} : vector<4x416xf32> to vector<1x416xf32>
    %1535 = vector.broadcast %1533 : vector<4x1xf32> to vector<4x416xf32>
    %1536 = vector.broadcast %1534 : vector<1x416xf32> to vector<4x416xf32>
    %1537 = arith.mulf %1535, %1536 : vector<4x416xf32>
    %1538 = arith.addf %1532, %1537 : vector<4x416xf32>
    %1539 = vector.extract_strided_slice %637 {offsets = [0, 131], sizes = [4, 416], strides = [1, 1]} : vector<4x640xf32> to vector<4x416xf32>
    %1540 = vector.extract_strided_slice %3 {offsets = [0, 144], sizes = [4, 1], strides = [1, 1]} : vector<4x196xf32> to vector<4x1xf32>
    %1541 = vector.extract_strided_slice %1539 {offsets = [0, 0], sizes = [1, 416], strides = [1, 1]} : vector<4x416xf32> to vector<1x416xf32>
    %1542 = vector.broadcast %1540 : vector<4x1xf32> to vector<4x416xf32>
    %1543 = vector.broadcast %1541 : vector<1x416xf32> to vector<4x416xf32>
    %1544 = arith.mulf %1542, %1543 : vector<4x416xf32>
    %1545 = arith.addf %1538, %1544 : vector<4x416xf32>
    %1546 = vector.extract_strided_slice %3 {offsets = [0, 145], sizes = [4, 1], strides = [1, 1]} : vector<4x196xf32> to vector<4x1xf32>
    %1547 = vector.extract_strided_slice %1539 {offsets = [1, 0], sizes = [1, 416], strides = [1, 1]} : vector<4x416xf32> to vector<1x416xf32>
    %1548 = vector.broadcast %1546 : vector<4x1xf32> to vector<4x416xf32>
    %1549 = vector.broadcast %1547 : vector<1x416xf32> to vector<4x416xf32>
    %1550 = arith.mulf %1548, %1549 : vector<4x416xf32>
    %1551 = arith.addf %1545, %1550 : vector<4x416xf32>
    %1552 = vector.extract_strided_slice %3 {offsets = [0, 146], sizes = [4, 1], strides = [1, 1]} : vector<4x196xf32> to vector<4x1xf32>
    %1553 = vector.extract_strided_slice %1539 {offsets = [2, 0], sizes = [1, 416], strides = [1, 1]} : vector<4x416xf32> to vector<1x416xf32>
    %1554 = vector.broadcast %1552 : vector<4x1xf32> to vector<4x416xf32>
    %1555 = vector.broadcast %1553 : vector<1x416xf32> to vector<4x416xf32>
    %1556 = arith.mulf %1554, %1555 : vector<4x416xf32>
    %1557 = arith.addf %1551, %1556 : vector<4x416xf32>
    %1558 = vector.extract_strided_slice %3 {offsets = [0, 147], sizes = [4, 1], strides = [1, 1]} : vector<4x196xf32> to vector<4x1xf32>
    %1559 = vector.extract_strided_slice %1539 {offsets = [3, 0], sizes = [1, 416], strides = [1, 1]} : vector<4x416xf32> to vector<1x416xf32>
    %1560 = vector.broadcast %1558 : vector<4x1xf32> to vector<4x416xf32>
    %1561 = vector.broadcast %1559 : vector<1x416xf32> to vector<4x416xf32>
    %1562 = arith.mulf %1560, %1561 : vector<4x416xf32>
    %1563 = arith.addf %1557, %1562 : vector<4x416xf32>
    %1564 = vector.extract_strided_slice %637 {offsets = [0, 132], sizes = [4, 416], strides = [1, 1]} : vector<4x640xf32> to vector<4x416xf32>
    %1565 = vector.extract_strided_slice %3 {offsets = [0, 148], sizes = [4, 1], strides = [1, 1]} : vector<4x196xf32> to vector<4x1xf32>
    %1566 = vector.extract_strided_slice %1564 {offsets = [0, 0], sizes = [1, 416], strides = [1, 1]} : vector<4x416xf32> to vector<1x416xf32>
    %1567 = vector.broadcast %1565 : vector<4x1xf32> to vector<4x416xf32>
    %1568 = vector.broadcast %1566 : vector<1x416xf32> to vector<4x416xf32>
    %1569 = arith.mulf %1567, %1568 : vector<4x416xf32>
    %1570 = arith.addf %1563, %1569 : vector<4x416xf32>
    %1571 = vector.extract_strided_slice %3 {offsets = [0, 149], sizes = [4, 1], strides = [1, 1]} : vector<4x196xf32> to vector<4x1xf32>
    %1572 = vector.extract_strided_slice %1564 {offsets = [1, 0], sizes = [1, 416], strides = [1, 1]} : vector<4x416xf32> to vector<1x416xf32>
    %1573 = vector.broadcast %1571 : vector<4x1xf32> to vector<4x416xf32>
    %1574 = vector.broadcast %1572 : vector<1x416xf32> to vector<4x416xf32>
    %1575 = arith.mulf %1573, %1574 : vector<4x416xf32>
    %1576 = arith.addf %1570, %1575 : vector<4x416xf32>
    %1577 = vector.extract_strided_slice %3 {offsets = [0, 150], sizes = [4, 1], strides = [1, 1]} : vector<4x196xf32> to vector<4x1xf32>
    %1578 = vector.extract_strided_slice %1564 {offsets = [2, 0], sizes = [1, 416], strides = [1, 1]} : vector<4x416xf32> to vector<1x416xf32>
    %1579 = vector.broadcast %1577 : vector<4x1xf32> to vector<4x416xf32>
    %1580 = vector.broadcast %1578 : vector<1x416xf32> to vector<4x416xf32>
    %1581 = arith.mulf %1579, %1580 : vector<4x416xf32>
    %1582 = arith.addf %1576, %1581 : vector<4x416xf32>
    %1583 = vector.extract_strided_slice %3 {offsets = [0, 151], sizes = [4, 1], strides = [1, 1]} : vector<4x196xf32> to vector<4x1xf32>
    %1584 = vector.extract_strided_slice %1564 {offsets = [3, 0], sizes = [1, 416], strides = [1, 1]} : vector<4x416xf32> to vector<1x416xf32>
    %1585 = vector.broadcast %1583 : vector<4x1xf32> to vector<4x416xf32>
    %1586 = vector.broadcast %1584 : vector<1x416xf32> to vector<4x416xf32>
    %1587 = arith.mulf %1585, %1586 : vector<4x416xf32>
    %1588 = arith.addf %1582, %1587 : vector<4x416xf32>
    %1589 = vector.extract_strided_slice %637 {offsets = [0, 133], sizes = [4, 416], strides = [1, 1]} : vector<4x640xf32> to vector<4x416xf32>
    %1590 = vector.extract_strided_slice %3 {offsets = [0, 152], sizes = [4, 1], strides = [1, 1]} : vector<4x196xf32> to vector<4x1xf32>
    %1591 = vector.extract_strided_slice %1589 {offsets = [0, 0], sizes = [1, 416], strides = [1, 1]} : vector<4x416xf32> to vector<1x416xf32>
    %1592 = vector.broadcast %1590 : vector<4x1xf32> to vector<4x416xf32>
    %1593 = vector.broadcast %1591 : vector<1x416xf32> to vector<4x416xf32>
    %1594 = arith.mulf %1592, %1593 : vector<4x416xf32>
    %1595 = arith.addf %1588, %1594 : vector<4x416xf32>
    %1596 = vector.extract_strided_slice %3 {offsets = [0, 153], sizes = [4, 1], strides = [1, 1]} : vector<4x196xf32> to vector<4x1xf32>
    %1597 = vector.extract_strided_slice %1589 {offsets = [1, 0], sizes = [1, 416], strides = [1, 1]} : vector<4x416xf32> to vector<1x416xf32>
    %1598 = vector.broadcast %1596 : vector<4x1xf32> to vector<4x416xf32>
    %1599 = vector.broadcast %1597 : vector<1x416xf32> to vector<4x416xf32>
    %1600 = arith.mulf %1598, %1599 : vector<4x416xf32>
    %1601 = arith.addf %1595, %1600 : vector<4x416xf32>
    %1602 = vector.extract_strided_slice %3 {offsets = [0, 154], sizes = [4, 1], strides = [1, 1]} : vector<4x196xf32> to vector<4x1xf32>
    %1603 = vector.extract_strided_slice %1589 {offsets = [2, 0], sizes = [1, 416], strides = [1, 1]} : vector<4x416xf32> to vector<1x416xf32>
    %1604 = vector.broadcast %1602 : vector<4x1xf32> to vector<4x416xf32>
    %1605 = vector.broadcast %1603 : vector<1x416xf32> to vector<4x416xf32>
    %1606 = arith.mulf %1604, %1605 : vector<4x416xf32>
    %1607 = arith.addf %1601, %1606 : vector<4x416xf32>
    %1608 = vector.extract_strided_slice %3 {offsets = [0, 155], sizes = [4, 1], strides = [1, 1]} : vector<4x196xf32> to vector<4x1xf32>
    %1609 = vector.extract_strided_slice %1589 {offsets = [3, 0], sizes = [1, 416], strides = [1, 1]} : vector<4x416xf32> to vector<1x416xf32>
    %1610 = vector.broadcast %1608 : vector<4x1xf32> to vector<4x416xf32>
    %1611 = vector.broadcast %1609 : vector<1x416xf32> to vector<4x416xf32>
    %1612 = arith.mulf %1610, %1611 : vector<4x416xf32>
    %1613 = arith.addf %1607, %1612 : vector<4x416xf32>
    %1614 = vector.extract_strided_slice %637 {offsets = [0, 134], sizes = [4, 416], strides = [1, 1]} : vector<4x640xf32> to vector<4x416xf32>
    %1615 = vector.extract_strided_slice %3 {offsets = [0, 156], sizes = [4, 1], strides = [1, 1]} : vector<4x196xf32> to vector<4x1xf32>
    %1616 = vector.extract_strided_slice %1614 {offsets = [0, 0], sizes = [1, 416], strides = [1, 1]} : vector<4x416xf32> to vector<1x416xf32>
    %1617 = vector.broadcast %1615 : vector<4x1xf32> to vector<4x416xf32>
    %1618 = vector.broadcast %1616 : vector<1x416xf32> to vector<4x416xf32>
    %1619 = arith.mulf %1617, %1618 : vector<4x416xf32>
    %1620 = arith.addf %1613, %1619 : vector<4x416xf32>
    %1621 = vector.extract_strided_slice %3 {offsets = [0, 157], sizes = [4, 1], strides = [1, 1]} : vector<4x196xf32> to vector<4x1xf32>
    %1622 = vector.extract_strided_slice %1614 {offsets = [1, 0], sizes = [1, 416], strides = [1, 1]} : vector<4x416xf32> to vector<1x416xf32>
    %1623 = vector.broadcast %1621 : vector<4x1xf32> to vector<4x416xf32>
    %1624 = vector.broadcast %1622 : vector<1x416xf32> to vector<4x416xf32>
    %1625 = arith.mulf %1623, %1624 : vector<4x416xf32>
    %1626 = arith.addf %1620, %1625 : vector<4x416xf32>
    %1627 = vector.extract_strided_slice %3 {offsets = [0, 158], sizes = [4, 1], strides = [1, 1]} : vector<4x196xf32> to vector<4x1xf32>
    %1628 = vector.extract_strided_slice %1614 {offsets = [2, 0], sizes = [1, 416], strides = [1, 1]} : vector<4x416xf32> to vector<1x416xf32>
    %1629 = vector.broadcast %1627 : vector<4x1xf32> to vector<4x416xf32>
    %1630 = vector.broadcast %1628 : vector<1x416xf32> to vector<4x416xf32>
    %1631 = arith.mulf %1629, %1630 : vector<4x416xf32>
    %1632 = arith.addf %1626, %1631 : vector<4x416xf32>
    %1633 = vector.extract_strided_slice %3 {offsets = [0, 159], sizes = [4, 1], strides = [1, 1]} : vector<4x196xf32> to vector<4x1xf32>
    %1634 = vector.extract_strided_slice %1614 {offsets = [3, 0], sizes = [1, 416], strides = [1, 1]} : vector<4x416xf32> to vector<1x416xf32>
    %1635 = vector.broadcast %1633 : vector<4x1xf32> to vector<4x416xf32>
    %1636 = vector.broadcast %1634 : vector<1x416xf32> to vector<4x416xf32>
    %1637 = arith.mulf %1635, %1636 : vector<4x416xf32>
    %1638 = arith.addf %1632, %1637 : vector<4x416xf32>
    %1639 = vector.extract_strided_slice %637 {offsets = [0, 135], sizes = [4, 416], strides = [1, 1]} : vector<4x640xf32> to vector<4x416xf32>
    %1640 = vector.extract_strided_slice %3 {offsets = [0, 160], sizes = [4, 1], strides = [1, 1]} : vector<4x196xf32> to vector<4x1xf32>
    %1641 = vector.extract_strided_slice %1639 {offsets = [0, 0], sizes = [1, 416], strides = [1, 1]} : vector<4x416xf32> to vector<1x416xf32>
    %1642 = vector.broadcast %1640 : vector<4x1xf32> to vector<4x416xf32>
    %1643 = vector.broadcast %1641 : vector<1x416xf32> to vector<4x416xf32>
    %1644 = arith.mulf %1642, %1643 : vector<4x416xf32>
    %1645 = arith.addf %1638, %1644 : vector<4x416xf32>
    %1646 = vector.extract_strided_slice %3 {offsets = [0, 161], sizes = [4, 1], strides = [1, 1]} : vector<4x196xf32> to vector<4x1xf32>
    %1647 = vector.extract_strided_slice %1639 {offsets = [1, 0], sizes = [1, 416], strides = [1, 1]} : vector<4x416xf32> to vector<1x416xf32>
    %1648 = vector.broadcast %1646 : vector<4x1xf32> to vector<4x416xf32>
    %1649 = vector.broadcast %1647 : vector<1x416xf32> to vector<4x416xf32>
    %1650 = arith.mulf %1648, %1649 : vector<4x416xf32>
    %1651 = arith.addf %1645, %1650 : vector<4x416xf32>
    %1652 = vector.extract_strided_slice %3 {offsets = [0, 162], sizes = [4, 1], strides = [1, 1]} : vector<4x196xf32> to vector<4x1xf32>
    %1653 = vector.extract_strided_slice %1639 {offsets = [2, 0], sizes = [1, 416], strides = [1, 1]} : vector<4x416xf32> to vector<1x416xf32>
    %1654 = vector.broadcast %1652 : vector<4x1xf32> to vector<4x416xf32>
    %1655 = vector.broadcast %1653 : vector<1x416xf32> to vector<4x416xf32>
    %1656 = arith.mulf %1654, %1655 : vector<4x416xf32>
    %1657 = arith.addf %1651, %1656 : vector<4x416xf32>
    %1658 = vector.extract_strided_slice %3 {offsets = [0, 163], sizes = [4, 1], strides = [1, 1]} : vector<4x196xf32> to vector<4x1xf32>
    %1659 = vector.extract_strided_slice %1639 {offsets = [3, 0], sizes = [1, 416], strides = [1, 1]} : vector<4x416xf32> to vector<1x416xf32>
    %1660 = vector.broadcast %1658 : vector<4x1xf32> to vector<4x416xf32>
    %1661 = vector.broadcast %1659 : vector<1x416xf32> to vector<4x416xf32>
    %1662 = arith.mulf %1660, %1661 : vector<4x416xf32>
    %1663 = arith.addf %1657, %1662 : vector<4x416xf32>
    %1664 = vector.extract_strided_slice %637 {offsets = [0, 136], sizes = [4, 416], strides = [1, 1]} : vector<4x640xf32> to vector<4x416xf32>
    %1665 = vector.extract_strided_slice %3 {offsets = [0, 164], sizes = [4, 1], strides = [1, 1]} : vector<4x196xf32> to vector<4x1xf32>
    %1666 = vector.extract_strided_slice %1664 {offsets = [0, 0], sizes = [1, 416], strides = [1, 1]} : vector<4x416xf32> to vector<1x416xf32>
    %1667 = vector.broadcast %1665 : vector<4x1xf32> to vector<4x416xf32>
    %1668 = vector.broadcast %1666 : vector<1x416xf32> to vector<4x416xf32>
    %1669 = arith.mulf %1667, %1668 : vector<4x416xf32>
    %1670 = arith.addf %1663, %1669 : vector<4x416xf32>
    %1671 = vector.extract_strided_slice %3 {offsets = [0, 165], sizes = [4, 1], strides = [1, 1]} : vector<4x196xf32> to vector<4x1xf32>
    %1672 = vector.extract_strided_slice %1664 {offsets = [1, 0], sizes = [1, 416], strides = [1, 1]} : vector<4x416xf32> to vector<1x416xf32>
    %1673 = vector.broadcast %1671 : vector<4x1xf32> to vector<4x416xf32>
    %1674 = vector.broadcast %1672 : vector<1x416xf32> to vector<4x416xf32>
    %1675 = arith.mulf %1673, %1674 : vector<4x416xf32>
    %1676 = arith.addf %1670, %1675 : vector<4x416xf32>
    %1677 = vector.extract_strided_slice %3 {offsets = [0, 166], sizes = [4, 1], strides = [1, 1]} : vector<4x196xf32> to vector<4x1xf32>
    %1678 = vector.extract_strided_slice %1664 {offsets = [2, 0], sizes = [1, 416], strides = [1, 1]} : vector<4x416xf32> to vector<1x416xf32>
    %1679 = vector.broadcast %1677 : vector<4x1xf32> to vector<4x416xf32>
    %1680 = vector.broadcast %1678 : vector<1x416xf32> to vector<4x416xf32>
    %1681 = arith.mulf %1679, %1680 : vector<4x416xf32>
    %1682 = arith.addf %1676, %1681 : vector<4x416xf32>
    %1683 = vector.extract_strided_slice %3 {offsets = [0, 167], sizes = [4, 1], strides = [1, 1]} : vector<4x196xf32> to vector<4x1xf32>
    %1684 = vector.extract_strided_slice %1664 {offsets = [3, 0], sizes = [1, 416], strides = [1, 1]} : vector<4x416xf32> to vector<1x416xf32>
    %1685 = vector.broadcast %1683 : vector<4x1xf32> to vector<4x416xf32>
    %1686 = vector.broadcast %1684 : vector<1x416xf32> to vector<4x416xf32>
    %1687 = arith.mulf %1685, %1686 : vector<4x416xf32>
    %1688 = arith.addf %1682, %1687 : vector<4x416xf32>
    %1689 = vector.extract_strided_slice %637 {offsets = [0, 156], sizes = [4, 416], strides = [1, 1]} : vector<4x640xf32> to vector<4x416xf32>
    %1690 = vector.extract_strided_slice %3 {offsets = [0, 168], sizes = [4, 1], strides = [1, 1]} : vector<4x196xf32> to vector<4x1xf32>
    %1691 = vector.extract_strided_slice %1689 {offsets = [0, 0], sizes = [1, 416], strides = [1, 1]} : vector<4x416xf32> to vector<1x416xf32>
    %1692 = vector.broadcast %1690 : vector<4x1xf32> to vector<4x416xf32>
    %1693 = vector.broadcast %1691 : vector<1x416xf32> to vector<4x416xf32>
    %1694 = arith.mulf %1692, %1693 : vector<4x416xf32>
    %1695 = arith.addf %1688, %1694 : vector<4x416xf32>
    %1696 = vector.extract_strided_slice %3 {offsets = [0, 169], sizes = [4, 1], strides = [1, 1]} : vector<4x196xf32> to vector<4x1xf32>
    %1697 = vector.extract_strided_slice %1689 {offsets = [1, 0], sizes = [1, 416], strides = [1, 1]} : vector<4x416xf32> to vector<1x416xf32>
    %1698 = vector.broadcast %1696 : vector<4x1xf32> to vector<4x416xf32>
    %1699 = vector.broadcast %1697 : vector<1x416xf32> to vector<4x416xf32>
    %1700 = arith.mulf %1698, %1699 : vector<4x416xf32>
    %1701 = arith.addf %1695, %1700 : vector<4x416xf32>
    %1702 = vector.extract_strided_slice %3 {offsets = [0, 170], sizes = [4, 1], strides = [1, 1]} : vector<4x196xf32> to vector<4x1xf32>
    %1703 = vector.extract_strided_slice %1689 {offsets = [2, 0], sizes = [1, 416], strides = [1, 1]} : vector<4x416xf32> to vector<1x416xf32>
    %1704 = vector.broadcast %1702 : vector<4x1xf32> to vector<4x416xf32>
    %1705 = vector.broadcast %1703 : vector<1x416xf32> to vector<4x416xf32>
    %1706 = arith.mulf %1704, %1705 : vector<4x416xf32>
    %1707 = arith.addf %1701, %1706 : vector<4x416xf32>
    %1708 = vector.extract_strided_slice %3 {offsets = [0, 171], sizes = [4, 1], strides = [1, 1]} : vector<4x196xf32> to vector<4x1xf32>
    %1709 = vector.extract_strided_slice %1689 {offsets = [3, 0], sizes = [1, 416], strides = [1, 1]} : vector<4x416xf32> to vector<1x416xf32>
    %1710 = vector.broadcast %1708 : vector<4x1xf32> to vector<4x416xf32>
    %1711 = vector.broadcast %1709 : vector<1x416xf32> to vector<4x416xf32>
    %1712 = arith.mulf %1710, %1711 : vector<4x416xf32>
    %1713 = arith.addf %1707, %1712 : vector<4x416xf32>
    %1714 = vector.extract_strided_slice %637 {offsets = [0, 157], sizes = [4, 416], strides = [1, 1]} : vector<4x640xf32> to vector<4x416xf32>
    %1715 = vector.extract_strided_slice %3 {offsets = [0, 172], sizes = [4, 1], strides = [1, 1]} : vector<4x196xf32> to vector<4x1xf32>
    %1716 = vector.extract_strided_slice %1714 {offsets = [0, 0], sizes = [1, 416], strides = [1, 1]} : vector<4x416xf32> to vector<1x416xf32>
    %1717 = vector.broadcast %1715 : vector<4x1xf32> to vector<4x416xf32>
    %1718 = vector.broadcast %1716 : vector<1x416xf32> to vector<4x416xf32>
    %1719 = arith.mulf %1717, %1718 : vector<4x416xf32>
    %1720 = arith.addf %1713, %1719 : vector<4x416xf32>
    %1721 = vector.extract_strided_slice %3 {offsets = [0, 173], sizes = [4, 1], strides = [1, 1]} : vector<4x196xf32> to vector<4x1xf32>
    %1722 = vector.extract_strided_slice %1714 {offsets = [1, 0], sizes = [1, 416], strides = [1, 1]} : vector<4x416xf32> to vector<1x416xf32>
    %1723 = vector.broadcast %1721 : vector<4x1xf32> to vector<4x416xf32>
    %1724 = vector.broadcast %1722 : vector<1x416xf32> to vector<4x416xf32>
    %1725 = arith.mulf %1723, %1724 : vector<4x416xf32>
    %1726 = arith.addf %1720, %1725 : vector<4x416xf32>
    %1727 = vector.extract_strided_slice %3 {offsets = [0, 174], sizes = [4, 1], strides = [1, 1]} : vector<4x196xf32> to vector<4x1xf32>
    %1728 = vector.extract_strided_slice %1714 {offsets = [2, 0], sizes = [1, 416], strides = [1, 1]} : vector<4x416xf32> to vector<1x416xf32>
    %1729 = vector.broadcast %1727 : vector<4x1xf32> to vector<4x416xf32>
    %1730 = vector.broadcast %1728 : vector<1x416xf32> to vector<4x416xf32>
    %1731 = arith.mulf %1729, %1730 : vector<4x416xf32>
    %1732 = arith.addf %1726, %1731 : vector<4x416xf32>
    %1733 = vector.extract_strided_slice %3 {offsets = [0, 175], sizes = [4, 1], strides = [1, 1]} : vector<4x196xf32> to vector<4x1xf32>
    %1734 = vector.extract_strided_slice %1714 {offsets = [3, 0], sizes = [1, 416], strides = [1, 1]} : vector<4x416xf32> to vector<1x416xf32>
    %1735 = vector.broadcast %1733 : vector<4x1xf32> to vector<4x416xf32>
    %1736 = vector.broadcast %1734 : vector<1x416xf32> to vector<4x416xf32>
    %1737 = arith.mulf %1735, %1736 : vector<4x416xf32>
    %1738 = arith.addf %1732, %1737 : vector<4x416xf32>
    %1739 = vector.extract_strided_slice %637 {offsets = [0, 158], sizes = [4, 416], strides = [1, 1]} : vector<4x640xf32> to vector<4x416xf32>
    %1740 = vector.extract_strided_slice %3 {offsets = [0, 176], sizes = [4, 1], strides = [1, 1]} : vector<4x196xf32> to vector<4x1xf32>
    %1741 = vector.extract_strided_slice %1739 {offsets = [0, 0], sizes = [1, 416], strides = [1, 1]} : vector<4x416xf32> to vector<1x416xf32>
    %1742 = vector.broadcast %1740 : vector<4x1xf32> to vector<4x416xf32>
    %1743 = vector.broadcast %1741 : vector<1x416xf32> to vector<4x416xf32>
    %1744 = arith.mulf %1742, %1743 : vector<4x416xf32>
    %1745 = arith.addf %1738, %1744 : vector<4x416xf32>
    %1746 = vector.extract_strided_slice %3 {offsets = [0, 177], sizes = [4, 1], strides = [1, 1]} : vector<4x196xf32> to vector<4x1xf32>
    %1747 = vector.extract_strided_slice %1739 {offsets = [1, 0], sizes = [1, 416], strides = [1, 1]} : vector<4x416xf32> to vector<1x416xf32>
    %1748 = vector.broadcast %1746 : vector<4x1xf32> to vector<4x416xf32>
    %1749 = vector.broadcast %1747 : vector<1x416xf32> to vector<4x416xf32>
    %1750 = arith.mulf %1748, %1749 : vector<4x416xf32>
    %1751 = arith.addf %1745, %1750 : vector<4x416xf32>
    %1752 = vector.extract_strided_slice %3 {offsets = [0, 178], sizes = [4, 1], strides = [1, 1]} : vector<4x196xf32> to vector<4x1xf32>
    %1753 = vector.extract_strided_slice %1739 {offsets = [2, 0], sizes = [1, 416], strides = [1, 1]} : vector<4x416xf32> to vector<1x416xf32>
    %1754 = vector.broadcast %1752 : vector<4x1xf32> to vector<4x416xf32>
    %1755 = vector.broadcast %1753 : vector<1x416xf32> to vector<4x416xf32>
    %1756 = arith.mulf %1754, %1755 : vector<4x416xf32>
    %1757 = arith.addf %1751, %1756 : vector<4x416xf32>
    %1758 = vector.extract_strided_slice %3 {offsets = [0, 179], sizes = [4, 1], strides = [1, 1]} : vector<4x196xf32> to vector<4x1xf32>
    %1759 = vector.extract_strided_slice %1739 {offsets = [3, 0], sizes = [1, 416], strides = [1, 1]} : vector<4x416xf32> to vector<1x416xf32>
    %1760 = vector.broadcast %1758 : vector<4x1xf32> to vector<4x416xf32>
    %1761 = vector.broadcast %1759 : vector<1x416xf32> to vector<4x416xf32>
    %1762 = arith.mulf %1760, %1761 : vector<4x416xf32>
    %1763 = arith.addf %1757, %1762 : vector<4x416xf32>
    %1764 = vector.extract_strided_slice %637 {offsets = [0, 159], sizes = [4, 416], strides = [1, 1]} : vector<4x640xf32> to vector<4x416xf32>
    %1765 = vector.extract_strided_slice %3 {offsets = [0, 180], sizes = [4, 1], strides = [1, 1]} : vector<4x196xf32> to vector<4x1xf32>
    %1766 = vector.extract_strided_slice %1764 {offsets = [0, 0], sizes = [1, 416], strides = [1, 1]} : vector<4x416xf32> to vector<1x416xf32>
    %1767 = vector.broadcast %1765 : vector<4x1xf32> to vector<4x416xf32>
    %1768 = vector.broadcast %1766 : vector<1x416xf32> to vector<4x416xf32>
    %1769 = arith.mulf %1767, %1768 : vector<4x416xf32>
    %1770 = arith.addf %1763, %1769 : vector<4x416xf32>
    %1771 = vector.extract_strided_slice %3 {offsets = [0, 181], sizes = [4, 1], strides = [1, 1]} : vector<4x196xf32> to vector<4x1xf32>
    %1772 = vector.extract_strided_slice %1764 {offsets = [1, 0], sizes = [1, 416], strides = [1, 1]} : vector<4x416xf32> to vector<1x416xf32>
    %1773 = vector.broadcast %1771 : vector<4x1xf32> to vector<4x416xf32>
    %1774 = vector.broadcast %1772 : vector<1x416xf32> to vector<4x416xf32>
    %1775 = arith.mulf %1773, %1774 : vector<4x416xf32>
    %1776 = arith.addf %1770, %1775 : vector<4x416xf32>
    %1777 = vector.extract_strided_slice %3 {offsets = [0, 182], sizes = [4, 1], strides = [1, 1]} : vector<4x196xf32> to vector<4x1xf32>
    %1778 = vector.extract_strided_slice %1764 {offsets = [2, 0], sizes = [1, 416], strides = [1, 1]} : vector<4x416xf32> to vector<1x416xf32>
    %1779 = vector.broadcast %1777 : vector<4x1xf32> to vector<4x416xf32>
    %1780 = vector.broadcast %1778 : vector<1x416xf32> to vector<4x416xf32>
    %1781 = arith.mulf %1779, %1780 : vector<4x416xf32>
    %1782 = arith.addf %1776, %1781 : vector<4x416xf32>
    %1783 = vector.extract_strided_slice %3 {offsets = [0, 183], sizes = [4, 1], strides = [1, 1]} : vector<4x196xf32> to vector<4x1xf32>
    %1784 = vector.extract_strided_slice %1764 {offsets = [3, 0], sizes = [1, 416], strides = [1, 1]} : vector<4x416xf32> to vector<1x416xf32>
    %1785 = vector.broadcast %1783 : vector<4x1xf32> to vector<4x416xf32>
    %1786 = vector.broadcast %1784 : vector<1x416xf32> to vector<4x416xf32>
    %1787 = arith.mulf %1785, %1786 : vector<4x416xf32>
    %1788 = arith.addf %1782, %1787 : vector<4x416xf32>
    %1789 = vector.extract_strided_slice %637 {offsets = [0, 160], sizes = [4, 416], strides = [1, 1]} : vector<4x640xf32> to vector<4x416xf32>
    %1790 = vector.extract_strided_slice %3 {offsets = [0, 184], sizes = [4, 1], strides = [1, 1]} : vector<4x196xf32> to vector<4x1xf32>
    %1791 = vector.extract_strided_slice %1789 {offsets = [0, 0], sizes = [1, 416], strides = [1, 1]} : vector<4x416xf32> to vector<1x416xf32>
    %1792 = vector.broadcast %1790 : vector<4x1xf32> to vector<4x416xf32>
    %1793 = vector.broadcast %1791 : vector<1x416xf32> to vector<4x416xf32>
    %1794 = arith.mulf %1792, %1793 : vector<4x416xf32>
    %1795 = arith.addf %1788, %1794 : vector<4x416xf32>
    %1796 = vector.extract_strided_slice %3 {offsets = [0, 185], sizes = [4, 1], strides = [1, 1]} : vector<4x196xf32> to vector<4x1xf32>
    %1797 = vector.extract_strided_slice %1789 {offsets = [1, 0], sizes = [1, 416], strides = [1, 1]} : vector<4x416xf32> to vector<1x416xf32>
    %1798 = vector.broadcast %1796 : vector<4x1xf32> to vector<4x416xf32>
    %1799 = vector.broadcast %1797 : vector<1x416xf32> to vector<4x416xf32>
    %1800 = arith.mulf %1798, %1799 : vector<4x416xf32>
    %1801 = arith.addf %1795, %1800 : vector<4x416xf32>
    %1802 = vector.extract_strided_slice %3 {offsets = [0, 186], sizes = [4, 1], strides = [1, 1]} : vector<4x196xf32> to vector<4x1xf32>
    %1803 = vector.extract_strided_slice %1789 {offsets = [2, 0], sizes = [1, 416], strides = [1, 1]} : vector<4x416xf32> to vector<1x416xf32>
    %1804 = vector.broadcast %1802 : vector<4x1xf32> to vector<4x416xf32>
    %1805 = vector.broadcast %1803 : vector<1x416xf32> to vector<4x416xf32>
    %1806 = arith.mulf %1804, %1805 : vector<4x416xf32>
    %1807 = arith.addf %1801, %1806 : vector<4x416xf32>
    %1808 = vector.extract_strided_slice %3 {offsets = [0, 187], sizes = [4, 1], strides = [1, 1]} : vector<4x196xf32> to vector<4x1xf32>
    %1809 = vector.extract_strided_slice %1789 {offsets = [3, 0], sizes = [1, 416], strides = [1, 1]} : vector<4x416xf32> to vector<1x416xf32>
    %1810 = vector.broadcast %1808 : vector<4x1xf32> to vector<4x416xf32>
    %1811 = vector.broadcast %1809 : vector<1x416xf32> to vector<4x416xf32>
    %1812 = arith.mulf %1810, %1811 : vector<4x416xf32>
    %1813 = arith.addf %1807, %1812 : vector<4x416xf32>
    %1814 = vector.extract_strided_slice %637 {offsets = [0, 161], sizes = [4, 416], strides = [1, 1]} : vector<4x640xf32> to vector<4x416xf32>
    %1815 = vector.extract_strided_slice %3 {offsets = [0, 188], sizes = [4, 1], strides = [1, 1]} : vector<4x196xf32> to vector<4x1xf32>
    %1816 = vector.extract_strided_slice %1814 {offsets = [0, 0], sizes = [1, 416], strides = [1, 1]} : vector<4x416xf32> to vector<1x416xf32>
    %1817 = vector.broadcast %1815 : vector<4x1xf32> to vector<4x416xf32>
    %1818 = vector.broadcast %1816 : vector<1x416xf32> to vector<4x416xf32>
    %1819 = arith.mulf %1817, %1818 : vector<4x416xf32>
    %1820 = arith.addf %1813, %1819 : vector<4x416xf32>
    %1821 = vector.extract_strided_slice %3 {offsets = [0, 189], sizes = [4, 1], strides = [1, 1]} : vector<4x196xf32> to vector<4x1xf32>
    %1822 = vector.extract_strided_slice %1814 {offsets = [1, 0], sizes = [1, 416], strides = [1, 1]} : vector<4x416xf32> to vector<1x416xf32>
    %1823 = vector.broadcast %1821 : vector<4x1xf32> to vector<4x416xf32>
    %1824 = vector.broadcast %1822 : vector<1x416xf32> to vector<4x416xf32>
    %1825 = arith.mulf %1823, %1824 : vector<4x416xf32>
    %1826 = arith.addf %1820, %1825 : vector<4x416xf32>
    %1827 = vector.extract_strided_slice %3 {offsets = [0, 190], sizes = [4, 1], strides = [1, 1]} : vector<4x196xf32> to vector<4x1xf32>
    %1828 = vector.extract_strided_slice %1814 {offsets = [2, 0], sizes = [1, 416], strides = [1, 1]} : vector<4x416xf32> to vector<1x416xf32>
    %1829 = vector.broadcast %1827 : vector<4x1xf32> to vector<4x416xf32>
    %1830 = vector.broadcast %1828 : vector<1x416xf32> to vector<4x416xf32>
    %1831 = arith.mulf %1829, %1830 : vector<4x416xf32>
    %1832 = arith.addf %1826, %1831 : vector<4x416xf32>
    %1833 = vector.extract_strided_slice %3 {offsets = [0, 191], sizes = [4, 1], strides = [1, 1]} : vector<4x196xf32> to vector<4x1xf32>
    %1834 = vector.extract_strided_slice %1814 {offsets = [3, 0], sizes = [1, 416], strides = [1, 1]} : vector<4x416xf32> to vector<1x416xf32>
    %1835 = vector.broadcast %1833 : vector<4x1xf32> to vector<4x416xf32>
    %1836 = vector.broadcast %1834 : vector<1x416xf32> to vector<4x416xf32>
    %1837 = arith.mulf %1835, %1836 : vector<4x416xf32>
    %1838 = arith.addf %1832, %1837 : vector<4x416xf32>
    %1839 = vector.extract_strided_slice %637 {offsets = [0, 162], sizes = [4, 416], strides = [1, 1]} : vector<4x640xf32> to vector<4x416xf32>
    %1840 = vector.extract_strided_slice %3 {offsets = [0, 192], sizes = [4, 1], strides = [1, 1]} : vector<4x196xf32> to vector<4x1xf32>
    %1841 = vector.extract_strided_slice %1839 {offsets = [0, 0], sizes = [1, 416], strides = [1, 1]} : vector<4x416xf32> to vector<1x416xf32>
    %1842 = vector.broadcast %1840 : vector<4x1xf32> to vector<4x416xf32>
    %1843 = vector.broadcast %1841 : vector<1x416xf32> to vector<4x416xf32>
    %1844 = arith.mulf %1842, %1843 : vector<4x416xf32>
    %1845 = arith.addf %1838, %1844 : vector<4x416xf32>
    %1846 = vector.extract_strided_slice %3 {offsets = [0, 193], sizes = [4, 1], strides = [1, 1]} : vector<4x196xf32> to vector<4x1xf32>
    %1847 = vector.extract_strided_slice %1839 {offsets = [1, 0], sizes = [1, 416], strides = [1, 1]} : vector<4x416xf32> to vector<1x416xf32>
    %1848 = vector.broadcast %1846 : vector<4x1xf32> to vector<4x416xf32>
    %1849 = vector.broadcast %1847 : vector<1x416xf32> to vector<4x416xf32>
    %1850 = arith.mulf %1848, %1849 : vector<4x416xf32>
    %1851 = arith.addf %1845, %1850 : vector<4x416xf32>
    %1852 = vector.extract_strided_slice %3 {offsets = [0, 194], sizes = [4, 1], strides = [1, 1]} : vector<4x196xf32> to vector<4x1xf32>
    %1853 = vector.extract_strided_slice %1839 {offsets = [2, 0], sizes = [1, 416], strides = [1, 1]} : vector<4x416xf32> to vector<1x416xf32>
    %1854 = vector.broadcast %1852 : vector<4x1xf32> to vector<4x416xf32>
    %1855 = vector.broadcast %1853 : vector<1x416xf32> to vector<4x416xf32>
    %1856 = arith.mulf %1854, %1855 : vector<4x416xf32>
    %1857 = arith.addf %1851, %1856 : vector<4x416xf32>
    %1858 = vector.extract_strided_slice %3 {offsets = [0, 195], sizes = [4, 1], strides = [1, 1]} : vector<4x196xf32> to vector<4x1xf32>
    %1859 = vector.extract_strided_slice %1839 {offsets = [3, 0], sizes = [1, 416], strides = [1, 1]} : vector<4x416xf32> to vector<1x416xf32>
    %1860 = vector.broadcast %1858 : vector<4x1xf32> to vector<4x416xf32>
    %1861 = vector.broadcast %1859 : vector<1x416xf32> to vector<4x416xf32>
    %1862 = arith.mulf %1860, %1861 : vector<4x416xf32>
    %1863 = arith.addf %1857, %1862 : vector<4x416xf32>
    %c0_12 = arith.constant 0 : index
    %c0_13 = arith.constant 0 : index
    %1864 = vector.load %arg5[%c0_12, %c0_13] : memref<4x1xf32, #tpu.memory_space<vmem>>, vector<4x1xf32>
    %1865 = vector.broadcast %1864 : vector<4x1xf32> to vector<4x416xf32>
    %1866 = arith.addf %1863, %1865 : vector<4x416xf32>
    %c0_14 = arith.constant 0 : index
    %c0_15 = arith.constant 0 : index
    %c0_16 = arith.constant 0 : index
    %1867 = vector.load %arg7[%c0_14, %c0_15, %c0_16] : memref<1x4x416xf32, #tpu.memory_space<vmem>>, vector<1x4x416xf32>
    %1868 = vector.shape_cast %1867 : vector<1x4x416xf32> to vector<4x416xf32>
    %1869 = vector.shape_cast %1866 : vector<4x416xf32> to vector<1x4x416xf32>
    tpu.vector_store %arg7[%c0_14, %c0_15, %c0_16], %1869 {strides = array<i32>} : memref<1x4x416xf32, #tpu.memory_space<vmem>>, vector<1x4x416xf32>,
    return
  }
  func.func @transform_0(%arg0: i32) -> (i32, i32, i32) {
    %c0_i32 = arith.constant 0 : i32
    %c0_i32_0 = arith.constant 0 : i32
    %c0_i32_1 = arith.constant 0 : i32
    return %arg0, %c0_i32, %c0_i32_0 : i32, i32, i32
  }
  func.func @transform_1(%arg0: i32) -> (i32, i32) {
    %c0_i32 = arith.constant 0 : i32
    %c0_i32_0 = arith.constant 0 : i32
    %c0_i32_1 = arith.constant 0 : i32
    return %c0_i32, %c0_i32_0 : i32, i32
  }
  func.func @transform_2(%arg0: i32) -> (i32, i32) {
    %c0_i32 = arith.constant 0 : i32
    %c0_i32_0 = arith.constant 0 : i32
    %c0_i32_1 = arith.constant 0 : i32
    return %c0_i32, %c0_i32_0 : i32, i32
  }
  func.func @transform_3(%arg0: i32) -> (i32, i32) {
    %c0_i32 = arith.constant 0 : i32
    %c0_i32_0 = arith.constant 0 : i32
    %c0_i32_1 = arith.constant 0 : i32
    return %c0_i32, %c0_i32_0 : i32, i32
  }
  func.func @transform_4(%arg0: i32) -> (i32, i32) {
    %c0_i32 = arith.constant 0 : i32
    %c0_i32_0 = arith.constant 0 : i32
    %c0_i32_1 = arith.constant 0 : i32
    return %c0_i32, %c0_i32_0 : i32, i32
  }
  func.func @transform_5(%arg0: i32) -> (i32, i32) {
    %c0_i32 = arith.constant 0 : i32
    %c0_i32_0 = arith.constant 0 : i32
    %c0_i32_1 = arith.constant 0 : i32
    return %c0_i32, %c0_i32_0 : i32, i32
  }
  func.func @transform_6(%arg0: i32) -> (i32, i32, i32) {
    %c0_i32 = arith.constant 0 : i32
    %c0_i32_0 = arith.constant 0 : i32
    %c0_i32_1 = arith.constant 0 : i32
    return %arg0, %c0_i32, %c0_i32_0 : i32, i32, i32
  }
}

</mosaic_0001>

<llo_original>
// kernel: block_forward.1
$region0: #{block_forward.1}
  #allocation0 [shape = 'u32[]', space=smem, size = 0x4, offset = 0x4, fixed_abs, tag = 'smem constant byte address 0x4 - core index']
  #allocation1 [shape = 'u32[144,128]{1,0:T(1,128)}', space=vmem, size = 0x12000, scoped, tag = 'internal scratch']
  %s0 = inlined_call_operand.vmem [shape: f32[2,4,768], index: 0, kind: input, shape index: {}]
  %s1 = inlined_call_operand.vmem [shape: f32[4,100], index: 1, kind: input, shape index: {}]
  %s2 = inlined_call_operand.vmem [shape: f32[4,1], index: 2, kind: input, shape index: {}]
  %s3 = inlined_call_operand.vmem [shape: f32[4,196], index: 3, kind: input, shape index: {}]
  %s4 = inlined_call_operand.vmem [shape: f32[4,1], index: 4, kind: input, shape index: {}]
  %s5 = inlined_call_operand.vmem [shape: f32[1,640], index: 5, kind: input, shape index: {}]
  %s6 = inlined_call_operand.vmem [shape: f32[2,4,416], index: 6, kind: output, shape index: {}]
  %s7 = sld [smem:[#allocation0]]
  $region57: #{block_forward.1} parent=0
    _
  %s9 = ssub.s32 1, %s7
  %s10 = scalar_select 0, %s9, %s7
  loop: start=0, step=1, limit=4
  $region2: #{block_forward.1} parent=0 // loop_pre_header
    _
  $region3: #{block_forward.1} parent=0 // loop_header
    %s12 = sphi 0, %s16
    %p13 = scmp.ge.s32.totalorder %s12, 4
    %s22 = sphi 0, %s24
    %s25 = sphi 0, %s22
    %s26 = sphi 0, %s25
    %s42 = sphi 0, %s26
    %s46 = sphi 0, %s46
    %s48 = sphi 0, %s46
    %s49 = sphi 0, %s48
    %s63 = sphi 0, %s49
    %s67 = sphi 0, %s67
    %s69 = sphi 0, %s67
    %s70 = sphi 0, %s69
    %s84 = sphi 0, %s70
    %s88 = sphi 0, %s88
    %s90 = sphi 0, %s88
    %s91 = sphi 0, %s90
    %s105 = sphi 0, %s91
    %s109 = sphi 0, %s109
    %s111 = sphi 0, %s109
    %s112 = sphi 0, %s111
    %s126 = sphi 0, %s112
    %s130 = sphi 0, %s130
    %s132 = sphi 0, %s130
    %s133 = sphi 0, %s132
    %s147 = sphi 0, %s133
    %s153 = sphi 0, %s155
    %s156 = sphi 0, %s153
    %s157 = sphi 0, %s156
    %s173 = sphi 0, %s157
  $region4: #{block_forward.1} parent=0 // loop_header_branch
    %15 = sbr.rel (%p13) target = $region8
  $region5: #{block_forward.1} parent=0 // loop_body
    %s17 = ssub.s32 %s12, 1
    %s18 = ssub.s32 %s12, 2
    %s19 = sadd.s32 %s12, 1
    %s20 = ssub.s32 %s12, %s19
    %p21 = scmp.eq.s32.totalorder %s20, 0
    %s23 = sadd.s32 %s22, 1
    %s24 = scalar_select %p21, %s22, %s23
    %p27 = pneg %p21
    %p28 = scmp.eq.s32.totalorder %s12, 1
    %p29 = por %p27, %p28
    %p30 = scmp.ne.s32.totalorder %s22, %s25
    %p31 = scmp.eq.s32.totalorder %s12, 0
    %p32 = por %p30, %p31
    %p33 = scmp.ne.s32.totalorder %s22, %s25
    %p34 = scmp.eq.s32.totalorder %s17, 1
    %p35 = por %p33, %p34
    %p36 = scmp.ne.s32.totalorder %s25, %s26
    %p37 = scmp.eq.s32.totalorder %s17, 0
    %p38 = por %p36, %p37
    %p39 = scmp.ne.s32.totalorder %s25, %s26
    %p40 = scmp.eq.s32.totalorder %s18, 1
    %p41 = por %p39, %p40
    %p43 = scmp.ne.s32.totalorder %s26, %s42
    %p44 = scmp.eq.s32.totalorder %s18, 0
    %p45 = por %p43, %p44
    %s47 = sadd.s32 %s46, 1
    %p50 = scmp.eq.s32.totalorder %s12, 1
    %p51 = scmp.ne.s32.totalorder %s46, %s48
    %p52 = scmp.eq.s32.totalorder %s12, 0
    %p53 = por %p51, %p52
    %p54 = scmp.ne.s32.totalorder %s46, %s48
    %p55 = scmp.eq.s32.totalorder %s17, 1
    %p56 = por %p54, %p55
    %p57 = scmp.ne.s32.totalorder %s48, %s49
    %p58 = scmp.eq.s32.totalorder %s17, 0
    %p59 = por %p57, %p58
    %p60 = scmp.ne.s32.totalorder %s48, %s49
    %p61 = scmp.eq.s32.totalorder %s18, 1
    %p62 = por %p60, %p61
    %p64 = scmp.ne.s32.totalorder %s49, %s63
    %p65 = scmp.eq.s32.totalorder %s18, 0
    %p66 = por %p64, %p65
    %s68 = sadd.s32 %s67, 1
    %p71 = scmp.eq.s32.totalorder %s12, 1
    %p72 = scmp.ne.s32.totalorder %s67, %s69
    %p73 = scmp.eq.s32.totalorder %s12, 0
    %p74 = por %p72, %p73
    %p75 = scmp.ne.s32.totalorder %s67, %s69
    %p76 = scmp.eq.s32.totalorder %s17, 1
    %p77 = por %p75, %p76
    %p78 = scmp.ne.s32.totalorder %s69, %s70
    %p79 = scmp.eq.s32.totalorder %s17, 0
    %p80 = por %p78, %p79
    %p81 = scmp.ne.s32.totalorder %s69, %s70
    %p82 = scmp.eq.s32.totalorder %s18, 1
    %p83 = por %p81, %p82
    %p85 = scmp.ne.s32.totalorder %s70, %s84
    %p86 = scmp.eq.s32.totalorder %s18, 0
    %p87 = por %p85, %p86
    %s89 = sadd.s32 %s88, 1
    %p92 = scmp.eq.s32.totalorder %s12, 1
    %p93 = scmp.ne.s32.totalorder %s88, %s90
    %p94 = scmp.eq.s32.totalorder %s12, 0
    %p95 = por %p93, %p94
    %p96 = scmp.ne.s32.totalorder %s88, %s90
    %p97 = scmp.eq.s32.totalorder %s17, 1
    %p98 = por %p96, %p97
    %p99 = scmp.ne.s32.totalorder %s90, %s91
    %p100 = scmp.eq.s32.totalorder %s17, 0
    %p101 = por %p99, %p100
    %p102 = scmp.ne.s32.totalorder %s90, %s91
    %p103 = scmp.eq.s32.totalorder %s18, 1
    %p104 = por %p102, %p103
    %p106 = scmp.ne.s32.totalorder %s91, %s105
    %p107 = scmp.eq.s32.totalorder %s18, 0
    %p108 = por %p106, %p107
    %s110 = sadd.s32 %s109, 1
    %p113 = scmp.eq.s32.totalorder %s12, 1
    %p114 = scmp.ne.s32.totalorder %s109, %s111
    %p115 = scmp.eq.s32.totalorder %s12, 0
    %p116 = por %p114, %p115
    %p117 = scmp.ne.s32.totalorder %s109, %s111
    %p118 = scmp.eq.s32.totalorder %s17, 1
    %p119 = por %p117, %p118
    %p120 = scmp.ne.s32.totalorder %s111, %s112
    %p121 = scmp.eq.s32.totalorder %s17, 0
    %p122 = por %p120, %p121
    %p123 = scmp.ne.s32.totalorder %s111, %s112
    %p124 = scmp.eq.s32.totalorder %s18, 1
    %p125 = por %p123, %p124
    %p127 = scmp.ne.s32.totalorder %s112, %s126
    %p128 = scmp.eq.s32.totalorder %s18, 0
    %p129 = por %p127, %p128
    %s131 = sadd.s32 %s130, 1
    %p134 = scmp.eq.s32.totalorder %s12, 1
    %p135 = scmp.ne.s32.totalorder %s130, %s132
    %p136 = scmp.eq.s32.totalorder %s12, 0
    %p137 = por %p135, %p136
    %p138 = scmp.ne.s32.totalorder %s130, %s132
    %p139 = scmp.eq.s32.totalorder %s17, 1
    %p140 = por %p138, %p139
    %p141 = scmp.ne.s32.totalorder %s132, %s133
    %p142 = scmp.eq.s32.totalorder %s17, 0
    %p143 = por %p141, %p142
    %p144 = scmp.ne.s32.totalorder %s132, %s133
    %p145 = scmp.eq.s32.totalorder %s18, 1
    %p146 = por %p144, %p145
    %p148 = scmp.ne.s32.totalorder %s133, %s147
    %p149 = scmp.eq.s32.totalorder %s18, 0
    %p150 = por %p148, %p149
    %s151 = ssub.s32 %s12, %s19
    %p152 = scmp.eq.s32.totalorder %s151, 0
    %s154 = sadd.s32 %s153, 1
    %s155 = scalar_select %p152, %s153, %s154
    %p158 = pneg %p152
    %p159 = scmp.eq.s32.totalorder %s12, 1
    %p160 = por %p158, %p159
    %p161 = scmp.ne.s32.totalorder %s153, %s156
    %p162 = scmp.eq.s32.totalorder %s12, 0
    %p163 = por %p161, %p162
    %p164 = scmp.ne.s32.totalorder %s153, %s156
    %p165 = scmp.eq.s32.totalorder %s17, 1
    %p166 = por %p164, %p165
    %p167 = scmp.ne.s32.totalorder %s156, %s157
    %p168 = scmp.eq.s32.totalorder %s17, 0
    %p169 = por %p167, %p168
    %p170 = scmp.ne.s32.totalorder %s156, %s157
    %p171 = scmp.eq.s32.totalorder %s18, 1
    %p172 = por %p170, %p171
    %p174 = scmp.ne.s32.totalorder %s157, %s173
    %p175 = scmp.eq.s32.totalorder %s18, 0
    %p176 = por %p174, %p175
    %p177 = scmp.le.s32.totalorder 1, %s12
    %p178 = scmp.lt.s32.totalorder %s12, 3
    %p179 = pnand %p177, %p178
    %p180 = pneg %p179
    // Predicated region
    $region9: #{block_forward.1} parent=5 // pred_check
      _
    $region10: #{block_forward.1} parent=5 // pred_check_branch
      %182 = sbr.rel (%p179) target = $region12
    $region11: #{block_forward.1} parent=5 // pred_region
      %s183 = ssub.s32 %s12, 1
      // Predicated region
      $region13: #{block_forward.1} parent=11 // pred_check
        %p184 = pneg %p59
      $region14: #{block_forward.1} parent=11 // pred_check_branch
        %186 = sbr.rel (%p184) target = $region16
      $region15: #{block_forward.1} parent=11 // pred_region
        _
      $region16: #{block_forward.1} parent=11 // pred_fallthru
        _
      // Predicated region
      $region17: #{block_forward.1} parent=11 // pred_check
        %p187 = pneg %p80
      $region18: #{block_forward.1} parent=11 // pred_check_branch
        %189 = sbr.rel (%p187) target = $region20
      $region19: #{block_forward.1} parent=11 // pred_region
        _
      $region20: #{block_forward.1} parent=11 // pred_fallthru
        _
      // Predicated region
      $region21: #{block_forward.1} parent=11 // pred_check
        %p190 = pneg %p101
      $region22: #{block_forward.1} parent=11 // pred_check_branch
        %192 = sbr.rel (%p190) target = $region24
      $region23: #{block_forward.1} parent=11 // pred_region
        _
      $region24: #{block_forward.1} parent=11 // pred_fallthru
        _
      // Predicated region
      $region25: #{block_forward.1} parent=11 // pred_check
        %p193 = pneg %p122
      $region26: #{block_forward.1} parent=11 // pred_check_branch
        %195 = sbr.rel (%p193) target = $region28
      $region27: #{block_forward.1} parent=11 // pred_region
        _
      $region28: #{block_forward.1} parent=11 // pred_fallthru
        _
      // Predicated region
      $region29: #{block_forward.1} parent=11 // pred_check
        %p196 = pneg %p143
      $region30: #{block_forward.1} parent=11 // pred_check_branch
        %198 = sbr.rel (%p196) target = $region32
      $region31: #{block_forward.1} parent=11 // pred_region
        _
      $region32: #{block_forward.1} parent=11 // pred_fallthru
        _
    $region12: #{block_forward.1} parent=5 // pred_fallthru
      _
    %p199 = scmp.lt.s32.totalorder %s12, 2
    // Predicated region
    $region33: #{block_forward.1} parent=5 // pred_check
      %p200 = pneg %p199
    $region34: #{block_forward.1} parent=5 // pred_check_branch
      %202 = sbr.rel (%p200) target = $region36
    $region35: #{block_forward.1} parent=5 // pred_region
      // Predicated region
      $region37: #{block_forward.1} parent=35 // pred_check
        %p203 = pneg %p32
      $region38: #{block_forward.1} parent=35 // pred_check_branch
        %205 = sbr.rel (%p203) target = $region40
      $region39: #{block_forward.1} parent=35 // pred_region
        %p206 = scmp.lt.s32.totalorder %s12, 1
        %s207 = scalar_select %p206, %s12, 1
        %s208 = smul.addr %s207, 6
        %s209 = smul.addr %s208, 4
        %s210 = scalar_lea.vmem %s0, %s209
      $region40: #{block_forward.1} parent=35 // pred_fallthru
        _
    $region36: #{block_forward.1} parent=5 // pred_fallthru
      _
    %p211 = scmp.le.s32.totalorder 1, %s12
    %p212 = scmp.lt.s32.totalorder %s12, 3
    %p213 = pnand %p211, %p212
    %p214 = pneg %p213
    // Predicated region
    $region41: #{block_forward.1} parent=5 // pred_check
      _
    $region42: #{block_forward.1} parent=5 // pred_check_branch
      %216 = sbr.rel (%p213) target = $region44
    $region43: #{block_forward.1} parent=5 // pred_region
      %s217 = ssub.s32 %s12, 1
      %p218 = scmp.lt.s32.totalorder %s17, 1
      %s219 = scalar_select %p218, %s17, 1
      %s220 = smul.addr %s219, 6
      %s221 = smul.addr %s220, 4
      %s222 = scalar_lea.vmem %s0, %s221
      %p223 = pneg %p38
      %p224 = pneg %p35
      %p225 = pneg %p59
      %p226 = pneg %p56
      %p227 = pneg %p80
      %p228 = pneg %p77
      %p229 = pneg %p101
      %p230 = pneg %p98
      %p231 = pneg %p122
      %p232 = pneg %p119
      %p233 = pneg %p143
      %p234 = pneg %p140
      %p235 = pneg %p169
      %p236 = pneg %p166
      %p237 = scmp.lt.s32.totalorder %s17, 1
      %s238 = scalar_select %p237, %s17, 1
      %s239 = smul.addr %s238, 4
      %s240 = smul.addr %s239, 4
      %s241 = scalar_lea.vmem %s6, %s240
      %p242 = scmp.lt.s32.totalorder %s17, 1
      %s243 = scalar_select %p242, %s17, 1
      %s244 = smul.addr %s243, 6
      %s245 = smul.addr %s244, 4
      %s246 = scalar_lea.vmem %s0, %s245
      %p247 = scmp.lt.s32.totalorder %s17, 1
      %s248 = scalar_select %p247, %s17, 1
      %s249 = smul.addr %s248, 4
      %s250 = smul.addr %s249, 4
      %s251 = scalar_lea.vmem %s6, %s250
      %v252 = vld [vmem:[%s246] sm:$0xff]
      %v253 = vld [vmem:[%s246 + $0x8] sm:$0xff]
      %v254 = vld [vmem:[%s246 + $0x10] sm:$0xff]
      %v255 = vld [vmem:[%s1] sm:$0xf]
      %v256 = vld [vmem:[%s3] sm:$0xff]
      %258 = vset.pattern.permute.xlu0 0
      %259 = vperm.xlu0 %258, %v255
      %v260 = vpop.permute.xlu0 %259
      %v265 = vlaneseq
      %v266 = vshrl.u32 %v265, 7
      %v267 = vsub.s32 0, %v266
      %v268 = vrot.slane %v252, %v267
      %v269 = vlaneseq
      %v270 = vshrl.u32 %v269, 7
      %v271 = vsub.s32 4, %v270
      %v272 = vrot.slane %v252, %v271
      %v273 = vlaneseq
      %v274 = vshrl.u32 %v273, 7
      %v275 = vsub.s32 0, %v274
      %v276 = vrot.slane %v253, %v275
      %v277 = vlaneseq
      %v278 = vshrl.u32 %v277, 7
      %v279 = vsub.s32 4, %v278
      %v280 = vrot.slane %v253, %v279
      %v281 = vlaneseq
      %v282 = vshrl.u32 %v281, 7
      %v283 = vsub.s32 0, %v282
      %v284 = vrot.slane %v254, %v283
      %v290 = vlaneseq
      %v291 = vshrl.u32 %v290, 7
      %v292 = vsub.s32 0, %v291
      %v293 = vrot.slane %v268, %v292
      %v294 = vlaneseq
      %v295 = vshrl.u32 %v294, 7
      %v296 = vsub.s32 0, %v295
      %v297 = vrot.slane %v272, %v296
      %v298 = vlaneseq
      %v299 = vshrl.u32 %v298, 7
      %v300 = vsub.s32 0, %v299
      %v301 = vrot.slane %v276, %v300
      %v302 = vlaneseq
      %v303 = vshrl.u32 %v302, 7
      %v304 = vsub.s32 0, %v303
      %v305 = vrot.slane %v280, %v304
      %v306 = vlaneseq
      %v307 = vshrl.u32 %v306, 7
      %v308 = vsub.s32 0, %v307
      %v309 = vrot.slane %v284, %v308
      %v310 = vmul.f32 %v260, %v293
      %v311 = vmul.f32 %v260, %v297
      %v312 = vmul.f32 %v260, %v301
      %v313 = vmul.f32 %v260, %v305
      %v314 = vmul.f32 %v260, %v309
      %v315 = vadd.f32 %v310, 0.0
      %v316 = vadd.f32 %v311, 0.0
      %v317 = vadd.f32 %v312, 0.0
      %v318 = vadd.f32 %v313, 0.0
      %v319 = vadd.f32 %v314, 0.0
      %320 = vset.pattern.permute.xlu0 1
      %321 = vperm.xlu0 %320, %v255
      %v322 = vpop.permute.xlu0 %321
      %v324 = vlaneseq
      %v325 = vshrl.u32 %v324, 7
      %v326 = vsub.s32 1, %v325
      %v327 = vrot.slane %v252, %v326
      %v328 = vlaneseq
      %v329 = vshrl.u32 %v328, 7
      %v330 = vsub.s32 5, %v329
      %v331 = vrot.slane %v252, %v330
      %v332 = vlaneseq
      %v333 = vshrl.u32 %v332, 7
      %v334 = vsub.s32 1, %v333
      %v335 = vrot.slane %v253, %v334
      %v336 = vlaneseq
      %v337 = vshrl.u32 %v336, 7
      %v338 = vsub.s32 5, %v337
      %v339 = vrot.slane %v253, %v338
      %v340 = vlaneseq
      %v341 = vshrl.u32 %v340, 7
      %v342 = vsub.s32 1, %v341
      %v343 = vrot.slane %v254, %v342
      %v349 = vlaneseq
      %v350 = vshrl.u32 %v349, 7
      %v351 = vsub.s32 1, %v350
      %v352 = vrot.slane %v327, %v351
      %v353 = vlaneseq
      %v354 = vshrl.u32 %v353, 7
      %v355 = vsub.s32 1, %v354
      %v356 = vrot.slane %v331, %v355
      %v357 = vlaneseq
      %v358 = vshrl.u32 %v357, 7
      %v359 = vsub.s32 1, %v358
      %v360 = vrot.slane %v335, %v359
      %v361 = vlaneseq
      %v362 = vshrl.u32 %v361, 7
      %v363 = vsub.s32 1, %v362
      %v364 = vrot.slane %v339, %v363
      %v365 = vlaneseq
      %v366 = vshrl.u32 %v365, 7
      %v367 = vsub.s32 1, %v366
      %v368 = vrot.slane %v343, %v367
      %v369 = vmul.f32 %v322, %v352
      %v370 = vmul.f32 %v322, %v356
      %v371 = vmul.f32 %v322, %v360
      %v372 = vmul.f32 %v322, %v364
      %v373 = vmul.f32 %v322, %v368
      %v374 = vadd.f32 %v315, %v369
      %v375 = vadd.f32 %v316, %v370
      %v376 = vadd.f32 %v317, %v371
      %v377 = vadd.f32 %v318, %v372
      %v378 = vadd.f32 %v319, %v373
      %379 = vset.pattern.permute.xlu0 2
      %380 = vperm.xlu0 %379, %v255
      %v381 = vpop.permute.xlu0 %380
      %v383 = vlaneseq
      %v384 = vshrl.u32 %v383, 7
      %v385 = vsub.s32 2, %v384
      %v386 = vrot.slane %v252, %v385
      %v387 = vlaneseq
      %v388 = vshrl.u32 %v387, 7
      %v389 = vsub.s32 6, %v388
      %v390 = vrot.slane %v252, %v389
      %v391 = vlaneseq
      %v392 = vshrl.u32 %v391, 7
      %v393 = vsub.s32 2, %v392
      %v394 = vrot.slane %v253, %v393
      %v395 = vlaneseq
      %v396 = vshrl.u32 %v395, 7
      %v397 = vsub.s32 6, %v396
      %v398 = vrot.slane %v253, %v397
      %v399 = vlaneseq
      %v400 = vshrl.u32 %v399, 7
      %v401 = vsub.s32 2, %v400
      %v402 = vrot.slane %v254, %v401
      %v408 = vlaneseq
      %v409 = vshrl.u32 %v408, 7
      %v410 = vsub.s32 2, %v409
      %v411 = vrot.slane %v386, %v410
      %v412 = vlaneseq
      %v413 = vshrl.u32 %v412, 7
      %v414 = vsub.s32 2, %v413
      %v415 = vrot.slane %v390, %v414
      %v416 = vlaneseq
      %v417 = vshrl.u32 %v416, 7
      %v418 = vsub.s32 2, %v417
      %v419 = vrot.slane %v394, %v418
      %v420 = vlaneseq
      %v421 = vshrl.u32 %v420, 7
      %v422 = vsub.s32 2, %v421
      %v423 = vrot.slane %v398, %v422
      %v424 = vlaneseq
      %v425 = vshrl.u32 %v424, 7
      %v426 = vsub.s32 2, %v425
      %v427 = vrot.slane %v402, %v426
      %v428 = vmul.f32 %v381, %v411
      %v429 = vmul.f32 %v381, %v415
      %v430 = vmul.f32 %v381, %v419
      %v431 = vmul.f32 %v381, %v423
      %v432 = vmul.f32 %v381, %v427
      %v433 = vadd.f32 %v374, %v428
      %v434 = vadd.f32 %v375, %v429
      %v435 = vadd.f32 %v376, %v430
      %v436 = vadd.f32 %v377, %v431
      %v437 = vadd.f32 %v378, %v432
      %438 = vset.pattern.permute.xlu0 3
      %439 = vperm.xlu0 %438, %v255
      %v440 = vpop.permute.xlu0 %439
      %v442 = vlaneseq
      %v443 = vshrl.u32 %v442, 7
      %v444 = vsub.s32 3, %v443
      %v445 = vrot.slane %v252, %v444
      %v446 = vlaneseq
      %v447 = vshrl.u32 %v446, 7
      %v448 = vsub.s32 7, %v447
      %v449 = vrot.slane %v252, %v448
      %v450 = vlaneseq
      %v451 = vshrl.u32 %v450, 7
      %v452 = vsub.s32 3, %v451
      %v453 = vrot.slane %v253, %v452
      %v454 = vlaneseq
      %v455 = vshrl.u32 %v454, 7
      %v456 = vsub.s32 7, %v455
      %v457 = vrot.slane %v253, %v456
      %v458 = vlaneseq
      %v459 = vshrl.u32 %v458, 7
      %v460 = vsub.s32 3, %v459
      %v461 = vrot.slane %v254, %v460
      %v467 = vlaneseq
      %v468 = vshrl.u32 %v467, 7
      %v469 = vsub.s32 3, %v468
      %v470 = vrot.slane %v445, %v469
      %v471 = vlaneseq
      %v472 = vshrl.u32 %v471, 7
      %v473 = vsub.s32 3, %v472
      %v474 = vrot.slane %v449, %v473
      %v475 = vlaneseq
      %v476 = vshrl.u32 %v475, 7
      %v477 = vsub.s32 3, %v476
      %v478 = vrot.slane %v453, %v477
      %v479 = vlaneseq
      %v480 = vshrl.u32 %v479, 7
      %v481 = vsub.s32 3, %v480
      %v482 = vrot.slane %v457, %v481
      %v483 = vlaneseq
      %v484 = vshrl.u32 %v483, 7
      %v485 = vsub.s32 3, %v484
      %v486 = vrot.slane %v461, %v485
      %v487 = vmul.f32 %v440, %v470
      %v488 = vmul.f32 %v440, %v474
      %v489 = vmul.f32 %v440, %v478
      %v490 = vmul.f32 %v440, %v482
      %v491 = vmul.f32 %v440, %v486
      %v492 = vadd.f32 %v433, %v487
      %v493 = vadd.f32 %v434, %v488
      %v494 = vadd.f32 %v435, %v489
      %v495 = vadd.f32 %v436, %v490
      %v496 = vadd.f32 %v437, %v491
      %497 = vset.pattern.permute.xlu0 4
      %498 = vperm.xlu0 %497, %v255
      %v499 = vpop.permute.xlu0 %498
      %v501 = vlaneseq
      %v502 = vshrl.u32 %v501, 7
      %v503 = vsub.s32 4, %v502
      %v504 = vrot.slane %v254, %v503
      %v506 = vlaneseq
      %v507 = vshrl.u32 %v506, 7
      %v508 = vsub.s32 0, %v507
      %v509 = vrot.slane %v504, %v508
      %v510 = vmul.f32 %v499, %v293
      %v511 = vmul.f32 %v499, %v297
      %v512 = vmul.f32 %v499, %v301
      %v513 = vmul.f32 %v499, %v305
      %v514 = vmul.f32 %v499, %v309
      %v515 = vmul.f32 %v499, %v509
      %522 = vrot.lane.b32.xlu0 %v510, 127
      %v523 = vpop.permute.xlu0 %522
      %524 = vrot.lane.b32.xlu0 %v511, 127
      %v525 = vpop.permute.xlu0 %524
      %526 = vrot.lane.b32.xlu0 %v512, 127
      %v527 = vpop.permute.xlu0 %526
      %528 = vrot.lane.b32.xlu0 %v513, 127
      %v529 = vpop.permute.xlu0 %528
      %530 = vrot.lane.b32.xlu0 %v514, 127
      %v531 = vpop.permute.xlu0 %530
      %532 = vrot.lane.b32.xlu0 %v515, 127
      %v533 = vpop.permute.xlu0 %532
      %vm534 = vcmask 1039360
      %v535 = vsel %vm534, %v523, %v525
      %v536 = vsel %vm534, %v525, %v527
      %v537 = vsel %vm534, %v527, %v529
      %v538 = vsel %vm534, %v529, %v531
      %v539 = vsel %vm534, %v531, %v533
      %v545 = vadd.f32 %v492, %v535
      %v546 = vadd.f32 %v493, %v536
      %v547 = vadd.f32 %v494, %v537
      %v548 = vadd.f32 %v495, %v538
      %v549 = vadd.f32 %v496, %v539
      %550 = vset.pattern.permute.xlu0 5
      %551 = vperm.xlu0 %550, %v255
      %v552 = vpop.permute.xlu0 %551
      %v554 = vlaneseq
      %v555 = vshrl.u32 %v554, 7
      %v556 = vsub.s32 5, %v555
      %v557 = vrot.slane %v254, %v556
      %v559 = vlaneseq
      %v560 = vshrl.u32 %v559, 7
      %v561 = vsub.s32 1, %v560
      %v562 = vrot.slane %v557, %v561
      %v563 = vmul.f32 %v552, %v352
      %v564 = vmul.f32 %v552, %v356
      %v565 = vmul.f32 %v552, %v360
      %v566 = vmul.f32 %v552, %v364
      %v567 = vmul.f32 %v552, %v368
      %v568 = vmul.f32 %v552, %v562
      %575 = vrot.lane.b32.xlu0 %v563, 127
      %v576 = vpop.permute.xlu0 %575
      %577 = vrot.lane.b32.xlu0 %v564, 127
      %v578 = vpop.permute.xlu0 %577
      %579 = vrot.lane.b32.xlu0 %v565, 127
      %v580 = vpop.permute.xlu0 %579
      %581 = vrot.lane.b32.xlu0 %v566, 127
      %v582 = vpop.permute.xlu0 %581
      %583 = vrot.lane.b32.xlu0 %v567, 127
      %v584 = vpop.permute.xlu0 %583
      %585 = vrot.lane.b32.xlu0 %v568, 127
      %v586 = vpop.permute.xlu0 %585
      %v587 = vsel %vm534, %v576, %v578
      %v588 = vsel %vm534, %v578, %v580
      %v589 = vsel %vm534, %v580, %v582
      %v590 = vsel %vm534, %v582, %v584
      %v591 = vsel %vm534, %v584, %v586
      %v597 = vadd.f32 %v545, %v587
      %v598 = vadd.f32 %v546, %v588
      %v599 = vadd.f32 %v547, %v589
      %v600 = vadd.f32 %v548, %v590
      %v601 = vadd.f32 %v549, %v591
      %602 = vset.pattern.permute.xlu0 6
      %603 = vperm.xlu0 %602, %v255
      %v604 = vpop.permute.xlu0 %603
      %v606 = vlaneseq
      %v607 = vshrl.u32 %v606, 7
      %v608 = vsub.s32 6, %v607
      %v609 = vrot.slane %v254, %v608
      %v611 = vlaneseq
      %v612 = vshrl.u32 %v611, 7
      %v613 = vsub.s32 2, %v612
      %v614 = vrot.slane %v609, %v613
      %v615 = vmul.f32 %v604, %v411
      %v616 = vmul.f32 %v604, %v415
      %v617 = vmul.f32 %v604, %v419
      %v618 = vmul.f32 %v604, %v423
      %v619 = vmul.f32 %v604, %v427
      %v620 = vmul.f32 %v604, %v614
      %627 = vrot.lane.b32.xlu0 %v615, 127
      %v628 = vpop.permute.xlu0 %627
      %629 = vrot.lane.b32.xlu0 %v616, 127
      %v630 = vpop.permute.xlu0 %629
      %631 = vrot.lane.b32.xlu0 %v617, 127
      %v632 = vpop.permute.xlu0 %631
      %633 = vrot.lane.b32.xlu0 %v618, 127
      %v634 = vpop.permute.xlu0 %633
      %635 = vrot.lane.b32.xlu0 %v619, 127
      %v636 = vpop.permute.xlu0 %635
      %637 = vrot.lane.b32.xlu0 %v620, 127
      %v638 = vpop.permute.xlu0 %637
      %v639 = vsel %vm534, %v628, %v630
      %v640 = vsel %vm534, %v630, %v632
      %v641 = vsel %vm534, %v632, %v634
      %v642 = vsel %vm534, %v634, %v636
      %v643 = vsel %vm534, %v636, %v638
      %v649 = vadd.f32 %v597, %v639
      %v650 = vadd.f32 %v598, %v640
      %v651 = vadd.f32 %v599, %v641
      %v652 = vadd.f32 %v600, %v642
      %v653 = vadd.f32 %v601, %v643
      %654 = vset.pattern.permute.xlu0 7
      %655 = vperm.xlu0 %654, %v255
      %v656 = vpop.permute.xlu0 %655
      %v658 = vlaneseq
      %v659 = vshrl.u32 %v658, 7
      %v660 = vsub.s32 7, %v659
      %v661 = vrot.slane %v254, %v660
      %v663 = vlaneseq
      %v664 = vshrl.u32 %v663, 7
      %v665 = vsub.s32 3, %v664
      %v666 = vrot.slane %v661, %v665
      %v667 = vmul.f32 %v656, %v470
      %v668 = vmul.f32 %v656, %v474
      %v669 = vmul.f32 %v656, %v478
      %v670 = vmul.f32 %v656, %v482
      %v671 = vmul.f32 %v656, %v486
      %v672 = vmul.f32 %v656, %v666
      %679 = vrot.lane.b32.xlu0 %v667, 127
      %v680 = vpop.permute.xlu0 %679
      %681 = vrot.lane.b32.xlu0 %v668, 127
      %v682 = vpop.permute.xlu0 %681
      %683 = vrot.lane.b32.xlu0 %v669, 127
      %v684 = vpop.permute.xlu0 %683
      %685 = vrot.lane.b32.xlu0 %v670, 127
      %v686 = vpop.permute.xlu0 %685
      %687 = vrot.lane.b32.xlu0 %v671, 127
      %v688 = vpop.permute.xlu0 %687
      %689 = vrot.lane.b32.xlu0 %v672, 127
      %v690 = vpop.permute.xlu0 %689
      %v691 = vsel %vm534, %v680, %v682
      %v692 = vsel %vm534, %v682, %v684
      %v693 = vsel %vm534, %v684, %v686
      %v694 = vsel %vm534, %v686, %v688
      %v695 = vsel %vm534, %v688, %v690
      %v701 = vadd.f32 %v649, %v691
      %v702 = vadd.f32 %v650, %v692
      %v703 = vadd.f32 %v651, %v693
      %v704 = vadd.f32 %v652, %v694
      %v705 = vadd.f32 %v653, %v695
      %706 = vset.pattern.permute.xlu0 8
      %707 = vperm.xlu0 %706, %v255
      %v708 = vpop.permute.xlu0 %707
      %v710 = vmul.f32 %v708, %v293
      %v711 = vmul.f32 %v708, %v297
      %v712 = vmul.f32 %v708, %v301
      %v713 = vmul.f32 %v708, %v305
      %v714 = vmul.f32 %v708, %v309
      %v715 = vmul.f32 %v708, %v509
      %722 = vrot.lane.b32.xlu0 %v710, 126
      %v723 = vpop.permute.xlu0 %722
      %724 = vrot.lane.b32.xlu0 %v711, 126
      %v725 = vpop.permute.xlu0 %724
      %726 = vrot.lane.b32.xlu0 %v712, 126
      %v727 = vpop.permute.xlu0 %726
      %728 = vrot.lane.b32.xlu0 %v713, 126
      %v729 = vpop.permute.xlu0 %728
      %730 = vrot.lane.b32.xlu0 %v714, 126
      %v731 = vpop.permute.xlu0 %730
      %732 = vrot.lane.b32.xlu0 %v715, 126
      %v733 = vpop.permute.xlu0 %732
      %vm734 = vcmask 1031168
      %v735 = vsel %vm734, %v723, %v725
      %v736 = vsel %vm734, %v725, %v727
      %v737 = vsel %vm734, %v727, %v729
      %v738 = vsel %vm734, %v729, %v731
      %v739 = vsel %vm734, %v731, %v733
      %v745 = vadd.f32 %v701, %v735
      %v746 = vadd.f32 %v702, %v736
      %v747 = vadd.f32 %v703, %v737
      %v748 = vadd.f32 %v704, %v738
      %v749 = vadd.f32 %v705, %v739
      %750 = vset.pattern.permute.xlu0 9
      %751 = vperm.xlu0 %750, %v255
      %v752 = vpop.permute.xlu0 %751
      %v754 = vmul.f32 %v752, %v352
      %v755 = vmul.f32 %v752, %v356
      %v756 = vmul.f32 %v752, %v360
      %v757 = vmul.f32 %v752, %v364
      %v758 = vmul.f32 %v752, %v368
      %v759 = vmul.f32 %v752, %v562
      %766 = vrot.lane.b32.xlu0 %v754, 126
      %v767 = vpop.permute.xlu0 %766
      %768 = vrot.lane.b32.xlu0 %v755, 126
      %v769 = vpop.permute.xlu0 %768
      %770 = vrot.lane.b32.xlu0 %v756, 126
      %v771 = vpop.permute.xlu0 %770
      %772 = vrot.lane.b32.xlu0 %v757, 126
      %v773 = vpop.permute.xlu0 %772
      %774 = vrot.lane.b32.xlu0 %v758, 126
      %v775 = vpop.permute.xlu0 %774
      %776 = vrot.lane.b32.xlu0 %v759, 126
      %v777 = vpop.permute.xlu0 %776
      %v778 = vsel %vm734, %v767, %v769
      %v779 = vsel %vm734, %v769, %v771
      %v780 = vsel %vm734, %v771, %v773
      %v781 = vsel %vm734, %v773, %v775
      %v782 = vsel %vm734, %v775, %v777
      %v788 = vadd.f32 %v745, %v778
      %v789 = vadd.f32 %v746, %v779
      %v790 = vadd.f32 %v747, %v780
      %v791 = vadd.f32 %v748, %v781
      %v792 = vadd.f32 %v749, %v782
      %793 = vset.pattern.permute.xlu0 10
      %794 = vperm.xlu0 %793, %v255
      %v795 = vpop.permute.xlu0 %794
      %v797 = vmul.f32 %v795, %v411
      %v798 = vmul.f32 %v795, %v415
      %v799 = vmul.f32 %v795, %v419
      %v800 = vmul.f32 %v795, %v423
      %v801 = vmul.f32 %v795, %v427
      %v802 = vmul.f32 %v795, %v614
      %809 = vrot.lane.b32.xlu0 %v797, 126
      %v810 = vpop.permute.xlu0 %809
      %811 = vrot.lane.b32.xlu0 %v798, 126
      %v812 = vpop.permute.xlu0 %811
      %813 = vrot.lane.b32.xlu0 %v799, 126
      %v814 = vpop.permute.xlu0 %813
      %815 = vrot.lane.b32.xlu0 %v800, 126
      %v816 = vpop.permute.xlu0 %815
      %817 = vrot.lane.b32.xlu0 %v801, 126
      %v818 = vpop.permute.xlu0 %817
      %819 = vrot.lane.b32.xlu0 %v802, 126
      %v820 = vpop.permute.xlu0 %819
      %v821 = vsel %vm734, %v810, %v812
      %v822 = vsel %vm734, %v812, %v814
      %v823 = vsel %vm734, %v814, %v816
      %v824 = vsel %vm734, %v816, %v818
      %v825 = vsel %vm734, %v818, %v820
      %v831 = vadd.f32 %v788, %v821
      %v832 = vadd.f32 %v789, %v822
      %v833 = vadd.f32 %v790, %v823
      %v834 = vadd.f32 %v791, %v824
      %v835 = vadd.f32 %v792, %v825
      %836 = vset.pattern.permute.xlu0 11
      %837 = vperm.xlu0 %836, %v255
      %v838 = vpop.permute.xlu0 %837
      %v840 = vmul.f32 %v838, %v470
      %v841 = vmul.f32 %v838, %v474
      %v842 = vmul.f32 %v838, %v478
      %v843 = vmul.f32 %v838, %v482
      %v844 = vmul.f32 %v838, %v486
      %v845 = vmul.f32 %v838, %v666
      %852 = vrot.lane.b32.xlu0 %v840, 126
      %v853 = vpop.permute.xlu0 %852
      %854 = vrot.lane.b32.xlu0 %v841, 126
      %v855 = vpop.permute.xlu0 %854
      %856 = vrot.lane.b32.xlu0 %v842, 126
      %v857 = vpop.permute.xlu0 %856
      %858 = vrot.lane.b32.xlu0 %v843, 126
      %v859 = vpop.permute.xlu0 %858
      %860 = vrot.lane.b32.xlu0 %v844, 126
      %v861 = vpop.permute.xlu0 %860
      %862 = vrot.lane.b32.xlu0 %v845, 126
      %v863 = vpop.permute.xlu0 %862
      %v864 = vsel %vm734, %v853, %v855
      %v865 = vsel %vm734, %v855, %v857
      %v866 = vsel %vm734, %v857, %v859
      %v867 = vsel %vm734, %v859, %v861
      %v868 = vsel %vm734, %v861, %v863
      %v874 = vadd.f32 %v831, %v864
      %v875 = vadd.f32 %v832, %v865
      %v876 = vadd.f32 %v833, %v866
      %v877 = vadd.f32 %v834, %v867
      %v878 = vadd.f32 %v835, %v868
      %879 = vset.pattern.permute.xlu0 12
      %880 = vperm.xlu0 %879, %v255
      %v881 = vpop.permute.xlu0 %880
      %v883 = vmul.f32 %v881, %v293
      %v884 = vmul.f32 %v881, %v297
      %v885 = vmul.f32 %v881, %v301
      %v886 = vmul.f32 %v881, %v305
      %v887 = vmul.f32 %v881, %v309
      %v888 = vmul.f32 %v881, %v509
      %895 = vrot.lane.b32.xlu0 %v883, 125
      %v896 = vpop.permute.xlu0 %895
      %897 = vrot.lane.b32.xlu0 %v884, 125
      %v898 = vpop.permute.xlu0 %897
      %899 = vrot.lane.b32.xlu0 %v885, 125
      %v900 = vpop.permute.xlu0 %899
      %901 = vrot.lane.b32.xlu0 %v886, 125
      %v902 = vpop.permute.xlu0 %901
      %903 = vrot.lane.b32.xlu0 %v887, 125
      %v904 = vpop.permute.xlu0 %903
      %905 = vrot.lane.b32.xlu0 %v888, 125
      %v906 = vpop.permute.xlu0 %905
      %vm907 = vcmask 1022976
      %v908 = vsel %vm907, %v896, %v898
      %v909 = vsel %vm907, %v898, %v900
      %v910 = vsel %vm907, %v900, %v902
      %v911 = vsel %vm907, %v902, %v904
      %v912 = vsel %vm907, %v904, %v906
      %v918 = vadd.f32 %v874, %v908
      %v919 = vadd.f32 %v875, %v909
      %v920 = vadd.f32 %v876, %v910
      %v921 = vadd.f32 %v877, %v911
      %v922 = vadd.f32 %v878, %v912
      %923 = vset.pattern.permute.xlu0 13
      %924 = vperm.xlu0 %923, %v255
      %v925 = vpop.permute.xlu0 %924
      %v927 = vmul.f32 %v925, %v352
      %v928 = vmul.f32 %v925, %v356
      %v929 = vmul.f32 %v925, %v360
      %v930 = vmul.f32 %v925, %v364
      %v931 = vmul.f32 %v925, %v368
      %v932 = vmul.f32 %v925, %v562
      %939 = vrot.lane.b32.xlu0 %v927, 125
      %v940 = vpop.permute.xlu0 %939
      %941 = vrot.lane.b32.xlu0 %v928, 125
      %v942 = vpop.permute.xlu0 %941
      %943 = vrot.lane.b32.xlu0 %v929, 125
      %v944 = vpop.permute.xlu0 %943
      %945 = vrot.lane.b32.xlu0 %v930, 125
      %v946 = vpop.permute.xlu0 %945
      %947 = vrot.lane.b32.xlu0 %v931, 125
      %v948 = vpop.permute.xlu0 %947
      %949 = vrot.lane.b32.xlu0 %v932, 125
      %v950 = vpop.permute.xlu0 %949
      %v951 = vsel %vm907, %v940, %v942
      %v952 = vsel %vm907, %v942, %v944
      %v953 = vsel %vm907, %v944, %v946
      %v954 = vsel %vm907, %v946, %v948
      %v955 = vsel %vm907, %v948, %v950
      %v961 = vadd.f32 %v918, %v951
      %v962 = vadd.f32 %v919, %v952
      %v963 = vadd.f32 %v920, %v953
      %v964 = vadd.f32 %v921, %v954
      %v965 = vadd.f32 %v922, %v955
      %966 = vset.pattern.permute.xlu0 14
      %967 = vperm.xlu0 %966, %v255
      %v968 = vpop.permute.xlu0 %967
      %v970 = vmul.f32 %v968, %v411
      %v971 = vmul.f32 %v968, %v415
      %v972 = vmul.f32 %v968, %v419
      %v973 = vmul.f32 %v968, %v423
      %v974 = vmul.f32 %v968, %v427
      %v975 = vmul.f32 %v968, %v614
      %982 = vrot.lane.b32.xlu0 %v970, 125
      %v983 = vpop.permute.xlu0 %982
      %984 = vrot.lane.b32.xlu0 %v971, 125
      %v985 = vpop.permute.xlu0 %984
      %986 = vrot.lane.b32.xlu0 %v972, 125
      %v987 = vpop.permute.xlu0 %986
      %988 = vrot.lane.b32.xlu0 %v973, 125
      %v989 = vpop.permute.xlu0 %988
      %990 = vrot.lane.b32.xlu0 %v974, 125
      %v991 = vpop.permute.xlu0 %990
      %992 = vrot.lane.b32.xlu0 %v975, 125
      %v993 = vpop.permute.xlu0 %992
      %v994 = vsel %vm907, %v983, %v985
      %v995 = vsel %vm907, %v985, %v987
      %v996 = vsel %vm907, %v987, %v989
      %v997 = vsel %vm907, %v989, %v991
      %v998 = vsel %vm907, %v991, %v993
      %v1004 = vadd.f32 %v961, %v994
      %v1005 = vadd.f32 %v962, %v995
      %v1006 = vadd.f32 %v963, %v996
      %v1007 = vadd.f32 %v964, %v997
      %v1008 = vadd.f32 %v965, %v998
      %1009 = vset.pattern.permute.xlu0 15
      %1010 = vperm.xlu0 %1009, %v255
      %v1011 = vpop.permute.xlu0 %1010
      %v1013 = vmul.f32 %v1011, %v470
      %v1014 = vmul.f32 %v1011, %v474
      %v1015 = vmul.f32 %v1011, %v478
      %v1016 = vmul.f32 %v1011, %v482
      %v1017 = vmul.f32 %v1011, %v486
      %v1018 = vmul.f32 %v1011, %v666
      %1025 = vrot.lane.b32.xlu0 %v1013, 125
      %v1026 = vpop.permute.xlu0 %1025
      %1027 = vrot.lane.b32.xlu0 %v1014, 125
      %v1028 = vpop.permute.xlu0 %1027
      %1029 = vrot.lane.b32.xlu0 %v1015, 125
      %v1030 = vpop.permute.xlu0 %1029
      %1031 = vrot.lane.b32.xlu0 %v1016, 125
      %v1032 = vpop.permute.xlu0 %1031
      %1033 = vrot.lane.b32.xlu0 %v1017, 125
      %v1034 = vpop.permute.xlu0 %1033
      %1035 = vrot.lane.b32.xlu0 %v1018, 125
      %v1036 = vpop.permute.xlu0 %1035
      %v1037 = vsel %vm907, %v1026, %v1028
      %v1038 = vsel %vm907, %v1028, %v1030
      %v1039 = vsel %vm907, %v1030, %v1032
      %v1040 = vsel %vm907, %v1032, %v1034
      %v1041 = vsel %vm907, %v1034, %v1036
      %v1047 = vadd.f32 %v1004, %v1037
      %v1048 = vadd.f32 %v1005, %v1038
      %v1049 = vadd.f32 %v1006, %v1039
      %v1050 = vadd.f32 %v1007, %v1040
      %v1051 = vadd.f32 %v1008, %v1041
      %1052 = vset.pattern.permute.xlu0 16
      %1053 = vperm.xlu0 %1052, %v255
      %v1054 = vpop.permute.xlu0 %1053
      %v1056 = vmul.f32 %v1054, %v293
      %v1057 = vmul.f32 %v1054, %v297
      %v1058 = vmul.f32 %v1054, %v301
      %v1059 = vmul.f32 %v1054, %v305
      %v1060 = vmul.f32 %v1054, %v309
      %v1061 = vmul.f32 %v1054, %v509
      %1068 = vrot.lane.b32.xlu0 %v1056, 124
      %v1069 = vpop.permute.xlu0 %1068
      %1070 = vrot.lane.b32.xlu0 %v1057, 124
      %v1071 = vpop.permute.xlu0 %1070
      %1072 = vrot.lane.b32.xlu0 %v1058, 124
      %v1073 = vpop.permute.xlu0 %1072
      %1074 = vrot.lane.b32.xlu0 %v1059, 124
      %v1075 = vpop.permute.xlu0 %1074
      %1076 = vrot.lane.b32.xlu0 %v1060, 124
      %v1077 = vpop.permute.xlu0 %1076
      %1078 = vrot.lane.b32.xlu0 %v1061, 124
      %v1079 = vpop.permute.xlu0 %1078
      %vm1080 = vcmask 1014784
      %v1081 = vsel %vm1080, %v1069, %v1071
      %v1082 = vsel %vm1080, %v1071, %v1073
      %v1083 = vsel %vm1080, %v1073, %v1075
      %v1084 = vsel %vm1080, %v1075, %v1077
      %v1085 = vsel %vm1080, %v1077, %v1079
      %v1091 = vadd.f32 %v1047, %v1081
      %v1092 = vadd.f32 %v1048, %v1082
      %v1093 = vadd.f32 %v1049, %v1083
      %v1094 = vadd.f32 %v1050, %v1084
      %v1095 = vadd.f32 %v1051, %v1085
      %1096 = vset.pattern.permute.xlu0 17
      %1097 = vperm.xlu0 %1096, %v255
      %v1098 = vpop.permute.xlu0 %1097
      %v1100 = vmul.f32 %v1098, %v352
      %v1101 = vmul.f32 %v1098, %v356
      %v1102 = vmul.f32 %v1098, %v360
      %v1103 = vmul.f32 %v1098, %v364
      %v1104 = vmul.f32 %v1098, %v368
      %v1105 = vmul.f32 %v1098, %v562
      %1112 = vrot.lane.b32.xlu0 %v1100, 124
      %v1113 = vpop.permute.xlu0 %1112
      %1114 = vrot.lane.b32.xlu0 %v1101, 124
      %v1115 = vpop.permute.xlu0 %1114
      %1116 = vrot.lane.b32.xlu0 %v1102, 124
      %v1117 = vpop.permute.xlu0 %1116
      %1118 = vrot.lane.b32.xlu0 %v1103, 124
      %v1119 = vpop.permute.xlu0 %1118
      %1120 = vrot.lane.b32.xlu0 %v1104, 124
      %v1121 = vpop.permute.xlu0 %1120
      %1122 = vrot.lane.b32.xlu0 %v1105, 124
      %v1123 = vpop.permute.xlu0 %1122
      %v1124 = vsel %vm1080, %v1113, %v1115
      %v1125 = vsel %vm1080, %v1115, %v1117
      %v1126 = vsel %vm1080, %v1117, %v1119
      %v1127 = vsel %vm1080, %v1119, %v1121
      %v1128 = vsel %vm1080, %v1121, %v1123
      %v1134 = vadd.f32 %v1091, %v1124
      %v1135 = vadd.f32 %v1092, %v1125
      %v1136 = vadd.f32 %v1093, %v1126
      %v1137 = vadd.f32 %v1094, %v1127
      %v1138 = vadd.f32 %v1095, %v1128
      %1139 = vset.pattern.permute.xlu0 18
      %1140 = vperm.xlu0 %1139, %v255
      %v1141 = vpop.permute.xlu0 %1140
      %v1143 = vmul.f32 %v1141, %v411
      %v1144 = vmul.f32 %v1141, %v415
      %v1145 = vmul.f32 %v1141, %v419
      %v1146 = vmul.f32 %v1141, %v423
      %v1147 = vmul.f32 %v1141, %v427
      %v1148 = vmul.f32 %v1141, %v614
      %1155 = vrot.lane.b32.xlu0 %v1143, 124
      %v1156 = vpop.permute.xlu0 %1155
      %1157 = vrot.lane.b32.xlu0 %v1144, 124
      %v1158 = vpop.permute.xlu0 %1157
      %1159 = vrot.lane.b32.xlu0 %v1145, 124
      %v1160 = vpop.permute.xlu0 %1159
      %1161 = vrot.lane.b32.xlu0 %v1146, 124
      %v1162 = vpop.permute.xlu0 %1161
      %1163 = vrot.lane.b32.xlu0 %v1147, 124
      %v1164 = vpop.permute.xlu0 %1163
      %1165 = vrot.lane.b32.xlu0 %v1148, 124
      %v1166 = vpop.permute.xlu0 %1165
      %v1167 = vsel %vm1080, %v1156, %v1158
      %v1168 = vsel %vm1080, %v1158, %v1160
      %v1169 = vsel %vm1080, %v1160, %v1162
      %v1170 = vsel %vm1080, %v1162, %v1164
      %v1171 = vsel %vm1080, %v1164, %v1166
      %v1177 = vadd.f32 %v1134, %v1167
      %v1178 = vadd.f32 %v1135, %v1168
      %v1179 = vadd.f32 %v1136, %v1169
      %v1180 = vadd.f32 %v1137, %v1170
      %v1181 = vadd.f32 %v1138, %v1171
      %1182 = vset.pattern.permute.xlu0 19
      %1183 = vperm.xlu0 %1182, %v255
      %v1184 = vpop.permute.xlu0 %1183
      %v1186 = vmul.f32 %v1184, %v470
      %v1187 = vmul.f32 %v1184, %v474
      %v1188 = vmul.f32 %v1184, %v478
      %v1189 = vmul.f32 %v1184, %v482
      %v1190 = vmul.f32 %v1184, %v486
      %v1191 = vmul.f32 %v1184, %v666
      %1198 = vrot.lane.b32.xlu0 %v1186, 124
      %v1199 = vpop.permute.xlu0 %1198
      %1200 = vrot.lane.b32.xlu0 %v1187, 124
      %v1201 = vpop.permute.xlu0 %1200
      %1202 = vrot.lane.b32.xlu0 %v1188, 124
      %v1203 = vpop.permute.xlu0 %1202
      %1204 = vrot.lane.b32.xlu0 %v1189, 124
      %v1205 = vpop.permute.xlu0 %1204
      %1206 = vrot.lane.b32.xlu0 %v1190, 124
      %v1207 = vpop.permute.xlu0 %1206
      %1208 = vrot.lane.b32.xlu0 %v1191, 124
      %v1209 = vpop.permute.xlu0 %1208
      %v1210 = vsel %vm1080, %v1199, %v1201
      %v1211 = vsel %vm1080, %v1201, %v1203
      %v1212 = vsel %vm1080, %v1203, %v1205
      %v1213 = vsel %vm1080, %v1205, %v1207
      %v1214 = vsel %vm1080, %v1207, %v1209
      %v1220 = vadd.f32 %v1177, %v1210
      %v1221 = vadd.f32 %v1178, %v1211
      %v1222 = vadd.f32 %v1179, %v1212
      %v1223 = vadd.f32 %v1180, %v1213
      %v1224 = vadd.f32 %v1181, %v1214
      %1225 = vset.pattern.permute.xlu0 20
      %1226 = vperm.xlu0 %1225, %v255
      %v1227 = vpop.permute.xlu0 %1226
      %v1229 = vmul.f32 %v1227, %v293
      %v1230 = vmul.f32 %v1227, %v297
      %v1231 = vmul.f32 %v1227, %v301
      %v1232 = vmul.f32 %v1227, %v305
      %v1233 = vmul.f32 %v1227, %v309
      %v1234 = vmul.f32 %v1227, %v509
      %1241 = vrot.lane.b32.xlu0 %v1229, 102
      %v1242 = vpop.permute.xlu0 %1241
      %1243 = vrot.lane.b32.xlu0 %v1230, 102
      %v1244 = vpop.permute.xlu0 %1243
      %1245 = vrot.lane.b32.xlu0 %v1231, 102
      %v1246 = vpop.permute.xlu0 %1245
      %1247 = vrot.lane.b32.xlu0 %v1232, 102
      %v1248 = vpop.permute.xlu0 %1247
      %1249 = vrot.lane.b32.xlu0 %v1233, 102
      %v1250 = vpop.permute.xlu0 %1249
      %1251 = vrot.lane.b32.xlu0 %v1234, 102
      %v1252 = vpop.permute.xlu0 %1251
      %vm1253 = vcmask 834560
      %v1254 = vsel %vm1253, %v1242, %v1244
      %v1255 = vsel %vm1253, %v1244, %v1246
      %v1256 = vsel %vm1253, %v1246, %v1248
      %v1257 = vsel %vm1253, %v1248, %v1250
      %v1258 = vsel %vm1253, %v1250, %v1252
      %v1264 = vadd.f32 %v1220, %v1254
      %v1265 = vadd.f32 %v1221, %v1255
      %v1266 = vadd.f32 %v1222, %v1256
      %v1267 = vadd.f32 %v1223, %v1257
      %v1268 = vadd.f32 %v1224, %v1258
      %1269 = vset.pattern.permute.xlu0 21
      %1270 = vperm.xlu0 %1269, %v255
      %v1271 = vpop.permute.xlu0 %1270
      %v1273 = vmul.f32 %v1271, %v352
      %v1274 = vmul.f32 %v1271, %v356
      %v1275 = vmul.f32 %v1271, %v360
      %v1276 = vmul.f32 %v1271, %v364
      %v1277 = vmul.f32 %v1271, %v368
      %v1278 = vmul.f32 %v1271, %v562
      %1285 = vrot.lane.b32.xlu0 %v1273, 102
      %v1286 = vpop.permute.xlu0 %1285
      %1287 = vrot.lane.b32.xlu0 %v1274, 102
      %v1288 = vpop.permute.xlu0 %1287
      %1289 = vrot.lane.b32.xlu0 %v1275, 102
      %v1290 = vpop.permute.xlu0 %1289
      %1291 = vrot.lane.b32.xlu0 %v1276, 102
      %v1292 = vpop.permute.xlu0 %1291
      %1293 = vrot.lane.b32.xlu0 %v1277, 102
      %v1294 = vpop.permute.xlu0 %1293
      %1295 = vrot.lane.b32.xlu0 %v1278, 102
      %v1296 = vpop.permute.xlu0 %1295
      %v1297 = vsel %vm1253, %v1286, %v1288
      %v1298 = vsel %vm1253, %v1288, %v1290
      %v1299 = vsel %vm1253, %v1290, %v1292
      %v1300 = vsel %vm1253, %v1292, %v1294
      %v1301 = vsel %vm1253, %v1294, %v1296
      %v1307 = vadd.f32 %v1264, %v1297
      %v1308 = vadd.f32 %v1265, %v1298
      %v1309 = vadd.f32 %v1266, %v1299
      %v1310 = vadd.f32 %v1267, %v1300
      %v1311 = vadd.f32 %v1268, %v1301
      %1312 = vset.pattern.permute.xlu0 22
      %1313 = vperm.xlu0 %1312, %v255
      %v1314 = vpop.permute.xlu0 %1313
      %v1316 = vmul.f32 %v1314, %v411
      %v1317 = vmul.f32 %v1314, %v415
      %v1318 = vmul.f32 %v1314, %v419
      %v1319 = vmul.f32 %v1314, %v423
      %v1320 = vmul.f32 %v1314, %v427
      %v1321 = vmul.f32 %v1314, %v614
      %1328 = vrot.lane.b32.xlu0 %v1316, 102
      %v1329 = vpop.permute.xlu0 %1328
      %1330 = vrot.lane.b32.xlu0 %v1317, 102
      %v1331 = vpop.permute.xlu0 %1330
      %1332 = vrot.lane.b32.xlu0 %v1318, 102
      %v1333 = vpop.permute.xlu0 %1332
      %1334 = vrot.lane.b32.xlu0 %v1319, 102
      %v1335 = vpop.permute.xlu0 %1334
      %1336 = vrot.lane.b32.xlu0 %v1320, 102
      %v1337 = vpop.permute.xlu0 %1336
      %1338 = vrot.lane.b32.xlu0 %v1321, 102
      %v1339 = vpop.permute.xlu0 %1338
      %v1340 = vsel %vm1253, %v1329, %v1331
      %v1341 = vsel %vm1253, %v1331, %v1333
      %v1342 = vsel %vm1253, %v1333, %v1335
      %v1343 = vsel %vm1253, %v1335, %v1337
      %v1344 = vsel %vm1253, %v1337, %v1339
      %v1350 = vadd.f32 %v1307, %v1340
      %v1351 = vadd.f32 %v1308, %v1341
      %v1352 = vadd.f32 %v1309, %v1342
      %v1353 = vadd.f32 %v1310, %v1343
      %v1354 = vadd.f32 %v1311, %v1344
      %1355 = vset.pattern.permute.xlu0 23
      %1356 = vperm.xlu0 %1355, %v255
      %v1357 = vpop.permute.xlu0 %1356
      %v1359 = vmul.f32 %v1357, %v470
      %v1360 = vmul.f32 %v1357, %v474
      %v1361 = vmul.f32 %v1357, %v478
      %v1362 = vmul.f32 %v1357, %v482
      %v1363 = vmul.f32 %v1357, %v486
      %v1364 = vmul.f32 %v1357, %v666
      %1371 = vrot.lane.b32.xlu0 %v1359, 102
      %v1372 = vpop.permute.xlu0 %1371
      %1373 = vrot.lane.b32.xlu0 %v1360, 102
      %v1374 = vpop.permute.xlu0 %1373
      %1375 = vrot.lane.b32.xlu0 %v1361, 102
      %v1376 = vpop.permute.xlu0 %1375
      %1377 = vrot.lane.b32.xlu0 %v1362, 102
      %v1378 = vpop.permute.xlu0 %1377
      %1379 = vrot.lane.b32.xlu0 %v1363, 102
      %v1380 = vpop.permute.xlu0 %1379
      %1381 = vrot.lane.b32.xlu0 %v1364, 102
      %v1382 = vpop.permute.xlu0 %1381
      %v1383 = vsel %vm1253, %v1372, %v1374
      %v1384 = vsel %vm1253, %v1374, %v1376
      %v1385 = vsel %vm1253, %v1376, %v1378
      %v1386 = vsel %vm1253, %v1378, %v1380
      %v1387 = vsel %vm1253, %v1380, %v1382
      %v1393 = vadd.f32 %v1350, %v1383
      %v1394 = vadd.f32 %v1351, %v1384
      %v1395 = vadd.f32 %v1352, %v1385
      %v1396 = vadd.f32 %v1353, %v1386
      %v1397 = vadd.f32 %v1354, %v1387
      %1398 = vset.pattern.permute.xlu0 24
      %1399 = vperm.xlu0 %1398, %v255
      %v1400 = vpop.permute.xlu0 %1399
      %v1402 = vmul.f32 %v1400, %v293
      %v1403 = vmul.f32 %v1400, %v297
      %v1404 = vmul.f32 %v1400, %v301
      %v1405 = vmul.f32 %v1400, %v305
      %v1406 = vmul.f32 %v1400, %v309
      %v1407 = vmul.f32 %v1400, %v509
      %1414 = vrot.lane.b32.xlu0 %v1402, 101
      %v1415 = vpop.permute.xlu0 %1414
      %1416 = vrot.lane.b32.xlu0 %v1403, 101
      %v1417 = vpop.permute.xlu0 %1416
      %1418 = vrot.lane.b32.xlu0 %v1404, 101
      %v1419 = vpop.permute.xlu0 %1418
      %1420 = vrot.lane.b32.xlu0 %v1405, 101
      %v1421 = vpop.permute.xlu0 %1420
      %1422 = vrot.lane.b32.xlu0 %v1406, 101
      %v1423 = vpop.permute.xlu0 %1422
      %1424 = vrot.lane.b32.xlu0 %v1407, 101
      %v1425 = vpop.permute.xlu0 %1424
      %vm1426 = vcmask 826368
      %v1427 = vsel %vm1426, %v1415, %v1417
      %v1428 = vsel %vm1426, %v1417, %v1419
      %v1429 = vsel %vm1426, %v1419, %v1421
      %v1430 = vsel %vm1426, %v1421, %v1423
      %v1431 = vsel %vm1426, %v1423, %v1425
      %v1437 = vadd.f32 %v1393, %v1427
      %v1438 = vadd.f32 %v1394, %v1428
      %v1439 = vadd.f32 %v1395, %v1429
      %v1440 = vadd.f32 %v1396, %v1430
      %v1441 = vadd.f32 %v1397, %v1431
      %1442 = vset.pattern.permute.xlu0 25
      %1443 = vperm.xlu0 %1442, %v255
      %v1444 = vpop.permute.xlu0 %1443
      %v1446 = vmul.f32 %v1444, %v352
      %v1447 = vmul.f32 %v1444, %v356
      %v1448 = vmul.f32 %v1444, %v360
      %v1449 = vmul.f32 %v1444, %v364
      %v1450 = vmul.f32 %v1444, %v368
      %v1451 = vmul.f32 %v1444, %v562
      %1458 = vrot.lane.b32.xlu0 %v1446, 101
      %v1459 = vpop.permute.xlu0 %1458
      %1460 = vrot.lane.b32.xlu0 %v1447, 101
      %v1461 = vpop.permute.xlu0 %1460
      %1462 = vrot.lane.b32.xlu0 %v1448, 101
      %v1463 = vpop.permute.xlu0 %1462
      %1464 = vrot.lane.b32.xlu0 %v1449, 101
      %v1465 = vpop.permute.xlu0 %1464
      %1466 = vrot.lane.b32.xlu0 %v1450, 101
      %v1467 = vpop.permute.xlu0 %1466
      %1468 = vrot.lane.b32.xlu0 %v1451, 101
      %v1469 = vpop.permute.xlu0 %1468
      %v1470 = vsel %vm1426, %v1459, %v1461
      %v1471 = vsel %vm1426, %v1461, %v1463
      %v1472 = vsel %vm1426, %v1463, %v1465
      %v1473 = vsel %vm1426, %v1465, %v1467
      %v1474 = vsel %vm1426, %v1467, %v1469
      %v1480 = vadd.f32 %v1437, %v1470
      %v1481 = vadd.f32 %v1438, %v1471
      %v1482 = vadd.f32 %v1439, %v1472
      %v1483 = vadd.f32 %v1440, %v1473
      %v1484 = vadd.f32 %v1441, %v1474
      %1485 = vset.pattern.permute.xlu0 26
      %1486 = vperm.xlu0 %1485, %v255
      %v1487 = vpop.permute.xlu0 %1486
      %v1489 = vmul.f32 %v1487, %v411
      %v1490 = vmul.f32 %v1487, %v415
      %v1491 = vmul.f32 %v1487, %v419
      %v1492 = vmul.f32 %v1487, %v423
      %v1493 = vmul.f32 %v1487, %v427
      %v1494 = vmul.f32 %v1487, %v614
      %1501 = vrot.lane.b32.xlu0 %v1489, 101
      %v1502 = vpop.permute.xlu0 %1501
      %1503 = vrot.lane.b32.xlu0 %v1490, 101
      %v1504 = vpop.permute.xlu0 %1503
      %1505 = vrot.lane.b32.xlu0 %v1491, 101
      %v1506 = vpop.permute.xlu0 %1505
      %1507 = vrot.lane.b32.xlu0 %v1492, 101
      %v1508 = vpop.permute.xlu0 %1507
      %1509 = vrot.lane.b32.xlu0 %v1493, 101
      %v1510 = vpop.permute.xlu0 %1509
      %1511 = vrot.lane.b32.xlu0 %v1494, 101
      %v1512 = vpop.permute.xlu0 %1511
      %v1513 = vsel %vm1426, %v1502, %v1504
      %v1514 = vsel %vm1426, %v1504, %v1506
      %v1515 = vsel %vm1426, %v1506, %v1508
      %v1516 = vsel %vm1426, %v1508, %v1510
      %v1517 = vsel %vm1426, %v1510, %v1512
      %v1523 = vadd.f32 %v1480, %v1513
      %v1524 = vadd.f32 %v1481, %v1514
      %v1525 = vadd.f32 %v1482, %v1515
      %v1526 = vadd.f32 %v1483, %v1516
      %v1527 = vadd.f32 %v1484, %v1517
      %1528 = vset.pattern.permute.xlu0 27
      %1529 = vperm.xlu0 %1528, %v255
      %v1530 = vpop.permute.xlu0 %1529
      %v1532 = vmul.f32 %v1530, %v470
      %v1533 = vmul.f32 %v1530, %v474
      %v1534 = vmul.f32 %v1530, %v478
      %v1535 = vmul.f32 %v1530, %v482
      %v1536 = vmul.f32 %v1530, %v486
      %v1537 = vmul.f32 %v1530, %v666
      %1544 = vrot.lane.b32.xlu0 %v1532, 101
      %v1545 = vpop.permute.xlu0 %1544
      %1546 = vrot.lane.b32.xlu0 %v1533, 101
      %v1547 = vpop.permute.xlu0 %1546
      %1548 = vrot.lane.b32.xlu0 %v1534, 101
      %v1549 = vpop.permute.xlu0 %1548
      %1550 = vrot.lane.b32.xlu0 %v1535, 101
      %v1551 = vpop.permute.xlu0 %1550
      %1552 = vrot.lane.b32.xlu0 %v1536, 101
      %v1553 = vpop.permute.xlu0 %1552
      %1554 = vrot.lane.b32.xlu0 %v1537, 101
      %v1555 = vpop.permute.xlu0 %1554
      %v1556 = vsel %vm1426, %v1545, %v1547
      %v1557 = vsel %vm1426, %v1547, %v1549
      %v1558 = vsel %vm1426, %v1549, %v1551
      %v1559 = vsel %vm1426, %v1551, %v1553
      %v1560 = vsel %vm1426, %v1553, %v1555
      %v1566 = vadd.f32 %v1523, %v1556
      %v1567 = vadd.f32 %v1524, %v1557
      %v1568 = vadd.f32 %v1525, %v1558
      %v1569 = vadd.f32 %v1526, %v1559
      %v1570 = vadd.f32 %v1527, %v1560
      %1571 = vset.pattern.permute.xlu0 28
      %1572 = vperm.xlu0 %1571, %v255
      %v1573 = vpop.permute.xlu0 %1572
      %v1575 = vmul.f32 %v1573, %v293
      %v1576 = vmul.f32 %v1573, %v297
      %v1577 = vmul.f32 %v1573, %v301
      %v1578 = vmul.f32 %v1573, %v305
      %v1579 = vmul.f32 %v1573, %v309
      %v1580 = vmul.f32 %v1573, %v509
      %1587 = vrot.lane.b32.xlu0 %v1575, 100
      %v1588 = vpop.permute.xlu0 %1587
      %1589 = vrot.lane.b32.xlu0 %v1576, 100
      %v1590 = vpop.permute.xlu0 %1589
      %1591 = vrot.lane.b32.xlu0 %v1577, 100
      %v1592 = vpop.permute.xlu0 %1591
      %1593 = vrot.lane.b32.xlu0 %v1578, 100
      %v1594 = vpop.permute.xlu0 %1593
      %1595 = vrot.lane.b32.xlu0 %v1579, 100
      %v1596 = vpop.permute.xlu0 %1595
      %1597 = vrot.lane.b32.xlu0 %v1580, 100
      %v1598 = vpop.permute.xlu0 %1597
      %vm1599 = vcmask 818176
      %v1600 = vsel %vm1599, %v1588, %v1590
      %v1601 = vsel %vm1599, %v1590, %v1592
      %v1602 = vsel %vm1599, %v1592, %v1594
      %v1603 = vsel %vm1599, %v1594, %v1596
      %v1604 = vsel %vm1599, %v1596, %v1598
      %v1610 = vadd.f32 %v1566, %v1600
      %v1611 = vadd.f32 %v1567, %v1601
      %v1612 = vadd.f32 %v1568, %v1602
      %v1613 = vadd.f32 %v1569, %v1603
      %v1614 = vadd.f32 %v1570, %v1604
      %1615 = vset.pattern.permute.xlu0 29
      %1616 = vperm.xlu0 %1615, %v255
      %v1617 = vpop.permute.xlu0 %1616
      %v1619 = vmul.f32 %v1617, %v352
      %v1620 = vmul.f32 %v1617, %v356
      %v1621 = vmul.f32 %v1617, %v360
      %v1622 = vmul.f32 %v1617, %v364
      %v1623 = vmul.f32 %v1617, %v368
      %v1624 = vmul.f32 %v1617, %v562
      %1631 = vrot.lane.b32.xlu0 %v1619, 100
      %v1632 = vpop.permute.xlu0 %1631
      %1633 = vrot.lane.b32.xlu0 %v1620, 100
      %v1634 = vpop.permute.xlu0 %1633
      %1635 = vrot.lane.b32.xlu0 %v1621, 100
      %v1636 = vpop.permute.xlu0 %1635
      %1637 = vrot.lane.b32.xlu0 %v1622, 100
      %v1638 = vpop.permute.xlu0 %1637
      %1639 = vrot.lane.b32.xlu0 %v1623, 100
      %v1640 = vpop.permute.xlu0 %1639
      %1641 = vrot.lane.b32.xlu0 %v1624, 100
      %v1642 = vpop.permute.xlu0 %1641
      %v1643 = vsel %vm1599, %v1632, %v1634
      %v1644 = vsel %vm1599, %v1634, %v1636
      %v1645 = vsel %vm1599, %v1636, %v1638
      %v1646 = vsel %vm1599, %v1638, %v1640
      %v1647 = vsel %vm1599, %v1640, %v1642
      %v1653 = vadd.f32 %v1610, %v1643
      %v1654 = vadd.f32 %v1611, %v1644
      %v1655 = vadd.f32 %v1612, %v1645
      %v1656 = vadd.f32 %v1613, %v1646
      %v1657 = vadd.f32 %v1614, %v1647
      %1658 = vset.pattern.permute.xlu0 30
      %1659 = vperm.xlu0 %1658, %v255
      %v1660 = vpop.permute.xlu0 %1659
      %v1662 = vmul.f32 %v1660, %v411
      %v1663 = vmul.f32 %v1660, %v415
      %v1664 = vmul.f32 %v1660, %v419
      %v1665 = vmul.f32 %v1660, %v423
      %v1666 = vmul.f32 %v1660, %v427
      %v1667 = vmul.f32 %v1660, %v614
      %1674 = vrot.lane.b32.xlu0 %v1662, 100
      %v1675 = vpop.permute.xlu0 %1674
      %1676 = vrot.lane.b32.xlu0 %v1663, 100
      %v1677 = vpop.permute.xlu0 %1676
      %1678 = vrot.lane.b32.xlu0 %v1664, 100
      %v1679 = vpop.permute.xlu0 %1678
      %1680 = vrot.lane.b32.xlu0 %v1665, 100
      %v1681 = vpop.permute.xlu0 %1680
      %1682 = vrot.lane.b32.xlu0 %v1666, 100
      %v1683 = vpop.permute.xlu0 %1682
      %1684 = vrot.lane.b32.xlu0 %v1667, 100
      %v1685 = vpop.permute.xlu0 %1684
      %v1686 = vsel %vm1599, %v1675, %v1677
      %v1687 = vsel %vm1599, %v1677, %v1679
      %v1688 = vsel %vm1599, %v1679, %v1681
      %v1689 = vsel %vm1599, %v1681, %v1683
      %v1690 = vsel %vm1599, %v1683, %v1685
      %v1696 = vadd.f32 %v1653, %v1686
      %v1697 = vadd.f32 %v1654, %v1687
      %v1698 = vadd.f32 %v1655, %v1688
      %v1699 = vadd.f32 %v1656, %v1689
      %v1700 = vadd.f32 %v1657, %v1690
      %1701 = vset.pattern.permute.xlu0 31
      %1702 = vperm.xlu0 %1701, %v255
      %v1703 = vpop.permute.xlu0 %1702
      %v1705 = vmul.f32 %v1703, %v470
      %v1706 = vmul.f32 %v1703, %v474
      %v1707 = vmul.f32 %v1703, %v478
      %v1708 = vmul.f32 %v1703, %v482
      %v1709 = vmul.f32 %v1703, %v486
      %v1710 = vmul.f32 %v1703, %v666
      %1717 = vrot.lane.b32.xlu0 %v1705, 100
      %v1718 = vpop.permute.xlu0 %1717
      %1719 = vrot.lane.b32.xlu0 %v1706, 100
      %v1720 = vpop.permute.xlu0 %1719
      %1721 = vrot.lane.b32.xlu0 %v1707, 100
      %v1722 = vpop.permute.xlu0 %1721
      %1723 = vrot.lane.b32.xlu0 %v1708, 100
      %v1724 = vpop.permute.xlu0 %1723
      %1725 = vrot.lane.b32.xlu0 %v1709, 100
      %v1726 = vpop.permute.xlu0 %1725
      %1727 = vrot.lane.b32.xlu0 %v1710, 100
      %v1728 = vpop.permute.xlu0 %1727
      %v1729 = vsel %vm1599, %v1718, %v1720
      %v1730 = vsel %vm1599, %v1720, %v1722
      %v1731 = vsel %vm1599, %v1722, %v1724
      %v1732 = vsel %vm1599, %v1724, %v1726
      %v1733 = vsel %vm1599, %v1726, %v1728
      %v1739 = vadd.f32 %v1696, %v1729
      %v1740 = vadd.f32 %v1697, %v1730
      %v1741 = vadd.f32 %v1698, %v1731
      %v1742 = vadd.f32 %v1699, %v1732
      %v1743 = vadd.f32 %v1700, %v1733
      %1744 = vset.pattern.permute.xlu0 32
      %1745 = vperm.xlu0 %1744, %v255
      %v1746 = vpop.permute.xlu0 %1745
      %v1748 = vmul.f32 %v1746, %v293
      %v1749 = vmul.f32 %v1746, %v297
      %v1750 = vmul.f32 %v1746, %v301
      %v1751 = vmul.f32 %v1746, %v305
      %v1752 = vmul.f32 %v1746, %v309
      %v1753 = vmul.f32 %v1746, %v509
      %1760 = vrot.lane.b32.xlu0 %v1748, 99
      %v1761 = vpop.permute.xlu0 %1760
      %1762 = vrot.lane.b32.xlu0 %v1749, 99
      %v1763 = vpop.permute.xlu0 %1762
      %1764 = vrot.lane.b32.xlu0 %v1750, 99
      %v1765 = vpop.permute.xlu0 %1764
      %1766 = vrot.lane.b32.xlu0 %v1751, 99
      %v1767 = vpop.permute.xlu0 %1766
      %1768 = vrot.lane.b32.xlu0 %v1752, 99
      %v1769 = vpop.permute.xlu0 %1768
      %1770 = vrot.lane.b32.xlu0 %v1753, 99
      %v1771 = vpop.permute.xlu0 %1770
      %vm1772 = vcmask 809984
      %v1773 = vsel %vm1772, %v1761, %v1763
      %v1774 = vsel %vm1772, %v1763, %v1765
      %v1775 = vsel %vm1772, %v1765, %v1767
      %v1776 = vsel %vm1772, %v1767, %v1769
      %v1777 = vsel %vm1772, %v1769, %v1771
      %v1783 = vadd.f32 %v1739, %v1773
      %v1784 = vadd.f32 %v1740, %v1774
      %v1785 = vadd.f32 %v1741, %v1775
      %v1786 = vadd.f32 %v1742, %v1776
      %v1787 = vadd.f32 %v1743, %v1777
      %1788 = vset.pattern.permute.xlu0 33
      %1789 = vperm.xlu0 %1788, %v255
      %v1790 = vpop.permute.xlu0 %1789
      %v1792 = vmul.f32 %v1790, %v352
      %v1793 = vmul.f32 %v1790, %v356
      %v1794 = vmul.f32 %v1790, %v360
      %v1795 = vmul.f32 %v1790, %v364
      %v1796 = vmul.f32 %v1790, %v368
      %v1797 = vmul.f32 %v1790, %v562
      %1804 = vrot.lane.b32.xlu0 %v1792, 99
      %v1805 = vpop.permute.xlu0 %1804
      %1806 = vrot.lane.b32.xlu0 %v1793, 99
      %v1807 = vpop.permute.xlu0 %1806
      %1808 = vrot.lane.b32.xlu0 %v1794, 99
      %v1809 = vpop.permute.xlu0 %1808
      %1810 = vrot.lane.b32.xlu0 %v1795, 99
      %v1811 = vpop.permute.xlu0 %1810
      %1812 = vrot.lane.b32.xlu0 %v1796, 99
      %v1813 = vpop.permute.xlu0 %1812
      %1814 = vrot.lane.b32.xlu0 %v1797, 99
      %v1815 = vpop.permute.xlu0 %1814
      %v1816 = vsel %vm1772, %v1805, %v1807
      %v1817 = vsel %vm1772, %v1807, %v1809
      %v1818 = vsel %vm1772, %v1809, %v1811
      %v1819 = vsel %vm1772, %v1811, %v1813
      %v1820 = vsel %vm1772, %v1813, %v1815
      %v1826 = vadd.f32 %v1783, %v1816
      %v1827 = vadd.f32 %v1784, %v1817
      %v1828 = vadd.f32 %v1785, %v1818
      %v1829 = vadd.f32 %v1786, %v1819
      %v1830 = vadd.f32 %v1787, %v1820
      %1831 = vset.pattern.permute.xlu0 34
      %1832 = vperm.xlu0 %1831, %v255
      %v1833 = vpop.permute.xlu0 %1832
      %v1835 = vmul.f32 %v1833, %v411
      %v1836 = vmul.f32 %v1833, %v415
      %v1837 = vmul.f32 %v1833, %v419
      %v1838 = vmul.f32 %v1833, %v423
      %v1839 = vmul.f32 %v1833, %v427
      %v1840 = vmul.f32 %v1833, %v614
      %1847 = vrot.lane.b32.xlu0 %v1835, 99
      %v1848 = vpop.permute.xlu0 %1847
      %1849 = vrot.lane.b32.xlu0 %v1836, 99
      %v1850 = vpop.permute.xlu0 %1849
      %1851 = vrot.lane.b32.xlu0 %v1837, 99
      %v1852 = vpop.permute.xlu0 %1851
      %1853 = vrot.lane.b32.xlu0 %v1838, 99
      %v1854 = vpop.permute.xlu0 %1853
      %1855 = vrot.lane.b32.xlu0 %v1839, 99
      %v1856 = vpop.permute.xlu0 %1855
      %1857 = vrot.lane.b32.xlu0 %v1840, 99
      %v1858 = vpop.permute.xlu0 %1857
      %v1859 = vsel %vm1772, %v1848, %v1850
      %v1860 = vsel %vm1772, %v1850, %v1852
      %v1861 = vsel %vm1772, %v1852, %v1854
      %v1862 = vsel %vm1772, %v1854, %v1856
      %v1863 = vsel %vm1772, %v1856, %v1858
      %v1869 = vadd.f32 %v1826, %v1859
      %v1870 = vadd.f32 %v1827, %v1860
      %v1871 = vadd.f32 %v1828, %v1861
      %v1872 = vadd.f32 %v1829, %v1862
      %v1873 = vadd.f32 %v1830, %v1863
      %1874 = vset.pattern.permute.xlu0 35
      %1875 = vperm.xlu0 %1874, %v255
      %v1876 = vpop.permute.xlu0 %1875
      %v1878 = vmul.f32 %v1876, %v470
      %v1879 = vmul.f32 %v1876, %v474
      %v1880 = vmul.f32 %v1876, %v478
      %v1881 = vmul.f32 %v1876, %v482
      %v1882 = vmul.f32 %v1876, %v486
      %v1883 = vmul.f32 %v1876, %v666
      %1890 = vrot.lane.b32.xlu0 %v1878, 99
      %v1891 = vpop.permute.xlu0 %1890
      %1892 = vrot.lane.b32.xlu0 %v1879, 99
      %v1893 = vpop.permute.xlu0 %1892
      %1894 = vrot.lane.b32.xlu0 %v1880, 99
      %v1895 = vpop.permute.xlu0 %1894
      %1896 = vrot.lane.b32.xlu0 %v1881, 99
      %v1897 = vpop.permute.xlu0 %1896
      %1898 = vrot.lane.b32.xlu0 %v1882, 99
      %v1899 = vpop.permute.xlu0 %1898
      %1900 = vrot.lane.b32.xlu0 %v1883, 99
      %v1901 = vpop.permute.xlu0 %1900
      %v1902 = vsel %vm1772, %v1891, %v1893
      %v1903 = vsel %vm1772, %v1893, %v1895
      %v1904 = vsel %vm1772, %v1895, %v1897
      %v1905 = vsel %vm1772, %v1897, %v1899
      %v1906 = vsel %vm1772, %v1899, %v1901
      %v1912 = vadd.f32 %v1869, %v1902
      %v1913 = vadd.f32 %v1870, %v1903
      %v1914 = vadd.f32 %v1871, %v1904
      %v1915 = vadd.f32 %v1872, %v1905
      %v1916 = vadd.f32 %v1873, %v1906
      %1917 = vset.pattern.permute.xlu0 36
      %1918 = vperm.xlu0 %1917, %v255
      %v1919 = vpop.permute.xlu0 %1918
      %v1921 = vmul.f32 %v1919, %v293
      %v1922 = vmul.f32 %v1919, %v297
      %v1923 = vmul.f32 %v1919, %v301
      %v1924 = vmul.f32 %v1919, %v305
      %v1925 = vmul.f32 %v1919, %v309
      %v1926 = vmul.f32 %v1919, %v509
      %1933 = vrot.lane.b32.xlu0 %v1921, 98
      %v1934 = vpop.permute.xlu0 %1933
      %1935 = vrot.lane.b32.xlu0 %v1922, 98
      %v1936 = vpop.permute.xlu0 %1935
      %1937 = vrot.lane.b32.xlu0 %v1923, 98
      %v1938 = vpop.permute.xlu0 %1937
      %1939 = vrot.lane.b32.xlu0 %v1924, 98
      %v1940 = vpop.permute.xlu0 %1939
      %1941 = vrot.lane.b32.xlu0 %v1925, 98
      %v1942 = vpop.permute.xlu0 %1941
      %1943 = vrot.lane.b32.xlu0 %v1926, 98
      %v1944 = vpop.permute.xlu0 %1943
      %vm1945 = vcmask 801792
      %v1946 = vsel %vm1945, %v1934, %v1936
      %v1947 = vsel %vm1945, %v1936, %v1938
      %v1948 = vsel %vm1945, %v1938, %v1940
      %v1949 = vsel %vm1945, %v1940, %v1942
      %v1950 = vsel %vm1945, %v1942, %v1944
      %v1956 = vadd.f32 %v1912, %v1946
      %v1957 = vadd.f32 %v1913, %v1947
      %v1958 = vadd.f32 %v1914, %v1948
      %v1959 = vadd.f32 %v1915, %v1949
      %v1960 = vadd.f32 %v1916, %v1950
      %1961 = vset.pattern.permute.xlu0 37
      %1962 = vperm.xlu0 %1961, %v255
      %v1963 = vpop.permute.xlu0 %1962
      %v1965 = vmul.f32 %v1963, %v352
      %v1966 = vmul.f32 %v1963, %v356
      %v1967 = vmul.f32 %v1963, %v360
      %v1968 = vmul.f32 %v1963, %v364
      %v1969 = vmul.f32 %v1963, %v368
      %v1970 = vmul.f32 %v1963, %v562
      %1977 = vrot.lane.b32.xlu0 %v1965, 98
      %v1978 = vpop.permute.xlu0 %1977
      %1979 = vrot.lane.b32.xlu0 %v1966, 98
      %v1980 = vpop.permute.xlu0 %1979
      %1981 = vrot.lane.b32.xlu0 %v1967, 98
      %v1982 = vpop.permute.xlu0 %1981
      %1983 = vrot.lane.b32.xlu0 %v1968, 98
      %v1984 = vpop.permute.xlu0 %1983
      %1985 = vrot.lane.b32.xlu0 %v1969, 98
      %v1986 = vpop.permute.xlu0 %1985
      %1987 = vrot.lane.b32.xlu0 %v1970, 98
      %v1988 = vpop.permute.xlu0 %1987
      %v1989 = vsel %vm1945, %v1978, %v1980
      %v1990 = vsel %vm1945, %v1980, %v1982
      %v1991 = vsel %vm1945, %v1982, %v1984
      %v1992 = vsel %vm1945, %v1984, %v1986
      %v1993 = vsel %vm1945, %v1986, %v1988
      %v1999 = vadd.f32 %v1956, %v1989
      %v2000 = vadd.f32 %v1957, %v1990
      %v2001 = vadd.f32 %v1958, %v1991
      %v2002 = vadd.f32 %v1959, %v1992
      %v2003 = vadd.f32 %v1960, %v1993
      %2004 = vset.pattern.permute.xlu0 38
      %2005 = vperm.xlu0 %2004, %v255
      %v2006 = vpop.permute.xlu0 %2005
      %v2008 = vmul.f32 %v2006, %v411
      %v2009 = vmul.f32 %v2006, %v415
      %v2010 = vmul.f32 %v2006, %v419
      %v2011 = vmul.f32 %v2006, %v423
      %v2012 = vmul.f32 %v2006, %v427
      %v2013 = vmul.f32 %v2006, %v614
      %2020 = vrot.lane.b32.xlu0 %v2008, 98
      %v2021 = vpop.permute.xlu0 %2020
      %2022 = vrot.lane.b32.xlu0 %v2009, 98
      %v2023 = vpop.permute.xlu0 %2022
      %2024 = vrot.lane.b32.xlu0 %v2010, 98
      %v2025 = vpop.permute.xlu0 %2024
      %2026 = vrot.lane.b32.xlu0 %v2011, 98
      %v2027 = vpop.permute.xlu0 %2026
      %2028 = vrot.lane.b32.xlu0 %v2012, 98
      %v2029 = vpop.permute.xlu0 %2028
      %2030 = vrot.lane.b32.xlu0 %v2013, 98
      %v2031 = vpop.permute.xlu0 %2030
      %v2032 = vsel %vm1945, %v2021, %v2023
      %v2033 = vsel %vm1945, %v2023, %v2025
      %v2034 = vsel %vm1945, %v2025, %v2027
      %v2035 = vsel %vm1945, %v2027, %v2029
      %v2036 = vsel %vm1945, %v2029, %v2031
      %v2042 = vadd.f32 %v1999, %v2032
      %v2043 = vadd.f32 %v2000, %v2033
      %v2044 = vadd.f32 %v2001, %v2034
      %v2045 = vadd.f32 %v2002, %v2035
      %v2046 = vadd.f32 %v2003, %v2036
      %2047 = vset.pattern.permute.xlu0 39
      %2048 = vperm.xlu0 %2047, %v255
      %v2049 = vpop.permute.xlu0 %2048
      %v2051 = vmul.f32 %v2049, %v470
      %v2052 = vmul.f32 %v2049, %v474
      %v2053 = vmul.f32 %v2049, %v478
      %v2054 = vmul.f32 %v2049, %v482
      %v2055 = vmul.f32 %v2049, %v486
      %v2056 = vmul.f32 %v2049, %v666
      %2063 = vrot.lane.b32.xlu0 %v2051, 98
      %v2064 = vpop.permute.xlu0 %2063
      %2065 = vrot.lane.b32.xlu0 %v2052, 98
      %v2066 = vpop.permute.xlu0 %2065
      %2067 = vrot.lane.b32.xlu0 %v2053, 98
      %v2068 = vpop.permute.xlu0 %2067
      %2069 = vrot.lane.b32.xlu0 %v2054, 98
      %v2070 = vpop.permute.xlu0 %2069
      %2071 = vrot.lane.b32.xlu0 %v2055, 98
      %v2072 = vpop.permute.xlu0 %2071
      %2073 = vrot.lane.b32.xlu0 %v2056, 98
      %v2074 = vpop.permute.xlu0 %2073
      %v2075 = vsel %vm1945, %v2064, %v2066
      %v2076 = vsel %vm1945, %v2066, %v2068
      %v2077 = vsel %vm1945, %v2068, %v2070
      %v2078 = vsel %vm1945, %v2070, %v2072
      %v2079 = vsel %vm1945, %v2072, %v2074
      %v2085 = vadd.f32 %v2042, %v2075
      %v2086 = vadd.f32 %v2043, %v2076
      %v2087 = vadd.f32 %v2044, %v2077
      %v2088 = vadd.f32 %v2045, %v2078
      %v2089 = vadd.f32 %v2046, %v2079
      %2090 = vset.pattern.permute.xlu0 40
      %2091 = vperm.xlu0 %2090, %v255
      %v2092 = vpop.permute.xlu0 %2091
      %v2094 = vmul.f32 %v2092, %v293
      %v2095 = vmul.f32 %v2092, %v297
      %v2096 = vmul.f32 %v2092, %v301
      %v2097 = vmul.f32 %v2092, %v305
      %v2098 = vmul.f32 %v2092, %v309
      %v2099 = vmul.f32 %v2092, %v509
      %2106 = vrot.lane.b32.xlu0 %v2094, 76
      %v2107 = vpop.permute.xlu0 %2106
      %2108 = vrot.lane.b32.xlu0 %v2095, 76
      %v2109 = vpop.permute.xlu0 %2108
      %2110 = vrot.lane.b32.xlu0 %v2096, 76
      %v2111 = vpop.permute.xlu0 %2110
      %2112 = vrot.lane.b32.xlu0 %v2097, 76
      %v2113 = vpop.permute.xlu0 %2112
      %2114 = vrot.lane.b32.xlu0 %v2098, 76
      %v2115 = vpop.permute.xlu0 %2114
      %2116 = vrot.lane.b32.xlu0 %v2099, 76
      %v2117 = vpop.permute.xlu0 %2116
      %vm2118 = vcmask 621568
      %v2119 = vsel %vm2118, %v2107, %v2109
      %v2120 = vsel %vm2118, %v2109, %v2111
      %v2121 = vsel %vm2118, %v2111, %v2113
      %v2122 = vsel %vm2118, %v2113, %v2115
      %v2123 = vsel %vm2118, %v2115, %v2117
      %v2129 = vadd.f32 %v2085, %v2119
      %v2130 = vadd.f32 %v2086, %v2120
      %v2131 = vadd.f32 %v2087, %v2121
      %v2132 = vadd.f32 %v2088, %v2122
      %v2133 = vadd.f32 %v2089, %v2123
      %2134 = vset.pattern.permute.xlu0 41
      %2135 = vperm.xlu0 %2134, %v255
      %v2136 = vpop.permute.xlu0 %2135
      %v2138 = vmul.f32 %v2136, %v352
      %v2139 = vmul.f32 %v2136, %v356
      %v2140 = vmul.f32 %v2136, %v360
      %v2141 = vmul.f32 %v2136, %v364
      %v2142 = vmul.f32 %v2136, %v368
      %v2143 = vmul.f32 %v2136, %v562
      %2150 = vrot.lane.b32.xlu0 %v2138, 76
      %v2151 = vpop.permute.xlu0 %2150
      %2152 = vrot.lane.b32.xlu0 %v2139, 76
      %v2153 = vpop.permute.xlu0 %2152
      %2154 = vrot.lane.b32.xlu0 %v2140, 76
      %v2155 = vpop.permute.xlu0 %2154
      %2156 = vrot.lane.b32.xlu0 %v2141, 76
      %v2157 = vpop.permute.xlu0 %2156
      %2158 = vrot.lane.b32.xlu0 %v2142, 76
      %v2159 = vpop.permute.xlu0 %2158
      %2160 = vrot.lane.b32.xlu0 %v2143, 76
      %v2161 = vpop.permute.xlu0 %2160
      %v2162 = vsel %vm2118, %v2151, %v2153
      %v2163 = vsel %vm2118, %v2153, %v2155
      %v2164 = vsel %vm2118, %v2155, %v2157
      %v2165 = vsel %vm2118, %v2157, %v2159
      %v2166 = vsel %vm2118, %v2159, %v2161
      %v2172 = vadd.f32 %v2129, %v2162
      %v2173 = vadd.f32 %v2130, %v2163
      %v2174 = vadd.f32 %v2131, %v2164
      %v2175 = vadd.f32 %v2132, %v2165
      %v2176 = vadd.f32 %v2133, %v2166
      %2177 = vset.pattern.permute.xlu0 42
      %2178 = vperm.xlu0 %2177, %v255
      %v2179 = vpop.permute.xlu0 %2178
      %v2181 = vmul.f32 %v2179, %v411
      %v2182 = vmul.f32 %v2179, %v415
      %v2183 = vmul.f32 %v2179, %v419
      %v2184 = vmul.f32 %v2179, %v423
      %v2185 = vmul.f32 %v2179, %v427
      %v2186 = vmul.f32 %v2179, %v614
      %2193 = vrot.lane.b32.xlu0 %v2181, 76
      %v2194 = vpop.permute.xlu0 %2193
      %2195 = vrot.lane.b32.xlu0 %v2182, 76
      %v2196 = vpop.permute.xlu0 %2195
      %2197 = vrot.lane.b32.xlu0 %v2183, 76
      %v2198 = vpop.permute.xlu0 %2197
      %2199 = vrot.lane.b32.xlu0 %v2184, 76
      %v2200 = vpop.permute.xlu0 %2199
      %2201 = vrot.lane.b32.xlu0 %v2185, 76
      %v2202 = vpop.permute.xlu0 %2201
      %2203 = vrot.lane.b32.xlu0 %v2186, 76
      %v2204 = vpop.permute.xlu0 %2203
      %v2205 = vsel %vm2118, %v2194, %v2196
      %v2206 = vsel %vm2118, %v2196, %v2198
      %v2207 = vsel %vm2118, %v2198, %v2200
      %v2208 = vsel %vm2118, %v2200, %v2202
      %v2209 = vsel %vm2118, %v2202, %v2204
      %v2215 = vadd.f32 %v2172, %v2205
      %v2216 = vadd.f32 %v2173, %v2206
      %v2217 = vadd.f32 %v2174, %v2207
      %v2218 = vadd.f32 %v2175, %v2208
      %v2219 = vadd.f32 %v2176, %v2209
      %2220 = vset.pattern.permute.xlu0 43
      %2221 = vperm.xlu0 %2220, %v255
      %v2222 = vpop.permute.xlu0 %2221
      %v2224 = vmul.f32 %v2222, %v470
      %v2225 = vmul.f32 %v2222, %v474
      %v2226 = vmul.f32 %v2222, %v478
      %v2227 = vmul.f32 %v2222, %v482
      %v2228 = vmul.f32 %v2222, %v486
      %v2229 = vmul.f32 %v2222, %v666
      %2236 = vrot.lane.b32.xlu0 %v2224, 76
      %v2237 = vpop.permute.xlu0 %2236
      %2238 = vrot.lane.b32.xlu0 %v2225, 76
      %v2239 = vpop.permute.xlu0 %2238
      %2240 = vrot.lane.b32.xlu0 %v2226, 76
      %v2241 = vpop.permute.xlu0 %2240
      %2242 = vrot.lane.b32.xlu0 %v2227, 76
      %v2243 = vpop.permute.xlu0 %2242
      %2244 = vrot.lane.b32.xlu0 %v2228, 76
      %v2245 = vpop.permute.xlu0 %2244
      %2246 = vrot.lane.b32.xlu0 %v2229, 76
      %v2247 = vpop.permute.xlu0 %2246
      %v2248 = vsel %vm2118, %v2237, %v2239
      %v2249 = vsel %vm2118, %v2239, %v2241
      %v2250 = vsel %vm2118, %v2241, %v2243
      %v2251 = vsel %vm2118, %v2243, %v2245
      %v2252 = vsel %vm2118, %v2245, %v2247
      %v2258 = vadd.f32 %v2215, %v2248
      %v2259 = vadd.f32 %v2216, %v2249
      %v2260 = vadd.f32 %v2217, %v2250
      %v2261 = vadd.f32 %v2218, %v2251
      %v2262 = vadd.f32 %v2219, %v2252
      %2263 = vset.pattern.permute.xlu0 44
      %2264 = vperm.xlu0 %2263, %v255
      %v2265 = vpop.permute.xlu0 %2264
      %v2267 = vmul.f32 %v2265, %v293
      %v2268 = vmul.f32 %v2265, %v297
      %v2269 = vmul.f32 %v2265, %v301
      %v2270 = vmul.f32 %v2265, %v305
      %v2271 = vmul.f32 %v2265, %v309
      %v2272 = vmul.f32 %v2265, %v509
      %2279 = vrot.lane.b32.xlu0 %v2267, 75
      %v2280 = vpop.permute.xlu0 %2279
      %2281 = vrot.lane.b32.xlu0 %v2268, 75
      %v2282 = vpop.permute.xlu0 %2281
      %2283 = vrot.lane.b32.xlu0 %v2269, 75
      %v2284 = vpop.permute.xlu0 %2283
      %2285 = vrot.lane.b32.xlu0 %v2270, 75
      %v2286 = vpop.permute.xlu0 %2285
      %2287 = vrot.lane.b32.xlu0 %v2271, 75
      %v2288 = vpop.permute.xlu0 %2287
      %2289 = vrot.lane.b32.xlu0 %v2272, 75
      %v2290 = vpop.permute.xlu0 %2289
      %vm2291 = vcmask 613376
      %v2292 = vsel %vm2291, %v2280, %v2282
      %v2293 = vsel %vm2291, %v2282, %v2284
      %v2294 = vsel %vm2291, %v2284, %v2286
      %v2295 = vsel %vm2291, %v2286, %v2288
      %v2296 = vsel %vm2291, %v2288, %v2290
      %v2302 = vadd.f32 %v2258, %v2292
      %v2303 = vadd.f32 %v2259, %v2293
      %v2304 = vadd.f32 %v2260, %v2294
      %v2305 = vadd.f32 %v2261, %v2295
      %v2306 = vadd.f32 %v2262, %v2296
      %2307 = vset.pattern.permute.xlu0 45
      %2308 = vperm.xlu0 %2307, %v255
      %v2309 = vpop.permute.xlu0 %2308
      %v2311 = vmul.f32 %v2309, %v352
      %v2312 = vmul.f32 %v2309, %v356
      %v2313 = vmul.f32 %v2309, %v360
      %v2314 = vmul.f32 %v2309, %v364
      %v2315 = vmul.f32 %v2309, %v368
      %v2316 = vmul.f32 %v2309, %v562
      %2323 = vrot.lane.b32.xlu0 %v2311, 75
      %v2324 = vpop.permute.xlu0 %2323
      %2325 = vrot.lane.b32.xlu0 %v2312, 75
      %v2326 = vpop.permute.xlu0 %2325
      %2327 = vrot.lane.b32.xlu0 %v2313, 75
      %v2328 = vpop.permute.xlu0 %2327
      %2329 = vrot.lane.b32.xlu0 %v2314, 75
      %v2330 = vpop.permute.xlu0 %2329
      %2331 = vrot.lane.b32.xlu0 %v2315, 75
      %v2332 = vpop.permute.xlu0 %2331
      %2333 = vrot.lane.b32.xlu0 %v2316, 75
      %v2334 = vpop.permute.xlu0 %2333
      %v2335 = vsel %vm2291, %v2324, %v2326
      %v2336 = vsel %vm2291, %v2326, %v2328
      %v2337 = vsel %vm2291, %v2328, %v2330
      %v2338 = vsel %vm2291, %v2330, %v2332
      %v2339 = vsel %vm2291, %v2332, %v2334
      %v2345 = vadd.f32 %v2302, %v2335
      %v2346 = vadd.f32 %v2303, %v2336
      %v2347 = vadd.f32 %v2304, %v2337
      %v2348 = vadd.f32 %v2305, %v2338
      %v2349 = vadd.f32 %v2306, %v2339
      %2350 = vset.pattern.permute.xlu0 46
      %2351 = vperm.xlu0 %2350, %v255
      %v2352 = vpop.permute.xlu0 %2351
      %v2354 = vmul.f32 %v2352, %v411
      %v2355 = vmul.f32 %v2352, %v415
      %v2356 = vmul.f32 %v2352, %v419
      %v2357 = vmul.f32 %v2352, %v423
      %v2358 = vmul.f32 %v2352, %v427
      %v2359 = vmul.f32 %v2352, %v614
      %2366 = vrot.lane.b32.xlu0 %v2354, 75
      %v2367 = vpop.permute.xlu0 %2366
      %2368 = vrot.lane.b32.xlu0 %v2355, 75
      %v2369 = vpop.permute.xlu0 %2368
      %2370 = vrot.lane.b32.xlu0 %v2356, 75
      %v2371 = vpop.permute.xlu0 %2370
      %2372 = vrot.lane.b32.xlu0 %v2357, 75
      %v2373 = vpop.permute.xlu0 %2372
      %2374 = vrot.lane.b32.xlu0 %v2358, 75
      %v2375 = vpop.permute.xlu0 %2374
      %2376 = vrot.lane.b32.xlu0 %v2359, 75
      %v2377 = vpop.permute.xlu0 %2376
      %v2378 = vsel %vm2291, %v2367, %v2369
      %v2379 = vsel %vm2291, %v2369, %v2371
      %v2380 = vsel %vm2291, %v2371, %v2373
      %v2381 = vsel %vm2291, %v2373, %v2375
      %v2382 = vsel %vm2291, %v2375, %v2377
      %v2388 = vadd.f32 %v2345, %v2378
      %v2389 = vadd.f32 %v2346, %v2379
      %v2390 = vadd.f32 %v2347, %v2380
      %v2391 = vadd.f32 %v2348, %v2381
      %v2392 = vadd.f32 %v2349, %v2382
      %2393 = vset.pattern.permute.xlu0 47
      %2394 = vperm.xlu0 %2393, %v255
      %v2395 = vpop.permute.xlu0 %2394
      %v2397 = vmul.f32 %v2395, %v470
      %v2398 = vmul.f32 %v2395, %v474
      %v2399 = vmul.f32 %v2395, %v478
      %v2400 = vmul.f32 %v2395, %v482
      %v2401 = vmul.f32 %v2395, %v486
      %v2402 = vmul.f32 %v2395, %v666
      %2409 = vrot.lane.b32.xlu0 %v2397, 75
      %v2410 = vpop.permute.xlu0 %2409
      %2411 = vrot.lane.b32.xlu0 %v2398, 75
      %v2412 = vpop.permute.xlu0 %2411
      %2413 = vrot.lane.b32.xlu0 %v2399, 75
      %v2414 = vpop.permute.xlu0 %2413
      %2415 = vrot.lane.b32.xlu0 %v2400, 75
      %v2416 = vpop.permute.xlu0 %2415
      %2417 = vrot.lane.b32.xlu0 %v2401, 75
      %v2418 = vpop.permute.xlu0 %2417
      %2419 = vrot.lane.b32.xlu0 %v2402, 75
      %v2420 = vpop.permute.xlu0 %2419
      %v2421 = vsel %vm2291, %v2410, %v2412
      %v2422 = vsel %vm2291, %v2412, %v2414
      %v2423 = vsel %vm2291, %v2414, %v2416
      %v2424 = vsel %vm2291, %v2416, %v2418
      %v2425 = vsel %vm2291, %v2418, %v2420
      %v2431 = vadd.f32 %v2388, %v2421
      %v2432 = vadd.f32 %v2389, %v2422
      %v2433 = vadd.f32 %v2390, %v2423
      %v2434 = vadd.f32 %v2391, %v2424
      %v2435 = vadd.f32 %v2392, %v2425
      %2436 = vset.pattern.permute.xlu0 48
      %2437 = vperm.xlu0 %2436, %v255
      %v2438 = vpop.permute.xlu0 %2437
      %v2440 = vmul.f32 %v2438, %v293
      %v2441 = vmul.f32 %v2438, %v297
      %v2442 = vmul.f32 %v2438, %v301
      %v2443 = vmul.f32 %v2438, %v305
      %v2444 = vmul.f32 %v2438, %v309
      %v2445 = vmul.f32 %v2438, %v509
      %2452 = vrot.lane.b32.xlu0 %v2440, 74
      %v2453 = vpop.permute.xlu0 %2452
      %2454 = vrot.lane.b32.xlu0 %v2441, 74
      %v2455 = vpop.permute.xlu0 %2454
      %2456 = vrot.lane.b32.xlu0 %v2442, 74
      %v2457 = vpop.permute.xlu0 %2456
      %2458 = vrot.lane.b32.xlu0 %v2443, 74
      %v2459 = vpop.permute.xlu0 %2458
      %2460 = vrot.lane.b32.xlu0 %v2444, 74
      %v2461 = vpop.permute.xlu0 %2460
      %2462 = vrot.lane.b32.xlu0 %v2445, 74
      %v2463 = vpop.permute.xlu0 %2462
      %vm2464 = vcmask 605184
      %v2465 = vsel %vm2464, %v2453, %v2455
      %v2466 = vsel %vm2464, %v2455, %v2457
      %v2467 = vsel %vm2464, %v2457, %v2459
      %v2468 = vsel %vm2464, %v2459, %v2461
      %v2469 = vsel %vm2464, %v2461, %v2463
      %v2475 = vadd.f32 %v2431, %v2465
      %v2476 = vadd.f32 %v2432, %v2466
      %v2477 = vadd.f32 %v2433, %v2467
      %v2478 = vadd.f32 %v2434, %v2468
      %v2479 = vadd.f32 %v2435, %v2469
      %2480 = vset.pattern.permute.xlu0 49
      %2481 = vperm.xlu0 %2480, %v255
      %v2482 = vpop.permute.xlu0 %2481
      %v2484 = vmul.f32 %v2482, %v352
      %v2485 = vmul.f32 %v2482, %v356
      %v2486 = vmul.f32 %v2482, %v360
      %v2487 = vmul.f32 %v2482, %v364
      %v2488 = vmul.f32 %v2482, %v368
      %v2489 = vmul.f32 %v2482, %v562
      %2496 = vrot.lane.b32.xlu0 %v2484, 74
      %v2497 = vpop.permute.xlu0 %2496
      %2498 = vrot.lane.b32.xlu0 %v2485, 74
      %v2499 = vpop.permute.xlu0 %2498
      %2500 = vrot.lane.b32.xlu0 %v2486, 74
      %v2501 = vpop.permute.xlu0 %2500
      %2502 = vrot.lane.b32.xlu0 %v2487, 74
      %v2503 = vpop.permute.xlu0 %2502
      %2504 = vrot.lane.b32.xlu0 %v2488, 74
      %v2505 = vpop.permute.xlu0 %2504
      %2506 = vrot.lane.b32.xlu0 %v2489, 74
      %v2507 = vpop.permute.xlu0 %2506
      %v2508 = vsel %vm2464, %v2497, %v2499
      %v2509 = vsel %vm2464, %v2499, %v2501
      %v2510 = vsel %vm2464, %v2501, %v2503
      %v2511 = vsel %vm2464, %v2503, %v2505
      %v2512 = vsel %vm2464, %v2505, %v2507
      %v2518 = vadd.f32 %v2475, %v2508
      %v2519 = vadd.f32 %v2476, %v2509
      %v2520 = vadd.f32 %v2477, %v2510
      %v2521 = vadd.f32 %v2478, %v2511
      %v2522 = vadd.f32 %v2479, %v2512
      %2523 = vset.pattern.permute.xlu0 50
      %2524 = vperm.xlu0 %2523, %v255
      %v2525 = vpop.permute.xlu0 %2524
      %v2527 = vmul.f32 %v2525, %v411
      %v2528 = vmul.f32 %v2525, %v415
      %v2529 = vmul.f32 %v2525, %v419
      %v2530 = vmul.f32 %v2525, %v423
      %v2531 = vmul.f32 %v2525, %v427
      %v2532 = vmul.f32 %v2525, %v614
      %2539 = vrot.lane.b32.xlu0 %v2527, 74
      %v2540 = vpop.permute.xlu0 %2539
      %2541 = vrot.lane.b32.xlu0 %v2528, 74
      %v2542 = vpop.permute.xlu0 %2541
      %2543 = vrot.lane.b32.xlu0 %v2529, 74
      %v2544 = vpop.permute.xlu0 %2543
      %2545 = vrot.lane.b32.xlu0 %v2530, 74
      %v2546 = vpop.permute.xlu0 %2545
      %2547 = vrot.lane.b32.xlu0 %v2531, 74
      %v2548 = vpop.permute.xlu0 %2547
      %2549 = vrot.lane.b32.xlu0 %v2532, 74
      %v2550 = vpop.permute.xlu0 %2549
      %v2551 = vsel %vm2464, %v2540, %v2542
      %v2552 = vsel %vm2464, %v2542, %v2544
      %v2553 = vsel %vm2464, %v2544, %v2546
      %v2554 = vsel %vm2464, %v2546, %v2548
      %v2555 = vsel %vm2464, %v2548, %v2550
      %v2561 = vadd.f32 %v2518, %v2551
      %v2562 = vadd.f32 %v2519, %v2552
      %v2563 = vadd.f32 %v2520, %v2553
      %v2564 = vadd.f32 %v2521, %v2554
      %v2565 = vadd.f32 %v2522, %v2555
      %2566 = vset.pattern.permute.xlu0 51
      %2567 = vperm.xlu0 %2566, %v255
      %v2568 = vpop.permute.xlu0 %2567
      %v2570 = vmul.f32 %v2568, %v470
      %v2571 = vmul.f32 %v2568, %v474
      %v2572 = vmul.f32 %v2568, %v478
      %v2573 = vmul.f32 %v2568, %v482
      %v2574 = vmul.f32 %v2568, %v486
      %v2575 = vmul.f32 %v2568, %v666
      %2582 = vrot.lane.b32.xlu0 %v2570, 74
      %v2583 = vpop.permute.xlu0 %2582
      %2584 = vrot.lane.b32.xlu0 %v2571, 74
      %v2585 = vpop.permute.xlu0 %2584
      %2586 = vrot.lane.b32.xlu0 %v2572, 74
      %v2587 = vpop.permute.xlu0 %2586
      %2588 = vrot.lane.b32.xlu0 %v2573, 74
      %v2589 = vpop.permute.xlu0 %2588
      %2590 = vrot.lane.b32.xlu0 %v2574, 74
      %v2591 = vpop.permute.xlu0 %2590
      %2592 = vrot.lane.b32.xlu0 %v2575, 74
      %v2593 = vpop.permute.xlu0 %2592
      %v2594 = vsel %vm2464, %v2583, %v2585
      %v2595 = vsel %vm2464, %v2585, %v2587
      %v2596 = vsel %vm2464, %v2587, %v2589
      %v2597 = vsel %vm2464, %v2589, %v2591
      %v2598 = vsel %vm2464, %v2591, %v2593
      %v2604 = vadd.f32 %v2561, %v2594
      %v2605 = vadd.f32 %v2562, %v2595
      %v2606 = vadd.f32 %v2563, %v2596
      %v2607 = vadd.f32 %v2564, %v2597
      %v2608 = vadd.f32 %v2565, %v2598
      %2609 = vset.pattern.permute.xlu0 52
      %2610 = vperm.xlu0 %2609, %v255
      %v2611 = vpop.permute.xlu0 %2610
      %v2613 = vmul.f32 %v2611, %v293
      %v2614 = vmul.f32 %v2611, %v297
      %v2615 = vmul.f32 %v2611, %v301
      %v2616 = vmul.f32 %v2611, %v305
      %v2617 = vmul.f32 %v2611, %v309
      %v2618 = vmul.f32 %v2611, %v509
      %2625 = vrot.lane.b32.xlu0 %v2613, 73
      %v2626 = vpop.permute.xlu0 %2625
      %2627 = vrot.lane.b32.xlu0 %v2614, 73
      %v2628 = vpop.permute.xlu0 %2627
      %2629 = vrot.lane.b32.xlu0 %v2615, 73
      %v2630 = vpop.permute.xlu0 %2629
      %2631 = vrot.lane.b32.xlu0 %v2616, 73
      %v2632 = vpop.permute.xlu0 %2631
      %2633 = vrot.lane.b32.xlu0 %v2617, 73
      %v2634 = vpop.permute.xlu0 %2633
      %2635 = vrot.lane.b32.xlu0 %v2618, 73
      %v2636 = vpop.permute.xlu0 %2635
      %vm2637 = vcmask 596992
      %v2638 = vsel %vm2637, %v2626, %v2628
      %v2639 = vsel %vm2637, %v2628, %v2630
      %v2640 = vsel %vm2637, %v2630, %v2632
      %v2641 = vsel %vm2637, %v2632, %v2634
      %v2642 = vsel %vm2637, %v2634, %v2636
      %v2648 = vadd.f32 %v2604, %v2638
      %v2649 = vadd.f32 %v2605, %v2639
      %v2650 = vadd.f32 %v2606, %v2640
      %v2651 = vadd.f32 %v2607, %v2641
      %v2652 = vadd.f32 %v2608, %v2642
      %2653 = vset.pattern.permute.xlu0 53
      %2654 = vperm.xlu0 %2653, %v255
      %v2655 = vpop.permute.xlu0 %2654
      %v2657 = vmul.f32 %v2655, %v352
      %v2658 = vmul.f32 %v2655, %v356
      %v2659 = vmul.f32 %v2655, %v360
      %v2660 = vmul.f32 %v2655, %v364
      %v2661 = vmul.f32 %v2655, %v368
      %v2662 = vmul.f32 %v2655, %v562
      %2669 = vrot.lane.b32.xlu0 %v2657, 73
      %v2670 = vpop.permute.xlu0 %2669
      %2671 = vrot.lane.b32.xlu0 %v2658, 73
      %v2672 = vpop.permute.xlu0 %2671
      %2673 = vrot.lane.b32.xlu0 %v2659, 73
      %v2674 = vpop.permute.xlu0 %2673
      %2675 = vrot.lane.b32.xlu0 %v2660, 73
      %v2676 = vpop.permute.xlu0 %2675
      %2677 = vrot.lane.b32.xlu0 %v2661, 73
      %v2678 = vpop.permute.xlu0 %2677
      %2679 = vrot.lane.b32.xlu0 %v2662, 73
      %v2680 = vpop.permute.xlu0 %2679
      %v2681 = vsel %vm2637, %v2670, %v2672
      %v2682 = vsel %vm2637, %v2672, %v2674
      %v2683 = vsel %vm2637, %v2674, %v2676
      %v2684 = vsel %vm2637, %v2676, %v2678
      %v2685 = vsel %vm2637, %v2678, %v2680
      %v2691 = vadd.f32 %v2648, %v2681
      %v2692 = vadd.f32 %v2649, %v2682
      %v2693 = vadd.f32 %v2650, %v2683
      %v2694 = vadd.f32 %v2651, %v2684
      %v2695 = vadd.f32 %v2652, %v2685
      %2696 = vset.pattern.permute.xlu0 54
      %2697 = vperm.xlu0 %2696, %v255
      %v2698 = vpop.permute.xlu0 %2697
      %v2700 = vmul.f32 %v2698, %v411
      %v2701 = vmul.f32 %v2698, %v415
      %v2702 = vmul.f32 %v2698, %v419
      %v2703 = vmul.f32 %v2698, %v423
      %v2704 = vmul.f32 %v2698, %v427
      %v2705 = vmul.f32 %v2698, %v614
      %2712 = vrot.lane.b32.xlu0 %v2700, 73
      %v2713 = vpop.permute.xlu0 %2712
      %2714 = vrot.lane.b32.xlu0 %v2701, 73
      %v2715 = vpop.permute.xlu0 %2714
      %2716 = vrot.lane.b32.xlu0 %v2702, 73
      %v2717 = vpop.permute.xlu0 %2716
      %2718 = vrot.lane.b32.xlu0 %v2703, 73
      %v2719 = vpop.permute.xlu0 %2718
      %2720 = vrot.lane.b32.xlu0 %v2704, 73
      %v2721 = vpop.permute.xlu0 %2720
      %2722 = vrot.lane.b32.xlu0 %v2705, 73
      %v2723 = vpop.permute.xlu0 %2722
      %v2724 = vsel %vm2637, %v2713, %v2715
      %v2725 = vsel %vm2637, %v2715, %v2717
      %v2726 = vsel %vm2637, %v2717, %v2719
      %v2727 = vsel %vm2637, %v2719, %v2721
      %v2728 = vsel %vm2637, %v2721, %v2723
      %v2734 = vadd.f32 %v2691, %v2724
      %v2735 = vadd.f32 %v2692, %v2725
      %v2736 = vadd.f32 %v2693, %v2726
      %v2737 = vadd.f32 %v2694, %v2727
      %v2738 = vadd.f32 %v2695, %v2728
      %2739 = vset.pattern.permute.xlu0 55
      %2740 = vperm.xlu0 %2739, %v255
      %v2741 = vpop.permute.xlu0 %2740
      %v2743 = vmul.f32 %v2741, %v470
      %v2744 = vmul.f32 %v2741, %v474
      %v2745 = vmul.f32 %v2741, %v478
      %v2746 = vmul.f32 %v2741, %v482
      %v2747 = vmul.f32 %v2741, %v486
      %v2748 = vmul.f32 %v2741, %v666
      %2755 = vrot.lane.b32.xlu0 %v2743, 73
      %v2756 = vpop.permute.xlu0 %2755
      %2757 = vrot.lane.b32.xlu0 %v2744, 73
      %v2758 = vpop.permute.xlu0 %2757
      %2759 = vrot.lane.b32.xlu0 %v2745, 73
      %v2760 = vpop.permute.xlu0 %2759
      %2761 = vrot.lane.b32.xlu0 %v2746, 73
      %v2762 = vpop.permute.xlu0 %2761
      %2763 = vrot.lane.b32.xlu0 %v2747, 73
      %v2764 = vpop.permute.xlu0 %2763
      %2765 = vrot.lane.b32.xlu0 %v2748, 73
      %v2766 = vpop.permute.xlu0 %2765
      %v2767 = vsel %vm2637, %v2756, %v2758
      %v2768 = vsel %vm2637, %v2758, %v2760
      %v2769 = vsel %vm2637, %v2760, %v2762
      %v2770 = vsel %vm2637, %v2762, %v2764
      %v2771 = vsel %vm2637, %v2764, %v2766
      %v2777 = vadd.f32 %v2734, %v2767
      %v2778 = vadd.f32 %v2735, %v2768
      %v2779 = vadd.f32 %v2736, %v2769
      %v2780 = vadd.f32 %v2737, %v2770
      %v2781 = vadd.f32 %v2738, %v2771
      %2782 = vset.pattern.permute.xlu0 56
      %2783 = vperm.xlu0 %2782, %v255
      %v2784 = vpop.permute.xlu0 %2783
      %v2786 = vmul.f32 %v2784, %v293
      %v2787 = vmul.f32 %v2784, %v297
      %v2788 = vmul.f32 %v2784, %v301
      %v2789 = vmul.f32 %v2784, %v305
      %v2790 = vmul.f32 %v2784, %v309
      %v2791 = vmul.f32 %v2784, %v509
      %2798 = vrot.lane.b32.xlu0 %v2786, 72
      %v2799 = vpop.permute.xlu0 %2798
      %2800 = vrot.lane.b32.xlu0 %v2787, 72
      %v2801 = vpop.permute.xlu0 %2800
      %2802 = vrot.lane.b32.xlu0 %v2788, 72
      %v2803 = vpop.permute.xlu0 %2802
      %2804 = vrot.lane.b32.xlu0 %v2789, 72
      %v2805 = vpop.permute.xlu0 %2804
      %2806 = vrot.lane.b32.xlu0 %v2790, 72
      %v2807 = vpop.permute.xlu0 %2806
      %2808 = vrot.lane.b32.xlu0 %v2791, 72
      %v2809 = vpop.permute.xlu0 %2808
      %vm2810 = vcmask 588800
      %v2811 = vsel %vm2810, %v2799, %v2801
      %v2812 = vsel %vm2810, %v2801, %v2803
      %v2813 = vsel %vm2810, %v2803, %v2805
      %v2814 = vsel %vm2810, %v2805, %v2807
      %v2815 = vsel %vm2810, %v2807, %v2809
      %v2821 = vadd.f32 %v2777, %v2811
      %v2822 = vadd.f32 %v2778, %v2812
      %v2823 = vadd.f32 %v2779, %v2813
      %v2824 = vadd.f32 %v2780, %v2814
      %v2825 = vadd.f32 %v2781, %v2815
      %2826 = vset.pattern.permute.xlu0 57
      %2827 = vperm.xlu0 %2826, %v255
      %v2828 = vpop.permute.xlu0 %2827
      %v2830 = vmul.f32 %v2828, %v352
      %v2831 = vmul.f32 %v2828, %v356
      %v2832 = vmul.f32 %v2828, %v360
      %v2833 = vmul.f32 %v2828, %v364
      %v2834 = vmul.f32 %v2828, %v368
      %v2835 = vmul.f32 %v2828, %v562
      %2842 = vrot.lane.b32.xlu0 %v2830, 72
      %v2843 = vpop.permute.xlu0 %2842
      %2844 = vrot.lane.b32.xlu0 %v2831, 72
      %v2845 = vpop.permute.xlu0 %2844
      %2846 = vrot.lane.b32.xlu0 %v2832, 72
      %v2847 = vpop.permute.xlu0 %2846
      %2848 = vrot.lane.b32.xlu0 %v2833, 72
      %v2849 = vpop.permute.xlu0 %2848
      %2850 = vrot.lane.b32.xlu0 %v2834, 72
      %v2851 = vpop.permute.xlu0 %2850
      %2852 = vrot.lane.b32.xlu0 %v2835, 72
      %v2853 = vpop.permute.xlu0 %2852
      %v2854 = vsel %vm2810, %v2843, %v2845
      %v2855 = vsel %vm2810, %v2845, %v2847
      %v2856 = vsel %vm2810, %v2847, %v2849
      %v2857 = vsel %vm2810, %v2849, %v2851
      %v2858 = vsel %vm2810, %v2851, %v2853
      %v2864 = vadd.f32 %v2821, %v2854
      %v2865 = vadd.f32 %v2822, %v2855
      %v2866 = vadd.f32 %v2823, %v2856
      %v2867 = vadd.f32 %v2824, %v2857
      %v2868 = vadd.f32 %v2825, %v2858
      %2869 = vset.pattern.permute.xlu0 58
      %2870 = vperm.xlu0 %2869, %v255
      %v2871 = vpop.permute.xlu0 %2870
      %v2873 = vmul.f32 %v2871, %v411
      %v2874 = vmul.f32 %v2871, %v415
      %v2875 = vmul.f32 %v2871, %v419
      %v2876 = vmul.f32 %v2871, %v423
      %v2877 = vmul.f32 %v2871, %v427
      %v2878 = vmul.f32 %v2871, %v614
      %2885 = vrot.lane.b32.xlu0 %v2873, 72
      %v2886 = vpop.permute.xlu0 %2885
      %2887 = vrot.lane.b32.xlu0 %v2874, 72
      %v2888 = vpop.permute.xlu0 %2887
      %2889 = vrot.lane.b32.xlu0 %v2875, 72
      %v2890 = vpop.permute.xlu0 %2889
      %2891 = vrot.lane.b32.xlu0 %v2876, 72
      %v2892 = vpop.permute.xlu0 %2891
      %2893 = vrot.lane.b32.xlu0 %v2877, 72
      %v2894 = vpop.permute.xlu0 %2893
      %2895 = vrot.lane.b32.xlu0 %v2878, 72
      %v2896 = vpop.permute.xlu0 %2895
      %v2897 = vsel %vm2810, %v2886, %v2888
      %v2898 = vsel %vm2810, %v2888, %v2890
      %v2899 = vsel %vm2810, %v2890, %v2892
      %v2900 = vsel %vm2810, %v2892, %v2894
      %v2901 = vsel %vm2810, %v2894, %v2896
      %v2907 = vadd.f32 %v2864, %v2897
      %v2908 = vadd.f32 %v2865, %v2898
      %v2909 = vadd.f32 %v2866, %v2899
      %v2910 = vadd.f32 %v2867, %v2900
      %v2911 = vadd.f32 %v2868, %v2901
      %2912 = vset.pattern.permute.xlu0 59
      %2913 = vperm.xlu0 %2912, %v255
      %v2914 = vpop.permute.xlu0 %2913
      %v2916 = vmul.f32 %v2914, %v470
      %v2917 = vmul.f32 %v2914, %v474
      %v2918 = vmul.f32 %v2914, %v478
      %v2919 = vmul.f32 %v2914, %v482
      %v2920 = vmul.f32 %v2914, %v486
      %v2921 = vmul.f32 %v2914, %v666
      %2928 = vrot.lane.b32.xlu0 %v2916, 72
      %v2929 = vpop.permute.xlu0 %2928
      %2930 = vrot.lane.b32.xlu0 %v2917, 72
      %v2931 = vpop.permute.xlu0 %2930
      %2932 = vrot.lane.b32.xlu0 %v2918, 72
      %v2933 = vpop.permute.xlu0 %2932
      %2934 = vrot.lane.b32.xlu0 %v2919, 72
      %v2935 = vpop.permute.xlu0 %2934
      %2936 = vrot.lane.b32.xlu0 %v2920, 72
      %v2937 = vpop.permute.xlu0 %2936
      %2938 = vrot.lane.b32.xlu0 %v2921, 72
      %v2939 = vpop.permute.xlu0 %2938
      %v2940 = vsel %vm2810, %v2929, %v2931
      %v2941 = vsel %vm2810, %v2931, %v2933
      %v2942 = vsel %vm2810, %v2933, %v2935
      %v2943 = vsel %vm2810, %v2935, %v2937
      %v2944 = vsel %vm2810, %v2937, %v2939
      %v2950 = vadd.f32 %v2907, %v2940
      %v2951 = vadd.f32 %v2908, %v2941
      %v2952 = vadd.f32 %v2909, %v2942
      %v2953 = vadd.f32 %v2910, %v2943
      %v2954 = vadd.f32 %v2911, %v2944
      %2955 = vset.pattern.permute.xlu0 60
      %2956 = vperm.xlu0 %2955, %v255
      %v2957 = vpop.permute.xlu0 %2956
      %v2959 = vmul.f32 %v2957, %v293
      %v2960 = vmul.f32 %v2957, %v297
      %v2961 = vmul.f32 %v2957, %v301
      %v2962 = vmul.f32 %v2957, %v305
      %v2963 = vmul.f32 %v2957, %v309
      %v2964 = vmul.f32 %v2957, %v509
      %2971 = vrot.lane.b32.xlu0 %v2959, 50
      %v2972 = vpop.permute.xlu0 %2971
      %2973 = vrot.lane.b32.xlu0 %v2960, 50
      %v2974 = vpop.permute.xlu0 %2973
      %2975 = vrot.lane.b32.xlu0 %v2961, 50
      %v2976 = vpop.permute.xlu0 %2975
      %2977 = vrot.lane.b32.xlu0 %v2962, 50
      %v2978 = vpop.permute.xlu0 %2977
      %2979 = vrot.lane.b32.xlu0 %v2963, 50
      %v2980 = vpop.permute.xlu0 %2979
      %2981 = vrot.lane.b32.xlu0 %v2964, 50
      %v2982 = vpop.permute.xlu0 %2981
      %vm2983 = vcmask 408576
      %v2984 = vsel %vm2983, %v2972, %v2974
      %v2985 = vsel %vm2983, %v2974, %v2976
      %v2986 = vsel %vm2983, %v2976, %v2978
      %v2987 = vsel %vm2983, %v2978, %v2980
      %v2988 = vsel %vm2983, %v2980, %v2982
      %v2994 = vadd.f32 %v2950, %v2984
      %v2995 = vadd.f32 %v2951, %v2985
      %v2996 = vadd.f32 %v2952, %v2986
      %v2997 = vadd.f32 %v2953, %v2987
      %v2998 = vadd.f32 %v2954, %v2988
      %2999 = vset.pattern.permute.xlu0 61
      %3000 = vperm.xlu0 %2999, %v255
      %v3001 = vpop.permute.xlu0 %3000
      %v3003 = vmul.f32 %v3001, %v352
      %v3004 = vmul.f32 %v3001, %v356
      %v3005 = vmul.f32 %v3001, %v360
      %v3006 = vmul.f32 %v3001, %v364
      %v3007 = vmul.f32 %v3001, %v368
      %v3008 = vmul.f32 %v3001, %v562
      %3015 = vrot.lane.b32.xlu0 %v3003, 50
      %v3016 = vpop.permute.xlu0 %3015
      %3017 = vrot.lane.b32.xlu0 %v3004, 50
      %v3018 = vpop.permute.xlu0 %3017
      %3019 = vrot.lane.b32.xlu0 %v3005, 50
      %v3020 = vpop.permute.xlu0 %3019
      %3021 = vrot.lane.b32.xlu0 %v3006, 50
      %v3022 = vpop.permute.xlu0 %3021
      %3023 = vrot.lane.b32.xlu0 %v3007, 50
      %v3024 = vpop.permute.xlu0 %3023
      %3025 = vrot.lane.b32.xlu0 %v3008, 50
      %v3026 = vpop.permute.xlu0 %3025
      %v3027 = vsel %vm2983, %v3016, %v3018
      %v3028 = vsel %vm2983, %v3018, %v3020
      %v3029 = vsel %vm2983, %v3020, %v3022
      %v3030 = vsel %vm2983, %v3022, %v3024
      %v3031 = vsel %vm2983, %v3024, %v3026
      %v3037 = vadd.f32 %v2994, %v3027
      %v3038 = vadd.f32 %v2995, %v3028
      %v3039 = vadd.f32 %v2996, %v3029
      %v3040 = vadd.f32 %v2997, %v3030
      %v3041 = vadd.f32 %v2998, %v3031
      %3042 = vset.pattern.permute.xlu0 62
      %3043 = vperm.xlu0 %3042, %v255
      %v3044 = vpop.permute.xlu0 %3043
      %v3046 = vmul.f32 %v3044, %v411
      %v3047 = vmul.f32 %v3044, %v415
      %v3048 = vmul.f32 %v3044, %v419
      %v3049 = vmul.f32 %v3044, %v423
      %v3050 = vmul.f32 %v3044, %v427
      %v3051 = vmul.f32 %v3044, %v614
      %3058 = vrot.lane.b32.xlu0 %v3046, 50
      %v3059 = vpop.permute.xlu0 %3058
      %3060 = vrot.lane.b32.xlu0 %v3047, 50
      %v3061 = vpop.permute.xlu0 %3060
      %3062 = vrot.lane.b32.xlu0 %v3048, 50
      %v3063 = vpop.permute.xlu0 %3062
      %3064 = vrot.lane.b32.xlu0 %v3049, 50
      %v3065 = vpop.permute.xlu0 %3064
      %3066 = vrot.lane.b32.xlu0 %v3050, 50
      %v3067 = vpop.permute.xlu0 %3066
      %3068 = vrot.lane.b32.xlu0 %v3051, 50
      %v3069 = vpop.permute.xlu0 %3068
      %v3070 = vsel %vm2983, %v3059, %v3061
      %v3071 = vsel %vm2983, %v3061, %v3063
      %v3072 = vsel %vm2983, %v3063, %v3065
      %v3073 = vsel %vm2983, %v3065, %v3067
      %v3074 = vsel %vm2983, %v3067, %v3069
      %v3080 = vadd.f32 %v3037, %v3070
      %v3081 = vadd.f32 %v3038, %v3071
      %v3082 = vadd.f32 %v3039, %v3072
      %v3083 = vadd.f32 %v3040, %v3073
      %v3084 = vadd.f32 %v3041, %v3074
      %3085 = vset.pattern.permute.xlu0 63
      %3086 = vperm.xlu0 %3085, %v255
      %v3087 = vpop.permute.xlu0 %3086
      %v3089 = vmul.f32 %v3087, %v470
      %v3090 = vmul.f32 %v3087, %v474
      %v3091 = vmul.f32 %v3087, %v478
      %v3092 = vmul.f32 %v3087, %v482
      %v3093 = vmul.f32 %v3087, %v486
      %v3094 = vmul.f32 %v3087, %v666
      %3101 = vrot.lane.b32.xlu0 %v3089, 50
      %v3102 = vpop.permute.xlu0 %3101
      %3103 = vrot.lane.b32.xlu0 %v3090, 50
      %v3104 = vpop.permute.xlu0 %3103
      %3105 = vrot.lane.b32.xlu0 %v3091, 50
      %v3106 = vpop.permute.xlu0 %3105
      %3107 = vrot.lane.b32.xlu0 %v3092, 50
      %v3108 = vpop.permute.xlu0 %3107
      %3109 = vrot.lane.b32.xlu0 %v3093, 50
      %v3110 = vpop.permute.xlu0 %3109
      %3111 = vrot.lane.b32.xlu0 %v3094, 50
      %v3112 = vpop.permute.xlu0 %3111
      %v3113 = vsel %vm2983, %v3102, %v3104
      %v3114 = vsel %vm2983, %v3104, %v3106
      %v3115 = vsel %vm2983, %v3106, %v3108
      %v3116 = vsel %vm2983, %v3108, %v3110
      %v3117 = vsel %vm2983, %v3110, %v3112
      %v3123 = vadd.f32 %v3080, %v3113
      %v3124 = vadd.f32 %v3081, %v3114
      %v3125 = vadd.f32 %v3082, %v3115
      %v3126 = vadd.f32 %v3083, %v3116
      %v3127 = vadd.f32 %v3084, %v3117
      %3128 = vset.pattern.permute.xlu0 64
      %3129 = vperm.xlu0 %3128, %v255
      %v3130 = vpop.permute.xlu0 %3129
      %v3132 = vmul.f32 %v3130, %v293
      %v3133 = vmul.f32 %v3130, %v297
      %v3134 = vmul.f32 %v3130, %v301
      %v3135 = vmul.f32 %v3130, %v305
      %v3136 = vmul.f32 %v3130, %v309
      %v3137 = vmul.f32 %v3130, %v509
      %3144 = vrot.lane.b32.xlu0 %v3132, 49
      %v3145 = vpop.permute.xlu0 %3144
      %3146 = vrot.lane.b32.xlu0 %v3133, 49
      %v3147 = vpop.permute.xlu0 %3146
      %3148 = vrot.lane.b32.xlu0 %v3134, 49
      %v3149 = vpop.permute.xlu0 %3148
      %3150 = vrot.lane.b32.xlu0 %v3135, 49
      %v3151 = vpop.permute.xlu0 %3150
      %3152 = vrot.lane.b32.xlu0 %v3136, 49
      %v3153 = vpop.permute.xlu0 %3152
      %3154 = vrot.lane.b32.xlu0 %v3137, 49
      %v3155 = vpop.permute.xlu0 %3154
      %vm3156 = vcmask 400384
      %v3157 = vsel %vm3156, %v3145, %v3147
      %v3158 = vsel %vm3156, %v3147, %v3149
      %v3159 = vsel %vm3156, %v3149, %v3151
      %v3160 = vsel %vm3156, %v3151, %v3153
      %v3161 = vsel %vm3156, %v3153, %v3155
      %v3167 = vadd.f32 %v3123, %v3157
      %v3168 = vadd.f32 %v3124, %v3158
      %v3169 = vadd.f32 %v3125, %v3159
      %v3170 = vadd.f32 %v3126, %v3160
      %v3171 = vadd.f32 %v3127, %v3161
      %3172 = vset.pattern.permute.xlu0 65
      %3173 = vperm.xlu0 %3172, %v255
      %v3174 = vpop.permute.xlu0 %3173
      %v3176 = vmul.f32 %v3174, %v352
      %v3177 = vmul.f32 %v3174, %v356
      %v3178 = vmul.f32 %v3174, %v360
      %v3179 = vmul.f32 %v3174, %v364
      %v3180 = vmul.f32 %v3174, %v368
      %v3181 = vmul.f32 %v3174, %v562
      %3188 = vrot.lane.b32.xlu0 %v3176, 49
      %v3189 = vpop.permute.xlu0 %3188
      %3190 = vrot.lane.b32.xlu0 %v3177, 49
      %v3191 = vpop.permute.xlu0 %3190
      %3192 = vrot.lane.b32.xlu0 %v3178, 49
      %v3193 = vpop.permute.xlu0 %3192
      %3194 = vrot.lane.b32.xlu0 %v3179, 49
      %v3195 = vpop.permute.xlu0 %3194
      %3196 = vrot.lane.b32.xlu0 %v3180, 49
      %v3197 = vpop.permute.xlu0 %3196
      %3198 = vrot.lane.b32.xlu0 %v3181, 49
      %v3199 = vpop.permute.xlu0 %3198
      %v3200 = vsel %vm3156, %v3189, %v3191
      %v3201 = vsel %vm3156, %v3191, %v3193
      %v3202 = vsel %vm3156, %v3193, %v3195
      %v3203 = vsel %vm3156, %v3195, %v3197
      %v3204 = vsel %vm3156, %v3197, %v3199
      %v3210 = vadd.f32 %v3167, %v3200
      %v3211 = vadd.f32 %v3168, %v3201
      %v3212 = vadd.f32 %v3169, %v3202
      %v3213 = vadd.f32 %v3170, %v3203
      %v3214 = vadd.f32 %v3171, %v3204
      %3215 = vset.pattern.permute.xlu0 66
      %3216 = vperm.xlu0 %3215, %v255
      %v3217 = vpop.permute.xlu0 %3216
      %v3219 = vmul.f32 %v3217, %v411
      %v3220 = vmul.f32 %v3217, %v415
      %v3221 = vmul.f32 %v3217, %v419
      %v3222 = vmul.f32 %v3217, %v423
      %v3223 = vmul.f32 %v3217, %v427
      %v3224 = vmul.f32 %v3217, %v614
      %3231 = vrot.lane.b32.xlu0 %v3219, 49
      %v3232 = vpop.permute.xlu0 %3231
      %3233 = vrot.lane.b32.xlu0 %v3220, 49
      %v3234 = vpop.permute.xlu0 %3233
      %3235 = vrot.lane.b32.xlu0 %v3221, 49
      %v3236 = vpop.permute.xlu0 %3235
      %3237 = vrot.lane.b32.xlu0 %v3222, 49
      %v3238 = vpop.permute.xlu0 %3237
      %3239 = vrot.lane.b32.xlu0 %v3223, 49
      %v3240 = vpop.permute.xlu0 %3239
      %3241 = vrot.lane.b32.xlu0 %v3224, 49
      %v3242 = vpop.permute.xlu0 %3241
      %v3243 = vsel %vm3156, %v3232, %v3234
      %v3244 = vsel %vm3156, %v3234, %v3236
      %v3245 = vsel %vm3156, %v3236, %v3238
      %v3246 = vsel %vm3156, %v3238, %v3240
      %v3247 = vsel %vm3156, %v3240, %v3242
      %v3253 = vadd.f32 %v3210, %v3243
      %v3254 = vadd.f32 %v3211, %v3244
      %v3255 = vadd.f32 %v3212, %v3245
      %v3256 = vadd.f32 %v3213, %v3246
      %v3257 = vadd.f32 %v3214, %v3247
      %3258 = vset.pattern.permute.xlu0 67
      %3259 = vperm.xlu0 %3258, %v255
      %v3260 = vpop.permute.xlu0 %3259
      %v3262 = vmul.f32 %v3260, %v470
      %v3263 = vmul.f32 %v3260, %v474
      %v3264 = vmul.f32 %v3260, %v478
      %v3265 = vmul.f32 %v3260, %v482
      %v3266 = vmul.f32 %v3260, %v486
      %v3267 = vmul.f32 %v3260, %v666
      %3274 = vrot.lane.b32.xlu0 %v3262, 49
      %v3275 = vpop.permute.xlu0 %3274
      %3276 = vrot.lane.b32.xlu0 %v3263, 49
      %v3277 = vpop.permute.xlu0 %3276
      %3278 = vrot.lane.b32.xlu0 %v3264, 49
      %v3279 = vpop.permute.xlu0 %3278
      %3280 = vrot.lane.b32.xlu0 %v3265, 49
      %v3281 = vpop.permute.xlu0 %3280
      %3282 = vrot.lane.b32.xlu0 %v3266, 49
      %v3283 = vpop.permute.xlu0 %3282
      %3284 = vrot.lane.b32.xlu0 %v3267, 49
      %v3285 = vpop.permute.xlu0 %3284
      %v3286 = vsel %vm3156, %v3275, %v3277
      %v3287 = vsel %vm3156, %v3277, %v3279
      %v3288 = vsel %vm3156, %v3279, %v3281
      %v3289 = vsel %vm3156, %v3281, %v3283
      %v3290 = vsel %vm3156, %v3283, %v3285
      %v3296 = vadd.f32 %v3253, %v3286
      %v3297 = vadd.f32 %v3254, %v3287
      %v3298 = vadd.f32 %v3255, %v3288
      %v3299 = vadd.f32 %v3256, %v3289
      %v3300 = vadd.f32 %v3257, %v3290
      %3301 = vset.pattern.permute.xlu0 68
      %3302 = vperm.xlu0 %3301, %v255
      %v3303 = vpop.permute.xlu0 %3302
      %v3305 = vmul.f32 %v3303, %v293
      %v3306 = vmul.f32 %v3303, %v297
      %v3307 = vmul.f32 %v3303, %v301
      %v3308 = vmul.f32 %v3303, %v305
      %v3309 = vmul.f32 %v3303, %v309
      %v3310 = vmul.f32 %v3303, %v509
      %3317 = vrot.lane.b32.xlu0 %v3305, 48
      %v3318 = vpop.permute.xlu0 %3317
      %3319 = vrot.lane.b32.xlu0 %v3306, 48
      %v3320 = vpop.permute.xlu0 %3319
      %3321 = vrot.lane.b32.xlu0 %v3307, 48
      %v3322 = vpop.permute.xlu0 %3321
      %3323 = vrot.lane.b32.xlu0 %v3308, 48
      %v3324 = vpop.permute.xlu0 %3323
      %3325 = vrot.lane.b32.xlu0 %v3309, 48
      %v3326 = vpop.permute.xlu0 %3325
      %3327 = vrot.lane.b32.xlu0 %v3310, 48
      %v3328 = vpop.permute.xlu0 %3327
      %vm3329 = vcmask 392192
      %v3330 = vsel %vm3329, %v3318, %v3320
      %v3331 = vsel %vm3329, %v3320, %v3322
      %v3332 = vsel %vm3329, %v3322, %v3324
      %v3333 = vsel %vm3329, %v3324, %v3326
      %v3334 = vsel %vm3329, %v3326, %v3328
      %v3340 = vadd.f32 %v3296, %v3330
      %v3341 = vadd.f32 %v3297, %v3331
      %v3342 = vadd.f32 %v3298, %v3332
      %v3343 = vadd.f32 %v3299, %v3333
      %v3344 = vadd.f32 %v3300, %v3334
      %3345 = vset.pattern.permute.xlu0 69
      %3346 = vperm.xlu0 %3345, %v255
      %v3347 = vpop.permute.xlu0 %3346
      %v3349 = vmul.f32 %v3347, %v352
      %v3350 = vmul.f32 %v3347, %v356
      %v3351 = vmul.f32 %v3347, %v360
      %v3352 = vmul.f32 %v3347, %v364
      %v3353 = vmul.f32 %v3347, %v368
      %v3354 = vmul.f32 %v3347, %v562
      %3361 = vrot.lane.b32.xlu0 %v3349, 48
      %v3362 = vpop.permute.xlu0 %3361
      %3363 = vrot.lane.b32.xlu0 %v3350, 48
      %v3364 = vpop.permute.xlu0 %3363
      %3365 = vrot.lane.b32.xlu0 %v3351, 48
      %v3366 = vpop.permute.xlu0 %3365
      %3367 = vrot.lane.b32.xlu0 %v3352, 48
      %v3368 = vpop.permute.xlu0 %3367
      %3369 = vrot.lane.b32.xlu0 %v3353, 48
      %v3370 = vpop.permute.xlu0 %3369
      %3371 = vrot.lane.b32.xlu0 %v3354, 48
      %v3372 = vpop.permute.xlu0 %3371
      %v3373 = vsel %vm3329, %v3362, %v3364
      %v3374 = vsel %vm3329, %v3364, %v3366
      %v3375 = vsel %vm3329, %v3366, %v3368
      %v3376 = vsel %vm3329, %v3368, %v3370
      %v3377 = vsel %vm3329, %v3370, %v3372
      %v3383 = vadd.f32 %v3340, %v3373
      %v3384 = vadd.f32 %v3341, %v3374
      %v3385 = vadd.f32 %v3342, %v3375
      %v3386 = vadd.f32 %v3343, %v3376
      %v3387 = vadd.f32 %v3344, %v3377
      %3388 = vset.pattern.permute.xlu0 70
      %3389 = vperm.xlu0 %3388, %v255
      %v3390 = vpop.permute.xlu0 %3389
      %v3392 = vmul.f32 %v3390, %v411
      %v3393 = vmul.f32 %v3390, %v415
      %v3394 = vmul.f32 %v3390, %v419
      %v3395 = vmul.f32 %v3390, %v423
      %v3396 = vmul.f32 %v3390, %v427
      %v3397 = vmul.f32 %v3390, %v614
      %3404 = vrot.lane.b32.xlu0 %v3392, 48
      %v3405 = vpop.permute.xlu0 %3404
      %3406 = vrot.lane.b32.xlu0 %v3393, 48
      %v3407 = vpop.permute.xlu0 %3406
      %3408 = vrot.lane.b32.xlu0 %v3394, 48
      %v3409 = vpop.permute.xlu0 %3408
      %3410 = vrot.lane.b32.xlu0 %v3395, 48
      %v3411 = vpop.permute.xlu0 %3410
      %3412 = vrot.lane.b32.xlu0 %v3396, 48
      %v3413 = vpop.permute.xlu0 %3412
      %3414 = vrot.lane.b32.xlu0 %v3397, 48
      %v3415 = vpop.permute.xlu0 %3414
      %v3416 = vsel %vm3329, %v3405, %v3407
      %v3417 = vsel %vm3329, %v3407, %v3409
      %v3418 = vsel %vm3329, %v3409, %v3411
      %v3419 = vsel %vm3329, %v3411, %v3413
      %v3420 = vsel %vm3329, %v3413, %v3415
      %v3426 = vadd.f32 %v3383, %v3416
      %v3427 = vadd.f32 %v3384, %v3417
      %v3428 = vadd.f32 %v3385, %v3418
      %v3429 = vadd.f32 %v3386, %v3419
      %v3430 = vadd.f32 %v3387, %v3420
      %3431 = vset.pattern.permute.xlu0 71
      %3432 = vperm.xlu0 %3431, %v255
      %v3433 = vpop.permute.xlu0 %3432
      %v3435 = vmul.f32 %v3433, %v470
      %v3436 = vmul.f32 %v3433, %v474
      %v3437 = vmul.f32 %v3433, %v478
      %v3438 = vmul.f32 %v3433, %v482
      %v3439 = vmul.f32 %v3433, %v486
      %v3440 = vmul.f32 %v3433, %v666
      %3447 = vrot.lane.b32.xlu0 %v3435, 48
      %v3448 = vpop.permute.xlu0 %3447
      %3449 = vrot.lane.b32.xlu0 %v3436, 48
      %v3450 = vpop.permute.xlu0 %3449
      %3451 = vrot.lane.b32.xlu0 %v3437, 48
      %v3452 = vpop.permute.xlu0 %3451
      %3453 = vrot.lane.b32.xlu0 %v3438, 48
      %v3454 = vpop.permute.xlu0 %3453
      %3455 = vrot.lane.b32.xlu0 %v3439, 48
      %v3456 = vpop.permute.xlu0 %3455
      %3457 = vrot.lane.b32.xlu0 %v3440, 48
      %v3458 = vpop.permute.xlu0 %3457
      %v3459 = vsel %vm3329, %v3448, %v3450
      %v3460 = vsel %vm3329, %v3450, %v3452
      %v3461 = vsel %vm3329, %v3452, %v3454
      %v3462 = vsel %vm3329, %v3454, %v3456
      %v3463 = vsel %vm3329, %v3456, %v3458
      %v3469 = vadd.f32 %v3426, %v3459
      %v3470 = vadd.f32 %v3427, %v3460
      %v3471 = vadd.f32 %v3428, %v3461
      %v3472 = vadd.f32 %v3429, %v3462
      %v3473 = vadd.f32 %v3430, %v3463
      %3474 = vset.pattern.permute.xlu0 72
      %3475 = vperm.xlu0 %3474, %v255
      %v3476 = vpop.permute.xlu0 %3475
      %v3478 = vmul.f32 %v3476, %v293
      %v3479 = vmul.f32 %v3476, %v297
      %v3480 = vmul.f32 %v3476, %v301
      %v3481 = vmul.f32 %v3476, %v305
      %v3482 = vmul.f32 %v3476, %v309
      %v3483 = vmul.f32 %v3476, %v509
      %3490 = vrot.lane.b32.xlu0 %v3478, 47
      %v3491 = vpop.permute.xlu0 %3490
      %3492 = vrot.lane.b32.xlu0 %v3479, 47
      %v3493 = vpop.permute.xlu0 %3492
      %3494 = vrot.lane.b32.xlu0 %v3480, 47
      %v3495 = vpop.permute.xlu0 %3494
      %3496 = vrot.lane.b32.xlu0 %v3481, 47
      %v3497 = vpop.permute.xlu0 %3496
      %3498 = vrot.lane.b32.xlu0 %v3482, 47
      %v3499 = vpop.permute.xlu0 %3498
      %3500 = vrot.lane.b32.xlu0 %v3483, 47
      %v3501 = vpop.permute.xlu0 %3500
      %vm3502 = vcmask 384000
      %v3503 = vsel %vm3502, %v3491, %v3493
      %v3504 = vsel %vm3502, %v3493, %v3495
      %v3505 = vsel %vm3502, %v3495, %v3497
      %v3506 = vsel %vm3502, %v3497, %v3499
      %v3507 = vsel %vm3502, %v3499, %v3501
      %v3513 = vadd.f32 %v3469, %v3503
      %v3514 = vadd.f32 %v3470, %v3504
      %v3515 = vadd.f32 %v3471, %v3505
      %v3516 = vadd.f32 %v3472, %v3506
      %v3517 = vadd.f32 %v3473, %v3507
      %3518 = vset.pattern.permute.xlu0 73
      %3519 = vperm.xlu0 %3518, %v255
      %v3520 = vpop.permute.xlu0 %3519
      %v3522 = vmul.f32 %v3520, %v352
      %v3523 = vmul.f32 %v3520, %v356
      %v3524 = vmul.f32 %v3520, %v360
      %v3525 = vmul.f32 %v3520, %v364
      %v3526 = vmul.f32 %v3520, %v368
      %v3527 = vmul.f32 %v3520, %v562
      %3534 = vrot.lane.b32.xlu0 %v3522, 47
      %v3535 = vpop.permute.xlu0 %3534
      %3536 = vrot.lane.b32.xlu0 %v3523, 47
      %v3537 = vpop.permute.xlu0 %3536
      %3538 = vrot.lane.b32.xlu0 %v3524, 47
      %v3539 = vpop.permute.xlu0 %3538
      %3540 = vrot.lane.b32.xlu0 %v3525, 47
      %v3541 = vpop.permute.xlu0 %3540
      %3542 = vrot.lane.b32.xlu0 %v3526, 47
      %v3543 = vpop.permute.xlu0 %3542
      %3544 = vrot.lane.b32.xlu0 %v3527, 47
      %v3545 = vpop.permute.xlu0 %3544
      %v3546 = vsel %vm3502, %v3535, %v3537
      %v3547 = vsel %vm3502, %v3537, %v3539
      %v3548 = vsel %vm3502, %v3539, %v3541
      %v3549 = vsel %vm3502, %v3541, %v3543
      %v3550 = vsel %vm3502, %v3543, %v3545
      %v3556 = vadd.f32 %v3513, %v3546
      %v3557 = vadd.f32 %v3514, %v3547
      %v3558 = vadd.f32 %v3515, %v3548
      %v3559 = vadd.f32 %v3516, %v3549
      %v3560 = vadd.f32 %v3517, %v3550
      %3561 = vset.pattern.permute.xlu0 74
      %3562 = vperm.xlu0 %3561, %v255
      %v3563 = vpop.permute.xlu0 %3562
      %v3565 = vmul.f32 %v3563, %v411
      %v3566 = vmul.f32 %v3563, %v415
      %v3567 = vmul.f32 %v3563, %v419
      %v3568 = vmul.f32 %v3563, %v423
      %v3569 = vmul.f32 %v3563, %v427
      %v3570 = vmul.f32 %v3563, %v614
      %3577 = vrot.lane.b32.xlu0 %v3565, 47
      %v3578 = vpop.permute.xlu0 %3577
      %3579 = vrot.lane.b32.xlu0 %v3566, 47
      %v3580 = vpop.permute.xlu0 %3579
      %3581 = vrot.lane.b32.xlu0 %v3567, 47
      %v3582 = vpop.permute.xlu0 %3581
      %3583 = vrot.lane.b32.xlu0 %v3568, 47
      %v3584 = vpop.permute.xlu0 %3583
      %3585 = vrot.lane.b32.xlu0 %v3569, 47
      %v3586 = vpop.permute.xlu0 %3585
      %3587 = vrot.lane.b32.xlu0 %v3570, 47
      %v3588 = vpop.permute.xlu0 %3587
      %v3589 = vsel %vm3502, %v3578, %v3580
      %v3590 = vsel %vm3502, %v3580, %v3582
      %v3591 = vsel %vm3502, %v3582, %v3584
      %v3592 = vsel %vm3502, %v3584, %v3586
      %v3593 = vsel %vm3502, %v3586, %v3588
      %v3599 = vadd.f32 %v3556, %v3589
      %v3600 = vadd.f32 %v3557, %v3590
      %v3601 = vadd.f32 %v3558, %v3591
      %v3602 = vadd.f32 %v3559, %v3592
      %v3603 = vadd.f32 %v3560, %v3593
      %3604 = vset.pattern.permute.xlu0 75
      %3605 = vperm.xlu0 %3604, %v255
      %v3606 = vpop.permute.xlu0 %3605
      %v3608 = vmul.f32 %v3606, %v470
      %v3609 = vmul.f32 %v3606, %v474
      %v3610 = vmul.f32 %v3606, %v478
      %v3611 = vmul.f32 %v3606, %v482
      %v3612 = vmul.f32 %v3606, %v486
      %v3613 = vmul.f32 %v3606, %v666
      %3620 = vrot.lane.b32.xlu0 %v3608, 47
      %v3621 = vpop.permute.xlu0 %3620
      %3622 = vrot.lane.b32.xlu0 %v3609, 47
      %v3623 = vpop.permute.xlu0 %3622
      %3624 = vrot.lane.b32.xlu0 %v3610, 47
      %v3625 = vpop.permute.xlu0 %3624
      %3626 = vrot.lane.b32.xlu0 %v3611, 47
      %v3627 = vpop.permute.xlu0 %3626
      %3628 = vrot.lane.b32.xlu0 %v3612, 47
      %v3629 = vpop.permute.xlu0 %3628
      %3630 = vrot.lane.b32.xlu0 %v3613, 47
      %v3631 = vpop.permute.xlu0 %3630
      %v3632 = vsel %vm3502, %v3621, %v3623
      %v3633 = vsel %vm3502, %v3623, %v3625
      %v3634 = vsel %vm3502, %v3625, %v3627
      %v3635 = vsel %vm3502, %v3627, %v3629
      %v3636 = vsel %vm3502, %v3629, %v3631
      %v3642 = vadd.f32 %v3599, %v3632
      %v3643 = vadd.f32 %v3600, %v3633
      %v3644 = vadd.f32 %v3601, %v3634
      %v3645 = vadd.f32 %v3602, %v3635
      %v3646 = vadd.f32 %v3603, %v3636
      %3647 = vset.pattern.permute.xlu0 76
      %3648 = vperm.xlu0 %3647, %v255
      %v3649 = vpop.permute.xlu0 %3648
      %v3651 = vmul.f32 %v3649, %v293
      %v3652 = vmul.f32 %v3649, %v297
      %v3653 = vmul.f32 %v3649, %v301
      %v3654 = vmul.f32 %v3649, %v305
      %v3655 = vmul.f32 %v3649, %v309
      %v3656 = vmul.f32 %v3649, %v509
      %3663 = vrot.lane.b32.xlu0 %v3651, 46
      %v3664 = vpop.permute.xlu0 %3663
      %3665 = vrot.lane.b32.xlu0 %v3652, 46
      %v3666 = vpop.permute.xlu0 %3665
      %3667 = vrot.lane.b32.xlu0 %v3653, 46
      %v3668 = vpop.permute.xlu0 %3667
      %3669 = vrot.lane.b32.xlu0 %v3654, 46
      %v3670 = vpop.permute.xlu0 %3669
      %3671 = vrot.lane.b32.xlu0 %v3655, 46
      %v3672 = vpop.permute.xlu0 %3671
      %3673 = vrot.lane.b32.xlu0 %v3656, 46
      %v3674 = vpop.permute.xlu0 %3673
      %vm3675 = vcmask 375808
      %v3676 = vsel %vm3675, %v3664, %v3666
      %v3677 = vsel %vm3675, %v3666, %v3668
      %v3678 = vsel %vm3675, %v3668, %v3670
      %v3679 = vsel %vm3675, %v3670, %v3672
      %v3680 = vsel %vm3675, %v3672, %v3674
      %v3686 = vadd.f32 %v3642, %v3676
      %v3687 = vadd.f32 %v3643, %v3677
      %v3688 = vadd.f32 %v3644, %v3678
      %v3689 = vadd.f32 %v3645, %v3679
      %v3690 = vadd.f32 %v3646, %v3680
      %3691 = vset.pattern.permute.xlu0 77
      %3692 = vperm.xlu0 %3691, %v255
      %v3693 = vpop.permute.xlu0 %3692
      %v3695 = vmul.f32 %v3693, %v352
      %v3696 = vmul.f32 %v3693, %v356
      %v3697 = vmul.f32 %v3693, %v360
      %v3698 = vmul.f32 %v3693, %v364
      %v3699 = vmul.f32 %v3693, %v368
      %v3700 = vmul.f32 %v3693, %v562
      %3707 = vrot.lane.b32.xlu0 %v3695, 46
      %v3708 = vpop.permute.xlu0 %3707
      %3709 = vrot.lane.b32.xlu0 %v3696, 46
      %v3710 = vpop.permute.xlu0 %3709
      %3711 = vrot.lane.b32.xlu0 %v3697, 46
      %v3712 = vpop.permute.xlu0 %3711
      %3713 = vrot.lane.b32.xlu0 %v3698, 46
      %v3714 = vpop.permute.xlu0 %3713
      %3715 = vrot.lane.b32.xlu0 %v3699, 46
      %v3716 = vpop.permute.xlu0 %3715
      %3717 = vrot.lane.b32.xlu0 %v3700, 46
      %v3718 = vpop.permute.xlu0 %3717
      %v3719 = vsel %vm3675, %v3708, %v3710
      %v3720 = vsel %vm3675, %v3710, %v3712
      %v3721 = vsel %vm3675, %v3712, %v3714
      %v3722 = vsel %vm3675, %v3714, %v3716
      %v3723 = vsel %vm3675, %v3716, %v3718
      %v3729 = vadd.f32 %v3686, %v3719
      %v3730 = vadd.f32 %v3687, %v3720
      %v3731 = vadd.f32 %v3688, %v3721
      %v3732 = vadd.f32 %v3689, %v3722
      %v3733 = vadd.f32 %v3690, %v3723
      %3734 = vset.pattern.permute.xlu0 78
      %3735 = vperm.xlu0 %3734, %v255
      %v3736 = vpop.permute.xlu0 %3735
      %v3738 = vmul.f32 %v3736, %v411
      %v3739 = vmul.f32 %v3736, %v415
      %v3740 = vmul.f32 %v3736, %v419
      %v3741 = vmul.f32 %v3736, %v423
      %v3742 = vmul.f32 %v3736, %v427
      %v3743 = vmul.f32 %v3736, %v614
      %3750 = vrot.lane.b32.xlu0 %v3738, 46
      %v3751 = vpop.permute.xlu0 %3750
      %3752 = vrot.lane.b32.xlu0 %v3739, 46
      %v3753 = vpop.permute.xlu0 %3752
      %3754 = vrot.lane.b32.xlu0 %v3740, 46
      %v3755 = vpop.permute.xlu0 %3754
      %3756 = vrot.lane.b32.xlu0 %v3741, 46
      %v3757 = vpop.permute.xlu0 %3756
      %3758 = vrot.lane.b32.xlu0 %v3742, 46
      %v3759 = vpop.permute.xlu0 %3758
      %3760 = vrot.lane.b32.xlu0 %v3743, 46
      %v3761 = vpop.permute.xlu0 %3760
      %v3762 = vsel %vm3675, %v3751, %v3753
      %v3763 = vsel %vm3675, %v3753, %v3755
      %v3764 = vsel %vm3675, %v3755, %v3757
      %v3765 = vsel %vm3675, %v3757, %v3759
      %v3766 = vsel %vm3675, %v3759, %v3761
      %v3772 = vadd.f32 %v3729, %v3762
      %v3773 = vadd.f32 %v3730, %v3763
      %v3774 = vadd.f32 %v3731, %v3764
      %v3775 = vadd.f32 %v3732, %v3765
      %v3776 = vadd.f32 %v3733, %v3766
      %3777 = vset.pattern.permute.xlu0 79
      %3778 = vperm.xlu0 %3777, %v255
      %v3779 = vpop.permute.xlu0 %3778
      %v3781 = vmul.f32 %v3779, %v470
      %v3782 = vmul.f32 %v3779, %v474
      %v3783 = vmul.f32 %v3779, %v478
      %v3784 = vmul.f32 %v3779, %v482
      %v3785 = vmul.f32 %v3779, %v486
      %v3786 = vmul.f32 %v3779, %v666
      %3793 = vrot.lane.b32.xlu0 %v3781, 46
      %v3794 = vpop.permute.xlu0 %3793
      %3795 = vrot.lane.b32.xlu0 %v3782, 46
      %v3796 = vpop.permute.xlu0 %3795
      %3797 = vrot.lane.b32.xlu0 %v3783, 46
      %v3798 = vpop.permute.xlu0 %3797
      %3799 = vrot.lane.b32.xlu0 %v3784, 46
      %v3800 = vpop.permute.xlu0 %3799
      %3801 = vrot.lane.b32.xlu0 %v3785, 46
      %v3802 = vpop.permute.xlu0 %3801
      %3803 = vrot.lane.b32.xlu0 %v3786, 46
      %v3804 = vpop.permute.xlu0 %3803
      %v3805 = vsel %vm3675, %v3794, %v3796
      %v3806 = vsel %vm3675, %v3796, %v3798
      %v3807 = vsel %vm3675, %v3798, %v3800
      %v3808 = vsel %vm3675, %v3800, %v3802
      %v3809 = vsel %vm3675, %v3802, %v3804
      %v3815 = vadd.f32 %v3772, %v3805
      %v3816 = vadd.f32 %v3773, %v3806
      %v3817 = vadd.f32 %v3774, %v3807
      %v3818 = vadd.f32 %v3775, %v3808
      %v3819 = vadd.f32 %v3776, %v3809
      %3820 = vset.pattern.permute.xlu0 80
      %3821 = vperm.xlu0 %3820, %v255
      %v3822 = vpop.permute.xlu0 %3821
      %v3824 = vmul.f32 %v3822, %v293
      %v3825 = vmul.f32 %v3822, %v297
      %v3826 = vmul.f32 %v3822, %v301
      %v3827 = vmul.f32 %v3822, %v305
      %v3828 = vmul.f32 %v3822, %v309
      %v3829 = vmul.f32 %v3822, %v509
      %3836 = vrot.lane.b32.xlu0 %v3824, 24
      %v3837 = vpop.permute.xlu0 %3836
      %3838 = vrot.lane.b32.xlu0 %v3825, 24
      %v3839 = vpop.permute.xlu0 %3838
      %3840 = vrot.lane.b32.xlu0 %v3826, 24
      %v3841 = vpop.permute.xlu0 %3840
      %3842 = vrot.lane.b32.xlu0 %v3827, 24
      %v3843 = vpop.permute.xlu0 %3842
      %3844 = vrot.lane.b32.xlu0 %v3828, 24
      %v3845 = vpop.permute.xlu0 %3844
      %3846 = vrot.lane.b32.xlu0 %v3829, 24
      %v3847 = vpop.permute.xlu0 %3846
      %vm3848 = vcmask 195584
      %v3849 = vsel %vm3848, %v3837, %v3839
      %v3850 = vsel %vm3848, %v3839, %v3841
      %v3851 = vsel %vm3848, %v3841, %v3843
      %v3852 = vsel %vm3848, %v3843, %v3845
      %v3853 = vsel %vm3848, %v3845, %v3847
      %v3859 = vadd.f32 %v3815, %v3849
      %v3860 = vadd.f32 %v3816, %v3850
      %v3861 = vadd.f32 %v3817, %v3851
      %v3862 = vadd.f32 %v3818, %v3852
      %v3863 = vadd.f32 %v3819, %v3853
      %3864 = vset.pattern.permute.xlu0 81
      %3865 = vperm.xlu0 %3864, %v255
      %v3866 = vpop.permute.xlu0 %3865
      %v3868 = vmul.f32 %v3866, %v352
      %v3869 = vmul.f32 %v3866, %v356
      %v3870 = vmul.f32 %v3866, %v360
      %v3871 = vmul.f32 %v3866, %v364
      %v3872 = vmul.f32 %v3866, %v368
      %v3873 = vmul.f32 %v3866, %v562
      %3880 = vrot.lane.b32.xlu0 %v3868, 24
      %v3881 = vpop.permute.xlu0 %3880
      %3882 = vrot.lane.b32.xlu0 %v3869, 24
      %v3883 = vpop.permute.xlu0 %3882
      %3884 = vrot.lane.b32.xlu0 %v3870, 24
      %v3885 = vpop.permute.xlu0 %3884
      %3886 = vrot.lane.b32.xlu0 %v3871, 24
      %v3887 = vpop.permute.xlu0 %3886
      %3888 = vrot.lane.b32.xlu0 %v3872, 24
      %v3889 = vpop.permute.xlu0 %3888
      %3890 = vrot.lane.b32.xlu0 %v3873, 24
      %v3891 = vpop.permute.xlu0 %3890
      %v3892 = vsel %vm3848, %v3881, %v3883
      %v3893 = vsel %vm3848, %v3883, %v3885
      %v3894 = vsel %vm3848, %v3885, %v3887
      %v3895 = vsel %vm3848, %v3887, %v3889
      %v3896 = vsel %vm3848, %v3889, %v3891
      %v3902 = vadd.f32 %v3859, %v3892
      %v3903 = vadd.f32 %v3860, %v3893
      %v3904 = vadd.f32 %v3861, %v3894
      %v3905 = vadd.f32 %v3862, %v3895
      %v3906 = vadd.f32 %v3863, %v3896
      %3907 = vset.pattern.permute.xlu0 82
      %3908 = vperm.xlu0 %3907, %v255
      %v3909 = vpop.permute.xlu0 %3908
      %v3911 = vmul.f32 %v3909, %v411
      %v3912 = vmul.f32 %v3909, %v415
      %v3913 = vmul.f32 %v3909, %v419
      %v3914 = vmul.f32 %v3909, %v423
      %v3915 = vmul.f32 %v3909, %v427
      %v3916 = vmul.f32 %v3909, %v614
      %3923 = vrot.lane.b32.xlu0 %v3911, 24
      %v3924 = vpop.permute.xlu0 %3923
      %3925 = vrot.lane.b32.xlu0 %v3912, 24
      %v3926 = vpop.permute.xlu0 %3925
      %3927 = vrot.lane.b32.xlu0 %v3913, 24
      %v3928 = vpop.permute.xlu0 %3927
      %3929 = vrot.lane.b32.xlu0 %v3914, 24
      %v3930 = vpop.permute.xlu0 %3929
      %3931 = vrot.lane.b32.xlu0 %v3915, 24
      %v3932 = vpop.permute.xlu0 %3931
      %3933 = vrot.lane.b32.xlu0 %v3916, 24
      %v3934 = vpop.permute.xlu0 %3933
      %v3935 = vsel %vm3848, %v3924, %v3926
      %v3936 = vsel %vm3848, %v3926, %v3928
      %v3937 = vsel %vm3848, %v3928, %v3930
      %v3938 = vsel %vm3848, %v3930, %v3932
      %v3939 = vsel %vm3848, %v3932, %v3934
      %v3945 = vadd.f32 %v3902, %v3935
      %v3946 = vadd.f32 %v3903, %v3936
      %v3947 = vadd.f32 %v3904, %v3937
      %v3948 = vadd.f32 %v3905, %v3938
      %v3949 = vadd.f32 %v3906, %v3939
      %3950 = vset.pattern.permute.xlu0 83
      %3951 = vperm.xlu0 %3950, %v255
      %v3952 = vpop.permute.xlu0 %3951
      %v3954 = vmul.f32 %v3952, %v470
      %v3955 = vmul.f32 %v3952, %v474
      %v3956 = vmul.f32 %v3952, %v478
      %v3957 = vmul.f32 %v3952, %v482
      %v3958 = vmul.f32 %v3952, %v486
      %v3959 = vmul.f32 %v3952, %v666
      %3966 = vrot.lane.b32.xlu0 %v3954, 24
      %v3967 = vpop.permute.xlu0 %3966
      %3968 = vrot.lane.b32.xlu0 %v3955, 24
      %v3969 = vpop.permute.xlu0 %3968
      %3970 = vrot.lane.b32.xlu0 %v3956, 24
      %v3971 = vpop.permute.xlu0 %3970
      %3972 = vrot.lane.b32.xlu0 %v3957, 24
      %v3973 = vpop.permute.xlu0 %3972
      %3974 = vrot.lane.b32.xlu0 %v3958, 24
      %v3975 = vpop.permute.xlu0 %3974
      %3976 = vrot.lane.b32.xlu0 %v3959, 24
      %v3977 = vpop.permute.xlu0 %3976
      %v3978 = vsel %vm3848, %v3967, %v3969
      %v3979 = vsel %vm3848, %v3969, %v3971
      %v3980 = vsel %vm3848, %v3971, %v3973
      %v3981 = vsel %vm3848, %v3973, %v3975
      %v3982 = vsel %vm3848, %v3975, %v3977
      %v3988 = vadd.f32 %v3945, %v3978
      %v3989 = vadd.f32 %v3946, %v3979
      %v3990 = vadd.f32 %v3947, %v3980
      %v3991 = vadd.f32 %v3948, %v3981
      %v3992 = vadd.f32 %v3949, %v3982
      %3993 = vset.pattern.permute.xlu0 84
      %3994 = vperm.xlu0 %3993, %v255
      %v3995 = vpop.permute.xlu0 %3994
      %v3997 = vmul.f32 %v3995, %v293
      %v3998 = vmul.f32 %v3995, %v297
      %v3999 = vmul.f32 %v3995, %v301
      %v4000 = vmul.f32 %v3995, %v305
      %v4001 = vmul.f32 %v3995, %v309
      %v4002 = vmul.f32 %v3995, %v509
      %4009 = vrot.lane.b32.xlu0 %v3997, 23
      %v4010 = vpop.permute.xlu0 %4009
      %4011 = vrot.lane.b32.xlu0 %v3998, 23
      %v4012 = vpop.permute.xlu0 %4011
      %4013 = vrot.lane.b32.xlu0 %v3999, 23
      %v4014 = vpop.permute.xlu0 %4013
      %4015 = vrot.lane.b32.xlu0 %v4000, 23
      %v4016 = vpop.permute.xlu0 %4015
      %4017 = vrot.lane.b32.xlu0 %v4001, 23
      %v4018 = vpop.permute.xlu0 %4017
      %4019 = vrot.lane.b32.xlu0 %v4002, 23
      %v4020 = vpop.permute.xlu0 %4019
      %vm4021 = vcmask 187392
      %v4022 = vsel %vm4021, %v4010, %v4012
      %v4023 = vsel %vm4021, %v4012, %v4014
      %v4024 = vsel %vm4021, %v4014, %v4016
      %v4025 = vsel %vm4021, %v4016, %v4018
      %v4026 = vsel %vm4021, %v4018, %v4020
      %v4032 = vadd.f32 %v3988, %v4022
      %v4033 = vadd.f32 %v3989, %v4023
      %v4034 = vadd.f32 %v3990, %v4024
      %v4035 = vadd.f32 %v3991, %v4025
      %v4036 = vadd.f32 %v3992, %v4026
      %4037 = vset.pattern.permute.xlu0 85
      %4038 = vperm.xlu0 %4037, %v255
      %v4039 = vpop.permute.xlu0 %4038
      %v4041 = vmul.f32 %v4039, %v352
      %v4042 = vmul.f32 %v4039, %v356
      %v4043 = vmul.f32 %v4039, %v360
      %v4044 = vmul.f32 %v4039, %v364
      %v4045 = vmul.f32 %v4039, %v368
      %v4046 = vmul.f32 %v4039, %v562
      %4053 = vrot.lane.b32.xlu0 %v4041, 23
      %v4054 = vpop.permute.xlu0 %4053
      %4055 = vrot.lane.b32.xlu0 %v4042, 23
      %v4056 = vpop.permute.xlu0 %4055
      %4057 = vrot.lane.b32.xlu0 %v4043, 23
      %v4058 = vpop.permute.xlu0 %4057
      %4059 = vrot.lane.b32.xlu0 %v4044, 23
      %v4060 = vpop.permute.xlu0 %4059
      %4061 = vrot.lane.b32.xlu0 %v4045, 23
      %v4062 = vpop.permute.xlu0 %4061
      %4063 = vrot.lane.b32.xlu0 %v4046, 23
      %v4064 = vpop.permute.xlu0 %4063
      %v4065 = vsel %vm4021, %v4054, %v4056
      %v4066 = vsel %vm4021, %v4056, %v4058
      %v4067 = vsel %vm4021, %v4058, %v4060
      %v4068 = vsel %vm4021, %v4060, %v4062
      %v4069 = vsel %vm4021, %v4062, %v4064
      %v4075 = vadd.f32 %v4032, %v4065
      %v4076 = vadd.f32 %v4033, %v4066
      %v4077 = vadd.f32 %v4034, %v4067
      %v4078 = vadd.f32 %v4035, %v4068
      %v4079 = vadd.f32 %v4036, %v4069
      %4080 = vset.pattern.permute.xlu0 86
      %4081 = vperm.xlu0 %4080, %v255
      %v4082 = vpop.permute.xlu0 %4081
      %v4084 = vmul.f32 %v4082, %v411
      %v4085 = vmul.f32 %v4082, %v415
      %v4086 = vmul.f32 %v4082, %v419
      %v4087 = vmul.f32 %v4082, %v423
      %v4088 = vmul.f32 %v4082, %v427
      %v4089 = vmul.f32 %v4082, %v614
      %4096 = vrot.lane.b32.xlu0 %v4084, 23
      %v4097 = vpop.permute.xlu0 %4096
      %4098 = vrot.lane.b32.xlu0 %v4085, 23
      %v4099 = vpop.permute.xlu0 %4098
      %4100 = vrot.lane.b32.xlu0 %v4086, 23
      %v4101 = vpop.permute.xlu0 %4100
      %4102 = vrot.lane.b32.xlu0 %v4087, 23
      %v4103 = vpop.permute.xlu0 %4102
      %4104 = vrot.lane.b32.xlu0 %v4088, 23
      %v4105 = vpop.permute.xlu0 %4104
      %4106 = vrot.lane.b32.xlu0 %v4089, 23
      %v4107 = vpop.permute.xlu0 %4106
      %v4108 = vsel %vm4021, %v4097, %v4099
      %v4109 = vsel %vm4021, %v4099, %v4101
      %v4110 = vsel %vm4021, %v4101, %v4103
      %v4111 = vsel %vm4021, %v4103, %v4105
      %v4112 = vsel %vm4021, %v4105, %v4107
      %v4118 = vadd.f32 %v4075, %v4108
      %v4119 = vadd.f32 %v4076, %v4109
      %v4120 = vadd.f32 %v4077, %v4110
      %v4121 = vadd.f32 %v4078, %v4111
      %v4122 = vadd.f32 %v4079, %v4112
      %4123 = vset.pattern.permute.xlu0 87
      %4124 = vperm.xlu0 %4123, %v255
      %v4125 = vpop.permute.xlu0 %4124
      %v4127 = vmul.f32 %v4125, %v470
      %v4128 = vmul.f32 %v4125, %v474
      %v4129 = vmul.f32 %v4125, %v478
      %v4130 = vmul.f32 %v4125, %v482
      %v4131 = vmul.f32 %v4125, %v486
      %v4132 = vmul.f32 %v4125, %v666
      %4139 = vrot.lane.b32.xlu0 %v4127, 23
      %v4140 = vpop.permute.xlu0 %4139
      %4141 = vrot.lane.b32.xlu0 %v4128, 23
      %v4142 = vpop.permute.xlu0 %4141
      %4143 = vrot.lane.b32.xlu0 %v4129, 23
      %v4144 = vpop.permute.xlu0 %4143
      %4145 = vrot.lane.b32.xlu0 %v4130, 23
      %v4146 = vpop.permute.xlu0 %4145
      %4147 = vrot.lane.b32.xlu0 %v4131, 23
      %v4148 = vpop.permute.xlu0 %4147
      %4149 = vrot.lane.b32.xlu0 %v4132, 23
      %v4150 = vpop.permute.xlu0 %4149
      %v4151 = vsel %vm4021, %v4140, %v4142
      %v4152 = vsel %vm4021, %v4142, %v4144
      %v4153 = vsel %vm4021, %v4144, %v4146
      %v4154 = vsel %vm4021, %v4146, %v4148
      %v4155 = vsel %vm4021, %v4148, %v4150
      %v4161 = vadd.f32 %v4118, %v4151
      %v4162 = vadd.f32 %v4119, %v4152
      %v4163 = vadd.f32 %v4120, %v4153
      %v4164 = vadd.f32 %v4121, %v4154
      %v4165 = vadd.f32 %v4122, %v4155
      %4166 = vset.pattern.permute.xlu0 88
      %4167 = vperm.xlu0 %4166, %v255
      %v4168 = vpop.permute.xlu0 %4167
      %v4170 = vmul.f32 %v4168, %v293
      %v4171 = vmul.f32 %v4168, %v297
      %v4172 = vmul.f32 %v4168, %v301
      %v4173 = vmul.f32 %v4168, %v305
      %v4174 = vmul.f32 %v4168, %v309
      %v4175 = vmul.f32 %v4168, %v509
      %4182 = vrot.lane.b32.xlu0 %v4170, 22
      %v4183 = vpop.permute.xlu0 %4182
      %4184 = vrot.lane.b32.xlu0 %v4171, 22
      %v4185 = vpop.permute.xlu0 %4184
      %4186 = vrot.lane.b32.xlu0 %v4172, 22
      %v4187 = vpop.permute.xlu0 %4186
      %4188 = vrot.lane.b32.xlu0 %v4173, 22
      %v4189 = vpop.permute.xlu0 %4188
      %4190 = vrot.lane.b32.xlu0 %v4174, 22
      %v4191 = vpop.permute.xlu0 %4190
      %4192 = vrot.lane.b32.xlu0 %v4175, 22
      %v4193 = vpop.permute.xlu0 %4192
      %vm4194 = vcmask 179200
      %v4195 = vsel %vm4194, %v4183, %v4185
      %v4196 = vsel %vm4194, %v4185, %v4187
      %v4197 = vsel %vm4194, %v4187, %v4189
      %v4198 = vsel %vm4194, %v4189, %v4191
      %v4199 = vsel %vm4194, %v4191, %v4193
      %v4205 = vadd.f32 %v4161, %v4195
      %v4206 = vadd.f32 %v4162, %v4196
      %v4207 = vadd.f32 %v4163, %v4197
      %v4208 = vadd.f32 %v4164, %v4198
      %v4209 = vadd.f32 %v4165, %v4199
      %4210 = vset.pattern.permute.xlu0 89
      %4211 = vperm.xlu0 %4210, %v255
      %v4212 = vpop.permute.xlu0 %4211
      %v4214 = vmul.f32 %v4212, %v352
      %v4215 = vmul.f32 %v4212, %v356
      %v4216 = vmul.f32 %v4212, %v360
      %v4217 = vmul.f32 %v4212, %v364
      %v4218 = vmul.f32 %v4212, %v368
      %v4219 = vmul.f32 %v4212, %v562
      %4226 = vrot.lane.b32.xlu0 %v4214, 22
      %v4227 = vpop.permute.xlu0 %4226
      %4228 = vrot.lane.b32.xlu0 %v4215, 22
      %v4229 = vpop.permute.xlu0 %4228
      %4230 = vrot.lane.b32.xlu0 %v4216, 22
      %v4231 = vpop.permute.xlu0 %4230
      %4232 = vrot.lane.b32.xlu0 %v4217, 22
      %v4233 = vpop.permute.xlu0 %4232
      %4234 = vrot.lane.b32.xlu0 %v4218, 22
      %v4235 = vpop.permute.xlu0 %4234
      %4236 = vrot.lane.b32.xlu0 %v4219, 22
      %v4237 = vpop.permute.xlu0 %4236
      %v4238 = vsel %vm4194, %v4227, %v4229
      %v4239 = vsel %vm4194, %v4229, %v4231
      %v4240 = vsel %vm4194, %v4231, %v4233
      %v4241 = vsel %vm4194, %v4233, %v4235
      %v4242 = vsel %vm4194, %v4235, %v4237
      %v4248 = vadd.f32 %v4205, %v4238
      %v4249 = vadd.f32 %v4206, %v4239
      %v4250 = vadd.f32 %v4207, %v4240
      %v4251 = vadd.f32 %v4208, %v4241
      %v4252 = vadd.f32 %v4209, %v4242
      %4253 = vset.pattern.permute.xlu0 90
      %4254 = vperm.xlu0 %4253, %v255
      %v4255 = vpop.permute.xlu0 %4254
      %v4257 = vmul.f32 %v4255, %v411
      %v4258 = vmul.f32 %v4255, %v415
      %v4259 = vmul.f32 %v4255, %v419
      %v4260 = vmul.f32 %v4255, %v423
      %v4261 = vmul.f32 %v4255, %v427
      %v4262 = vmul.f32 %v4255, %v614
      %4269 = vrot.lane.b32.xlu0 %v4257, 22
      %v4270 = vpop.permute.xlu0 %4269
      %4271 = vrot.lane.b32.xlu0 %v4258, 22
      %v4272 = vpop.permute.xlu0 %4271
      %4273 = vrot.lane.b32.xlu0 %v4259, 22
      %v4274 = vpop.permute.xlu0 %4273
      %4275 = vrot.lane.b32.xlu0 %v4260, 22
      %v4276 = vpop.permute.xlu0 %4275
      %4277 = vrot.lane.b32.xlu0 %v4261, 22
      %v4278 = vpop.permute.xlu0 %4277
      %4279 = vrot.lane.b32.xlu0 %v4262, 22
      %v4280 = vpop.permute.xlu0 %4279
      %v4281 = vsel %vm4194, %v4270, %v4272
      %v4282 = vsel %vm4194, %v4272, %v4274
      %v4283 = vsel %vm4194, %v4274, %v4276
      %v4284 = vsel %vm4194, %v4276, %v4278
      %v4285 = vsel %vm4194, %v4278, %v4280
      %v4291 = vadd.f32 %v4248, %v4281
      %v4292 = vadd.f32 %v4249, %v4282
      %v4293 = vadd.f32 %v4250, %v4283
      %v4294 = vadd.f32 %v4251, %v4284
      %v4295 = vadd.f32 %v4252, %v4285
      %4296 = vset.pattern.permute.xlu0 91
      %4297 = vperm.xlu0 %4296, %v255
      %v4298 = vpop.permute.xlu0 %4297
      %v4300 = vmul.f32 %v4298, %v470
      %v4301 = vmul.f32 %v4298, %v474
      %v4302 = vmul.f32 %v4298, %v478
      %v4303 = vmul.f32 %v4298, %v482
      %v4304 = vmul.f32 %v4298, %v486
      %v4305 = vmul.f32 %v4298, %v666
      %4312 = vrot.lane.b32.xlu0 %v4300, 22
      %v4313 = vpop.permute.xlu0 %4312
      %4314 = vrot.lane.b32.xlu0 %v4301, 22
      %v4315 = vpop.permute.xlu0 %4314
      %4316 = vrot.lane.b32.xlu0 %v4302, 22
      %v4317 = vpop.permute.xlu0 %4316
      %4318 = vrot.lane.b32.xlu0 %v4303, 22
      %v4319 = vpop.permute.xlu0 %4318
      %4320 = vrot.lane.b32.xlu0 %v4304, 22
      %v4321 = vpop.permute.xlu0 %4320
      %4322 = vrot.lane.b32.xlu0 %v4305, 22
      %v4323 = vpop.permute.xlu0 %4322
      %v4324 = vsel %vm4194, %v4313, %v4315
      %v4325 = vsel %vm4194, %v4315, %v4317
      %v4326 = vsel %vm4194, %v4317, %v4319
      %v4327 = vsel %vm4194, %v4319, %v4321
      %v4328 = vsel %vm4194, %v4321, %v4323
      %v4334 = vadd.f32 %v4291, %v4324
      %v4335 = vadd.f32 %v4292, %v4325
      %v4336 = vadd.f32 %v4293, %v4326
      %v4337 = vadd.f32 %v4294, %v4327
      %v4338 = vadd.f32 %v4295, %v4328
      %4339 = vset.pattern.permute.xlu0 92
      %4340 = vperm.xlu0 %4339, %v255
      %v4341 = vpop.permute.xlu0 %4340
      %v4343 = vmul.f32 %v4341, %v293
      %v4344 = vmul.f32 %v4341, %v297
      %v4345 = vmul.f32 %v4341, %v301
      %v4346 = vmul.f32 %v4341, %v305
      %v4347 = vmul.f32 %v4341, %v309
      %v4348 = vmul.f32 %v4341, %v509
      %4355 = vrot.lane.b32.xlu0 %v4343, 21
      %v4356 = vpop.permute.xlu0 %4355
      %4357 = vrot.lane.b32.xlu0 %v4344, 21
      %v4358 = vpop.permute.xlu0 %4357
      %4359 = vrot.lane.b32.xlu0 %v4345, 21
      %v4360 = vpop.permute.xlu0 %4359
      %4361 = vrot.lane.b32.xlu0 %v4346, 21
      %v4362 = vpop.permute.xlu0 %4361
      %4363 = vrot.lane.b32.xlu0 %v4347, 21
      %v4364 = vpop.permute.xlu0 %4363
      %4365 = vrot.lane.b32.xlu0 %v4348, 21
      %v4366 = vpop.permute.xlu0 %4365
      %vm4367 = vcmask 171008
      %v4368 = vsel %vm4367, %v4356, %v4358
      %v4369 = vsel %vm4367, %v4358, %v4360
      %v4370 = vsel %vm4367, %v4360, %v4362
      %v4371 = vsel %vm4367, %v4362, %v4364
      %v4372 = vsel %vm4367, %v4364, %v4366
      %v4378 = vadd.f32 %v4334, %v4368
      %v4379 = vadd.f32 %v4335, %v4369
      %v4380 = vadd.f32 %v4336, %v4370
      %v4381 = vadd.f32 %v4337, %v4371
      %v4382 = vadd.f32 %v4338, %v4372
      %4383 = vset.pattern.permute.xlu0 93
      %4384 = vperm.xlu0 %4383, %v255
      %v4385 = vpop.permute.xlu0 %4384
      %v4387 = vmul.f32 %v4385, %v352
      %v4388 = vmul.f32 %v4385, %v356
      %v4389 = vmul.f32 %v4385, %v360
      %v4390 = vmul.f32 %v4385, %v364
      %v4391 = vmul.f32 %v4385, %v368
      %v4392 = vmul.f32 %v4385, %v562
      %4399 = vrot.lane.b32.xlu0 %v4387, 21
      %v4400 = vpop.permute.xlu0 %4399
      %4401 = vrot.lane.b32.xlu0 %v4388, 21
      %v4402 = vpop.permute.xlu0 %4401
      %4403 = vrot.lane.b32.xlu0 %v4389, 21
      %v4404 = vpop.permute.xlu0 %4403
      %4405 = vrot.lane.b32.xlu0 %v4390, 21
      %v4406 = vpop.permute.xlu0 %4405
      %4407 = vrot.lane.b32.xlu0 %v4391, 21
      %v4408 = vpop.permute.xlu0 %4407
      %4409 = vrot.lane.b32.xlu0 %v4392, 21
      %v4410 = vpop.permute.xlu0 %4409
      %v4411 = vsel %vm4367, %v4400, %v4402
      %v4412 = vsel %vm4367, %v4402, %v4404
      %v4413 = vsel %vm4367, %v4404, %v4406
      %v4414 = vsel %vm4367, %v4406, %v4408
      %v4415 = vsel %vm4367, %v4408, %v4410
      %v4421 = vadd.f32 %v4378, %v4411
      %v4422 = vadd.f32 %v4379, %v4412
      %v4423 = vadd.f32 %v4380, %v4413
      %v4424 = vadd.f32 %v4381, %v4414
      %v4425 = vadd.f32 %v4382, %v4415
      %4426 = vset.pattern.permute.xlu0 94
      %4427 = vperm.xlu0 %4426, %v255
      %v4428 = vpop.permute.xlu0 %4427
      %v4430 = vmul.f32 %v4428, %v411
      %v4431 = vmul.f32 %v4428, %v415
      %v4432 = vmul.f32 %v4428, %v419
      %v4433 = vmul.f32 %v4428, %v423
      %v4434 = vmul.f32 %v4428, %v427
      %v4435 = vmul.f32 %v4428, %v614
      %4442 = vrot.lane.b32.xlu0 %v4430, 21
      %v4443 = vpop.permute.xlu0 %4442
      %4444 = vrot.lane.b32.xlu0 %v4431, 21
      %v4445 = vpop.permute.xlu0 %4444
      %4446 = vrot.lane.b32.xlu0 %v4432, 21
      %v4447 = vpop.permute.xlu0 %4446
      %4448 = vrot.lane.b32.xlu0 %v4433, 21
      %v4449 = vpop.permute.xlu0 %4448
      %4450 = vrot.lane.b32.xlu0 %v4434, 21
      %v4451 = vpop.permute.xlu0 %4450
      %4452 = vrot.lane.b32.xlu0 %v4435, 21
      %v4453 = vpop.permute.xlu0 %4452
      %v4454 = vsel %vm4367, %v4443, %v4445
      %v4455 = vsel %vm4367, %v4445, %v4447
      %v4456 = vsel %vm4367, %v4447, %v4449
      %v4457 = vsel %vm4367, %v4449, %v4451
      %v4458 = vsel %vm4367, %v4451, %v4453
      %v4464 = vadd.f32 %v4421, %v4454
      %v4465 = vadd.f32 %v4422, %v4455
      %v4466 = vadd.f32 %v4423, %v4456
      %v4467 = vadd.f32 %v4424, %v4457
      %v4468 = vadd.f32 %v4425, %v4458
      %4469 = vset.pattern.permute.xlu0 95
      %4470 = vperm.xlu0 %4469, %v255
      %v4471 = vpop.permute.xlu0 %4470
      %v4473 = vmul.f32 %v4471, %v470
      %v4474 = vmul.f32 %v4471, %v474
      %v4475 = vmul.f32 %v4471, %v478
      %v4476 = vmul.f32 %v4471, %v482
      %v4477 = vmul.f32 %v4471, %v486
      %v4478 = vmul.f32 %v4471, %v666
      %4485 = vrot.lane.b32.xlu0 %v4473, 21
      %v4486 = vpop.permute.xlu0 %4485
      %4487 = vrot.lane.b32.xlu0 %v4474, 21
      %v4488 = vpop.permute.xlu0 %4487
      %4489 = vrot.lane.b32.xlu0 %v4475, 21
      %v4490 = vpop.permute.xlu0 %4489
      %4491 = vrot.lane.b32.xlu0 %v4476, 21
      %v4492 = vpop.permute.xlu0 %4491
      %4493 = vrot.lane.b32.xlu0 %v4477, 21
      %v4494 = vpop.permute.xlu0 %4493
      %4495 = vrot.lane.b32.xlu0 %v4478, 21
      %v4496 = vpop.permute.xlu0 %4495
      %v4497 = vsel %vm4367, %v4486, %v4488
      %v4498 = vsel %vm4367, %v4488, %v4490
      %v4499 = vsel %vm4367, %v4490, %v4492
      %v4500 = vsel %vm4367, %v4492, %v4494
      %v4501 = vsel %vm4367, %v4494, %v4496
      %v4507 = vadd.f32 %v4464, %v4497
      %v4508 = vadd.f32 %v4465, %v4498
      %v4509 = vadd.f32 %v4466, %v4499
      %v4510 = vadd.f32 %v4467, %v4500
      %v4511 = vadd.f32 %v4468, %v4501
      %4512 = vset.pattern.permute.xlu0 96
      %4513 = vperm.xlu0 %4512, %v255
      %v4514 = vpop.permute.xlu0 %4513
      %v4516 = vmul.f32 %v4514, %v293
      %v4517 = vmul.f32 %v4514, %v297
      %v4518 = vmul.f32 %v4514, %v301
      %v4519 = vmul.f32 %v4514, %v305
      %v4520 = vmul.f32 %v4514, %v309
      %v4521 = vmul.f32 %v4514, %v509
      %4528 = vrot.lane.b32.xlu0 %v4516, 20
      %v4529 = vpop.permute.xlu0 %4528
      %4530 = vrot.lane.b32.xlu0 %v4517, 20
      %v4531 = vpop.permute.xlu0 %4530
      %4532 = vrot.lane.b32.xlu0 %v4518, 20
      %v4533 = vpop.permute.xlu0 %4532
      %4534 = vrot.lane.b32.xlu0 %v4519, 20
      %v4535 = vpop.permute.xlu0 %4534
      %4536 = vrot.lane.b32.xlu0 %v4520, 20
      %v4537 = vpop.permute.xlu0 %4536
      %4538 = vrot.lane.b32.xlu0 %v4521, 20
      %v4539 = vpop.permute.xlu0 %4538
      %vm4540 = vcmask 162816
      %v4541 = vsel %vm4540, %v4529, %v4531
      %v4542 = vsel %vm4540, %v4531, %v4533
      %v4543 = vsel %vm4540, %v4533, %v4535
      %v4544 = vsel %vm4540, %v4535, %v4537
      %v4545 = vsel %vm4540, %v4537, %v4539
      %v4551 = vadd.f32 %v4507, %v4541
      %v4552 = vadd.f32 %v4508, %v4542
      %v4553 = vadd.f32 %v4509, %v4543
      %v4554 = vadd.f32 %v4510, %v4544
      %v4555 = vadd.f32 %v4511, %v4545
      %4556 = vset.pattern.permute.xlu0 97
      %4557 = vperm.xlu0 %4556, %v255
      %v4558 = vpop.permute.xlu0 %4557
      %v4560 = vmul.f32 %v4558, %v352
      %v4561 = vmul.f32 %v4558, %v356
      %v4562 = vmul.f32 %v4558, %v360
      %v4563 = vmul.f32 %v4558, %v364
      %v4564 = vmul.f32 %v4558, %v368
      %v4565 = vmul.f32 %v4558, %v562
      %4572 = vrot.lane.b32.xlu0 %v4560, 20
      %v4573 = vpop.permute.xlu0 %4572
      %4574 = vrot.lane.b32.xlu0 %v4561, 20
      %v4575 = vpop.permute.xlu0 %4574
      %4576 = vrot.lane.b32.xlu0 %v4562, 20
      %v4577 = vpop.permute.xlu0 %4576
      %4578 = vrot.lane.b32.xlu0 %v4563, 20
      %v4579 = vpop.permute.xlu0 %4578
      %4580 = vrot.lane.b32.xlu0 %v4564, 20
      %v4581 = vpop.permute.xlu0 %4580
      %4582 = vrot.lane.b32.xlu0 %v4565, 20
      %v4583 = vpop.permute.xlu0 %4582
      %v4584 = vsel %vm4540, %v4573, %v4575
      %v4585 = vsel %vm4540, %v4575, %v4577
      %v4586 = vsel %vm4540, %v4577, %v4579
      %v4587 = vsel %vm4540, %v4579, %v4581
      %v4588 = vsel %vm4540, %v4581, %v4583
      %v4594 = vadd.f32 %v4551, %v4584
      %v4595 = vadd.f32 %v4552, %v4585
      %v4596 = vadd.f32 %v4553, %v4586
      %v4597 = vadd.f32 %v4554, %v4587
      %v4598 = vadd.f32 %v4555, %v4588
      %4599 = vset.pattern.permute.xlu0 98
      %4600 = vperm.xlu0 %4599, %v255
      %v4601 = vpop.permute.xlu0 %4600
      %v4603 = vmul.f32 %v4601, %v411
      %v4604 = vmul.f32 %v4601, %v415
      %v4605 = vmul.f32 %v4601, %v419
      %v4606 = vmul.f32 %v4601, %v423
      %v4607 = vmul.f32 %v4601, %v427
      %v4608 = vmul.f32 %v4601, %v614
      %4615 = vrot.lane.b32.xlu0 %v4603, 20
      %v4616 = vpop.permute.xlu0 %4615
      %4617 = vrot.lane.b32.xlu0 %v4604, 20
      %v4618 = vpop.permute.xlu0 %4617
      %4619 = vrot.lane.b32.xlu0 %v4605, 20
      %v4620 = vpop.permute.xlu0 %4619
      %4621 = vrot.lane.b32.xlu0 %v4606, 20
      %v4622 = vpop.permute.xlu0 %4621
      %4623 = vrot.lane.b32.xlu0 %v4607, 20
      %v4624 = vpop.permute.xlu0 %4623
      %4625 = vrot.lane.b32.xlu0 %v4608, 20
      %v4626 = vpop.permute.xlu0 %4625
      %v4627 = vsel %vm4540, %v4616, %v4618
      %v4628 = vsel %vm4540, %v4618, %v4620
      %v4629 = vsel %vm4540, %v4620, %v4622
      %v4630 = vsel %vm4540, %v4622, %v4624
      %v4631 = vsel %vm4540, %v4624, %v4626
      %v4637 = vadd.f32 %v4594, %v4627
      %v4638 = vadd.f32 %v4595, %v4628
      %v4639 = vadd.f32 %v4596, %v4629
      %v4640 = vadd.f32 %v4597, %v4630
      %v4641 = vadd.f32 %v4598, %v4631
      %4642 = vset.pattern.permute.xlu0 99
      %4643 = vperm.xlu0 %4642, %v255
      %v4644 = vpop.permute.xlu0 %4643
      %v4646 = vmul.f32 %v4644, %v470
      %v4647 = vmul.f32 %v4644, %v474
      %v4648 = vmul.f32 %v4644, %v478
      %v4649 = vmul.f32 %v4644, %v482
      %v4650 = vmul.f32 %v4644, %v486
      %v4651 = vmul.f32 %v4644, %v666
      %4658 = vrot.lane.b32.xlu0 %v4646, 20
      %v4659 = vpop.permute.xlu0 %4658
      %4660 = vrot.lane.b32.xlu0 %v4647, 20
      %v4661 = vpop.permute.xlu0 %4660
      %4662 = vrot.lane.b32.xlu0 %v4648, 20
      %v4663 = vpop.permute.xlu0 %4662
      %4664 = vrot.lane.b32.xlu0 %v4649, 20
      %v4665 = vpop.permute.xlu0 %4664
      %4666 = vrot.lane.b32.xlu0 %v4650, 20
      %v4667 = vpop.permute.xlu0 %4666
      %4668 = vrot.lane.b32.xlu0 %v4651, 20
      %v4669 = vpop.permute.xlu0 %4668
      %v4670 = vsel %vm4540, %v4659, %v4661
      %v4671 = vsel %vm4540, %v4661, %v4663
      %v4672 = vsel %vm4540, %v4663, %v4665
      %v4673 = vsel %vm4540, %v4665, %v4667
      %v4674 = vsel %vm4540, %v4667, %v4669
      %v4680 = vadd.f32 %v4637, %v4670
      %v4681 = vadd.f32 %v4638, %v4671
      %v4682 = vadd.f32 %v4639, %v4672
      %v4683 = vadd.f32 %v4640, %v4673
      %v4684 = vadd.f32 %v4641, %v4674
      %v4685 = vld [vmem:[%s2] sm:$0xf]
      %4687 = vset.pattern.permute.xlu0 0
      %4688 = vperm.xlu0 %4687, %v4685
      %v4689 = vpop.permute.xlu0 %4688
      %v4691 = vadd.f32 %v4680, %v4689
      %v4692 = vadd.f32 %v4681, %v4689
      %v4693 = vadd.f32 %v4682, %v4689
      %v4694 = vadd.f32 %v4683, %v4689
      %v4695 = vadd.f32 %v4684, %v4689
      %v4696 = vmax.f32 %v4691, 0.0
      %v4697 = vmax.f32 %v4692, 0.0
      %v4698 = vmax.f32 %v4693, 0.0
      %v4699 = vmax.f32 %v4694, 0.0
      %v4700 = vmax.f32 %v4695, 0.0
      %v4701 = vld [vmem:[%s5] sm:$0x1f]
      %v4703 = vlaneseq
      %v4704 = vshrl.u32 %v4703, 7
      %v4705 = vsub.s32 0, %v4704
      %v4706 = vrot.slane %v4701, %v4705
      %v4707 = vlaneseq
      %v4708 = vshrl.u32 %v4707, 7
      %v4709 = vsub.s32 1, %v4708
      %v4710 = vrot.slane %v4701, %v4709
      %v4711 = vlaneseq
      %v4712 = vshrl.u32 %v4711, 7
      %v4713 = vsub.s32 2, %v4712
      %v4714 = vrot.slane %v4701, %v4713
      %v4715 = vlaneseq
      %v4716 = vshrl.u32 %v4715, 7
      %v4717 = vsub.s32 3, %v4716
      %v4718 = vrot.slane %v4701, %v4717
      %v4719 = vlaneseq
      %v4720 = vshrl.u32 %v4719, 7
      %v4721 = vsub.s32 4, %v4720
      %v4722 = vrot.slane %v4701, %v4721
      %v4728 = vmul.f32 %v4696, %v4706
      %v4729 = vmul.f32 %v4697, %v4710
      %v4730 = vmul.f32 %v4698, %v4714
      %v4731 = vmul.f32 %v4699, %v4718
      %v4732 = vmul.f32 %v4700, %v4722
      %4734 = vset.pattern.permute.xlu0 0
      %4735 = vperm.xlu0 %4734, %v256
      %v4736 = vpop.permute.xlu0 %4735
      %v4739 = vunpack.c.l.s4 839922192
      %v4740 = vunpack.c.0.s8 %v4739
      %v4741 = vlaneseq
      %v4742 = vshrl.u32 %v4741, 7
      %v4743 = vsub.s32 %v4740, %v4742
      %v4744 = vrot.slane %v4736, %v4743
      %v4745 = vlaneseq
      %v4746 = vshrl.u32 %v4745, 7
      %v4747 = vsub.s32 0, %v4746
      %v4748 = vrot.slane %v4728, %v4747
      %v4749 = vlaneseq
      %v4750 = vshrl.u32 %v4749, 7
      %v4751 = vsub.s32 0, %v4750
      %v4752 = vrot.slane %v4729, %v4751
      %v4753 = vlaneseq
      %v4754 = vshrl.u32 %v4753, 7
      %v4755 = vsub.s32 0, %v4754
      %v4756 = vrot.slane %v4730, %v4755
      %v4757 = vlaneseq
      %v4758 = vshrl.u32 %v4757, 7
      %v4759 = vsub.s32 0, %v4758
      %v4760 = vrot.slane %v4731, %v4759
      %v4765 = vcombine.low %v4748, %v4752
      %v4766 = vcombine.low %v4756, %v4760
      %v4769 = vmul.f32 %v4744, %v4765
      %v4770 = vmul.f32 %v4744, %v4766
      %v4771 = vadd.f32 %v4769, 0.0
      %v4772 = vadd.f32 %v4770, 0.0
      %4773 = vset.pattern.permute.xlu0 1
      %4774 = vperm.xlu0 %4773, %v256
      %v4775 = vpop.permute.xlu0 %4774
      %v4778 = vunpack.c.l.s4 839922192
      %v4779 = vunpack.c.0.s8 %v4778
      %v4780 = vlaneseq
      %v4781 = vshrl.u32 %v4780, 7
      %v4782 = vsub.s32 %v4779, %v4781
      %v4783 = vrot.slane %v4775, %v4782
      %v4784 = vlaneseq
      %v4785 = vshrl.u32 %v4784, 7
      %v4786 = vsub.s32 1, %v4785
      %v4787 = vrot.slane %v4728, %v4786
      %v4788 = vlaneseq
      %v4789 = vshrl.u32 %v4788, 7
      %v4790 = vsub.s32 1, %v4789
      %v4791 = vrot.slane %v4729, %v4790
      %v4792 = vlaneseq
      %v4793 = vshrl.u32 %v4792, 7
      %v4794 = vsub.s32 1, %v4793
      %v4795 = vrot.slane %v4730, %v4794
      %v4796 = vlaneseq
      %v4797 = vshrl.u32 %v4796, 7
      %v4798 = vsub.s32 1, %v4797
      %v4799 = vrot.slane %v4731, %v4798
      %v4804 = vcombine.low %v4787, %v4791
      %v4805 = vcombine.low %v4795, %v4799
      %v4808 = vmul.f32 %v4783, %v4804
      %v4809 = vmul.f32 %v4783, %v4805
      %v4810 = vadd.f32 %v4771, %v4808
      %v4811 = vadd.f32 %v4772, %v4809
      %4812 = vset.pattern.permute.xlu0 2
      %4813 = vperm.xlu0 %4812, %v256
      %v4814 = vpop.permute.xlu0 %4813
      %v4817 = vunpack.c.l.s4 839922192
      %v4818 = vunpack.c.0.s8 %v4817
      %v4819 = vlaneseq
      %v4820 = vshrl.u32 %v4819, 7
      %v4821 = vsub.s32 %v4818, %v4820
      %v4822 = vrot.slane %v4814, %v4821
      %v4823 = vlaneseq
      %v4824 = vshrl.u32 %v4823, 7
      %v4825 = vsub.s32 2, %v4824
      %v4826 = vrot.slane %v4728, %v4825
      %v4827 = vlaneseq
      %v4828 = vshrl.u32 %v4827, 7
      %v4829 = vsub.s32 2, %v4828
      %v4830 = vrot.slane %v4729, %v4829
      %v4831 = vlaneseq
      %v4832 = vshrl.u32 %v4831, 7
      %v4833 = vsub.s32 2, %v4832
      %v4834 = vrot.slane %v4730, %v4833
      %v4835 = vlaneseq
      %v4836 = vshrl.u32 %v4835, 7
      %v4837 = vsub.s32 2, %v4836
      %v4838 = vrot.slane %v4731, %v4837
      %v4843 = vcombine.low %v4826, %v4830
      %v4844 = vcombine.low %v4834, %v4838
      %v4847 = vmul.f32 %v4822, %v4843
      %v4848 = vmul.f32 %v4822, %v4844
      %v4849 = vadd.f32 %v4810, %v4847
      %v4850 = vadd.f32 %v4811, %v4848
      %4851 = vset.pattern.permute.xlu0 3
      %4852 = vperm.xlu0 %4851, %v256
      %v4853 = vpop.permute.xlu0 %4852
      %v4856 = vunpack.c.l.s4 839922192
      %v4857 = vunpack.c.0.s8 %v4856
      %v4858 = vlaneseq
      %v4859 = vshrl.u32 %v4858, 7
      %v4860 = vsub.s32 %v4857, %v4859
      %v4861 = vrot.slane %v4853, %v4860
      %v4862 = vlaneseq
      %v4863 = vshrl.u32 %v4862, 7
      %v4864 = vsub.s32 3, %v4863
      %v4865 = vrot.slane %v4728, %v4864
      %v4866 = vlaneseq
      %v4867 = vshrl.u32 %v4866, 7
      %v4868 = vsub.s32 3, %v4867
      %v4869 = vrot.slane %v4729, %v4868
      %v4870 = vlaneseq
      %v4871 = vshrl.u32 %v4870, 7
      %v4872 = vsub.s32 3, %v4871
      %v4873 = vrot.slane %v4730, %v4872
      %v4874 = vlaneseq
      %v4875 = vshrl.u32 %v4874, 7
      %v4876 = vsub.s32 3, %v4875
      %v4877 = vrot.slane %v4731, %v4876
      %v4882 = vcombine.low %v4865, %v4869
      %v4883 = vcombine.low %v4873, %v4877
      %v4886 = vmul.f32 %v4861, %v4882
      %v4887 = vmul.f32 %v4861, %v4883
      %v4888 = vadd.f32 %v4849, %v4886
      %v4889 = vadd.f32 %v4850, %v4887
      %4890 = vset.pattern.permute.xlu0 4
      %4891 = vperm.xlu0 %4890, %v256
      %v4892 = vpop.permute.xlu0 %4891
      %v4895 = vunpack.c.l.s4 839922192
      %v4896 = vunpack.c.0.s8 %v4895
      %v4897 = vlaneseq
      %v4898 = vshrl.u32 %v4897, 7
      %v4899 = vsub.s32 %v4896, %v4898
      %v4900 = vrot.slane %v4892, %v4899
      %4901 = vrot.lane.b32.xlu0 %v4765, 127
      %v4902 = vpop.permute.xlu0 %4901
      %4903 = vrot.lane.b32.xlu0 %v4766, 127
      %v4904 = vpop.permute.xlu0 %4903
      %v4905 = vrot.slane %v4902, 4
      %v4906 = vrot.slane %v4904, 4
      %vm4907 = vcmask 1043456
      %v4908 = vsel %vm4907, %v4905, %v4906
      %v4909 = vsel %vm534, %v4902, %v4908
      %v4910 = vsel %vm534, %v4904, %v4906
      %v4913 = vmul.f32 %v4900, %v4909
      %v4914 = vmul.f32 %v4900, %v4910
      %v4915 = vadd.f32 %v4888, %v4913
      %v4916 = vadd.f32 %v4889, %v4914
      %4917 = vset.pattern.permute.xlu0 5
      %4918 = vperm.xlu0 %4917, %v256
      %v4919 = vpop.permute.xlu0 %4918
      %v4922 = vunpack.c.l.s4 839922192
      %v4923 = vunpack.c.0.s8 %v4922
      %v4924 = vlaneseq
      %v4925 = vshrl.u32 %v4924, 7
      %v4926 = vsub.s32 %v4923, %v4925
      %v4927 = vrot.slane %v4919, %v4926
      %4928 = vrot.lane.b32.xlu0 %v4804, 127
      %v4929 = vpop.permute.xlu0 %4928
      %4930 = vrot.lane.b32.xlu0 %v4805, 127
      %v4931 = vpop.permute.xlu0 %4930
      %v4932 = vrot.slane %v4929, 4
      %v4933 = vrot.slane %v4931, 4
      %v4934 = vsel %vm4907, %v4932, %v4933
      %v4935 = vsel %vm534, %v4929, %v4934
      %v4936 = vsel %vm534, %v4931, %v4933
      %v4939 = vmul.f32 %v4927, %v4935
      %v4940 = vmul.f32 %v4927, %v4936
      %v4941 = vadd.f32 %v4915, %v4939
      %v4942 = vadd.f32 %v4916, %v4940
      %4943 = vset.pattern.permute.xlu0 6
      %4944 = vperm.xlu0 %4943, %v256
      %v4945 = vpop.permute.xlu0 %4944
      %v4948 = vunpack.c.l.s4 839922192
      %v4949 = vunpack.c.0.s8 %v4948
      %v4950 = vlaneseq
      %v4951 = vshrl.u32 %v4950, 7
      %v4952 = vsub.s32 %v4949, %v4951
      %v4953 = vrot.slane %v4945, %v4952
      %4954 = vrot.lane.b32.xlu0 %v4843, 127
      %v4955 = vpop.permute.xlu0 %4954
      %4956 = vrot.lane.b32.xlu0 %v4844, 127
      %v4957 = vpop.permute.xlu0 %4956
      %v4958 = vrot.slane %v4955, 4
      %v4959 = vrot.slane %v4957, 4
      %v4960 = vsel %vm4907, %v4958, %v4959
      %v4961 = vsel %vm534, %v4955, %v4960
      %v4962 = vsel %vm534, %v4957, %v4959
      %v4965 = vmul.f32 %v4953, %v4961
      %v4966 = vmul.f32 %v4953, %v4962
      %v4967 = vadd.f32 %v4941, %v4965
      %v4968 = vadd.f32 %v4942, %v4966
      %4969 = vset.pattern.permute.xlu0 7
      %4970 = vperm.xlu0 %4969, %v256
      %v4971 = vpop.permute.xlu0 %4970
      %v4974 = vunpack.c.l.s4 839922192
      %v4975 = vunpack.c.0.s8 %v4974
      %v4976 = vlaneseq
      %v4977 = vshrl.u32 %v4976, 7
      %v4978 = vsub.s32 %v4975, %v4977
      %v4979 = vrot.slane %v4971, %v4978
      %4980 = vrot.lane.b32.xlu0 %v4882, 127
      %v4981 = vpop.permute.xlu0 %4980
      %4982 = vrot.lane.b32.xlu0 %v4883, 127
      %v4983 = vpop.permute.xlu0 %4982
      %v4984 = vrot.slane %v4981, 4
      %v4985 = vrot.slane %v4983, 4
      %v4986 = vsel %vm4907, %v4984, %v4985
      %v4987 = vsel %vm534, %v4981, %v4986
      %v4988 = vsel %vm534, %v4983, %v4985
      %v4991 = vmul.f32 %v4979, %v4987
      %v4992 = vmul.f32 %v4979, %v4988
      %v4993 = vadd.f32 %v4967, %v4991
      %v4994 = vadd.f32 %v4968, %v4992
      %4995 = vset.pattern.permute.xlu0 8
      %4996 = vperm.xlu0 %4995, %v256
      %v4997 = vpop.permute.xlu0 %4996
      %v5000 = vunpack.c.l.s4 839922192
      %v5001 = vunpack.c.0.s8 %v5000
      %v5002 = vlaneseq
      %v5003 = vshrl.u32 %v5002, 7
      %v5004 = vsub.s32 %v5001, %v5003
      %v5005 = vrot.slane %v4997, %v5004
      %5006 = vrot.lane.b32.xlu0 %v4765, 126
      %v5007 = vpop.permute.xlu0 %5006
      %5008 = vrot.lane.b32.xlu0 %v4766, 126
      %v5009 = vpop.permute.xlu0 %5008
      %v5010 = vrot.slane %v5007, 4
      %v5011 = vrot.slane %v5009, 4
      %v5012 = vsel %vm4907, %v5010, %v5011
      %v5013 = vsel %vm734, %v5007, %v5012
      %v5014 = vsel %vm734, %v5009, %v5011
      %v5017 = vmul.f32 %v5005, %v5013
      %v5018 = vmul.f32 %v5005, %v5014
      %v5019 = vadd.f32 %v4993, %v5017
      %v5020 = vadd.f32 %v4994, %v5018
      %5021 = vset.pattern.permute.xlu0 9
      %5022 = vperm.xlu0 %5021, %v256
      %v5023 = vpop.permute.xlu0 %5022
      %v5026 = vunpack.c.l.s4 839922192
      %v5027 = vunpack.c.0.s8 %v5026
      %v5028 = vlaneseq
      %v5029 = vshrl.u32 %v5028, 7
      %v5030 = vsub.s32 %v5027, %v5029
      %v5031 = vrot.slane %v5023, %v5030
      %5032 = vrot.lane.b32.xlu0 %v4804, 126
      %v5033 = vpop.permute.xlu0 %5032
      %5034 = vrot.lane.b32.xlu0 %v4805, 126
      %v5035 = vpop.permute.xlu0 %5034
      %v5036 = vrot.slane %v5033, 4
      %v5037 = vrot.slane %v5035, 4
      %v5038 = vsel %vm4907, %v5036, %v5037
      %v5039 = vsel %vm734, %v5033, %v5038
      %v5040 = vsel %vm734, %v5035, %v5037
      %v5043 = vmul.f32 %v5031, %v5039
      %v5044 = vmul.f32 %v5031, %v5040
      %v5045 = vadd.f32 %v5019, %v5043
      %v5046 = vadd.f32 %v5020, %v5044
      %5047 = vset.pattern.permute.xlu0 10
      %5048 = vperm.xlu0 %5047, %v256
      %v5049 = vpop.permute.xlu0 %5048
      %v5052 = vunpack.c.l.s4 839922192
      %v5053 = vunpack.c.0.s8 %v5052
      %v5054 = vlaneseq
      %v5055 = vshrl.u32 %v5054, 7
      %v5056 = vsub.s32 %v5053, %v5055
      %v5057 = vrot.slane %v5049, %v5056
      %5058 = vrot.lane.b32.xlu0 %v4843, 126
      %v5059 = vpop.permute.xlu0 %5058
      %5060 = vrot.lane.b32.xlu0 %v4844, 126
      %v5061 = vpop.permute.xlu0 %5060
      %v5062 = vrot.slane %v5059, 4
      %v5063 = vrot.slane %v5061, 4
      %v5064 = vsel %vm4907, %v5062, %v5063
      %v5065 = vsel %vm734, %v5059, %v5064
      %v5066 = vsel %vm734, %v5061, %v5063
      %v5069 = vmul.f32 %v5057, %v5065
      %v5070 = vmul.f32 %v5057, %v5066
      %v5071 = vadd.f32 %v5045, %v5069
      %v5072 = vadd.f32 %v5046, %v5070
      %5073 = vset.pattern.permute.xlu0 11
      %5074 = vperm.xlu0 %5073, %v256
      %v5075 = vpop.permute.xlu0 %5074
      %v5078 = vunpack.c.l.s4 839922192
      %v5079 = vunpack.c.0.s8 %v5078
      %v5080 = vlaneseq
      %v5081 = vshrl.u32 %v5080, 7
      %v5082 = vsub.s32 %v5079, %v5081
      %v5083 = vrot.slane %v5075, %v5082
      %5084 = vrot.lane.b32.xlu0 %v4882, 126
      %v5085 = vpop.permute.xlu0 %5084
      %5086 = vrot.lane.b32.xlu0 %v4883, 126
      %v5087 = vpop.permute.xlu0 %5086
      %v5088 = vrot.slane %v5085, 4
      %v5089 = vrot.slane %v5087, 4
      %v5090 = vsel %vm4907, %v5088, %v5089
      %v5091 = vsel %vm734, %v5085, %v5090
      %v5092 = vsel %vm734, %v5087, %v5089
      %v5095 = vmul.f32 %v5083, %v5091
      %v5096 = vmul.f32 %v5083, %v5092
      %v5097 = vadd.f32 %v5071, %v5095
      %v5098 = vadd.f32 %v5072, %v5096
      %5099 = vset.pattern.permute.xlu0 12
      %5100 = vperm.xlu0 %5099, %v256
      %v5101 = vpop.permute.xlu0 %5100
      %v5104 = vunpack.c.l.s4 839922192
      %v5105 = vunpack.c.0.s8 %v5104
      %v5106 = vlaneseq
      %v5107 = vshrl.u32 %v5106, 7
      %v5108 = vsub.s32 %v5105, %v5107
      %v5109 = vrot.slane %v5101, %v5108
      %5110 = vrot.lane.b32.xlu0 %v4765, 125
      %v5111 = vpop.permute.xlu0 %5110
      %5112 = vrot.lane.b32.xlu0 %v4766, 125
      %v5113 = vpop.permute.xlu0 %5112
      %v5114 = vrot.slane %v5111, 4
      %v5115 = vrot.slane %v5113, 4
      %v5116 = vsel %vm4907, %v5114, %v5115
      %v5117 = vsel %vm907, %v5111, %v5116
      %v5118 = vsel %vm907, %v5113, %v5115
      %v5121 = vmul.f32 %v5109, %v5117
      %v5122 = vmul.f32 %v5109, %v5118
      %v5123 = vadd.f32 %v5097, %v5121
      %v5124 = vadd.f32 %v5098, %v5122
      %5125 = vset.pattern.permute.xlu0 13
      %5126 = vperm.xlu0 %5125, %v256
      %v5127 = vpop.permute.xlu0 %5126
      %v5130 = vunpack.c.l.s4 839922192
      %v5131 = vunpack.c.0.s8 %v5130
      %v5132 = vlaneseq
      %v5133 = vshrl.u32 %v5132, 7
      %v5134 = vsub.s32 %v5131, %v5133
      %v5135 = vrot.slane %v5127, %v5134
      %5136 = vrot.lane.b32.xlu0 %v4804, 125
      %v5137 = vpop.permute.xlu0 %5136
      %5138 = vrot.lane.b32.xlu0 %v4805, 125
      %v5139 = vpop.permute.xlu0 %5138
      %v5140 = vrot.slane %v5137, 4
      %v5141 = vrot.slane %v5139, 4
      %v5142 = vsel %vm4907, %v5140, %v5141
      %v5143 = vsel %vm907, %v5137, %v5142
      %v5144 = vsel %vm907, %v5139, %v5141
      %v5147 = vmul.f32 %v5135, %v5143
      %v5148 = vmul.f32 %v5135, %v5144
      %v5149 = vadd.f32 %v5123, %v5147
      %v5150 = vadd.f32 %v5124, %v5148
      %5151 = vset.pattern.permute.xlu0 14
      %5152 = vperm.xlu0 %5151, %v256
      %v5153 = vpop.permute.xlu0 %5152
      %v5156 = vunpack.c.l.s4 839922192
      %v5157 = vunpack.c.0.s8 %v5156
      %v5158 = vlaneseq
      %v5159 = vshrl.u32 %v5158, 7
      %v5160 = vsub.s32 %v5157, %v5159
      %v5161 = vrot.slane %v5153, %v5160
      %5162 = vrot.lane.b32.xlu0 %v4843, 125
      %v5163 = vpop.permute.xlu0 %5162
      %5164 = vrot.lane.b32.xlu0 %v4844, 125
      %v5165 = vpop.permute.xlu0 %5164
      %v5166 = vrot.slane %v5163, 4
      %v5167 = vrot.slane %v5165, 4
      %v5168 = vsel %vm4907, %v5166, %v5167
      %v5169 = vsel %vm907, %v5163, %v5168
      %v5170 = vsel %vm907, %v5165, %v5167
      %v5173 = vmul.f32 %v5161, %v5169
      %v5174 = vmul.f32 %v5161, %v5170
      %v5175 = vadd.f32 %v5149, %v5173
      %v5176 = vadd.f32 %v5150, %v5174
      %5177 = vset.pattern.permute.xlu0 15
      %5178 = vperm.xlu0 %5177, %v256
      %v5179 = vpop.permute.xlu0 %5178
      %v5182 = vunpack.c.l.s4 839922192
      %v5183 = vunpack.c.0.s8 %v5182
      %v5184 = vlaneseq
      %v5185 = vshrl.u32 %v5184, 7
      %v5186 = vsub.s32 %v5183, %v5185
      %v5187 = vrot.slane %v5179, %v5186
      %5188 = vrot.lane.b32.xlu0 %v4882, 125
      %v5189 = vpop.permute.xlu0 %5188
      %5190 = vrot.lane.b32.xlu0 %v4883, 125
      %v5191 = vpop.permute.xlu0 %5190
      %v5192 = vrot.slane %v5189, 4
      %v5193 = vrot.slane %v5191, 4
      %v5194 = vsel %vm4907, %v5192, %v5193
      %v5195 = vsel %vm907, %v5189, %v5194
      %v5196 = vsel %vm907, %v5191, %v5193
      %v5199 = vmul.f32 %v5187, %v5195
      %v5200 = vmul.f32 %v5187, %v5196
      %v5201 = vadd.f32 %v5175, %v5199
      %v5202 = vadd.f32 %v5176, %v5200
      %5203 = vset.pattern.permute.xlu0 16
      %5204 = vperm.xlu0 %5203, %v256
      %v5205 = vpop.permute.xlu0 %5204
      %v5208 = vunpack.c.l.s4 839922192
      %v5209 = vunpack.c.0.s8 %v5208
      %v5210 = vlaneseq
      %v5211 = vshrl.u32 %v5210, 7
      %v5212 = vsub.s32 %v5209, %v5211
      %v5213 = vrot.slane %v5205, %v5212
      %5214 = vrot.lane.b32.xlu0 %v4765, 124
      %v5215 = vpop.permute.xlu0 %5214
      %5216 = vrot.lane.b32.xlu0 %v4766, 124
      %v5217 = vpop.permute.xlu0 %5216
      %v5218 = vrot.slane %v5215, 4
      %v5219 = vrot.slane %v5217, 4
      %v5220 = vsel %vm4907, %v5218, %v5219
      %v5221 = vsel %vm1080, %v5215, %v5220
      %v5222 = vsel %vm1080, %v5217, %v5219
      %v5225 = vmul.f32 %v5213, %v5221
      %v5226 = vmul.f32 %v5213, %v5222
      %v5227 = vadd.f32 %v5201, %v5225
      %v5228 = vadd.f32 %v5202, %v5226
      %5229 = vset.pattern.permute.xlu0 17
      %5230 = vperm.xlu0 %5229, %v256
      %v5231 = vpop.permute.xlu0 %5230
      %v5234 = vunpack.c.l.s4 839922192
      %v5235 = vunpack.c.0.s8 %v5234
      %v5236 = vlaneseq
      %v5237 = vshrl.u32 %v5236, 7
      %v5238 = vsub.s32 %v5235, %v5237
      %v5239 = vrot.slane %v5231, %v5238
      %5240 = vrot.lane.b32.xlu0 %v4804, 124
      %v5241 = vpop.permute.xlu0 %5240
      %5242 = vrot.lane.b32.xlu0 %v4805, 124
      %v5243 = vpop.permute.xlu0 %5242
      %v5244 = vrot.slane %v5241, 4
      %v5245 = vrot.slane %v5243, 4
      %v5246 = vsel %vm4907, %v5244, %v5245
      %v5247 = vsel %vm1080, %v5241, %v5246
      %v5248 = vsel %vm1080, %v5243, %v5245
      %v5251 = vmul.f32 %v5239, %v5247
      %v5252 = vmul.f32 %v5239, %v5248
      %v5253 = vadd.f32 %v5227, %v5251
      %v5254 = vadd.f32 %v5228, %v5252
      %5255 = vset.pattern.permute.xlu0 18
      %5256 = vperm.xlu0 %5255, %v256
      %v5257 = vpop.permute.xlu0 %5256
      %v5260 = vunpack.c.l.s4 839922192
      %v5261 = vunpack.c.0.s8 %v5260
      %v5262 = vlaneseq
      %v5263 = vshrl.u32 %v5262, 7
      %v5264 = vsub.s32 %v5261, %v5263
      %v5265 = vrot.slane %v5257, %v5264
      %5266 = vrot.lane.b32.xlu0 %v4843, 124
      %v5267 = vpop.permute.xlu0 %5266
      %5268 = vrot.lane.b32.xlu0 %v4844, 124
      %v5269 = vpop.permute.xlu0 %5268
      %v5270 = vrot.slane %v5267, 4
      %v5271 = vrot.slane %v5269, 4
      %v5272 = vsel %vm4907, %v5270, %v5271
      %v5273 = vsel %vm1080, %v5267, %v5272
      %v5274 = vsel %vm1080, %v5269, %v5271
      %v5277 = vmul.f32 %v5265, %v5273
      %v5278 = vmul.f32 %v5265, %v5274
      %v5279 = vadd.f32 %v5253, %v5277
      %v5280 = vadd.f32 %v5254, %v5278
      %5281 = vset.pattern.permute.xlu0 19
      %5282 = vperm.xlu0 %5281, %v256
      %v5283 = vpop.permute.xlu0 %5282
      %v5286 = vunpack.c.l.s4 839922192
      %v5287 = vunpack.c.0.s8 %v5286
      %v5288 = vlaneseq
      %v5289 = vshrl.u32 %v5288, 7
      %v5290 = vsub.s32 %v5287, %v5289
      %v5291 = vrot.slane %v5283, %v5290
      %5292 = vrot.lane.b32.xlu0 %v4882, 124
      %v5293 = vpop.permute.xlu0 %5292
      %5294 = vrot.lane.b32.xlu0 %v4883, 124
      %v5295 = vpop.permute.xlu0 %5294
      %v5296 = vrot.slane %v5293, 4
      %v5297 = vrot.slane %v5295, 4
      %v5298 = vsel %vm4907, %v5296, %v5297
      %v5299 = vsel %vm1080, %v5293, %v5298
      %v5300 = vsel %vm1080, %v5295, %v5297
      %v5303 = vmul.f32 %v5291, %v5299
      %v5304 = vmul.f32 %v5291, %v5300
      %v5305 = vadd.f32 %v5279, %v5303
      %v5306 = vadd.f32 %v5280, %v5304
      %5307 = vset.pattern.permute.xlu0 20
      %5308 = vperm.xlu0 %5307, %v256
      %v5309 = vpop.permute.xlu0 %5308
      %v5312 = vunpack.c.l.s4 839922192
      %v5313 = vunpack.c.0.s8 %v5312
      %v5314 = vlaneseq
      %v5315 = vshrl.u32 %v5314, 7
      %v5316 = vsub.s32 %v5313, %v5315
      %v5317 = vrot.slane %v5309, %v5316
      %5318 = vrot.lane.b32.xlu0 %v4765, 123
      %v5319 = vpop.permute.xlu0 %5318
      %5320 = vrot.lane.b32.xlu0 %v4766, 123
      %v5321 = vpop.permute.xlu0 %5320
      %v5322 = vrot.slane %v5319, 4
      %v5323 = vrot.slane %v5321, 4
      %v5324 = vsel %vm4907, %v5322, %v5323
      %vm5325 = vcmask 1006592
      %v5326 = vsel %vm5325, %v5319, %v5324
      %v5327 = vsel %vm5325, %v5321, %v5323
      %v5330 = vmul.f32 %v5317, %v5326
      %v5331 = vmul.f32 %v5317, %v5327
      %v5332 = vadd.f32 %v5305, %v5330
      %v5333 = vadd.f32 %v5306, %v5331
      %5334 = vset.pattern.permute.xlu0 21
      %5335 = vperm.xlu0 %5334, %v256
      %v5336 = vpop.permute.xlu0 %5335
      %v5339 = vunpack.c.l.s4 839922192
      %v5340 = vunpack.c.0.s8 %v5339
      %v5341 = vlaneseq
      %v5342 = vshrl.u32 %v5341, 7
      %v5343 = vsub.s32 %v5340, %v5342
      %v5344 = vrot.slane %v5336, %v5343
      %5345 = vrot.lane.b32.xlu0 %v4804, 123
      %v5346 = vpop.permute.xlu0 %5345
      %5347 = vrot.lane.b32.xlu0 %v4805, 123
      %v5348 = vpop.permute.xlu0 %5347
      %v5349 = vrot.slane %v5346, 4
      %v5350 = vrot.slane %v5348, 4
      %v5351 = vsel %vm4907, %v5349, %v5350
      %v5352 = vsel %vm5325, %v5346, %v5351
      %v5353 = vsel %vm5325, %v5348, %v5350
      %v5356 = vmul.f32 %v5344, %v5352
      %v5357 = vmul.f32 %v5344, %v5353
      %v5358 = vadd.f32 %v5332, %v5356
      %v5359 = vadd.f32 %v5333, %v5357
      %5360 = vset.pattern.permute.xlu0 22
      %5361 = vperm.xlu0 %5360, %v256
      %v5362 = vpop.permute.xlu0 %5361
      %v5365 = vunpack.c.l.s4 839922192
      %v5366 = vunpack.c.0.s8 %v5365
      %v5367 = vlaneseq
      %v5368 = vshrl.u32 %v5367, 7
      %v5369 = vsub.s32 %v5366, %v5368
      %v5370 = vrot.slane %v5362, %v5369
      %5371 = vrot.lane.b32.xlu0 %v4843, 123
      %v5372 = vpop.permute.xlu0 %5371
      %5373 = vrot.lane.b32.xlu0 %v4844, 123
      %v5374 = vpop.permute.xlu0 %5373
      %v5375 = vrot.slane %v5372, 4
      %v5376 = vrot.slane %v5374, 4
      %v5377 = vsel %vm4907, %v5375, %v5376
      %v5378 = vsel %vm5325, %v5372, %v5377
      %v5379 = vsel %vm5325, %v5374, %v5376
      %v5382 = vmul.f32 %v5370, %v5378
      %v5383 = vmul.f32 %v5370, %v5379
      %v5384 = vadd.f32 %v5358, %v5382
      %v5385 = vadd.f32 %v5359, %v5383
      %5386 = vset.pattern.permute.xlu0 23
      %5387 = vperm.xlu0 %5386, %v256
      %v5388 = vpop.permute.xlu0 %5387
      %v5391 = vunpack.c.l.s4 839922192
      %v5392 = vunpack.c.0.s8 %v5391
      %v5393 = vlaneseq
      %v5394 = vshrl.u32 %v5393, 7
      %v5395 = vsub.s32 %v5392, %v5394
      %v5396 = vrot.slane %v5388, %v5395
      %5397 = vrot.lane.b32.xlu0 %v4882, 123
      %v5398 = vpop.permute.xlu0 %5397
      %5399 = vrot.lane.b32.xlu0 %v4883, 123
      %v5400 = vpop.permute.xlu0 %5399
      %v5401 = vrot.slane %v5398, 4
      %v5402 = vrot.slane %v5400, 4
      %v5403 = vsel %vm4907, %v5401, %v5402
      %v5404 = vsel %vm5325, %v5398, %v5403
      %v5405 = vsel %vm5325, %v5400, %v5402
      %v5408 = vmul.f32 %v5396, %v5404
      %v5409 = vmul.f32 %v5396, %v5405
      %v5410 = vadd.f32 %v5384, %v5408
      %v5411 = vadd.f32 %v5385, %v5409
      %5412 = vset.pattern.permute.xlu0 24
      %5413 = vperm.xlu0 %5412, %v256
      %v5414 = vpop.permute.xlu0 %5413
      %v5417 = vunpack.c.l.s4 839922192
      %v5418 = vunpack.c.0.s8 %v5417
      %v5419 = vlaneseq
      %v5420 = vshrl.u32 %v5419, 7
      %v5421 = vsub.s32 %v5418, %v5420
      %v5422 = vrot.slane %v5414, %v5421
      %5423 = vrot.lane.b32.xlu0 %v4765, 122
      %v5424 = vpop.permute.xlu0 %5423
      %5425 = vrot.lane.b32.xlu0 %v4766, 122
      %v5426 = vpop.permute.xlu0 %5425
      %v5427 = vrot.slane %v5424, 4
      %v5428 = vrot.slane %v5426, 4
      %v5429 = vsel %vm4907, %v5427, %v5428
      %vm5430 = vcmask 998400
      %v5431 = vsel %vm5430, %v5424, %v5429
      %v5432 = vsel %vm5430, %v5426, %v5428
      %v5435 = vmul.f32 %v5422, %v5431
      %v5436 = vmul.f32 %v5422, %v5432
      %v5437 = vadd.f32 %v5410, %v5435
      %v5438 = vadd.f32 %v5411, %v5436
      %5439 = vset.pattern.permute.xlu0 25
      %5440 = vperm.xlu0 %5439, %v256
      %v5441 = vpop.permute.xlu0 %5440
      %v5444 = vunpack.c.l.s4 839922192
      %v5445 = vunpack.c.0.s8 %v5444
      %v5446 = vlaneseq
      %v5447 = vshrl.u32 %v5446, 7
      %v5448 = vsub.s32 %v5445, %v5447
      %v5449 = vrot.slane %v5441, %v5448
      %5450 = vrot.lane.b32.xlu0 %v4804, 122
      %v5451 = vpop.permute.xlu0 %5450
      %5452 = vrot.lane.b32.xlu0 %v4805, 122
      %v5453 = vpop.permute.xlu0 %5452
      %v5454 = vrot.slane %v5451, 4
      %v5455 = vrot.slane %v5453, 4
      %v5456 = vsel %vm4907, %v5454, %v5455
      %v5457 = vsel %vm5430, %v5451, %v5456
      %v5458 = vsel %vm5430, %v5453, %v5455
      %v5461 = vmul.f32 %v5449, %v5457
      %v5462 = vmul.f32 %v5449, %v5458
      %v5463 = vadd.f32 %v5437, %v5461
      %v5464 = vadd.f32 %v5438, %v5462
      %5465 = vset.pattern.permute.xlu0 26
      %5466 = vperm.xlu0 %5465, %v256
      %v5467 = vpop.permute.xlu0 %5466
      %v5470 = vunpack.c.l.s4 839922192
      %v5471 = vunpack.c.0.s8 %v5470
      %v5472 = vlaneseq
      %v5473 = vshrl.u32 %v5472, 7
      %v5474 = vsub.s32 %v5471, %v5473
      %v5475 = vrot.slane %v5467, %v5474
      %5476 = vrot.lane.b32.xlu0 %v4843, 122
      %v5477 = vpop.permute.xlu0 %5476
      %5478 = vrot.lane.b32.xlu0 %v4844, 122
      %v5479 = vpop.permute.xlu0 %5478
      %v5480 = vrot.slane %v5477, 4
      %v5481 = vrot.slane %v5479, 4
      %v5482 = vsel %vm4907, %v5480, %v5481
      %v5483 = vsel %vm5430, %v5477, %v5482
      %v5484 = vsel %vm5430, %v5479, %v5481
      %v5487 = vmul.f32 %v5475, %v5483
      %v5488 = vmul.f32 %v5475, %v5484
      %v5489 = vadd.f32 %v5463, %v5487
      %v5490 = vadd.f32 %v5464, %v5488
      %5491 = vset.pattern.permute.xlu0 27
      %5492 = vperm.xlu0 %5491, %v256
      %v5493 = vpop.permute.xlu0 %5492
      %v5496 = vunpack.c.l.s4 839922192
      %v5497 = vunpack.c.0.s8 %v5496
      %v5498 = vlaneseq
      %v5499 = vshrl.u32 %v5498, 7
      %v5500 = vsub.s32 %v5497, %v5499
      %v5501 = vrot.slane %v5493, %v5500
      %5502 = vrot.lane.b32.xlu0 %v4882, 122
      %v5503 = vpop.permute.xlu0 %5502
      %5504 = vrot.lane.b32.xlu0 %v4883, 122
      %v5505 = vpop.permute.xlu0 %5504
      %v5506 = vrot.slane %v5503, 4
      %v5507 = vrot.slane %v5505, 4
      %v5508 = vsel %vm4907, %v5506, %v5507
      %v5509 = vsel %vm5430, %v5503, %v5508
      %v5510 = vsel %vm5430, %v5505, %v5507
      %v5513 = vmul.f32 %v5501, %v5509
      %v5514 = vmul.f32 %v5501, %v5510
      %v5515 = vadd.f32 %v5489, %v5513
      %v5516 = vadd.f32 %v5490, %v5514
      %5517 = vset.pattern.permute.xlu0 28
      %5518 = vperm.xlu0 %5517, %v256
      %v5519 = vpop.permute.xlu0 %5518
      %v5522 = vunpack.c.l.s4 839922192
      %v5523 = vunpack.c.0.s8 %v5522
      %v5524 = vlaneseq
      %v5525 = vshrl.u32 %v5524, 7
      %v5526 = vsub.s32 %v5523, %v5525
      %v5527 = vrot.slane %v5519, %v5526
      %5528 = vrot.lane.b32.xlu0 %v4765, 102
      %v5529 = vpop.permute.xlu0 %5528
      %5530 = vrot.lane.b32.xlu0 %v4766, 102
      %v5531 = vpop.permute.xlu0 %5530
      %v5532 = vrot.slane %v5529, 4
      %v5533 = vrot.slane %v5531, 4
      %v5534 = vsel %vm4907, %v5532, %v5533
      %v5535 = vsel %vm1253, %v5529, %v5534
      %v5536 = vsel %vm1253, %v5531, %v5533
      %v5539 = vmul.f32 %v5527, %v5535
      %v5540 = vmul.f32 %v5527, %v5536
      %v5541 = vadd.f32 %v5515, %v5539
      %v5542 = vadd.f32 %v5516, %v5540
      %5543 = vset.pattern.permute.xlu0 29
      %5544 = vperm.xlu0 %5543, %v256
      %v5545 = vpop.permute.xlu0 %5544
      %v5548 = vunpack.c.l.s4 839922192
      %v5549 = vunpack.c.0.s8 %v5548
      %v5550 = vlaneseq
      %v5551 = vshrl.u32 %v5550, 7
      %v5552 = vsub.s32 %v5549, %v5551
      %v5553 = vrot.slane %v5545, %v5552
      %5554 = vrot.lane.b32.xlu0 %v4804, 102
      %v5555 = vpop.permute.xlu0 %5554
      %5556 = vrot.lane.b32.xlu0 %v4805, 102
      %v5557 = vpop.permute.xlu0 %5556
      %v5558 = vrot.slane %v5555, 4
      %v5559 = vrot.slane %v5557, 4
      %v5560 = vsel %vm4907, %v5558, %v5559
      %v5561 = vsel %vm1253, %v5555, %v5560
      %v5562 = vsel %vm1253, %v5557, %v5559
      %v5565 = vmul.f32 %v5553, %v5561
      %v5566 = vmul.f32 %v5553, %v5562
      %v5567 = vadd.f32 %v5541, %v5565
      %v5568 = vadd.f32 %v5542, %v5566
      %5569 = vset.pattern.permute.xlu0 30
      %5570 = vperm.xlu0 %5569, %v256
      %v5571 = vpop.permute.xlu0 %5570
      %v5574 = vunpack.c.l.s4 839922192
      %v5575 = vunpack.c.0.s8 %v5574
      %v5576 = vlaneseq
      %v5577 = vshrl.u32 %v5576, 7
      %v5578 = vsub.s32 %v5575, %v5577
      %v5579 = vrot.slane %v5571, %v5578
      %5580 = vrot.lane.b32.xlu0 %v4843, 102
      %v5581 = vpop.permute.xlu0 %5580
      %5582 = vrot.lane.b32.xlu0 %v4844, 102
      %v5583 = vpop.permute.xlu0 %5582
      %v5584 = vrot.slane %v5581, 4
      %v5585 = vrot.slane %v5583, 4
      %v5586 = vsel %vm4907, %v5584, %v5585
      %v5587 = vsel %vm1253, %v5581, %v5586
      %v5588 = vsel %vm1253, %v5583, %v5585
      %v5591 = vmul.f32 %v5579, %v5587
      %v5592 = vmul.f32 %v5579, %v5588
      %v5593 = vadd.f32 %v5567, %v5591
      %v5594 = vadd.f32 %v5568, %v5592
      %5595 = vset.pattern.permute.xlu0 31
      %5596 = vperm.xlu0 %5595, %v256
      %v5597 = vpop.permute.xlu0 %5596
      %v5600 = vunpack.c.l.s4 839922192
      %v5601 = vunpack.c.0.s8 %v5600
      %v5602 = vlaneseq
      %v5603 = vshrl.u32 %v5602, 7
      %v5604 = vsub.s32 %v5601, %v5603
      %v5605 = vrot.slane %v5597, %v5604
      %5606 = vrot.lane.b32.xlu0 %v4882, 102
      %v5607 = vpop.permute.xlu0 %5606
      %5608 = vrot.lane.b32.xlu0 %v4883, 102
      %v5609 = vpop.permute.xlu0 %5608
      %v5610 = vrot.slane %v5607, 4
      %v5611 = vrot.slane %v5609, 4
      %v5612 = vsel %vm4907, %v5610, %v5611
      %v5613 = vsel %vm1253, %v5607, %v5612
      %v5614 = vsel %vm1253, %v5609, %v5611
      %v5617 = vmul.f32 %v5605, %v5613
      %v5618 = vmul.f32 %v5605, %v5614
      %v5619 = vadd.f32 %v5593, %v5617
      %v5620 = vadd.f32 %v5594, %v5618
      %5621 = vset.pattern.permute.xlu0 32
      %5622 = vperm.xlu0 %5621, %v256
      %v5623 = vpop.permute.xlu0 %5622
      %v5626 = vunpack.c.l.s4 839922192
      %v5627 = vunpack.c.0.s8 %v5626
      %v5628 = vlaneseq
      %v5629 = vshrl.u32 %v5628, 7
      %v5630 = vsub.s32 %v5627, %v5629
      %v5631 = vrot.slane %v5623, %v5630
      %5632 = vrot.lane.b32.xlu0 %v4765, 101
      %v5633 = vpop.permute.xlu0 %5632
      %5634 = vrot.lane.b32.xlu0 %v4766, 101
      %v5635 = vpop.permute.xlu0 %5634
      %v5636 = vrot.slane %v5633, 4
      %v5637 = vrot.slane %v5635, 4
      %v5638 = vsel %vm4907, %v5636, %v5637
      %v5639 = vsel %vm1426, %v5633, %v5638
      %v5640 = vsel %vm1426, %v5635, %v5637
      %v5643 = vmul.f32 %v5631, %v5639
      %v5644 = vmul.f32 %v5631, %v5640
      %v5645 = vadd.f32 %v5619, %v5643
      %v5646 = vadd.f32 %v5620, %v5644
      %5647 = vset.pattern.permute.xlu0 33
      %5648 = vperm.xlu0 %5647, %v256
      %v5649 = vpop.permute.xlu0 %5648
      %v5652 = vunpack.c.l.s4 839922192
      %v5653 = vunpack.c.0.s8 %v5652
      %v5654 = vlaneseq
      %v5655 = vshrl.u32 %v5654, 7
      %v5656 = vsub.s32 %v5653, %v5655
      %v5657 = vrot.slane %v5649, %v5656
      %5658 = vrot.lane.b32.xlu0 %v4804, 101
      %v5659 = vpop.permute.xlu0 %5658
      %5660 = vrot.lane.b32.xlu0 %v4805, 101
      %v5661 = vpop.permute.xlu0 %5660
      %v5662 = vrot.slane %v5659, 4
      %v5663 = vrot.slane %v5661, 4
      %v5664 = vsel %vm4907, %v5662, %v5663
      %v5665 = vsel %vm1426, %v5659, %v5664
      %v5666 = vsel %vm1426, %v5661, %v5663
      %v5669 = vmul.f32 %v5657, %v5665
      %v5670 = vmul.f32 %v5657, %v5666
      %v5671 = vadd.f32 %v5645, %v5669
      %v5672 = vadd.f32 %v5646, %v5670
      %5673 = vset.pattern.permute.xlu0 34
      %5674 = vperm.xlu0 %5673, %v256
      %v5675 = vpop.permute.xlu0 %5674
      %v5678 = vunpack.c.l.s4 839922192
      %v5679 = vunpack.c.0.s8 %v5678
      %v5680 = vlaneseq
      %v5681 = vshrl.u32 %v5680, 7
      %v5682 = vsub.s32 %v5679, %v5681
      %v5683 = vrot.slane %v5675, %v5682
      %5684 = vrot.lane.b32.xlu0 %v4843, 101
      %v5685 = vpop.permute.xlu0 %5684
      %5686 = vrot.lane.b32.xlu0 %v4844, 101
      %v5687 = vpop.permute.xlu0 %5686
      %v5688 = vrot.slane %v5685, 4
      %v5689 = vrot.slane %v5687, 4
      %v5690 = vsel %vm4907, %v5688, %v5689
      %v5691 = vsel %vm1426, %v5685, %v5690
      %v5692 = vsel %vm1426, %v5687, %v5689
      %v5695 = vmul.f32 %v5683, %v5691
      %v5696 = vmul.f32 %v5683, %v5692
      %v5697 = vadd.f32 %v5671, %v5695
      %v5698 = vadd.f32 %v5672, %v5696
      %5699 = vset.pattern.permute.xlu0 35
      %5700 = vperm.xlu0 %5699, %v256
      %v5701 = vpop.permute.xlu0 %5700
      %v5704 = vunpack.c.l.s4 839922192
      %v5705 = vunpack.c.0.s8 %v5704
      %v5706 = vlaneseq
      %v5707 = vshrl.u32 %v5706, 7
      %v5708 = vsub.s32 %v5705, %v5707
      %v5709 = vrot.slane %v5701, %v5708
      %5710 = vrot.lane.b32.xlu0 %v4882, 101
      %v5711 = vpop.permute.xlu0 %5710
      %5712 = vrot.lane.b32.xlu0 %v4883, 101
      %v5713 = vpop.permute.xlu0 %5712
      %v5714 = vrot.slane %v5711, 4
      %v5715 = vrot.slane %v5713, 4
      %v5716 = vsel %vm4907, %v5714, %v5715
      %v5717 = vsel %vm1426, %v5711, %v5716
      %v5718 = vsel %vm1426, %v5713, %v5715
      %v5721 = vmul.f32 %v5709, %v5717
      %v5722 = vmul.f32 %v5709, %v5718
      %v5723 = vadd.f32 %v5697, %v5721
      %v5724 = vadd.f32 %v5698, %v5722
      %5725 = vset.pattern.permute.xlu0 36
      %5726 = vperm.xlu0 %5725, %v256
      %v5727 = vpop.permute.xlu0 %5726
      %v5730 = vunpack.c.l.s4 839922192
      %v5731 = vunpack.c.0.s8 %v5730
      %v5732 = vlaneseq
      %v5733 = vshrl.u32 %v5732, 7
      %v5734 = vsub.s32 %v5731, %v5733
      %v5735 = vrot.slane %v5727, %v5734
      %5736 = vrot.lane.b32.xlu0 %v4765, 100
      %v5737 = vpop.permute.xlu0 %5736
      %5738 = vrot.lane.b32.xlu0 %v4766, 100
      %v5739 = vpop.permute.xlu0 %5738
      %v5740 = vrot.slane %v5737, 4
      %v5741 = vrot.slane %v5739, 4
      %v5742 = vsel %vm4907, %v5740, %v5741
      %v5743 = vsel %vm1599, %v5737, %v5742
      %v5744 = vsel %vm1599, %v5739, %v5741
      %v5747 = vmul.f32 %v5735, %v5743
      %v5748 = vmul.f32 %v5735, %v5744
      %v5749 = vadd.f32 %v5723, %v5747
      %v5750 = vadd.f32 %v5724, %v5748
      %5751 = vset.pattern.permute.xlu0 37
      %5752 = vperm.xlu0 %5751, %v256
      %v5753 = vpop.permute.xlu0 %5752
      %v5756 = vunpack.c.l.s4 839922192
      %v5757 = vunpack.c.0.s8 %v5756
      %v5758 = vlaneseq
      %v5759 = vshrl.u32 %v5758, 7
      %v5760 = vsub.s32 %v5757, %v5759
      %v5761 = vrot.slane %v5753, %v5760
      %5762 = vrot.lane.b32.xlu0 %v4804, 100
      %v5763 = vpop.permute.xlu0 %5762
      %5764 = vrot.lane.b32.xlu0 %v4805, 100
      %v5765 = vpop.permute.xlu0 %5764
      %v5766 = vrot.slane %v5763, 4
      %v5767 = vrot.slane %v5765, 4
      %v5768 = vsel %vm4907, %v5766, %v5767
      %v5769 = vsel %vm1599, %v5763, %v5768
      %v5770 = vsel %vm1599, %v5765, %v5767
      %v5773 = vmul.f32 %v5761, %v5769
      %v5774 = vmul.f32 %v5761, %v5770
      %v5775 = vadd.f32 %v5749, %v5773
      %v5776 = vadd.f32 %v5750, %v5774
      %5777 = vset.pattern.permute.xlu0 38
      %5778 = vperm.xlu0 %5777, %v256
      %v5779 = vpop.permute.xlu0 %5778
      %v5782 = vunpack.c.l.s4 839922192
      %v5783 = vunpack.c.0.s8 %v5782
      %v5784 = vlaneseq
      %v5785 = vshrl.u32 %v5784, 7
      %v5786 = vsub.s32 %v5783, %v5785
      %v5787 = vrot.slane %v5779, %v5786
      %5788 = vrot.lane.b32.xlu0 %v4843, 100
      %v5789 = vpop.permute.xlu0 %5788
      %5790 = vrot.lane.b32.xlu0 %v4844, 100
      %v5791 = vpop.permute.xlu0 %5790
      %v5792 = vrot.slane %v5789, 4
      %v5793 = vrot.slane %v5791, 4
      %v5794 = vsel %vm4907, %v5792, %v5793
      %v5795 = vsel %vm1599, %v5789, %v5794
      %v5796 = vsel %vm1599, %v5791, %v5793
      %v5799 = vmul.f32 %v5787, %v5795
      %v5800 = vmul.f32 %v5787, %v5796
      %v5801 = vadd.f32 %v5775, %v5799
      %v5802 = vadd.f32 %v5776, %v5800
      %5803 = vset.pattern.permute.xlu0 39
      %5804 = vperm.xlu0 %5803, %v256
      %v5805 = vpop.permute.xlu0 %5804
      %v5808 = vunpack.c.l.s4 839922192
      %v5809 = vunpack.c.0.s8 %v5808
      %v5810 = vlaneseq
      %v5811 = vshrl.u32 %v5810, 7
      %v5812 = vsub.s32 %v5809, %v5811
      %v5813 = vrot.slane %v5805, %v5812
      %5814 = vrot.lane.b32.xlu0 %v4882, 100
      %v5815 = vpop.permute.xlu0 %5814
      %5816 = vrot.lane.b32.xlu0 %v4883, 100
      %v5817 = vpop.permute.xlu0 %5816
      %v5818 = vrot.slane %v5815, 4
      %v5819 = vrot.slane %v5817, 4
      %v5820 = vsel %vm4907, %v5818, %v5819
      %v5821 = vsel %vm1599, %v5815, %v5820
      %v5822 = vsel %vm1599, %v5817, %v5819
      %v5825 = vmul.f32 %v5813, %v5821
      %v5826 = vmul.f32 %v5813, %v5822
      %v5827 = vadd.f32 %v5801, %v5825
      %v5828 = vadd.f32 %v5802, %v5826
      %5829 = vset.pattern.permute.xlu0 40
      %5830 = vperm.xlu0 %5829, %v256
      %v5831 = vpop.permute.xlu0 %5830
      %v5834 = vunpack.c.l.s4 839922192
      %v5835 = vunpack.c.0.s8 %v5834
      %v5836 = vlaneseq
      %v5837 = vshrl.u32 %v5836, 7
      %v5838 = vsub.s32 %v5835, %v5837
      %v5839 = vrot.slane %v5831, %v5838
      %5840 = vrot.lane.b32.xlu0 %v4765, 99
      %v5841 = vpop.permute.xlu0 %5840
      %5842 = vrot.lane.b32.xlu0 %v4766, 99
      %v5843 = vpop.permute.xlu0 %5842
      %v5844 = vrot.slane %v5841, 4
      %v5845 = vrot.slane %v5843, 4
      %v5846 = vsel %vm4907, %v5844, %v5845
      %v5847 = vsel %vm1772, %v5841, %v5846
      %v5848 = vsel %vm1772, %v5843, %v5845
      %v5851 = vmul.f32 %v5839, %v5847
      %v5852 = vmul.f32 %v5839, %v5848
      %v5853 = vadd.f32 %v5827, %v5851
      %v5854 = vadd.f32 %v5828, %v5852
      %5855 = vset.pattern.permute.xlu0 41
      %5856 = vperm.xlu0 %5855, %v256
      %v5857 = vpop.permute.xlu0 %5856
      %v5860 = vunpack.c.l.s4 839922192
      %v5861 = vunpack.c.0.s8 %v5860
      %v5862 = vlaneseq
      %v5863 = vshrl.u32 %v5862, 7
      %v5864 = vsub.s32 %v5861, %v5863
      %v5865 = vrot.slane %v5857, %v5864
      %5866 = vrot.lane.b32.xlu0 %v4804, 99
      %v5867 = vpop.permute.xlu0 %5866
      %5868 = vrot.lane.b32.xlu0 %v4805, 99
      %v5869 = vpop.permute.xlu0 %5868
      %v5870 = vrot.slane %v5867, 4
      %v5871 = vrot.slane %v5869, 4
      %v5872 = vsel %vm4907, %v5870, %v5871
      %v5873 = vsel %vm1772, %v5867, %v5872
      %v5874 = vsel %vm1772, %v5869, %v5871
      %v5877 = vmul.f32 %v5865, %v5873
      %v5878 = vmul.f32 %v5865, %v5874
      %v5879 = vadd.f32 %v5853, %v5877
      %v5880 = vadd.f32 %v5854, %v5878
      %5881 = vset.pattern.permute.xlu0 42
      %5882 = vperm.xlu0 %5881, %v256
      %v5883 = vpop.permute.xlu0 %5882
      %v5886 = vunpack.c.l.s4 839922192
      %v5887 = vunpack.c.0.s8 %v5886
      %v5888 = vlaneseq
      %v5889 = vshrl.u32 %v5888, 7
      %v5890 = vsub.s32 %v5887, %v5889
      %v5891 = vrot.slane %v5883, %v5890
      %5892 = vrot.lane.b32.xlu0 %v4843, 99
      %v5893 = vpop.permute.xlu0 %5892
      %5894 = vrot.lane.b32.xlu0 %v4844, 99
      %v5895 = vpop.permute.xlu0 %5894
      %v5896 = vrot.slane %v5893, 4
      %v5897 = vrot.slane %v5895, 4
      %v5898 = vsel %vm4907, %v5896, %v5897
      %v5899 = vsel %vm1772, %v5893, %v5898
      %v5900 = vsel %vm1772, %v5895, %v5897
      %v5903 = vmul.f32 %v5891, %v5899
      %v5904 = vmul.f32 %v5891, %v5900
      %v5905 = vadd.f32 %v5879, %v5903
      %v5906 = vadd.f32 %v5880, %v5904
      %5907 = vset.pattern.permute.xlu0 43
      %5908 = vperm.xlu0 %5907, %v256
      %v5909 = vpop.permute.xlu0 %5908
      %v5912 = vunpack.c.l.s4 839922192
      %v5913 = vunpack.c.0.s8 %v5912
      %v5914 = vlaneseq
      %v5915 = vshrl.u32 %v5914, 7
      %v5916 = vsub.s32 %v5913, %v5915
      %v5917 = vrot.slane %v5909, %v5916
      %5918 = vrot.lane.b32.xlu0 %v4882, 99
      %v5919 = vpop.permute.xlu0 %5918
      %5920 = vrot.lane.b32.xlu0 %v4883, 99
      %v5921 = vpop.permute.xlu0 %5920
      %v5922 = vrot.slane %v5919, 4
      %v5923 = vrot.slane %v5921, 4
      %v5924 = vsel %vm4907, %v5922, %v5923
      %v5925 = vsel %vm1772, %v5919, %v5924
      %v5926 = vsel %vm1772, %v5921, %v5923
      %v5929 = vmul.f32 %v5917, %v5925
      %v5930 = vmul.f32 %v5917, %v5926
      %v5931 = vadd.f32 %v5905, %v5929
      %v5932 = vadd.f32 %v5906, %v5930
      %5933 = vset.pattern.permute.xlu0 44
      %5934 = vperm.xlu0 %5933, %v256
      %v5935 = vpop.permute.xlu0 %5934
      %v5938 = vunpack.c.l.s4 839922192
      %v5939 = vunpack.c.0.s8 %v5938
      %v5940 = vlaneseq
      %v5941 = vshrl.u32 %v5940, 7
      %v5942 = vsub.s32 %v5939, %v5941
      %v5943 = vrot.slane %v5935, %v5942
      %5944 = vrot.lane.b32.xlu0 %v4765, 98
      %v5945 = vpop.permute.xlu0 %5944
      %5946 = vrot.lane.b32.xlu0 %v4766, 98
      %v5947 = vpop.permute.xlu0 %5946
      %v5948 = vrot.slane %v5945, 4
      %v5949 = vrot.slane %v5947, 4
      %v5950 = vsel %vm4907, %v5948, %v5949
      %v5951 = vsel %vm1945, %v5945, %v5950
      %v5952 = vsel %vm1945, %v5947, %v5949
      %v5955 = vmul.f32 %v5943, %v5951
      %v5956 = vmul.f32 %v5943, %v5952
      %v5957 = vadd.f32 %v5931, %v5955
      %v5958 = vadd.f32 %v5932, %v5956
      %5959 = vset.pattern.permute.xlu0 45
      %5960 = vperm.xlu0 %5959, %v256
      %v5961 = vpop.permute.xlu0 %5960
      %v5964 = vunpack.c.l.s4 839922192
      %v5965 = vunpack.c.0.s8 %v5964
      %v5966 = vlaneseq
      %v5967 = vshrl.u32 %v5966, 7
      %v5968 = vsub.s32 %v5965, %v5967
      %v5969 = vrot.slane %v5961, %v5968
      %5970 = vrot.lane.b32.xlu0 %v4804, 98
      %v5971 = vpop.permute.xlu0 %5970
      %5972 = vrot.lane.b32.xlu0 %v4805, 98
      %v5973 = vpop.permute.xlu0 %5972
      %v5974 = vrot.slane %v5971, 4
      %v5975 = vrot.slane %v5973, 4
      %v5976 = vsel %vm4907, %v5974, %v5975
      %v5977 = vsel %vm1945, %v5971, %v5976
      %v5978 = vsel %vm1945, %v5973, %v5975
      %v5981 = vmul.f32 %v5969, %v5977
      %v5982 = vmul.f32 %v5969, %v5978
      %v5983 = vadd.f32 %v5957, %v5981
      %v5984 = vadd.f32 %v5958, %v5982
      %5985 = vset.pattern.permute.xlu0 46
      %5986 = vperm.xlu0 %5985, %v256
      %v5987 = vpop.permute.xlu0 %5986
      %v5990 = vunpack.c.l.s4 839922192
      %v5991 = vunpack.c.0.s8 %v5990
      %v5992 = vlaneseq
      %v5993 = vshrl.u32 %v5992, 7
      %v5994 = vsub.s32 %v5991, %v5993
      %v5995 = vrot.slane %v5987, %v5994
      %5996 = vrot.lane.b32.xlu0 %v4843, 98
      %v5997 = vpop.permute.xlu0 %5996
      %5998 = vrot.lane.b32.xlu0 %v4844, 98
      %v5999 = vpop.permute.xlu0 %5998
      %v6000 = vrot.slane %v5997, 4
      %v6001 = vrot.slane %v5999, 4
      %v6002 = vsel %vm4907, %v6000, %v6001
      %v6003 = vsel %vm1945, %v5997, %v6002
      %v6004 = vsel %vm1945, %v5999, %v6001
      %v6007 = vmul.f32 %v5995, %v6003
      %v6008 = vmul.f32 %v5995, %v6004
      %v6009 = vadd.f32 %v5983, %v6007
      %v6010 = vadd.f32 %v5984, %v6008
      %6011 = vset.pattern.permute.xlu0 47
      %6012 = vperm.xlu0 %6011, %v256
      %v6013 = vpop.permute.xlu0 %6012
      %v6016 = vunpack.c.l.s4 839922192
      %v6017 = vunpack.c.0.s8 %v6016
      %v6018 = vlaneseq
      %v6019 = vshrl.u32 %v6018, 7
      %v6020 = vsub.s32 %v6017, %v6019
      %v6021 = vrot.slane %v6013, %v6020
      %6022 = vrot.lane.b32.xlu0 %v4882, 98
      %v6023 = vpop.permute.xlu0 %6022
      %6024 = vrot.lane.b32.xlu0 %v4883, 98
      %v6025 = vpop.permute.xlu0 %6024
      %v6026 = vrot.slane %v6023, 4
      %v6027 = vrot.slane %v6025, 4
      %v6028 = vsel %vm4907, %v6026, %v6027
      %v6029 = vsel %vm1945, %v6023, %v6028
      %v6030 = vsel %vm1945, %v6025, %v6027
      %v6033 = vmul.f32 %v6021, %v6029
      %v6034 = vmul.f32 %v6021, %v6030
      %v6035 = vadd.f32 %v6009, %v6033
      %v6036 = vadd.f32 %v6010, %v6034
      %6037 = vset.pattern.permute.xlu0 48
      %6038 = vperm.xlu0 %6037, %v256
      %v6039 = vpop.permute.xlu0 %6038
      %v6042 = vunpack.c.l.s4 839922192
      %v6043 = vunpack.c.0.s8 %v6042
      %v6044 = vlaneseq
      %v6045 = vshrl.u32 %v6044, 7
      %v6046 = vsub.s32 %v6043, %v6045
      %v6047 = vrot.slane %v6039, %v6046
      %6048 = vrot.lane.b32.xlu0 %v4765, 97
      %v6049 = vpop.permute.xlu0 %6048
      %6050 = vrot.lane.b32.xlu0 %v4766, 97
      %v6051 = vpop.permute.xlu0 %6050
      %v6052 = vrot.slane %v6049, 4
      %v6053 = vrot.slane %v6051, 4
      %v6054 = vsel %vm4907, %v6052, %v6053
      %vm6055 = vcmask 793600
      %v6056 = vsel %vm6055, %v6049, %v6054
      %v6057 = vsel %vm6055, %v6051, %v6053
      %v6060 = vmul.f32 %v6047, %v6056
      %v6061 = vmul.f32 %v6047, %v6057
      %v6062 = vadd.f32 %v6035, %v6060
      %v6063 = vadd.f32 %v6036, %v6061
      %6064 = vset.pattern.permute.xlu0 49
      %6065 = vperm.xlu0 %6064, %v256
      %v6066 = vpop.permute.xlu0 %6065
      %v6069 = vunpack.c.l.s4 839922192
      %v6070 = vunpack.c.0.s8 %v6069
      %v6071 = vlaneseq
      %v6072 = vshrl.u32 %v6071, 7
      %v6073 = vsub.s32 %v6070, %v6072
      %v6074 = vrot.slane %v6066, %v6073
      %6075 = vrot.lane.b32.xlu0 %v4804, 97
      %v6076 = vpop.permute.xlu0 %6075
      %6077 = vrot.lane.b32.xlu0 %v4805, 97
      %v6078 = vpop.permute.xlu0 %6077
      %v6079 = vrot.slane %v6076, 4
      %v6080 = vrot.slane %v6078, 4
      %v6081 = vsel %vm4907, %v6079, %v6080
      %v6082 = vsel %vm6055, %v6076, %v6081
      %v6083 = vsel %vm6055, %v6078, %v6080
      %v6086 = vmul.f32 %v6074, %v6082
      %v6087 = vmul.f32 %v6074, %v6083
      %v6088 = vadd.f32 %v6062, %v6086
      %v6089 = vadd.f32 %v6063, %v6087
      %6090 = vset.pattern.permute.xlu0 50
      %6091 = vperm.xlu0 %6090, %v256
      %v6092 = vpop.permute.xlu0 %6091
      %v6095 = vunpack.c.l.s4 839922192
      %v6096 = vunpack.c.0.s8 %v6095
      %v6097 = vlaneseq
      %v6098 = vshrl.u32 %v6097, 7
      %v6099 = vsub.s32 %v6096, %v6098
      %v6100 = vrot.slane %v6092, %v6099
      %6101 = vrot.lane.b32.xlu0 %v4843, 97
      %v6102 = vpop.permute.xlu0 %6101
      %6103 = vrot.lane.b32.xlu0 %v4844, 97
      %v6104 = vpop.permute.xlu0 %6103
      %v6105 = vrot.slane %v6102, 4
      %v6106 = vrot.slane %v6104, 4
      %v6107 = vsel %vm4907, %v6105, %v6106
      %v6108 = vsel %vm6055, %v6102, %v6107
      %v6109 = vsel %vm6055, %v6104, %v6106
      %v6112 = vmul.f32 %v6100, %v6108
      %v6113 = vmul.f32 %v6100, %v6109
      %v6114 = vadd.f32 %v6088, %v6112
      %v6115 = vadd.f32 %v6089, %v6113
      %6116 = vset.pattern.permute.xlu0 51
      %6117 = vperm.xlu0 %6116, %v256
      %v6118 = vpop.permute.xlu0 %6117
      %v6121 = vunpack.c.l.s4 839922192
      %v6122 = vunpack.c.0.s8 %v6121
      %v6123 = vlaneseq
      %v6124 = vshrl.u32 %v6123, 7
      %v6125 = vsub.s32 %v6122, %v6124
      %v6126 = vrot.slane %v6118, %v6125
      %6127 = vrot.lane.b32.xlu0 %v4882, 97
      %v6128 = vpop.permute.xlu0 %6127
      %6129 = vrot.lane.b32.xlu0 %v4883, 97
      %v6130 = vpop.permute.xlu0 %6129
      %v6131 = vrot.slane %v6128, 4
      %v6132 = vrot.slane %v6130, 4
      %v6133 = vsel %vm4907, %v6131, %v6132
      %v6134 = vsel %vm6055, %v6128, %v6133
      %v6135 = vsel %vm6055, %v6130, %v6132
      %v6138 = vmul.f32 %v6126, %v6134
      %v6139 = vmul.f32 %v6126, %v6135
      %v6140 = vadd.f32 %v6114, %v6138
      %v6141 = vadd.f32 %v6115, %v6139
      %6142 = vset.pattern.permute.xlu0 52
      %6143 = vperm.xlu0 %6142, %v256
      %v6144 = vpop.permute.xlu0 %6143
      %v6147 = vunpack.c.l.s4 839922192
      %v6148 = vunpack.c.0.s8 %v6147
      %v6149 = vlaneseq
      %v6150 = vshrl.u32 %v6149, 7
      %v6151 = vsub.s32 %v6148, %v6150
      %v6152 = vrot.slane %v6144, %v6151
      %6153 = vrot.lane.b32.xlu0 %v4765, 96
      %v6154 = vpop.permute.xlu0 %6153
      %6155 = vrot.lane.b32.xlu0 %v4766, 96
      %v6156 = vpop.permute.xlu0 %6155
      %v6157 = vrot.slane %v6154, 4
      %v6158 = vrot.slane %v6156, 4
      %v6159 = vsel %vm4907, %v6157, %v6158
      %vm6160 = vcmask 785408
      %v6161 = vsel %vm6160, %v6154, %v6159
      %v6162 = vsel %vm6160, %v6156, %v6158
      %v6165 = vmul.f32 %v6152, %v6161
      %v6166 = vmul.f32 %v6152, %v6162
      %v6167 = vadd.f32 %v6140, %v6165
      %v6168 = vadd.f32 %v6141, %v6166
      %6169 = vset.pattern.permute.xlu0 53
      %6170 = vperm.xlu0 %6169, %v256
      %v6171 = vpop.permute.xlu0 %6170
      %v6174 = vunpack.c.l.s4 839922192
      %v6175 = vunpack.c.0.s8 %v6174
      %v6176 = vlaneseq
      %v6177 = vshrl.u32 %v6176, 7
      %v6178 = vsub.s32 %v6175, %v6177
      %v6179 = vrot.slane %v6171, %v6178
      %6180 = vrot.lane.b32.xlu0 %v4804, 96
      %v6181 = vpop.permute.xlu0 %6180
      %6182 = vrot.lane.b32.xlu0 %v4805, 96
      %v6183 = vpop.permute.xlu0 %6182
      %v6184 = vrot.slane %v6181, 4
      %v6185 = vrot.slane %v6183, 4
      %v6186 = vsel %vm4907, %v6184, %v6185
      %v6187 = vsel %vm6160, %v6181, %v6186
      %v6188 = vsel %vm6160, %v6183, %v6185
      %v6191 = vmul.f32 %v6179, %v6187
      %v6192 = vmul.f32 %v6179, %v6188
      %v6193 = vadd.f32 %v6167, %v6191
      %v6194 = vadd.f32 %v6168, %v6192
      %6195 = vset.pattern.permute.xlu0 54
      %6196 = vperm.xlu0 %6195, %v256
      %v6197 = vpop.permute.xlu0 %6196
      %v6200 = vunpack.c.l.s4 839922192
      %v6201 = vunpack.c.0.s8 %v6200
      %v6202 = vlaneseq
      %v6203 = vshrl.u32 %v6202, 7
      %v6204 = vsub.s32 %v6201, %v6203
      %v6205 = vrot.slane %v6197, %v6204
      %6206 = vrot.lane.b32.xlu0 %v4843, 96
      %v6207 = vpop.permute.xlu0 %6206
      %6208 = vrot.lane.b32.xlu0 %v4844, 96
      %v6209 = vpop.permute.xlu0 %6208
      %v6210 = vrot.slane %v6207, 4
      %v6211 = vrot.slane %v6209, 4
      %v6212 = vsel %vm4907, %v6210, %v6211
      %v6213 = vsel %vm6160, %v6207, %v6212
      %v6214 = vsel %vm6160, %v6209, %v6211
      %v6217 = vmul.f32 %v6205, %v6213
      %v6218 = vmul.f32 %v6205, %v6214
      %v6219 = vadd.f32 %v6193, %v6217
      %v6220 = vadd.f32 %v6194, %v6218
      %6221 = vset.pattern.permute.xlu0 55
      %6222 = vperm.xlu0 %6221, %v256
      %v6223 = vpop.permute.xlu0 %6222
      %v6226 = vunpack.c.l.s4 839922192
      %v6227 = vunpack.c.0.s8 %v6226
      %v6228 = vlaneseq
      %v6229 = vshrl.u32 %v6228, 7
      %v6230 = vsub.s32 %v6227, %v6229
      %v6231 = vrot.slane %v6223, %v6230
      %6232 = vrot.lane.b32.xlu0 %v4882, 96
      %v6233 = vpop.permute.xlu0 %6232
      %6234 = vrot.lane.b32.xlu0 %v4883, 96
      %v6235 = vpop.permute.xlu0 %6234
      %v6236 = vrot.slane %v6233, 4
      %v6237 = vrot.slane %v6235, 4
      %v6238 = vsel %vm4907, %v6236, %v6237
      %v6239 = vsel %vm6160, %v6233, %v6238
      %v6240 = vsel %vm6160, %v6235, %v6237
      %v6243 = vmul.f32 %v6231, %v6239
      %v6244 = vmul.f32 %v6231, %v6240
      %v6245 = vadd.f32 %v6219, %v6243
      %v6246 = vadd.f32 %v6220, %v6244
      %6247 = vset.pattern.permute.xlu0 56
      %6248 = vperm.xlu0 %6247, %v256
      %v6249 = vpop.permute.xlu0 %6248
      %v6252 = vunpack.c.l.s4 839922192
      %v6253 = vunpack.c.0.s8 %v6252
      %v6254 = vlaneseq
      %v6255 = vshrl.u32 %v6254, 7
      %v6256 = vsub.s32 %v6253, %v6255
      %v6257 = vrot.slane %v6249, %v6256
      %6258 = vrot.lane.b32.xlu0 %v4765, 76
      %v6259 = vpop.permute.xlu0 %6258
      %6260 = vrot.lane.b32.xlu0 %v4766, 76
      %v6261 = vpop.permute.xlu0 %6260
      %v6262 = vrot.slane %v6259, 4
      %v6263 = vrot.slane %v6261, 4
      %v6264 = vsel %vm4907, %v6262, %v6263
      %v6265 = vsel %vm2118, %v6259, %v6264
      %v6266 = vsel %vm2118, %v6261, %v6263
      %v6269 = vmul.f32 %v6257, %v6265
      %v6270 = vmul.f32 %v6257, %v6266
      %v6271 = vadd.f32 %v6245, %v6269
      %v6272 = vadd.f32 %v6246, %v6270
      %6273 = vset.pattern.permute.xlu0 57
      %6274 = vperm.xlu0 %6273, %v256
      %v6275 = vpop.permute.xlu0 %6274
      %v6278 = vunpack.c.l.s4 839922192
      %v6279 = vunpack.c.0.s8 %v6278
      %v6280 = vlaneseq
      %v6281 = vshrl.u32 %v6280, 7
      %v6282 = vsub.s32 %v6279, %v6281
      %v6283 = vrot.slane %v6275, %v6282
      %6284 = vrot.lane.b32.xlu0 %v4804, 76
      %v6285 = vpop.permute.xlu0 %6284
      %6286 = vrot.lane.b32.xlu0 %v4805, 76
      %v6287 = vpop.permute.xlu0 %6286
      %v6288 = vrot.slane %v6285, 4
      %v6289 = vrot.slane %v6287, 4
      %v6290 = vsel %vm4907, %v6288, %v6289
      %v6291 = vsel %vm2118, %v6285, %v6290
      %v6292 = vsel %vm2118, %v6287, %v6289
      %v6295 = vmul.f32 %v6283, %v6291
      %v6296 = vmul.f32 %v6283, %v6292
      %v6297 = vadd.f32 %v6271, %v6295
      %v6298 = vadd.f32 %v6272, %v6296
      %6299 = vset.pattern.permute.xlu0 58
      %6300 = vperm.xlu0 %6299, %v256
      %v6301 = vpop.permute.xlu0 %6300
      %v6304 = vunpack.c.l.s4 839922192
      %v6305 = vunpack.c.0.s8 %v6304
      %v6306 = vlaneseq
      %v6307 = vshrl.u32 %v6306, 7
      %v6308 = vsub.s32 %v6305, %v6307
      %v6309 = vrot.slane %v6301, %v6308
      %6310 = vrot.lane.b32.xlu0 %v4843, 76
      %v6311 = vpop.permute.xlu0 %6310
      %6312 = vrot.lane.b32.xlu0 %v4844, 76
      %v6313 = vpop.permute.xlu0 %6312
      %v6314 = vrot.slane %v6311, 4
      %v6315 = vrot.slane %v6313, 4
      %v6316 = vsel %vm4907, %v6314, %v6315
      %v6317 = vsel %vm2118, %v6311, %v6316
      %v6318 = vsel %vm2118, %v6313, %v6315
      %v6321 = vmul.f32 %v6309, %v6317
      %v6322 = vmul.f32 %v6309, %v6318
      %v6323 = vadd.f32 %v6297, %v6321
      %v6324 = vadd.f32 %v6298, %v6322
      %6325 = vset.pattern.permute.xlu0 59
      %6326 = vperm.xlu0 %6325, %v256
      %v6327 = vpop.permute.xlu0 %6326
      %v6330 = vunpack.c.l.s4 839922192
      %v6331 = vunpack.c.0.s8 %v6330
      %v6332 = vlaneseq
      %v6333 = vshrl.u32 %v6332, 7
      %v6334 = vsub.s32 %v6331, %v6333
      %v6335 = vrot.slane %v6327, %v6334
      %6336 = vrot.lane.b32.xlu0 %v4882, 76
      %v6337 = vpop.permute.xlu0 %6336
      %6338 = vrot.lane.b32.xlu0 %v4883, 76
      %v6339 = vpop.permute.xlu0 %6338
      %v6340 = vrot.slane %v6337, 4
      %v6341 = vrot.slane %v6339, 4
      %v6342 = vsel %vm4907, %v6340, %v6341
      %v6343 = vsel %vm2118, %v6337, %v6342
      %v6344 = vsel %vm2118, %v6339, %v6341
      %v6347 = vmul.f32 %v6335, %v6343
      %v6348 = vmul.f32 %v6335, %v6344
      %v6349 = vadd.f32 %v6323, %v6347
      %v6350 = vadd.f32 %v6324, %v6348
      %6351 = vset.pattern.permute.xlu0 60
      %6352 = vperm.xlu0 %6351, %v256
      %v6353 = vpop.permute.xlu0 %6352
      %v6356 = vunpack.c.l.s4 839922192
      %v6357 = vunpack.c.0.s8 %v6356
      %v6358 = vlaneseq
      %v6359 = vshrl.u32 %v6358, 7
      %v6360 = vsub.s32 %v6357, %v6359
      %v6361 = vrot.slane %v6353, %v6360
      %6362 = vrot.lane.b32.xlu0 %v4765, 75
      %v6363 = vpop.permute.xlu0 %6362
      %6364 = vrot.lane.b32.xlu0 %v4766, 75
      %v6365 = vpop.permute.xlu0 %6364
      %v6366 = vrot.slane %v6363, 4
      %v6367 = vrot.slane %v6365, 4
      %v6368 = vsel %vm4907, %v6366, %v6367
      %v6369 = vsel %vm2291, %v6363, %v6368
      %v6370 = vsel %vm2291, %v6365, %v6367
      %v6373 = vmul.f32 %v6361, %v6369
      %v6374 = vmul.f32 %v6361, %v6370
      %v6375 = vadd.f32 %v6349, %v6373
      %v6376 = vadd.f32 %v6350, %v6374
      %6377 = vset.pattern.permute.xlu0 61
      %6378 = vperm.xlu0 %6377, %v256
      %v6379 = vpop.permute.xlu0 %6378
      %v6382 = vunpack.c.l.s4 839922192
      %v6383 = vunpack.c.0.s8 %v6382
      %v6384 = vlaneseq
      %v6385 = vshrl.u32 %v6384, 7
      %v6386 = vsub.s32 %v6383, %v6385
      %v6387 = vrot.slane %v6379, %v6386
      %6388 = vrot.lane.b32.xlu0 %v4804, 75
      %v6389 = vpop.permute.xlu0 %6388
      %6390 = vrot.lane.b32.xlu0 %v4805, 75
      %v6391 = vpop.permute.xlu0 %6390
      %v6392 = vrot.slane %v6389, 4
      %v6393 = vrot.slane %v6391, 4
      %v6394 = vsel %vm4907, %v6392, %v6393
      %v6395 = vsel %vm2291, %v6389, %v6394
      %v6396 = vsel %vm2291, %v6391, %v6393
      %v6399 = vmul.f32 %v6387, %v6395
      %v6400 = vmul.f32 %v6387, %v6396
      %v6401 = vadd.f32 %v6375, %v6399
      %v6402 = vadd.f32 %v6376, %v6400
      %6403 = vset.pattern.permute.xlu0 62
      %6404 = vperm.xlu0 %6403, %v256
      %v6405 = vpop.permute.xlu0 %6404
      %v6408 = vunpack.c.l.s4 839922192
      %v6409 = vunpack.c.0.s8 %v6408
      %v6410 = vlaneseq
      %v6411 = vshrl.u32 %v6410, 7
      %v6412 = vsub.s32 %v6409, %v6411
      %v6413 = vrot.slane %v6405, %v6412
      %6414 = vrot.lane.b32.xlu0 %v4843, 75
      %v6415 = vpop.permute.xlu0 %6414
      %6416 = vrot.lane.b32.xlu0 %v4844, 75
      %v6417 = vpop.permute.xlu0 %6416
      %v6418 = vrot.slane %v6415, 4
      %v6419 = vrot.slane %v6417, 4
      %v6420 = vsel %vm4907, %v6418, %v6419
      %v6421 = vsel %vm2291, %v6415, %v6420
      %v6422 = vsel %vm2291, %v6417, %v6419
      %v6425 = vmul.f32 %v6413, %v6421
      %v6426 = vmul.f32 %v6413, %v6422
      %v6427 = vadd.f32 %v6401, %v6425
      %v6428 = vadd.f32 %v6402, %v6426
      %6429 = vset.pattern.permute.xlu0 63
      %6430 = vperm.xlu0 %6429, %v256
      %v6431 = vpop.permute.xlu0 %6430
      %v6434 = vunpack.c.l.s4 839922192
      %v6435 = vunpack.c.0.s8 %v6434
      %v6436 = vlaneseq
      %v6437 = vshrl.u32 %v6436, 7
      %v6438 = vsub.s32 %v6435, %v6437
      %v6439 = vrot.slane %v6431, %v6438
      %6440 = vrot.lane.b32.xlu0 %v4882, 75
      %v6441 = vpop.permute.xlu0 %6440
      %6442 = vrot.lane.b32.xlu0 %v4883, 75
      %v6443 = vpop.permute.xlu0 %6442
      %v6444 = vrot.slane %v6441, 4
      %v6445 = vrot.slane %v6443, 4
      %v6446 = vsel %vm4907, %v6444, %v6445
      %v6447 = vsel %vm2291, %v6441, %v6446
      %v6448 = vsel %vm2291, %v6443, %v6445
      %v6451 = vmul.f32 %v6439, %v6447
      %v6452 = vmul.f32 %v6439, %v6448
      %v6453 = vadd.f32 %v6427, %v6451
      %v6454 = vadd.f32 %v6428, %v6452
      %6455 = vset.pattern.permute.xlu0 64
      %6456 = vperm.xlu0 %6455, %v256
      %v6457 = vpop.permute.xlu0 %6456
      %v6460 = vunpack.c.l.s4 839922192
      %v6461 = vunpack.c.0.s8 %v6460
      %v6462 = vlaneseq
      %v6463 = vshrl.u32 %v6462, 7
      %v6464 = vsub.s32 %v6461, %v6463
      %v6465 = vrot.slane %v6457, %v6464
      %6466 = vrot.lane.b32.xlu0 %v4765, 74
      %v6467 = vpop.permute.xlu0 %6466
      %6468 = vrot.lane.b32.xlu0 %v4766, 74
      %v6469 = vpop.permute.xlu0 %6468
      %v6470 = vrot.slane %v6467, 4
      %v6471 = vrot.slane %v6469, 4
      %v6472 = vsel %vm4907, %v6470, %v6471
      %v6473 = vsel %vm2464, %v6467, %v6472
      %v6474 = vsel %vm2464, %v6469, %v6471
      %v6477 = vmul.f32 %v6465, %v6473
      %v6478 = vmul.f32 %v6465, %v6474
      %v6479 = vadd.f32 %v6453, %v6477
      %v6480 = vadd.f32 %v6454, %v6478
      %6481 = vset.pattern.permute.xlu0 65
      %6482 = vperm.xlu0 %6481, %v256
      %v6483 = vpop.permute.xlu0 %6482
      %v6486 = vunpack.c.l.s4 839922192
      %v6487 = vunpack.c.0.s8 %v6486
      %v6488 = vlaneseq
      %v6489 = vshrl.u32 %v6488, 7
      %v6490 = vsub.s32 %v6487, %v6489
      %v6491 = vrot.slane %v6483, %v6490
      %6492 = vrot.lane.b32.xlu0 %v4804, 74
      %v6493 = vpop.permute.xlu0 %6492
      %6494 = vrot.lane.b32.xlu0 %v4805, 74
      %v6495 = vpop.permute.xlu0 %6494
      %v6496 = vrot.slane %v6493, 4
      %v6497 = vrot.slane %v6495, 4
      %v6498 = vsel %vm4907, %v6496, %v6497
      %v6499 = vsel %vm2464, %v6493, %v6498
      %v6500 = vsel %vm2464, %v6495, %v6497
      %v6503 = vmul.f32 %v6491, %v6499
      %v6504 = vmul.f32 %v6491, %v6500
      %v6505 = vadd.f32 %v6479, %v6503
      %v6506 = vadd.f32 %v6480, %v6504
      %6507 = vset.pattern.permute.xlu0 66
      %6508 = vperm.xlu0 %6507, %v256
      %v6509 = vpop.permute.xlu0 %6508
      %v6512 = vunpack.c.l.s4 839922192
      %v6513 = vunpack.c.0.s8 %v6512
      %v6514 = vlaneseq
      %v6515 = vshrl.u32 %v6514, 7
      %v6516 = vsub.s32 %v6513, %v6515
      %v6517 = vrot.slane %v6509, %v6516
      %6518 = vrot.lane.b32.xlu0 %v4843, 74
      %v6519 = vpop.permute.xlu0 %6518
      %6520 = vrot.lane.b32.xlu0 %v4844, 74
      %v6521 = vpop.permute.xlu0 %6520
      %v6522 = vrot.slane %v6519, 4
      %v6523 = vrot.slane %v6521, 4
      %v6524 = vsel %vm4907, %v6522, %v6523
      %v6525 = vsel %vm2464, %v6519, %v6524
      %v6526 = vsel %vm2464, %v6521, %v6523
      %v6529 = vmul.f32 %v6517, %v6525
      %v6530 = vmul.f32 %v6517, %v6526
      %v6531 = vadd.f32 %v6505, %v6529
      %v6532 = vadd.f32 %v6506, %v6530
      %6533 = vset.pattern.permute.xlu0 67
      %6534 = vperm.xlu0 %6533, %v256
      %v6535 = vpop.permute.xlu0 %6534
      %v6538 = vunpack.c.l.s4 839922192
      %v6539 = vunpack.c.0.s8 %v6538
      %v6540 = vlaneseq
      %v6541 = vshrl.u32 %v6540, 7
      %v6542 = vsub.s32 %v6539, %v6541
      %v6543 = vrot.slane %v6535, %v6542
      %6544 = vrot.lane.b32.xlu0 %v4882, 74
      %v6545 = vpop.permute.xlu0 %6544
      %6546 = vrot.lane.b32.xlu0 %v4883, 74
      %v6547 = vpop.permute.xlu0 %6546
      %v6548 = vrot.slane %v6545, 4
      %v6549 = vrot.slane %v6547, 4
      %v6550 = vsel %vm4907, %v6548, %v6549
      %v6551 = vsel %vm2464, %v6545, %v6550
      %v6552 = vsel %vm2464, %v6547, %v6549
      %v6555 = vmul.f32 %v6543, %v6551
      %v6556 = vmul.f32 %v6543, %v6552
      %v6557 = vadd.f32 %v6531, %v6555
      %v6558 = vadd.f32 %v6532, %v6556
      %6559 = vset.pattern.permute.xlu0 68
      %6560 = vperm.xlu0 %6559, %v256
      %v6561 = vpop.permute.xlu0 %6560
      %v6564 = vunpack.c.l.s4 839922192
      %v6565 = vunpack.c.0.s8 %v6564
      %v6566 = vlaneseq
      %v6567 = vshrl.u32 %v6566, 7
      %v6568 = vsub.s32 %v6565, %v6567
      %v6569 = vrot.slane %v6561, %v6568
      %6570 = vrot.lane.b32.xlu0 %v4765, 73
      %v6571 = vpop.permute.xlu0 %6570
      %6572 = vrot.lane.b32.xlu0 %v4766, 73
      %v6573 = vpop.permute.xlu0 %6572
      %v6574 = vrot.slane %v6571, 4
      %v6575 = vrot.slane %v6573, 4
      %v6576 = vsel %vm4907, %v6574, %v6575
      %v6577 = vsel %vm2637, %v6571, %v6576
      %v6578 = vsel %vm2637, %v6573, %v6575
      %v6581 = vmul.f32 %v6569, %v6577
      %v6582 = vmul.f32 %v6569, %v6578
      %v6583 = vadd.f32 %v6557, %v6581
      %v6584 = vadd.f32 %v6558, %v6582
      %6585 = vset.pattern.permute.xlu0 69
      %6586 = vperm.xlu0 %6585, %v256
      %v6587 = vpop.permute.xlu0 %6586
      %v6590 = vunpack.c.l.s4 839922192
      %v6591 = vunpack.c.0.s8 %v6590
      %v6592 = vlaneseq
      %v6593 = vshrl.u32 %v6592, 7
      %v6594 = vsub.s32 %v6591, %v6593
      %v6595 = vrot.slane %v6587, %v6594
      %6596 = vrot.lane.b32.xlu0 %v4804, 73
      %v6597 = vpop.permute.xlu0 %6596
      %6598 = vrot.lane.b32.xlu0 %v4805, 73
      %v6599 = vpop.permute.xlu0 %6598
      %v6600 = vrot.slane %v6597, 4
      %v6601 = vrot.slane %v6599, 4
      %v6602 = vsel %vm4907, %v6600, %v6601
      %v6603 = vsel %vm2637, %v6597, %v6602
      %v6604 = vsel %vm2637, %v6599, %v6601
      %v6607 = vmul.f32 %v6595, %v6603
      %v6608 = vmul.f32 %v6595, %v6604
      %v6609 = vadd.f32 %v6583, %v6607
      %v6610 = vadd.f32 %v6584, %v6608
      %6611 = vset.pattern.permute.xlu0 70
      %6612 = vperm.xlu0 %6611, %v256
      %v6613 = vpop.permute.xlu0 %6612
      %v6616 = vunpack.c.l.s4 839922192
      %v6617 = vunpack.c.0.s8 %v6616
      %v6618 = vlaneseq
      %v6619 = vshrl.u32 %v6618, 7
      %v6620 = vsub.s32 %v6617, %v6619
      %v6621 = vrot.slane %v6613, %v6620
      %6622 = vrot.lane.b32.xlu0 %v4843, 73
      %v6623 = vpop.permute.xlu0 %6622
      %6624 = vrot.lane.b32.xlu0 %v4844, 73
      %v6625 = vpop.permute.xlu0 %6624
      %v6626 = vrot.slane %v6623, 4
      %v6627 = vrot.slane %v6625, 4
      %v6628 = vsel %vm4907, %v6626, %v6627
      %v6629 = vsel %vm2637, %v6623, %v6628
      %v6630 = vsel %vm2637, %v6625, %v6627
      %v6633 = vmul.f32 %v6621, %v6629
      %v6634 = vmul.f32 %v6621, %v6630
      %v6635 = vadd.f32 %v6609, %v6633
      %v6636 = vadd.f32 %v6610, %v6634
      %6637 = vset.pattern.permute.xlu0 71
      %6638 = vperm.xlu0 %6637, %v256
      %v6639 = vpop.permute.xlu0 %6638
      %v6642 = vunpack.c.l.s4 839922192
      %v6643 = vunpack.c.0.s8 %v6642
      %v6644 = vlaneseq
      %v6645 = vshrl.u32 %v6644, 7
      %v6646 = vsub.s32 %v6643, %v6645
      %v6647 = vrot.slane %v6639, %v6646
      %6648 = vrot.lane.b32.xlu0 %v4882, 73
      %v6649 = vpop.permute.xlu0 %6648
      %6650 = vrot.lane.b32.xlu0 %v4883, 73
      %v6651 = vpop.permute.xlu0 %6650
      %v6652 = vrot.slane %v6649, 4
      %v6653 = vrot.slane %v6651, 4
      %v6654 = vsel %vm4907, %v6652, %v6653
      %v6655 = vsel %vm2637, %v6649, %v6654
      %v6656 = vsel %vm2637, %v6651, %v6653
      %v6659 = vmul.f32 %v6647, %v6655
      %v6660 = vmul.f32 %v6647, %v6656
      %v6661 = vadd.f32 %v6635, %v6659
      %v6662 = vadd.f32 %v6636, %v6660
      %6663 = vset.pattern.permute.xlu0 72
      %6664 = vperm.xlu0 %6663, %v256
      %v6665 = vpop.permute.xlu0 %6664
      %v6668 = vunpack.c.l.s4 839922192
      %v6669 = vunpack.c.0.s8 %v6668
      %v6670 = vlaneseq
      %v6671 = vshrl.u32 %v6670, 7
      %v6672 = vsub.s32 %v6669, %v6671
      %v6673 = vrot.slane %v6665, %v6672
      %6674 = vrot.lane.b32.xlu0 %v4765, 72
      %v6675 = vpop.permute.xlu0 %6674
      %6676 = vrot.lane.b32.xlu0 %v4766, 72
      %v6677 = vpop.permute.xlu0 %6676
      %v6678 = vrot.slane %v6675, 4
      %v6679 = vrot.slane %v6677, 4
      %v6680 = vsel %vm4907, %v6678, %v6679
      %v6681 = vsel %vm2810, %v6675, %v6680
      %v6682 = vsel %vm2810, %v6677, %v6679
      %v6685 = vmul.f32 %v6673, %v6681
      %v6686 = vmul.f32 %v6673, %v6682
      %v6687 = vadd.f32 %v6661, %v6685
      %v6688 = vadd.f32 %v6662, %v6686
      %6689 = vset.pattern.permute.xlu0 73
      %6690 = vperm.xlu0 %6689, %v256
      %v6691 = vpop.permute.xlu0 %6690
      %v6694 = vunpack.c.l.s4 839922192
      %v6695 = vunpack.c.0.s8 %v6694
      %v6696 = vlaneseq
      %v6697 = vshrl.u32 %v6696, 7
      %v6698 = vsub.s32 %v6695, %v6697
      %v6699 = vrot.slane %v6691, %v6698
      %6700 = vrot.lane.b32.xlu0 %v4804, 72
      %v6701 = vpop.permute.xlu0 %6700
      %6702 = vrot.lane.b32.xlu0 %v4805, 72
      %v6703 = vpop.permute.xlu0 %6702
      %v6704 = vrot.slane %v6701, 4
      %v6705 = vrot.slane %v6703, 4
      %v6706 = vsel %vm4907, %v6704, %v6705
      %v6707 = vsel %vm2810, %v6701, %v6706
      %v6708 = vsel %vm2810, %v6703, %v6705
      %v6711 = vmul.f32 %v6699, %v6707
      %v6712 = vmul.f32 %v6699, %v6708
      %v6713 = vadd.f32 %v6687, %v6711
      %v6714 = vadd.f32 %v6688, %v6712
      %6715 = vset.pattern.permute.xlu0 74
      %6716 = vperm.xlu0 %6715, %v256
      %v6717 = vpop.permute.xlu0 %6716
      %v6720 = vunpack.c.l.s4 839922192
      %v6721 = vunpack.c.0.s8 %v6720
      %v6722 = vlaneseq
      %v6723 = vshrl.u32 %v6722, 7
      %v6724 = vsub.s32 %v6721, %v6723
      %v6725 = vrot.slane %v6717, %v6724
      %6726 = vrot.lane.b32.xlu0 %v4843, 72
      %v6727 = vpop.permute.xlu0 %6726
      %6728 = vrot.lane.b32.xlu0 %v4844, 72
      %v6729 = vpop.permute.xlu0 %6728
      %v6730 = vrot.slane %v6727, 4
      %v6731 = vrot.slane %v6729, 4
      %v6732 = vsel %vm4907, %v6730, %v6731
      %v6733 = vsel %vm2810, %v6727, %v6732
      %v6734 = vsel %vm2810, %v6729, %v6731
      %v6737 = vmul.f32 %v6725, %v6733
      %v6738 = vmul.f32 %v6725, %v6734
      %v6739 = vadd.f32 %v6713, %v6737
      %v6740 = vadd.f32 %v6714, %v6738
      %6741 = vset.pattern.permute.xlu0 75
      %6742 = vperm.xlu0 %6741, %v256
      %v6743 = vpop.permute.xlu0 %6742
      %v6746 = vunpack.c.l.s4 839922192
      %v6747 = vunpack.c.0.s8 %v6746
      %v6748 = vlaneseq
      %v6749 = vshrl.u32 %v6748, 7
      %v6750 = vsub.s32 %v6747, %v6749
      %v6751 = vrot.slane %v6743, %v6750
      %6752 = vrot.lane.b32.xlu0 %v4882, 72
      %v6753 = vpop.permute.xlu0 %6752
      %6754 = vrot.lane.b32.xlu0 %v4883, 72
      %v6755 = vpop.permute.xlu0 %6754
      %v6756 = vrot.slane %v6753, 4
      %v6757 = vrot.slane %v6755, 4
      %v6758 = vsel %vm4907, %v6756, %v6757
      %v6759 = vsel %vm2810, %v6753, %v6758
      %v6760 = vsel %vm2810, %v6755, %v6757
      %v6763 = vmul.f32 %v6751, %v6759
      %v6764 = vmul.f32 %v6751, %v6760
      %v6765 = vadd.f32 %v6739, %v6763
      %v6766 = vadd.f32 %v6740, %v6764
      %6767 = vset.pattern.permute.xlu0 76
      %6768 = vperm.xlu0 %6767, %v256
      %v6769 = vpop.permute.xlu0 %6768
      %v6772 = vunpack.c.l.s4 839922192
      %v6773 = vunpack.c.0.s8 %v6772
      %v6774 = vlaneseq
      %v6775 = vshrl.u32 %v6774, 7
      %v6776 = vsub.s32 %v6773, %v6775
      %v6777 = vrot.slane %v6769, %v6776
      %6778 = vrot.lane.b32.xlu0 %v4765, 71
      %v6779 = vpop.permute.xlu0 %6778
      %6780 = vrot.lane.b32.xlu0 %v4766, 71
      %v6781 = vpop.permute.xlu0 %6780
      %v6782 = vrot.slane %v6779, 4
      %v6783 = vrot.slane %v6781, 4
      %v6784 = vsel %vm4907, %v6782, %v6783
      %vm6785 = vcmask 580608
      %v6786 = vsel %vm6785, %v6779, %v6784
      %v6787 = vsel %vm6785, %v6781, %v6783
      %v6790 = vmul.f32 %v6777, %v6786
      %v6791 = vmul.f32 %v6777, %v6787
      %v6792 = vadd.f32 %v6765, %v6790
      %v6793 = vadd.f32 %v6766, %v6791
      %6794 = vset.pattern.permute.xlu0 77
      %6795 = vperm.xlu0 %6794, %v256
      %v6796 = vpop.permute.xlu0 %6795
      %v6799 = vunpack.c.l.s4 839922192
      %v6800 = vunpack.c.0.s8 %v6799
      %v6801 = vlaneseq
      %v6802 = vshrl.u32 %v6801, 7
      %v6803 = vsub.s32 %v6800, %v6802
      %v6804 = vrot.slane %v6796, %v6803
      %6805 = vrot.lane.b32.xlu0 %v4804, 71
      %v6806 = vpop.permute.xlu0 %6805
      %6807 = vrot.lane.b32.xlu0 %v4805, 71
      %v6808 = vpop.permute.xlu0 %6807
      %v6809 = vrot.slane %v6806, 4
      %v6810 = vrot.slane %v6808, 4
      %v6811 = vsel %vm4907, %v6809, %v6810
      %v6812 = vsel %vm6785, %v6806, %v6811
      %v6813 = vsel %vm6785, %v6808, %v6810
      %v6816 = vmul.f32 %v6804, %v6812
      %v6817 = vmul.f32 %v6804, %v6813
      %v6818 = vadd.f32 %v6792, %v6816
      %v6819 = vadd.f32 %v6793, %v6817
      %6820 = vset.pattern.permute.xlu0 78
      %6821 = vperm.xlu0 %6820, %v256
      %v6822 = vpop.permute.xlu0 %6821
      %v6825 = vunpack.c.l.s4 839922192
      %v6826 = vunpack.c.0.s8 %v6825
      %v6827 = vlaneseq
      %v6828 = vshrl.u32 %v6827, 7
      %v6829 = vsub.s32 %v6826, %v6828
      %v6830 = vrot.slane %v6822, %v6829
      %6831 = vrot.lane.b32.xlu0 %v4843, 71
      %v6832 = vpop.permute.xlu0 %6831
      %6833 = vrot.lane.b32.xlu0 %v4844, 71
      %v6834 = vpop.permute.xlu0 %6833
      %v6835 = vrot.slane %v6832, 4
      %v6836 = vrot.slane %v6834, 4
      %v6837 = vsel %vm4907, %v6835, %v6836
      %v6838 = vsel %vm6785, %v6832, %v6837
      %v6839 = vsel %vm6785, %v6834, %v6836
      %v6842 = vmul.f32 %v6830, %v6838
      %v6843 = vmul.f32 %v6830, %v6839
      %v6844 = vadd.f32 %v6818, %v6842
      %v6845 = vadd.f32 %v6819, %v6843
      %6846 = vset.pattern.permute.xlu0 79
      %6847 = vperm.xlu0 %6846, %v256
      %v6848 = vpop.permute.xlu0 %6847
      %v6851 = vunpack.c.l.s4 839922192
      %v6852 = vunpack.c.0.s8 %v6851
      %v6853 = vlaneseq
      %v6854 = vshrl.u32 %v6853, 7
      %v6855 = vsub.s32 %v6852, %v6854
      %v6856 = vrot.slane %v6848, %v6855
      %6857 = vrot.lane.b32.xlu0 %v4882, 71
      %v6858 = vpop.permute.xlu0 %6857
      %6859 = vrot.lane.b32.xlu0 %v4883, 71
      %v6860 = vpop.permute.xlu0 %6859
      %v6861 = vrot.slane %v6858, 4
      %v6862 = vrot.slane %v6860, 4
      %v6863 = vsel %vm4907, %v6861, %v6862
      %v6864 = vsel %vm6785, %v6858, %v6863
      %v6865 = vsel %vm6785, %v6860, %v6862
      %v6868 = vmul.f32 %v6856, %v6864
      %v6869 = vmul.f32 %v6856, %v6865
      %v6870 = vadd.f32 %v6844, %v6868
      %v6871 = vadd.f32 %v6845, %v6869
      %6872 = vset.pattern.permute.xlu0 80
      %6873 = vperm.xlu0 %6872, %v256
      %v6874 = vpop.permute.xlu0 %6873
      %v6877 = vunpack.c.l.s4 839922192
      %v6878 = vunpack.c.0.s8 %v6877
      %v6879 = vlaneseq
      %v6880 = vshrl.u32 %v6879, 7
      %v6881 = vsub.s32 %v6878, %v6880
      %v6882 = vrot.slane %v6874, %v6881
      %6883 = vrot.lane.b32.xlu0 %v4765, 70
      %v6884 = vpop.permute.xlu0 %6883
      %6885 = vrot.lane.b32.xlu0 %v4766, 70
      %v6886 = vpop.permute.xlu0 %6885
      %v6887 = vrot.slane %v6884, 4
      %v6888 = vrot.slane %v6886, 4
      %v6889 = vsel %vm4907, %v6887, %v6888
      %vm6890 = vcmask 572416
      %v6891 = vsel %vm6890, %v6884, %v6889
      %v6892 = vsel %vm6890, %v6886, %v6888
      %v6895 = vmul.f32 %v6882, %v6891
      %v6896 = vmul.f32 %v6882, %v6892
      %v6897 = vadd.f32 %v6870, %v6895
      %v6898 = vadd.f32 %v6871, %v6896
      %6899 = vset.pattern.permute.xlu0 81
      %6900 = vperm.xlu0 %6899, %v256
      %v6901 = vpop.permute.xlu0 %6900
      %v6904 = vunpack.c.l.s4 839922192
      %v6905 = vunpack.c.0.s8 %v6904
      %v6906 = vlaneseq
      %v6907 = vshrl.u32 %v6906, 7
      %v6908 = vsub.s32 %v6905, %v6907
      %v6909 = vrot.slane %v6901, %v6908
      %6910 = vrot.lane.b32.xlu0 %v4804, 70
      %v6911 = vpop.permute.xlu0 %6910
      %6912 = vrot.lane.b32.xlu0 %v4805, 70
      %v6913 = vpop.permute.xlu0 %6912
      %v6914 = vrot.slane %v6911, 4
      %v6915 = vrot.slane %v6913, 4
      %v6916 = vsel %vm4907, %v6914, %v6915
      %v6917 = vsel %vm6890, %v6911, %v6916
      %v6918 = vsel %vm6890, %v6913, %v6915
      %v6921 = vmul.f32 %v6909, %v6917
      %v6922 = vmul.f32 %v6909, %v6918
      %v6923 = vadd.f32 %v6897, %v6921
      %v6924 = vadd.f32 %v6898, %v6922
      %6925 = vset.pattern.permute.xlu0 82
      %6926 = vperm.xlu0 %6925, %v256
      %v6927 = vpop.permute.xlu0 %6926
      %v6930 = vunpack.c.l.s4 839922192
      %v6931 = vunpack.c.0.s8 %v6930
      %v6932 = vlaneseq
      %v6933 = vshrl.u32 %v6932, 7
      %v6934 = vsub.s32 %v6931, %v6933
      %v6935 = vrot.slane %v6927, %v6934
      %6936 = vrot.lane.b32.xlu0 %v4843, 70
      %v6937 = vpop.permute.xlu0 %6936
      %6938 = vrot.lane.b32.xlu0 %v4844, 70
      %v6939 = vpop.permute.xlu0 %6938
      %v6940 = vrot.slane %v6937, 4
      %v6941 = vrot.slane %v6939, 4
      %v6942 = vsel %vm4907, %v6940, %v6941
      %v6943 = vsel %vm6890, %v6937, %v6942
      %v6944 = vsel %vm6890, %v6939, %v6941
      %v6947 = vmul.f32 %v6935, %v6943
      %v6948 = vmul.f32 %v6935, %v6944
      %v6949 = vadd.f32 %v6923, %v6947
      %v6950 = vadd.f32 %v6924, %v6948
      %6951 = vset.pattern.permute.xlu0 83
      %6952 = vperm.xlu0 %6951, %v256
      %v6953 = vpop.permute.xlu0 %6952
      %v6956 = vunpack.c.l.s4 839922192
      %v6957 = vunpack.c.0.s8 %v6956
      %v6958 = vlaneseq
      %v6959 = vshrl.u32 %v6958, 7
      %v6960 = vsub.s32 %v6957, %v6959
      %v6961 = vrot.slane %v6953, %v6960
      %6962 = vrot.lane.b32.xlu0 %v4882, 70
      %v6963 = vpop.permute.xlu0 %6962
      %6964 = vrot.lane.b32.xlu0 %v4883, 70
      %v6965 = vpop.permute.xlu0 %6964
      %v6966 = vrot.slane %v6963, 4
      %v6967 = vrot.slane %v6965, 4
      %v6968 = vsel %vm4907, %v6966, %v6967
      %v6969 = vsel %vm6890, %v6963, %v6968
      %v6970 = vsel %vm6890, %v6965, %v6967
      %v6973 = vmul.f32 %v6961, %v6969
      %v6974 = vmul.f32 %v6961, %v6970
      %v6975 = vadd.f32 %v6949, %v6973
      %v6976 = vadd.f32 %v6950, %v6974
      %6977 = vset.pattern.permute.xlu0 84
      %6978 = vperm.xlu0 %6977, %v256
      %v6979 = vpop.permute.xlu0 %6978
      %v6982 = vunpack.c.l.s4 839922192
      %v6983 = vunpack.c.0.s8 %v6982
      %v6984 = vlaneseq
      %v6985 = vshrl.u32 %v6984, 7
      %v6986 = vsub.s32 %v6983, %v6985
      %v6987 = vrot.slane %v6979, %v6986
      %6988 = vrot.lane.b32.xlu0 %v4765, 50
      %v6989 = vpop.permute.xlu0 %6988
      %6990 = vrot.lane.b32.xlu0 %v4766, 50
      %v6991 = vpop.permute.xlu0 %6990
      %v6992 = vrot.slane %v6989, 4
      %v6993 = vrot.slane %v6991, 4
      %v6994 = vsel %vm4907, %v6992, %v6993
      %v6995 = vsel %vm2983, %v6989, %v6994
      %v6996 = vsel %vm2983, %v6991, %v6993
      %v6999 = vmul.f32 %v6987, %v6995
      %v7000 = vmul.f32 %v6987, %v6996
      %v7001 = vadd.f32 %v6975, %v6999
      %v7002 = vadd.f32 %v6976, %v7000
      %7003 = vset.pattern.permute.xlu0 85
      %7004 = vperm.xlu0 %7003, %v256
      %v7005 = vpop.permute.xlu0 %7004
      %v7008 = vunpack.c.l.s4 839922192
      %v7009 = vunpack.c.0.s8 %v7008
      %v7010 = vlaneseq
      %v7011 = vshrl.u32 %v7010, 7
      %v7012 = vsub.s32 %v7009, %v7011
      %v7013 = vrot.slane %v7005, %v7012
      %7014 = vrot.lane.b32.xlu0 %v4804, 50
      %v7015 = vpop.permute.xlu0 %7014
      %7016 = vrot.lane.b32.xlu0 %v4805, 50
      %v7017 = vpop.permute.xlu0 %7016
      %v7018 = vrot.slane %v7015, 4
      %v7019 = vrot.slane %v7017, 4
      %v7020 = vsel %vm4907, %v7018, %v7019
      %v7021 = vsel %vm2983, %v7015, %v7020
      %v7022 = vsel %vm2983, %v7017, %v7019
      %v7025 = vmul.f32 %v7013, %v7021
      %v7026 = vmul.f32 %v7013, %v7022
      %v7027 = vadd.f32 %v7001, %v7025
      %v7028 = vadd.f32 %v7002, %v7026
      %7029 = vset.pattern.permute.xlu0 86
      %7030 = vperm.xlu0 %7029, %v256
      %v7031 = vpop.permute.xlu0 %7030
      %v7034 = vunpack.c.l.s4 839922192
      %v7035 = vunpack.c.0.s8 %v7034
      %v7036 = vlaneseq
      %v7037 = vshrl.u32 %v7036, 7
      %v7038 = vsub.s32 %v7035, %v7037
      %v7039 = vrot.slane %v7031, %v7038
      %7040 = vrot.lane.b32.xlu0 %v4843, 50
      %v7041 = vpop.permute.xlu0 %7040
      %7042 = vrot.lane.b32.xlu0 %v4844, 50
      %v7043 = vpop.permute.xlu0 %7042
      %v7044 = vrot.slane %v7041, 4
      %v7045 = vrot.slane %v7043, 4
      %v7046 = vsel %vm4907, %v7044, %v7045
      %v7047 = vsel %vm2983, %v7041, %v7046
      %v7048 = vsel %vm2983, %v7043, %v7045
      %v7051 = vmul.f32 %v7039, %v7047
      %v7052 = vmul.f32 %v7039, %v7048
      %v7053 = vadd.f32 %v7027, %v7051
      %v7054 = vadd.f32 %v7028, %v7052
      %7055 = vset.pattern.permute.xlu0 87
      %7056 = vperm.xlu0 %7055, %v256
      %v7057 = vpop.permute.xlu0 %7056
      %v7060 = vunpack.c.l.s4 839922192
      %v7061 = vunpack.c.0.s8 %v7060
      %v7062 = vlaneseq
      %v7063 = vshrl.u32 %v7062, 7
      %v7064 = vsub.s32 %v7061, %v7063
      %v7065 = vrot.slane %v7057, %v7064
      %7066 = vrot.lane.b32.xlu0 %v4882, 50
      %v7067 = vpop.permute.xlu0 %7066
      %7068 = vrot.lane.b32.xlu0 %v4883, 50
      %v7069 = vpop.permute.xlu0 %7068
      %v7070 = vrot.slane %v7067, 4
      %v7071 = vrot.slane %v7069, 4
      %v7072 = vsel %vm4907, %v7070, %v7071
      %v7073 = vsel %vm2983, %v7067, %v7072
      %v7074 = vsel %vm2983, %v7069, %v7071
      %v7077 = vmul.f32 %v7065, %v7073
      %v7078 = vmul.f32 %v7065, %v7074
      %v7079 = vadd.f32 %v7053, %v7077
      %v7080 = vadd.f32 %v7054, %v7078
      %7081 = vset.pattern.permute.xlu0 88
      %7082 = vperm.xlu0 %7081, %v256
      %v7083 = vpop.permute.xlu0 %7082
      %v7086 = vunpack.c.l.s4 839922192
      %v7087 = vunpack.c.0.s8 %v7086
      %v7088 = vlaneseq
      %v7089 = vshrl.u32 %v7088, 7
      %v7090 = vsub.s32 %v7087, %v7089
      %v7091 = vrot.slane %v7083, %v7090
      %7092 = vrot.lane.b32.xlu0 %v4765, 49
      %v7093 = vpop.permute.xlu0 %7092
      %7094 = vrot.lane.b32.xlu0 %v4766, 49
      %v7095 = vpop.permute.xlu0 %7094
      %v7096 = vrot.slane %v7093, 4
      %v7097 = vrot.slane %v7095, 4
      %v7098 = vsel %vm4907, %v7096, %v7097
      %v7099 = vsel %vm3156, %v7093, %v7098
      %v7100 = vsel %vm3156, %v7095, %v7097
      %v7103 = vmul.f32 %v7091, %v7099
      %v7104 = vmul.f32 %v7091, %v7100
      %v7105 = vadd.f32 %v7079, %v7103
      %v7106 = vadd.f32 %v7080, %v7104
      %7107 = vset.pattern.permute.xlu0 89
      %7108 = vperm.xlu0 %7107, %v256
      %v7109 = vpop.permute.xlu0 %7108
      %v7112 = vunpack.c.l.s4 839922192
      %v7113 = vunpack.c.0.s8 %v7112
      %v7114 = vlaneseq
      %v7115 = vshrl.u32 %v7114, 7
      %v7116 = vsub.s32 %v7113, %v7115
      %v7117 = vrot.slane %v7109, %v7116
      %7118 = vrot.lane.b32.xlu0 %v4804, 49
      %v7119 = vpop.permute.xlu0 %7118
      %7120 = vrot.lane.b32.xlu0 %v4805, 49
      %v7121 = vpop.permute.xlu0 %7120
      %v7122 = vrot.slane %v7119, 4
      %v7123 = vrot.slane %v7121, 4
      %v7124 = vsel %vm4907, %v7122, %v7123
      %v7125 = vsel %vm3156, %v7119, %v7124
      %v7126 = vsel %vm3156, %v7121, %v7123
      %v7129 = vmul.f32 %v7117, %v7125
      %v7130 = vmul.f32 %v7117, %v7126
      %v7131 = vadd.f32 %v7105, %v7129
      %v7132 = vadd.f32 %v7106, %v7130
      %7133 = vset.pattern.permute.xlu0 90
      %7134 = vperm.xlu0 %7133, %v256
      %v7135 = vpop.permute.xlu0 %7134
      %v7138 = vunpack.c.l.s4 839922192
      %v7139 = vunpack.c.0.s8 %v7138
      %v7140 = vlaneseq
      %v7141 = vshrl.u32 %v7140, 7
      %v7142 = vsub.s32 %v7139, %v7141
      %v7143 = vrot.slane %v7135, %v7142
      %7144 = vrot.lane.b32.xlu0 %v4843, 49
      %v7145 = vpop.permute.xlu0 %7144
      %7146 = vrot.lane.b32.xlu0 %v4844, 49
      %v7147 = vpop.permute.xlu0 %7146
      %v7148 = vrot.slane %v7145, 4
      %v7149 = vrot.slane %v7147, 4
      %v7150 = vsel %vm4907, %v7148, %v7149
      %v7151 = vsel %vm3156, %v7145, %v7150
      %v7152 = vsel %vm3156, %v7147, %v7149
      %v7155 = vmul.f32 %v7143, %v7151
      %v7156 = vmul.f32 %v7143, %v7152
      %v7157 = vadd.f32 %v7131, %v7155
      %v7158 = vadd.f32 %v7132, %v7156
      %7159 = vset.pattern.permute.xlu0 91
      %7160 = vperm.xlu0 %7159, %v256
      %v7161 = vpop.permute.xlu0 %7160
      %v7164 = vunpack.c.l.s4 839922192
      %v7165 = vunpack.c.0.s8 %v7164
      %v7166 = vlaneseq
      %v7167 = vshrl.u32 %v7166, 7
      %v7168 = vsub.s32 %v7165, %v7167
      %v7169 = vrot.slane %v7161, %v7168
      %7170 = vrot.lane.b32.xlu0 %v4882, 49
      %v7171 = vpop.permute.xlu0 %7170
      %7172 = vrot.lane.b32.xlu0 %v4883, 49
      %v7173 = vpop.permute.xlu0 %7172
      %v7174 = vrot.slane %v7171, 4
      %v7175 = vrot.slane %v7173, 4
      %v7176 = vsel %vm4907, %v7174, %v7175
      %v7177 = vsel %vm3156, %v7171, %v7176
      %v7178 = vsel %vm3156, %v7173, %v7175
      %v7181 = vmul.f32 %v7169, %v7177
      %v7182 = vmul.f32 %v7169, %v7178
      %v7183 = vadd.f32 %v7157, %v7181
      %v7184 = vadd.f32 %v7158, %v7182
      %7185 = vset.pattern.permute.xlu0 92
      %7186 = vperm.xlu0 %7185, %v256
      %v7187 = vpop.permute.xlu0 %7186
      %v7190 = vunpack.c.l.s4 839922192
      %v7191 = vunpack.c.0.s8 %v7190
      %v7192 = vlaneseq
      %v7193 = vshrl.u32 %v7192, 7
      %v7194 = vsub.s32 %v7191, %v7193
      %v7195 = vrot.slane %v7187, %v7194
      %7196 = vrot.lane.b32.xlu0 %v4765, 48
      %v7197 = vpop.permute.xlu0 %7196
      %7198 = vrot.lane.b32.xlu0 %v4766, 48
      %v7199 = vpop.permute.xlu0 %7198
      %v7200 = vrot.slane %v7197, 4
      %v7201 = vrot.slane %v7199, 4
      %v7202 = vsel %vm4907, %v7200, %v7201
      %v7203 = vsel %vm3329, %v7197, %v7202
      %v7204 = vsel %vm3329, %v7199, %v7201
      %v7207 = vmul.f32 %v7195, %v7203
      %v7208 = vmul.f32 %v7195, %v7204
      %v7209 = vadd.f32 %v7183, %v7207
      %v7210 = vadd.f32 %v7184, %v7208
      %7211 = vset.pattern.permute.xlu0 93
      %7212 = vperm.xlu0 %7211, %v256
      %v7213 = vpop.permute.xlu0 %7212
      %v7216 = vunpack.c.l.s4 839922192
      %v7217 = vunpack.c.0.s8 %v7216
      %v7218 = vlaneseq
      %v7219 = vshrl.u32 %v7218, 7
      %v7220 = vsub.s32 %v7217, %v7219
      %v7221 = vrot.slane %v7213, %v7220
      %7222 = vrot.lane.b32.xlu0 %v4804, 48
      %v7223 = vpop.permute.xlu0 %7222
      %7224 = vrot.lane.b32.xlu0 %v4805, 48
      %v7225 = vpop.permute.xlu0 %7224
      %v7226 = vrot.slane %v7223, 4
      %v7227 = vrot.slane %v7225, 4
      %v7228 = vsel %vm4907, %v7226, %v7227
      %v7229 = vsel %vm3329, %v7223, %v7228
      %v7230 = vsel %vm3329, %v7225, %v7227
      %v7233 = vmul.f32 %v7221, %v7229
      %v7234 = vmul.f32 %v7221, %v7230
      %v7235 = vadd.f32 %v7209, %v7233
      %v7236 = vadd.f32 %v7210, %v7234
      %7237 = vset.pattern.permute.xlu0 94
      %7238 = vperm.xlu0 %7237, %v256
      %v7239 = vpop.permute.xlu0 %7238
      %v7242 = vunpack.c.l.s4 839922192
      %v7243 = vunpack.c.0.s8 %v7242
      %v7244 = vlaneseq
      %v7245 = vshrl.u32 %v7244, 7
      %v7246 = vsub.s32 %v7243, %v7245
      %v7247 = vrot.slane %v7239, %v7246
      %7248 = vrot.lane.b32.xlu0 %v4843, 48
      %v7249 = vpop.permute.xlu0 %7248
      %7250 = vrot.lane.b32.xlu0 %v4844, 48
      %v7251 = vpop.permute.xlu0 %7250
      %v7252 = vrot.slane %v7249, 4
      %v7253 = vrot.slane %v7251, 4
      %v7254 = vsel %vm4907, %v7252, %v7253
      %v7255 = vsel %vm3329, %v7249, %v7254
      %v7256 = vsel %vm3329, %v7251, %v7253
      %v7259 = vmul.f32 %v7247, %v7255
      %v7260 = vmul.f32 %v7247, %v7256
      %v7261 = vadd.f32 %v7235, %v7259
      %v7262 = vadd.f32 %v7236, %v7260
      %7263 = vset.pattern.permute.xlu0 95
      %7264 = vperm.xlu0 %7263, %v256
      %v7265 = vpop.permute.xlu0 %7264
      %v7268 = vunpack.c.l.s4 839922192
      %v7269 = vunpack.c.0.s8 %v7268
      %v7270 = vlaneseq
      %v7271 = vshrl.u32 %v7270, 7
      %v7272 = vsub.s32 %v7269, %v7271
      %v7273 = vrot.slane %v7265, %v7272
      %7274 = vrot.lane.b32.xlu0 %v4882, 48
      %v7275 = vpop.permute.xlu0 %7274
      %7276 = vrot.lane.b32.xlu0 %v4883, 48
      %v7277 = vpop.permute.xlu0 %7276
      %v7278 = vrot.slane %v7275, 4
      %v7279 = vrot.slane %v7277, 4
      %v7280 = vsel %vm4907, %v7278, %v7279
      %v7281 = vsel %vm3329, %v7275, %v7280
      %v7282 = vsel %vm3329, %v7277, %v7279
      %v7285 = vmul.f32 %v7273, %v7281
      %v7286 = vmul.f32 %v7273, %v7282
      %v7287 = vadd.f32 %v7261, %v7285
      %v7288 = vadd.f32 %v7262, %v7286
      %7289 = vset.pattern.permute.xlu0 96
      %7290 = vperm.xlu0 %7289, %v256
      %v7291 = vpop.permute.xlu0 %7290
      %v7294 = vunpack.c.l.s4 839922192
      %v7295 = vunpack.c.0.s8 %v7294
      %v7296 = vlaneseq
      %v7297 = vshrl.u32 %v7296, 7
      %v7298 = vsub.s32 %v7295, %v7297
      %v7299 = vrot.slane %v7291, %v7298
      %7300 = vrot.lane.b32.xlu0 %v4765, 47
      %v7301 = vpop.permute.xlu0 %7300
      %7302 = vrot.lane.b32.xlu0 %v4766, 47
      %v7303 = vpop.permute.xlu0 %7302
      %v7304 = vrot.slane %v7301, 4
      %v7305 = vrot.slane %v7303, 4
      %v7306 = vsel %vm4907, %v7304, %v7305
      %v7307 = vsel %vm3502, %v7301, %v7306
      %v7308 = vsel %vm3502, %v7303, %v7305
      %v7311 = vmul.f32 %v7299, %v7307
      %v7312 = vmul.f32 %v7299, %v7308
      %v7313 = vadd.f32 %v7287, %v7311
      %v7314 = vadd.f32 %v7288, %v7312
      %7315 = vset.pattern.permute.xlu0 97
      %7316 = vperm.xlu0 %7315, %v256
      %v7317 = vpop.permute.xlu0 %7316
      %v7320 = vunpack.c.l.s4 839922192
      %v7321 = vunpack.c.0.s8 %v7320
      %v7322 = vlaneseq
      %v7323 = vshrl.u32 %v7322, 7
      %v7324 = vsub.s32 %v7321, %v7323
      %v7325 = vrot.slane %v7317, %v7324
      %7326 = vrot.lane.b32.xlu0 %v4804, 47
      %v7327 = vpop.permute.xlu0 %7326
      %7328 = vrot.lane.b32.xlu0 %v4805, 47
      %v7329 = vpop.permute.xlu0 %7328
      %v7330 = vrot.slane %v7327, 4
      %v7331 = vrot.slane %v7329, 4
      %v7332 = vsel %vm4907, %v7330, %v7331
      %v7333 = vsel %vm3502, %v7327, %v7332
      %v7334 = vsel %vm3502, %v7329, %v7331
      %v7337 = vmul.f32 %v7325, %v7333
      %v7338 = vmul.f32 %v7325, %v7334
      %v7339 = vadd.f32 %v7313, %v7337
      %v7340 = vadd.f32 %v7314, %v7338
      %7341 = vset.pattern.permute.xlu0 98
      %7342 = vperm.xlu0 %7341, %v256
      %v7343 = vpop.permute.xlu0 %7342
      %v7346 = vunpack.c.l.s4 839922192
      %v7347 = vunpack.c.0.s8 %v7346
      %v7348 = vlaneseq
      %v7349 = vshrl.u32 %v7348, 7
      %v7350 = vsub.s32 %v7347, %v7349
      %v7351 = vrot.slane %v7343, %v7350
      %7352 = vrot.lane.b32.xlu0 %v4843, 47
      %v7353 = vpop.permute.xlu0 %7352
      %7354 = vrot.lane.b32.xlu0 %v4844, 47
      %v7355 = vpop.permute.xlu0 %7354
      %v7356 = vrot.slane %v7353, 4
      %v7357 = vrot.slane %v7355, 4
      %v7358 = vsel %vm4907, %v7356, %v7357
      %v7359 = vsel %vm3502, %v7353, %v7358
      %v7360 = vsel %vm3502, %v7355, %v7357
      %v7363 = vmul.f32 %v7351, %v7359
      %v7364 = vmul.f32 %v7351, %v7360
      %v7365 = vadd.f32 %v7339, %v7363
      %v7366 = vadd.f32 %v7340, %v7364
      %7367 = vset.pattern.permute.xlu0 99
      %7368 = vperm.xlu0 %7367, %v256
      %v7369 = vpop.permute.xlu0 %7368
      %v7372 = vunpack.c.l.s4 839922192
      %v7373 = vunpack.c.0.s8 %v7372
      %v7374 = vlaneseq
      %v7375 = vshrl.u32 %v7374, 7
      %v7376 = vsub.s32 %v7373, %v7375
      %v7377 = vrot.slane %v7369, %v7376
      %7378 = vrot.lane.b32.xlu0 %v4882, 47
      %v7379 = vpop.permute.xlu0 %7378
      %7380 = vrot.lane.b32.xlu0 %v4883, 47
      %v7381 = vpop.permute.xlu0 %7380
      %v7382 = vrot.slane %v7379, 4
      %v7383 = vrot.slane %v7381, 4
      %v7384 = vsel %vm4907, %v7382, %v7383
      %v7385 = vsel %vm3502, %v7379, %v7384
      %v7386 = vsel %vm3502, %v7381, %v7383
      %v7389 = vmul.f32 %v7377, %v7385
      %v7390 = vmul.f32 %v7377, %v7386
      %v7391 = vadd.f32 %v7365, %v7389
      %v7392 = vadd.f32 %v7366, %v7390
      %7393 = vset.pattern.permute.xlu0 100
      %7394 = vperm.xlu0 %7393, %v256
      %v7395 = vpop.permute.xlu0 %7394
      %v7398 = vunpack.c.l.s4 839922192
      %v7399 = vunpack.c.0.s8 %v7398
      %v7400 = vlaneseq
      %v7401 = vshrl.u32 %v7400, 7
      %v7402 = vsub.s32 %v7399, %v7401
      %v7403 = vrot.slane %v7395, %v7402
      %7404 = vrot.lane.b32.xlu0 %v4765, 46
      %v7405 = vpop.permute.xlu0 %7404
      %7406 = vrot.lane.b32.xlu0 %v4766, 46
      %v7407 = vpop.permute.xlu0 %7406
      %v7408 = vrot.slane %v7405, 4
      %v7409 = vrot.slane %v7407, 4
      %v7410 = vsel %vm4907, %v7408, %v7409
      %v7411 = vsel %vm3675, %v7405, %v7410
      %v7412 = vsel %vm3675, %v7407, %v7409
      %v7415 = vmul.f32 %v7403, %v7411
      %v7416 = vmul.f32 %v7403, %v7412
      %v7417 = vadd.f32 %v7391, %v7415
      %v7418 = vadd.f32 %v7392, %v7416
      %7419 = vset.pattern.permute.xlu0 101
      %7420 = vperm.xlu0 %7419, %v256
      %v7421 = vpop.permute.xlu0 %7420
      %v7424 = vunpack.c.l.s4 839922192
      %v7425 = vunpack.c.0.s8 %v7424
      %v7426 = vlaneseq
      %v7427 = vshrl.u32 %v7426, 7
      %v7428 = vsub.s32 %v7425, %v7427
      %v7429 = vrot.slane %v7421, %v7428
      %7430 = vrot.lane.b32.xlu0 %v4804, 46
      %v7431 = vpop.permute.xlu0 %7430
      %7432 = vrot.lane.b32.xlu0 %v4805, 46
      %v7433 = vpop.permute.xlu0 %7432
      %v7434 = vrot.slane %v7431, 4
      %v7435 = vrot.slane %v7433, 4
      %v7436 = vsel %vm4907, %v7434, %v7435
      %v7437 = vsel %vm3675, %v7431, %v7436
      %v7438 = vsel %vm3675, %v7433, %v7435
      %v7441 = vmul.f32 %v7429, %v7437
      %v7442 = vmul.f32 %v7429, %v7438
      %v7443 = vadd.f32 %v7417, %v7441
      %v7444 = vadd.f32 %v7418, %v7442
      %7445 = vset.pattern.permute.xlu0 102
      %7446 = vperm.xlu0 %7445, %v256
      %v7447 = vpop.permute.xlu0 %7446
      %v7450 = vunpack.c.l.s4 839922192
      %v7451 = vunpack.c.0.s8 %v7450
      %v7452 = vlaneseq
      %v7453 = vshrl.u32 %v7452, 7
      %v7454 = vsub.s32 %v7451, %v7453
      %v7455 = vrot.slane %v7447, %v7454
      %7456 = vrot.lane.b32.xlu0 %v4843, 46
      %v7457 = vpop.permute.xlu0 %7456
      %7458 = vrot.lane.b32.xlu0 %v4844, 46
      %v7459 = vpop.permute.xlu0 %7458
      %v7460 = vrot.slane %v7457, 4
      %v7461 = vrot.slane %v7459, 4
      %v7462 = vsel %vm4907, %v7460, %v7461
      %v7463 = vsel %vm3675, %v7457, %v7462
      %v7464 = vsel %vm3675, %v7459, %v7461
      %v7467 = vmul.f32 %v7455, %v7463
      %v7468 = vmul.f32 %v7455, %v7464
      %v7469 = vadd.f32 %v7443, %v7467
      %v7470 = vadd.f32 %v7444, %v7468
      %7471 = vset.pattern.permute.xlu0 103
      %7472 = vperm.xlu0 %7471, %v256
      %v7473 = vpop.permute.xlu0 %7472
      %v7476 = vunpack.c.l.s4 839922192
      %v7477 = vunpack.c.0.s8 %v7476
      %v7478 = vlaneseq
      %v7479 = vshrl.u32 %v7478, 7
      %v7480 = vsub.s32 %v7477, %v7479
      %v7481 = vrot.slane %v7473, %v7480
      %7482 = vrot.lane.b32.xlu0 %v4882, 46
      %v7483 = vpop.permute.xlu0 %7482
      %7484 = vrot.lane.b32.xlu0 %v4883, 46
      %v7485 = vpop.permute.xlu0 %7484
      %v7486 = vrot.slane %v7483, 4
      %v7487 = vrot.slane %v7485, 4
      %v7488 = vsel %vm4907, %v7486, %v7487
      %v7489 = vsel %vm3675, %v7483, %v7488
      %v7490 = vsel %vm3675, %v7485, %v7487
      %v7493 = vmul.f32 %v7481, %v7489
      %v7494 = vmul.f32 %v7481, %v7490
      %v7495 = vadd.f32 %v7469, %v7493
      %v7496 = vadd.f32 %v7470, %v7494
      %7497 = vset.pattern.permute.xlu0 104
      %7498 = vperm.xlu0 %7497, %v256
      %v7499 = vpop.permute.xlu0 %7498
      %v7502 = vunpack.c.l.s4 839922192
      %v7503 = vunpack.c.0.s8 %v7502
      %v7504 = vlaneseq
      %v7505 = vshrl.u32 %v7504, 7
      %v7506 = vsub.s32 %v7503, %v7505
      %v7507 = vrot.slane %v7499, %v7506
      %7508 = vrot.lane.b32.xlu0 %v4765, 45
      %v7509 = vpop.permute.xlu0 %7508
      %7510 = vrot.lane.b32.xlu0 %v4766, 45
      %v7511 = vpop.permute.xlu0 %7510
      %v7512 = vrot.slane %v7509, 4
      %v7513 = vrot.slane %v7511, 4
      %v7514 = vsel %vm4907, %v7512, %v7513
      %vm7515 = vcmask 367616
      %v7516 = vsel %vm7515, %v7509, %v7514
      %v7517 = vsel %vm7515, %v7511, %v7513
      %v7520 = vmul.f32 %v7507, %v7516
      %v7521 = vmul.f32 %v7507, %v7517
      %v7522 = vadd.f32 %v7495, %v7520
      %v7523 = vadd.f32 %v7496, %v7521
      %7524 = vset.pattern.permute.xlu0 105
      %7525 = vperm.xlu0 %7524, %v256
      %v7526 = vpop.permute.xlu0 %7525
      %v7529 = vunpack.c.l.s4 839922192
      %v7530 = vunpack.c.0.s8 %v7529
      %v7531 = vlaneseq
      %v7532 = vshrl.u32 %v7531, 7
      %v7533 = vsub.s32 %v7530, %v7532
      %v7534 = vrot.slane %v7526, %v7533
      %7535 = vrot.lane.b32.xlu0 %v4804, 45
      %v7536 = vpop.permute.xlu0 %7535
      %7537 = vrot.lane.b32.xlu0 %v4805, 45
      %v7538 = vpop.permute.xlu0 %7537
      %v7539 = vrot.slane %v7536, 4
      %v7540 = vrot.slane %v7538, 4
      %v7541 = vsel %vm4907, %v7539, %v7540
      %v7542 = vsel %vm7515, %v7536, %v7541
      %v7543 = vsel %vm7515, %v7538, %v7540
      %v7546 = vmul.f32 %v7534, %v7542
      %v7547 = vmul.f32 %v7534, %v7543
      %v7548 = vadd.f32 %v7522, %v7546
      %v7549 = vadd.f32 %v7523, %v7547
      %7550 = vset.pattern.permute.xlu0 106
      %7551 = vperm.xlu0 %7550, %v256
      %v7552 = vpop.permute.xlu0 %7551
      %v7555 = vunpack.c.l.s4 839922192
      %v7556 = vunpack.c.0.s8 %v7555
      %v7557 = vlaneseq
      %v7558 = vshrl.u32 %v7557, 7
      %v7559 = vsub.s32 %v7556, %v7558
      %v7560 = vrot.slane %v7552, %v7559
      %7561 = vrot.lane.b32.xlu0 %v4843, 45
      %v7562 = vpop.permute.xlu0 %7561
      %7563 = vrot.lane.b32.xlu0 %v4844, 45
      %v7564 = vpop.permute.xlu0 %7563
      %v7565 = vrot.slane %v7562, 4
      %v7566 = vrot.slane %v7564, 4
      %v7567 = vsel %vm4907, %v7565, %v7566
      %v7568 = vsel %vm7515, %v7562, %v7567
      %v7569 = vsel %vm7515, %v7564, %v7566
      %v7572 = vmul.f32 %v7560, %v7568
      %v7573 = vmul.f32 %v7560, %v7569
      %v7574 = vadd.f32 %v7548, %v7572
      %v7575 = vadd.f32 %v7549, %v7573
      %7576 = vset.pattern.permute.xlu0 107
      %7577 = vperm.xlu0 %7576, %v256
      %v7578 = vpop.permute.xlu0 %7577
      %v7581 = vunpack.c.l.s4 839922192
      %v7582 = vunpack.c.0.s8 %v7581
      %v7583 = vlaneseq
      %v7584 = vshrl.u32 %v7583, 7
      %v7585 = vsub.s32 %v7582, %v7584
      %v7586 = vrot.slane %v7578, %v7585
      %7587 = vrot.lane.b32.xlu0 %v4882, 45
      %v7588 = vpop.permute.xlu0 %7587
      %7589 = vrot.lane.b32.xlu0 %v4883, 45
      %v7590 = vpop.permute.xlu0 %7589
      %v7591 = vrot.slane %v7588, 4
      %v7592 = vrot.slane %v7590, 4
      %v7593 = vsel %vm4907, %v7591, %v7592
      %v7594 = vsel %vm7515, %v7588, %v7593
      %v7595 = vsel %vm7515, %v7590, %v7592
      %v7598 = vmul.f32 %v7586, %v7594
      %v7599 = vmul.f32 %v7586, %v7595
      %v7600 = vadd.f32 %v7574, %v7598
      %v7601 = vadd.f32 %v7575, %v7599
      %7602 = vset.pattern.permute.xlu0 108
      %7603 = vperm.xlu0 %7602, %v256
      %v7604 = vpop.permute.xlu0 %7603
      %v7607 = vunpack.c.l.s4 839922192
      %v7608 = vunpack.c.0.s8 %v7607
      %v7609 = vlaneseq
      %v7610 = vshrl.u32 %v7609, 7
      %v7611 = vsub.s32 %v7608, %v7610
      %v7612 = vrot.slane %v7604, %v7611
      %7613 = vrot.lane.b32.xlu0 %v4765, 44
      %v7614 = vpop.permute.xlu0 %7613
      %7615 = vrot.lane.b32.xlu0 %v4766, 44
      %v7616 = vpop.permute.xlu0 %7615
      %v7617 = vrot.slane %v7614, 4
      %v7618 = vrot.slane %v7616, 4
      %v7619 = vsel %vm4907, %v7617, %v7618
      %vm7620 = vcmask 359424
      %v7621 = vsel %vm7620, %v7614, %v7619
      %v7622 = vsel %vm7620, %v7616, %v7618
      %v7625 = vmul.f32 %v7612, %v7621
      %v7626 = vmul.f32 %v7612, %v7622
      %v7627 = vadd.f32 %v7600, %v7625
      %v7628 = vadd.f32 %v7601, %v7626
      %7629 = vset.pattern.permute.xlu0 109
      %7630 = vperm.xlu0 %7629, %v256
      %v7631 = vpop.permute.xlu0 %7630
      %v7634 = vunpack.c.l.s4 839922192
      %v7635 = vunpack.c.0.s8 %v7634
      %v7636 = vlaneseq
      %v7637 = vshrl.u32 %v7636, 7
      %v7638 = vsub.s32 %v7635, %v7637
      %v7639 = vrot.slane %v7631, %v7638
      %7640 = vrot.lane.b32.xlu0 %v4804, 44
      %v7641 = vpop.permute.xlu0 %7640
      %7642 = vrot.lane.b32.xlu0 %v4805, 44
      %v7643 = vpop.permute.xlu0 %7642
      %v7644 = vrot.slane %v7641, 4
      %v7645 = vrot.slane %v7643, 4
      %v7646 = vsel %vm4907, %v7644, %v7645
      %v7647 = vsel %vm7620, %v7641, %v7646
      %v7648 = vsel %vm7620, %v7643, %v7645
      %v7651 = vmul.f32 %v7639, %v7647
      %v7652 = vmul.f32 %v7639, %v7648
      %v7653 = vadd.f32 %v7627, %v7651
      %v7654 = vadd.f32 %v7628, %v7652
      %7655 = vset.pattern.permute.xlu0 110
      %7656 = vperm.xlu0 %7655, %v256
      %v7657 = vpop.permute.xlu0 %7656
      %v7660 = vunpack.c.l.s4 839922192
      %v7661 = vunpack.c.0.s8 %v7660
      %v7662 = vlaneseq
      %v7663 = vshrl.u32 %v7662, 7
      %v7664 = vsub.s32 %v7661, %v7663
      %v7665 = vrot.slane %v7657, %v7664
      %7666 = vrot.lane.b32.xlu0 %v4843, 44
      %v7667 = vpop.permute.xlu0 %7666
      %7668 = vrot.lane.b32.xlu0 %v4844, 44
      %v7669 = vpop.permute.xlu0 %7668
      %v7670 = vrot.slane %v7667, 4
      %v7671 = vrot.slane %v7669, 4
      %v7672 = vsel %vm4907, %v7670, %v7671
      %v7673 = vsel %vm7620, %v7667, %v7672
      %v7674 = vsel %vm7620, %v7669, %v7671
      %v7677 = vmul.f32 %v7665, %v7673
      %v7678 = vmul.f32 %v7665, %v7674
      %v7679 = vadd.f32 %v7653, %v7677
      %v7680 = vadd.f32 %v7654, %v7678
      %7681 = vset.pattern.permute.xlu0 111
      %7682 = vperm.xlu0 %7681, %v256
      %v7683 = vpop.permute.xlu0 %7682
      %v7686 = vunpack.c.l.s4 839922192
      %v7687 = vunpack.c.0.s8 %v7686
      %v7688 = vlaneseq
      %v7689 = vshrl.u32 %v7688, 7
      %v7690 = vsub.s32 %v7687, %v7689
      %v7691 = vrot.slane %v7683, %v7690
      %7692 = vrot.lane.b32.xlu0 %v4882, 44
      %v7693 = vpop.permute.xlu0 %7692
      %7694 = vrot.lane.b32.xlu0 %v4883, 44
      %v7695 = vpop.permute.xlu0 %7694
      %v7696 = vrot.slane %v7693, 4
      %v7697 = vrot.slane %v7695, 4
      %v7698 = vsel %vm4907, %v7696, %v7697
      %v7699 = vsel %vm7620, %v7693, %v7698
      %v7700 = vsel %vm7620, %v7695, %v7697
      %v7703 = vmul.f32 %v7691, %v7699
      %v7704 = vmul.f32 %v7691, %v7700
      %v7705 = vadd.f32 %v7679, %v7703
      %v7706 = vadd.f32 %v7680, %v7704
      %7707 = vset.pattern.permute.xlu0 112
      %7708 = vperm.xlu0 %7707, %v256
      %v7709 = vpop.permute.xlu0 %7708
      %v7712 = vunpack.c.l.s4 839922192
      %v7713 = vunpack.c.0.s8 %v7712
      %v7714 = vlaneseq
      %v7715 = vshrl.u32 %v7714, 7
      %v7716 = vsub.s32 %v7713, %v7715
      %v7717 = vrot.slane %v7709, %v7716
      %v7718 = vlaneseq
      %v7719 = vshrl.u32 %v7718, 7
      %v7720 = vsub.s32 0, %v7719
      %v7721 = vrot.slane %v4732, %v7720
      %7723 = vrot.lane.b32.xlu0 %v4765, 24
      %v7724 = vpop.permute.xlu0 %7723
      %7725 = vrot.lane.b32.xlu0 %v4766, 24
      %v7726 = vpop.permute.xlu0 %7725
      %7727 = vrot.lane.b32.xlu0 %v7721, 24
      %v7728 = vpop.permute.xlu0 %7727
      %v7729 = vrot.slane %v7724, 4
      %v7730 = vrot.slane %v7726, 4
      %v7731 = vrot.slane %v7728, 4
      %v7732 = vsel %vm4907, %v7729, %v7730
      %v7733 = vsel %vm3848, %v7724, %v7732
      %v7734 = vsel %vm4907, %v7730, %v7731
      %v7735 = vsel %vm3848, %v7726, %v7734
      %v7738 = vmul.f32 %v7717, %v7733
      %v7739 = vmul.f32 %v7717, %v7735
      %v7740 = vadd.f32 %v7705, %v7738
      %v7741 = vadd.f32 %v7706, %v7739
      %7742 = vset.pattern.permute.xlu0 113
      %7743 = vperm.xlu0 %7742, %v256
      %v7744 = vpop.permute.xlu0 %7743
      %v7747 = vunpack.c.l.s4 839922192
      %v7748 = vunpack.c.0.s8 %v7747
      %v7749 = vlaneseq
      %v7750 = vshrl.u32 %v7749, 7
      %v7751 = vsub.s32 %v7748, %v7750
      %v7752 = vrot.slane %v7744, %v7751
      %v7753 = vlaneseq
      %v7754 = vshrl.u32 %v7753, 7
      %v7755 = vsub.s32 1, %v7754
      %v7756 = vrot.slane %v4732, %v7755
      %7758 = vrot.lane.b32.xlu0 %v4804, 24
      %v7759 = vpop.permute.xlu0 %7758
      %7760 = vrot.lane.b32.xlu0 %v4805, 24
      %v7761 = vpop.permute.xlu0 %7760
      %7762 = vrot.lane.b32.xlu0 %v7756, 24
      %v7763 = vpop.permute.xlu0 %7762
      %v7764 = vrot.slane %v7759, 4
      %v7765 = vrot.slane %v7761, 4
      %v7766 = vrot.slane %v7763, 4
      %v7767 = vsel %vm4907, %v7764, %v7765
      %v7768 = vsel %vm3848, %v7759, %v7767
      %v7769 = vsel %vm4907, %v7765, %v7766
      %v7770 = vsel %vm3848, %v7761, %v7769
      %v7773 = vmul.f32 %v7752, %v7768
      %v7774 = vmul.f32 %v7752, %v7770
      %v7775 = vadd.f32 %v7740, %v7773
      %v7776 = vadd.f32 %v7741, %v7774
      %7777 = vset.pattern.permute.xlu0 114
      %7778 = vperm.xlu0 %7777, %v256
      %v7779 = vpop.permute.xlu0 %7778
      %v7782 = vunpack.c.l.s4 839922192
      %v7783 = vunpack.c.0.s8 %v7782
      %v7784 = vlaneseq
      %v7785 = vshrl.u32 %v7784, 7
      %v7786 = vsub.s32 %v7783, %v7785
      %v7787 = vrot.slane %v7779, %v7786
      %v7788 = vlaneseq
      %v7789 = vshrl.u32 %v7788, 7
      %v7790 = vsub.s32 2, %v7789
      %v7791 = vrot.slane %v4732, %v7790
      %7793 = vrot.lane.b32.xlu0 %v4843, 24
      %v7794 = vpop.permute.xlu0 %7793
      %7795 = vrot.lane.b32.xlu0 %v4844, 24
      %v7796 = vpop.permute.xlu0 %7795
      %7797 = vrot.lane.b32.xlu0 %v7791, 24
      %v7798 = vpop.permute.xlu0 %7797
      %v7799 = vrot.slane %v7794, 4
      %v7800 = vrot.slane %v7796, 4
      %v7801 = vrot.slane %v7798, 4
      %v7802 = vsel %vm4907, %v7799, %v7800
      %v7803 = vsel %vm3848, %v7794, %v7802
      %v7804 = vsel %vm4907, %v7800, %v7801
      %v7805 = vsel %vm3848, %v7796, %v7804
      %v7808 = vmul.f32 %v7787, %v7803
      %v7809 = vmul.f32 %v7787, %v7805
      %v7810 = vadd.f32 %v7775, %v7808
      %v7811 = vadd.f32 %v7776, %v7809
      %7812 = vset.pattern.permute.xlu0 115
      %7813 = vperm.xlu0 %7812, %v256
      %v7814 = vpop.permute.xlu0 %7813
      %v7817 = vunpack.c.l.s4 839922192
      %v7818 = vunpack.c.0.s8 %v7817
      %v7819 = vlaneseq
      %v7820 = vshrl.u32 %v7819, 7
      %v7821 = vsub.s32 %v7818, %v7820
      %v7822 = vrot.slane %v7814, %v7821
      %v7823 = vlaneseq
      %v7824 = vshrl.u32 %v7823, 7
      %v7825 = vsub.s32 3, %v7824
      %v7826 = vrot.slane %v4732, %v7825
      %7828 = vrot.lane.b32.xlu0 %v4882, 24
      %v7829 = vpop.permute.xlu0 %7828
      %7830 = vrot.lane.b32.xlu0 %v4883, 24
      %v7831 = vpop.permute.xlu0 %7830
      %7832 = vrot.lane.b32.xlu0 %v7826, 24
      %v7833 = vpop.permute.xlu0 %7832
      %v7834 = vrot.slane %v7829, 4
      %v7835 = vrot.slane %v7831, 4
      %v7836 = vrot.slane %v7833, 4
      %v7837 = vsel %vm4907, %v7834, %v7835
      %v7838 = vsel %vm3848, %v7829, %v7837
      %v7839 = vsel %vm4907, %v7835, %v7836
      %v7840 = vsel %vm3848, %v7831, %v7839
      %v7843 = vmul.f32 %v7822, %v7838
      %v7844 = vmul.f32 %v7822, %v7840
      %v7845 = vadd.f32 %v7810, %v7843
      %v7846 = vadd.f32 %v7811, %v7844
      %7847 = vset.pattern.permute.xlu0 116
      %7848 = vperm.xlu0 %7847, %v256
      %v7849 = vpop.permute.xlu0 %7848
      %v7852 = vunpack.c.l.s4 839922192
      %v7853 = vunpack.c.0.s8 %v7852
      %v7854 = vlaneseq
      %v7855 = vshrl.u32 %v7854, 7
      %v7856 = vsub.s32 %v7853, %v7855
      %v7857 = vrot.slane %v7849, %v7856
      %7858 = vrot.lane.b32.xlu0 %v4765, 23
      %v7859 = vpop.permute.xlu0 %7858
      %7860 = vrot.lane.b32.xlu0 %v4766, 23
      %v7861 = vpop.permute.xlu0 %7860
      %7862 = vrot.lane.b32.xlu0 %v7721, 23
      %v7863 = vpop.permute.xlu0 %7862
      %v7864 = vrot.slane %v7859, 4
      %v7865 = vrot.slane %v7861, 4
      %v7866 = vrot.slane %v7863, 4
      %v7867 = vsel %vm4907, %v7864, %v7865
      %v7868 = vsel %vm4021, %v7859, %v7867
      %v7869 = vsel %vm4907, %v7865, %v7866
      %v7870 = vsel %vm4021, %v7861, %v7869
      %v7873 = vmul.f32 %v7857, %v7868
      %v7874 = vmul.f32 %v7857, %v7870
      %v7875 = vadd.f32 %v7845, %v7873
      %v7876 = vadd.f32 %v7846, %v7874
      %7877 = vset.pattern.permute.xlu0 117
      %7878 = vperm.xlu0 %7877, %v256
      %v7879 = vpop.permute.xlu0 %7878
      %v7882 = vunpack.c.l.s4 839922192
      %v7883 = vunpack.c.0.s8 %v7882
      %v7884 = vlaneseq
      %v7885 = vshrl.u32 %v7884, 7
      %v7886 = vsub.s32 %v7883, %v7885
      %v7887 = vrot.slane %v7879, %v7886
      %7888 = vrot.lane.b32.xlu0 %v4804, 23
      %v7889 = vpop.permute.xlu0 %7888
      %7890 = vrot.lane.b32.xlu0 %v4805, 23
      %v7891 = vpop.permute.xlu0 %7890
      %7892 = vrot.lane.b32.xlu0 %v7756, 23
      %v7893 = vpop.permute.xlu0 %7892
      %v7894 = vrot.slane %v7889, 4
      %v7895 = vrot.slane %v7891, 4
      %v7896 = vrot.slane %v7893, 4
      %v7897 = vsel %vm4907, %v7894, %v7895
      %v7898 = vsel %vm4021, %v7889, %v7897
      %v7899 = vsel %vm4907, %v7895, %v7896
      %v7900 = vsel %vm4021, %v7891, %v7899
      %v7903 = vmul.f32 %v7887, %v7898
      %v7904 = vmul.f32 %v7887, %v7900
      %v7905 = vadd.f32 %v7875, %v7903
      %v7906 = vadd.f32 %v7876, %v7904
      %7907 = vset.pattern.permute.xlu0 118
      %7908 = vperm.xlu0 %7907, %v256
      %v7909 = vpop.permute.xlu0 %7908
      %v7912 = vunpack.c.l.s4 839922192
      %v7913 = vunpack.c.0.s8 %v7912
      %v7914 = vlaneseq
      %v7915 = vshrl.u32 %v7914, 7
      %v7916 = vsub.s32 %v7913, %v7915
      %v7917 = vrot.slane %v7909, %v7916
      %7918 = vrot.lane.b32.xlu0 %v4843, 23
      %v7919 = vpop.permute.xlu0 %7918
      %7920 = vrot.lane.b32.xlu0 %v4844, 23
      %v7921 = vpop.permute.xlu0 %7920
      %7922 = vrot.lane.b32.xlu0 %v7791, 23
      %v7923 = vpop.permute.xlu0 %7922
      %v7924 = vrot.slane %v7919, 4
      %v7925 = vrot.slane %v7921, 4
      %v7926 = vrot.slane %v7923, 4
      %v7927 = vsel %vm4907, %v7924, %v7925
      %v7928 = vsel %vm4021, %v7919, %v7927
      %v7929 = vsel %vm4907, %v7925, %v7926
      %v7930 = vsel %vm4021, %v7921, %v7929
      %v7933 = vmul.f32 %v7917, %v7928
      %v7934 = vmul.f32 %v7917, %v7930
      %v7935 = vadd.f32 %v7905, %v7933
      %v7936 = vadd.f32 %v7906, %v7934
      %7937 = vset.pattern.permute.xlu0 119
      %7938 = vperm.xlu0 %7937, %v256
      %v7939 = vpop.permute.xlu0 %7938
      %v7942 = vunpack.c.l.s4 839922192
      %v7943 = vunpack.c.0.s8 %v7942
      %v7944 = vlaneseq
      %v7945 = vshrl.u32 %v7944, 7
      %v7946 = vsub.s32 %v7943, %v7945
      %v7947 = vrot.slane %v7939, %v7946
      %7948 = vrot.lane.b32.xlu0 %v4882, 23
      %v7949 = vpop.permute.xlu0 %7948
      %7950 = vrot.lane.b32.xlu0 %v4883, 23
      %v7951 = vpop.permute.xlu0 %7950
      %7952 = vrot.lane.b32.xlu0 %v7826, 23
      %v7953 = vpop.permute.xlu0 %7952
      %v7954 = vrot.slane %v7949, 4
      %v7955 = vrot.slane %v7951, 4
      %v7956 = vrot.slane %v7953, 4
      %v7957 = vsel %vm4907, %v7954, %v7955
      %v7958 = vsel %vm4021, %v7949, %v7957
      %v7959 = vsel %vm4907, %v7955, %v7956
      %v7960 = vsel %vm4021, %v7951, %v7959
      %v7963 = vmul.f32 %v7947, %v7958
      %v7964 = vmul.f32 %v7947, %v7960
      %v7965 = vadd.f32 %v7935, %v7963
      %v7966 = vadd.f32 %v7936, %v7964
      %7967 = vset.pattern.permute.xlu0 120
      %7968 = vperm.xlu0 %7967, %v256
      %v7969 = vpop.permute.xlu0 %7968
      %v7972 = vunpack.c.l.s4 839922192
      %v7973 = vunpack.c.0.s8 %v7972
      %v7974 = vlaneseq
      %v7975 = vshrl.u32 %v7974, 7
      %v7976 = vsub.s32 %v7973, %v7975
      %v7977 = vrot.slane %v7969, %v7976
      %7978 = vrot.lane.b32.xlu0 %v4765, 22
      %v7979 = vpop.permute.xlu0 %7978
      %7980 = vrot.lane.b32.xlu0 %v4766, 22
      %v7981 = vpop.permute.xlu0 %7980
      %7982 = vrot.lane.b32.xlu0 %v7721, 22
      %v7983 = vpop.permute.xlu0 %7982
      %v7984 = vrot.slane %v7979, 4
      %v7985 = vrot.slane %v7981, 4
      %v7986 = vrot.slane %v7983, 4
      %v7987 = vsel %vm4907, %v7984, %v7985
      %v7988 = vsel %vm4194, %v7979, %v7987
      %v7989 = vsel %vm4907, %v7985, %v7986
      %v7990 = vsel %vm4194, %v7981, %v7989
      %v7993 = vmul.f32 %v7977, %v7988
      %v7994 = vmul.f32 %v7977, %v7990
      %v7995 = vadd.f32 %v7965, %v7993
      %v7996 = vadd.f32 %v7966, %v7994
      %7997 = vset.pattern.permute.xlu0 121
      %7998 = vperm.xlu0 %7997, %v256
      %v7999 = vpop.permute.xlu0 %7998
      %v8002 = vunpack.c.l.s4 839922192
      %v8003 = vunpack.c.0.s8 %v8002
      %v8004 = vlaneseq
      %v8005 = vshrl.u32 %v8004, 7
      %v8006 = vsub.s32 %v8003, %v8005
      %v8007 = vrot.slane %v7999, %v8006
      %8008 = vrot.lane.b32.xlu0 %v4804, 22
      %v8009 = vpop.permute.xlu0 %8008
      %8010 = vrot.lane.b32.xlu0 %v4805, 22
      %v8011 = vpop.permute.xlu0 %8010
      %8012 = vrot.lane.b32.xlu0 %v7756, 22
      %v8013 = vpop.permute.xlu0 %8012
      %v8014 = vrot.slane %v8009, 4
      %v8015 = vrot.slane %v8011, 4
      %v8016 = vrot.slane %v8013, 4
      %v8017 = vsel %vm4907, %v8014, %v8015
      %v8018 = vsel %vm4194, %v8009, %v8017
      %v8019 = vsel %vm4907, %v8015, %v8016
      %v8020 = vsel %vm4194, %v8011, %v8019
      %v8023 = vmul.f32 %v8007, %v8018
      %v8024 = vmul.f32 %v8007, %v8020
      %v8025 = vadd.f32 %v7995, %v8023
      %v8026 = vadd.f32 %v7996, %v8024
      %8027 = vset.pattern.permute.xlu0 122
      %8028 = vperm.xlu0 %8027, %v256
      %v8029 = vpop.permute.xlu0 %8028
      %v8032 = vunpack.c.l.s4 839922192
      %v8033 = vunpack.c.0.s8 %v8032
      %v8034 = vlaneseq
      %v8035 = vshrl.u32 %v8034, 7
      %v8036 = vsub.s32 %v8033, %v8035
      %v8037 = vrot.slane %v8029, %v8036
      %8038 = vrot.lane.b32.xlu0 %v4843, 22
      %v8039 = vpop.permute.xlu0 %8038
      %8040 = vrot.lane.b32.xlu0 %v4844, 22
      %v8041 = vpop.permute.xlu0 %8040
      %8042 = vrot.lane.b32.xlu0 %v7791, 22
      %v8043 = vpop.permute.xlu0 %8042
      %v8044 = vrot.slane %v8039, 4
      %v8045 = vrot.slane %v8041, 4
      %v8046 = vrot.slane %v8043, 4
      %v8047 = vsel %vm4907, %v8044, %v8045
      %v8048 = vsel %vm4194, %v8039, %v8047
      %v8049 = vsel %vm4907, %v8045, %v8046
      %v8050 = vsel %vm4194, %v8041, %v8049
      %v8053 = vmul.f32 %v8037, %v8048
      %v8054 = vmul.f32 %v8037, %v8050
      %v8055 = vadd.f32 %v8025, %v8053
      %v8056 = vadd.f32 %v8026, %v8054
      %8057 = vset.pattern.permute.xlu0 123
      %8058 = vperm.xlu0 %8057, %v256
      %v8059 = vpop.permute.xlu0 %8058
      %v8062 = vunpack.c.l.s4 839922192
      %v8063 = vunpack.c.0.s8 %v8062
      %v8064 = vlaneseq
      %v8065 = vshrl.u32 %v8064, 7
      %v8066 = vsub.s32 %v8063, %v8065
      %v8067 = vrot.slane %v8059, %v8066
      %8068 = vrot.lane.b32.xlu0 %v4882, 22
      %v8069 = vpop.permute.xlu0 %8068
      %8070 = vrot.lane.b32.xlu0 %v4883, 22
      %v8071 = vpop.permute.xlu0 %8070
      %8072 = vrot.lane.b32.xlu0 %v7826, 22
      %v8073 = vpop.permute.xlu0 %8072
      %v8074 = vrot.slane %v8069, 4
      %v8075 = vrot.slane %v8071, 4
      %v8076 = vrot.slane %v8073, 4
      %v8077 = vsel %vm4907, %v8074, %v8075
      %v8078 = vsel %vm4194, %v8069, %v8077
      %v8079 = vsel %vm4907, %v8075, %v8076
      %v8080 = vsel %vm4194, %v8071, %v8079
      %v8083 = vmul.f32 %v8067, %v8078
      %v8084 = vmul.f32 %v8067, %v8080
      %v8085 = vadd.f32 %v8055, %v8083
      %v8086 = vadd.f32 %v8056, %v8084
      %8087 = vset.pattern.permute.xlu0 124
      %8088 = vperm.xlu0 %8087, %v256
      %v8089 = vpop.permute.xlu0 %8088
      %v8092 = vunpack.c.l.s4 839922192
      %v8093 = vunpack.c.0.s8 %v8092
      %v8094 = vlaneseq
      %v8095 = vshrl.u32 %v8094, 7
      %v8096 = vsub.s32 %v8093, %v8095
      %v8097 = vrot.slane %v8089, %v8096
      %8098 = vrot.lane.b32.xlu0 %v4765, 21
      %v8099 = vpop.permute.xlu0 %8098
      %8100 = vrot.lane.b32.xlu0 %v4766, 21
      %v8101 = vpop.permute.xlu0 %8100
      %8102 = vrot.lane.b32.xlu0 %v7721, 21
      %v8103 = vpop.permute.xlu0 %8102
      %v8104 = vrot.slane %v8099, 4
      %v8105 = vrot.slane %v8101, 4
      %v8106 = vrot.slane %v8103, 4
      %v8107 = vsel %vm4907, %v8104, %v8105
      %v8108 = vsel %vm4367, %v8099, %v8107
      %v8109 = vsel %vm4907, %v8105, %v8106
      %v8110 = vsel %vm4367, %v8101, %v8109
      %v8113 = vmul.f32 %v8097, %v8108
      %v8114 = vmul.f32 %v8097, %v8110
      %v8115 = vadd.f32 %v8085, %v8113
      %v8116 = vadd.f32 %v8086, %v8114
      %8117 = vset.pattern.permute.xlu0 125
      %8118 = vperm.xlu0 %8117, %v256
      %v8119 = vpop.permute.xlu0 %8118
      %v8122 = vunpack.c.l.s4 839922192
      %v8123 = vunpack.c.0.s8 %v8122
      %v8124 = vlaneseq
      %v8125 = vshrl.u32 %v8124, 7
      %v8126 = vsub.s32 %v8123, %v8125
      %v8127 = vrot.slane %v8119, %v8126
      %8128 = vrot.lane.b32.xlu0 %v4804, 21
      %v8129 = vpop.permute.xlu0 %8128
      %8130 = vrot.lane.b32.xlu0 %v4805, 21
      %v8131 = vpop.permute.xlu0 %8130
      %8132 = vrot.lane.b32.xlu0 %v7756, 21
      %v8133 = vpop.permute.xlu0 %8132
      %v8134 = vrot.slane %v8129, 4
      %v8135 = vrot.slane %v8131, 4
      %v8136 = vrot.slane %v8133, 4
      %v8137 = vsel %vm4907, %v8134, %v8135
      %v8138 = vsel %vm4367, %v8129, %v8137
      %v8139 = vsel %vm4907, %v8135, %v8136
      %v8140 = vsel %vm4367, %v8131, %v8139
      %v8143 = vmul.f32 %v8127, %v8138
      %v8144 = vmul.f32 %v8127, %v8140
      %v8145 = vadd.f32 %v8115, %v8143
      %v8146 = vadd.f32 %v8116, %v8144
      %8147 = vset.pattern.permute.xlu0 126
      %8148 = vperm.xlu0 %8147, %v256
      %v8149 = vpop.permute.xlu0 %8148
      %v8152 = vunpack.c.l.s4 839922192
      %v8153 = vunpack.c.0.s8 %v8152
      %v8154 = vlaneseq
      %v8155 = vshrl.u32 %v8154, 7
      %v8156 = vsub.s32 %v8153, %v8155
      %v8157 = vrot.slane %v8149, %v8156
      %8158 = vrot.lane.b32.xlu0 %v4843, 21
      %v8159 = vpop.permute.xlu0 %8158
      %8160 = vrot.lane.b32.xlu0 %v4844, 21
      %v8161 = vpop.permute.xlu0 %8160
      %8162 = vrot.lane.b32.xlu0 %v7791, 21
      %v8163 = vpop.permute.xlu0 %8162
      %v8164 = vrot.slane %v8159, 4
      %v8165 = vrot.slane %v8161, 4
      %v8166 = vrot.slane %v8163, 4
      %v8167 = vsel %vm4907, %v8164, %v8165
      %v8168 = vsel %vm4367, %v8159, %v8167
      %v8169 = vsel %vm4907, %v8165, %v8166
      %v8170 = vsel %vm4367, %v8161, %v8169
      %v8173 = vmul.f32 %v8157, %v8168
      %v8174 = vmul.f32 %v8157, %v8170
      %v8175 = vadd.f32 %v8145, %v8173
      %v8176 = vadd.f32 %v8146, %v8174
      %8177 = vset.pattern.permute.xlu0 127
      %8178 = vperm.xlu0 %8177, %v256
      %v8179 = vpop.permute.xlu0 %8178
      %v8182 = vunpack.c.l.s4 839922192
      %v8183 = vunpack.c.0.s8 %v8182
      %v8184 = vlaneseq
      %v8185 = vshrl.u32 %v8184, 7
      %v8186 = vsub.s32 %v8183, %v8185
      %v8187 = vrot.slane %v8179, %v8186
      %8188 = vrot.lane.b32.xlu0 %v4882, 21
      %v8189 = vpop.permute.xlu0 %8188
      %8190 = vrot.lane.b32.xlu0 %v4883, 21
      %v8191 = vpop.permute.xlu0 %8190
      %8192 = vrot.lane.b32.xlu0 %v7826, 21
      %v8193 = vpop.permute.xlu0 %8192
      %v8194 = vrot.slane %v8189, 4
      %v8195 = vrot.slane %v8191, 4
      %v8196 = vrot.slane %v8193, 4
      %v8197 = vsel %vm4907, %v8194, %v8195
      %v8198 = vsel %vm4367, %v8189, %v8197
      %v8199 = vsel %vm4907, %v8195, %v8196
      %v8200 = vsel %vm4367, %v8191, %v8199
      %v8203 = vmul.f32 %v8187, %v8198
      %v8204 = vmul.f32 %v8187, %v8200
      %v8205 = vadd.f32 %v8175, %v8203
      %v8206 = vadd.f32 %v8176, %v8204
      %v8208 = vunpack.c.l.s4 1985246804
      %v8209 = vunpack.c.0.s8 %v8208
      %v8210 = vlaneseq
      %v8211 = vshrl.u32 %v8210, 7
      %v8212 = vsub.s32 %v8209, %v8211
      %v8213 = vrot.slane %v4736, %v8212
      %8214 = vrot.lane.b32.xlu0 %v4765, 20
      %v8215 = vpop.permute.xlu0 %8214
      %8216 = vrot.lane.b32.xlu0 %v4766, 20
      %v8217 = vpop.permute.xlu0 %8216
      %8218 = vrot.lane.b32.xlu0 %v7721, 20
      %v8219 = vpop.permute.xlu0 %8218
      %v8220 = vrot.slane %v8215, 4
      %v8221 = vrot.slane %v8217, 4
      %v8222 = vrot.slane %v8219, 4
      %v8223 = vsel %vm4907, %v8220, %v8221
      %v8224 = vsel %vm4540, %v8215, %v8223
      %v8225 = vsel %vm4907, %v8221, %v8222
      %v8226 = vsel %vm4540, %v8217, %v8225
      %v8229 = vmul.f32 %v8213, %v8224
      %v8230 = vmul.f32 %v8213, %v8226
      %v8231 = vadd.f32 %v8205, %v8229
      %v8232 = vadd.f32 %v8206, %v8230
      %v8234 = vunpack.c.l.s4 1985246804
      %v8235 = vunpack.c.0.s8 %v8234
      %v8236 = vlaneseq
      %v8237 = vshrl.u32 %v8236, 7
      %v8238 = vsub.s32 %v8235, %v8237
      %v8239 = vrot.slane %v4775, %v8238
      %8240 = vrot.lane.b32.xlu0 %v4804, 20
      %v8241 = vpop.permute.xlu0 %8240
      %8242 = vrot.lane.b32.xlu0 %v4805, 20
      %v8243 = vpop.permute.xlu0 %8242
      %8244 = vrot.lane.b32.xlu0 %v7756, 20
      %v8245 = vpop.permute.xlu0 %8244
      %v8246 = vrot.slane %v8241, 4
      %v8247 = vrot.slane %v8243, 4
      %v8248 = vrot.slane %v8245, 4
      %v8249 = vsel %vm4907, %v8246, %v8247
      %v8250 = vsel %vm4540, %v8241, %v8249
      %v8251 = vsel %vm4907, %v8247, %v8248
      %v8252 = vsel %vm4540, %v8243, %v8251
      %v8255 = vmul.f32 %v8239, %v8250
      %v8256 = vmul.f32 %v8239, %v8252
      %v8257 = vadd.f32 %v8231, %v8255
      %v8258 = vadd.f32 %v8232, %v8256
      %v8260 = vunpack.c.l.s4 1985246804
      %v8261 = vunpack.c.0.s8 %v8260
      %v8262 = vlaneseq
      %v8263 = vshrl.u32 %v8262, 7
      %v8264 = vsub.s32 %v8261, %v8263
      %v8265 = vrot.slane %v4814, %v8264
      %8266 = vrot.lane.b32.xlu0 %v4843, 20
      %v8267 = vpop.permute.xlu0 %8266
      %8268 = vrot.lane.b32.xlu0 %v4844, 20
      %v8269 = vpop.permute.xlu0 %8268
      %8270 = vrot.lane.b32.xlu0 %v7791, 20
      %v8271 = vpop.permute.xlu0 %8270
      %v8272 = vrot.slane %v8267, 4
      %v8273 = vrot.slane %v8269, 4
      %v8274 = vrot.slane %v8271, 4
      %v8275 = vsel %vm4907, %v8272, %v8273
      %v8276 = vsel %vm4540, %v8267, %v8275
      %v8277 = vsel %vm4907, %v8273, %v8274
      %v8278 = vsel %vm4540, %v8269, %v8277
      %v8281 = vmul.f32 %v8265, %v8276
      %v8282 = vmul.f32 %v8265, %v8278
      %v8283 = vadd.f32 %v8257, %v8281
      %v8284 = vadd.f32 %v8258, %v8282
      %v8286 = vunpack.c.l.s4 1985246804
      %v8287 = vunpack.c.0.s8 %v8286
      %v8288 = vlaneseq
      %v8289 = vshrl.u32 %v8288, 7
      %v8290 = vsub.s32 %v8287, %v8289
      %v8291 = vrot.slane %v4853, %v8290
      %8292 = vrot.lane.b32.xlu0 %v4882, 20
      %v8293 = vpop.permute.xlu0 %8292
      %8294 = vrot.lane.b32.xlu0 %v4883, 20
      %v8295 = vpop.permute.xlu0 %8294
      %8296 = vrot.lane.b32.xlu0 %v7826, 20
      %v8297 = vpop.permute.xlu0 %8296
      %v8298 = vrot.slane %v8293, 4
      %v8299 = vrot.slane %v8295, 4
      %v8300 = vrot.slane %v8297, 4
      %v8301 = vsel %vm4907, %v8298, %v8299
      %v8302 = vsel %vm4540, %v8293, %v8301
      %v8303 = vsel %vm4907, %v8299, %v8300
      %v8304 = vsel %vm4540, %v8295, %v8303
      %v8307 = vmul.f32 %v8291, %v8302
      %v8308 = vmul.f32 %v8291, %v8304
      %v8309 = vadd.f32 %v8283, %v8307
      %v8310 = vadd.f32 %v8284, %v8308
      %v8312 = vunpack.c.l.s4 1985246804
      %v8313 = vunpack.c.0.s8 %v8312
      %v8314 = vlaneseq
      %v8315 = vshrl.u32 %v8314, 7
      %v8316 = vsub.s32 %v8313, %v8315
      %v8317 = vrot.slane %v4892, %v8316
      %8318 = vrot.lane.b32.xlu0 %v4765, 19
      %v8319 = vpop.permute.xlu0 %8318
      %8320 = vrot.lane.b32.xlu0 %v4766, 19
      %v8321 = vpop.permute.xlu0 %8320
      %8322 = vrot.lane.b32.xlu0 %v7721, 19
      %v8323 = vpop.permute.xlu0 %8322
      %v8324 = vrot.slane %v8319, 4
      %v8325 = vrot.slane %v8321, 4
      %v8326 = vrot.slane %v8323, 4
      %v8327 = vsel %vm4907, %v8324, %v8325
      %vm8328 = vcmask 154624
      %v8329 = vsel %vm8328, %v8319, %v8327
      %v8330 = vsel %vm4907, %v8325, %v8326
      %v8331 = vsel %vm8328, %v8321, %v8330
      %v8334 = vmul.f32 %v8317, %v8329
      %v8335 = vmul.f32 %v8317, %v8331
      %v8336 = vadd.f32 %v8309, %v8334
      %v8337 = vadd.f32 %v8310, %v8335
      %v8339 = vunpack.c.l.s4 1985246804
      %v8340 = vunpack.c.0.s8 %v8339
      %v8341 = vlaneseq
      %v8342 = vshrl.u32 %v8341, 7
      %v8343 = vsub.s32 %v8340, %v8342
      %v8344 = vrot.slane %v4919, %v8343
      %8345 = vrot.lane.b32.xlu0 %v4804, 19
      %v8346 = vpop.permute.xlu0 %8345
      %8347 = vrot.lane.b32.xlu0 %v4805, 19
      %v8348 = vpop.permute.xlu0 %8347
      %8349 = vrot.lane.b32.xlu0 %v7756, 19
      %v8350 = vpop.permute.xlu0 %8349
      %v8351 = vrot.slane %v8346, 4
      %v8352 = vrot.slane %v8348, 4
      %v8353 = vrot.slane %v8350, 4
      %v8354 = vsel %vm4907, %v8351, %v8352
      %v8355 = vsel %vm8328, %v8346, %v8354
      %v8356 = vsel %vm4907, %v8352, %v8353
      %v8357 = vsel %vm8328, %v8348, %v8356
      %v8360 = vmul.f32 %v8344, %v8355
      %v8361 = vmul.f32 %v8344, %v8357
      %v8362 = vadd.f32 %v8336, %v8360
      %v8363 = vadd.f32 %v8337, %v8361
      %v8365 = vunpack.c.l.s4 1985246804
      %v8366 = vunpack.c.0.s8 %v8365
      %v8367 = vlaneseq
      %v8368 = vshrl.u32 %v8367, 7
      %v8369 = vsub.s32 %v8366, %v8368
      %v8370 = vrot.slane %v4945, %v8369
      %8371 = vrot.lane.b32.xlu0 %v4843, 19
      %v8372 = vpop.permute.xlu0 %8371
      %8373 = vrot.lane.b32.xlu0 %v4844, 19
      %v8374 = vpop.permute.xlu0 %8373
      %8375 = vrot.lane.b32.xlu0 %v7791, 19
      %v8376 = vpop.permute.xlu0 %8375
      %v8377 = vrot.slane %v8372, 4
      %v8378 = vrot.slane %v8374, 4
      %v8379 = vrot.slane %v8376, 4
      %v8380 = vsel %vm4907, %v8377, %v8378
      %v8381 = vsel %vm8328, %v8372, %v8380
      %v8382 = vsel %vm4907, %v8378, %v8379
      %v8383 = vsel %vm8328, %v8374, %v8382
      %v8386 = vmul.f32 %v8370, %v8381
      %v8387 = vmul.f32 %v8370, %v8383
      %v8388 = vadd.f32 %v8362, %v8386
      %v8389 = vadd.f32 %v8363, %v8387
      %v8391 = vunpack.c.l.s4 1985246804
      %v8392 = vunpack.c.0.s8 %v8391
      %v8393 = vlaneseq
      %v8394 = vshrl.u32 %v8393, 7
      %v8395 = vsub.s32 %v8392, %v8394
      %v8396 = vrot.slane %v4971, %v8395
      %8397 = vrot.lane.b32.xlu0 %v4882, 19
      %v8398 = vpop.permute.xlu0 %8397
      %8399 = vrot.lane.b32.xlu0 %v4883, 19
      %v8400 = vpop.permute.xlu0 %8399
      %8401 = vrot.lane.b32.xlu0 %v7826, 19
      %v8402 = vpop.permute.xlu0 %8401
      %v8403 = vrot.slane %v8398, 4
      %v8404 = vrot.slane %v8400, 4
      %v8405 = vrot.slane %v8402, 4
      %v8406 = vsel %vm4907, %v8403, %v8404
      %v8407 = vsel %vm8328, %v8398, %v8406
      %v8408 = vsel %vm4907, %v8404, %v8405
      %v8409 = vsel %vm8328, %v8400, %v8408
      %v8412 = vmul.f32 %v8396, %v8407
      %v8413 = vmul.f32 %v8396, %v8409
      %v8414 = vadd.f32 %v8388, %v8412
      %v8415 = vadd.f32 %v8389, %v8413
      %v8417 = vunpack.c.l.s4 1985246804
      %v8418 = vunpack.c.0.s8 %v8417
      %v8419 = vlaneseq
      %v8420 = vshrl.u32 %v8419, 7
      %v8421 = vsub.s32 %v8418, %v8420
      %v8422 = vrot.slane %v4997, %v8421
      %8423 = vrot.lane.b32.xlu0 %v4765, 18
      %v8424 = vpop.permute.xlu0 %8423
      %8425 = vrot.lane.b32.xlu0 %v4766, 18
      %v8426 = vpop.permute.xlu0 %8425
      %8427 = vrot.lane.b32.xlu0 %v7721, 18
      %v8428 = vpop.permute.xlu0 %8427
      %v8429 = vrot.slane %v8424, 4
      %v8430 = vrot.slane %v8426, 4
      %v8431 = vrot.slane %v8428, 4
      %v8432 = vsel %vm4907, %v8429, %v8430
      %vm8433 = vcmask 146432
      %v8434 = vsel %vm8433, %v8424, %v8432
      %v8435 = vsel %vm4907, %v8430, %v8431
      %v8436 = vsel %vm8433, %v8426, %v8435
      %v8439 = vmul.f32 %v8422, %v8434
      %v8440 = vmul.f32 %v8422, %v8436
      %v8441 = vadd.f32 %v8414, %v8439
      %v8442 = vadd.f32 %v8415, %v8440
      %v8444 = vunpack.c.l.s4 1985246804
      %v8445 = vunpack.c.0.s8 %v8444
      %v8446 = vlaneseq
      %v8447 = vshrl.u32 %v8446, 7
      %v8448 = vsub.s32 %v8445, %v8447
      %v8449 = vrot.slane %v5023, %v8448
      %8450 = vrot.lane.b32.xlu0 %v4804, 18
      %v8451 = vpop.permute.xlu0 %8450
      %8452 = vrot.lane.b32.xlu0 %v4805, 18
      %v8453 = vpop.permute.xlu0 %8452
      %8454 = vrot.lane.b32.xlu0 %v7756, 18
      %v8455 = vpop.permute.xlu0 %8454
      %v8456 = vrot.slane %v8451, 4
      %v8457 = vrot.slane %v8453, 4
      %v8458 = vrot.slane %v8455, 4
      %v8459 = vsel %vm4907, %v8456, %v8457
      %v8460 = vsel %vm8433, %v8451, %v8459
      %v8461 = vsel %vm4907, %v8457, %v8458
      %v8462 = vsel %vm8433, %v8453, %v8461
      %v8465 = vmul.f32 %v8449, %v8460
      %v8466 = vmul.f32 %v8449, %v8462
      %v8467 = vadd.f32 %v8441, %v8465
      %v8468 = vadd.f32 %v8442, %v8466
      %v8470 = vunpack.c.l.s4 1985246804
      %v8471 = vunpack.c.0.s8 %v8470
      %v8472 = vlaneseq
      %v8473 = vshrl.u32 %v8472, 7
      %v8474 = vsub.s32 %v8471, %v8473
      %v8475 = vrot.slane %v5049, %v8474
      %8476 = vrot.lane.b32.xlu0 %v4843, 18
      %v8477 = vpop.permute.xlu0 %8476
      %8478 = vrot.lane.b32.xlu0 %v4844, 18
      %v8479 = vpop.permute.xlu0 %8478
      %8480 = vrot.lane.b32.xlu0 %v7791, 18
      %v8481 = vpop.permute.xlu0 %8480
      %v8482 = vrot.slane %v8477, 4
      %v8483 = vrot.slane %v8479, 4
      %v8484 = vrot.slane %v8481, 4
      %v8485 = vsel %vm4907, %v8482, %v8483
      %v8486 = vsel %vm8433, %v8477, %v8485
      %v8487 = vsel %vm4907, %v8483, %v8484
      %v8488 = vsel %vm8433, %v8479, %v8487
      %v8491 = vmul.f32 %v8475, %v8486
      %v8492 = vmul.f32 %v8475, %v8488
      %v8493 = vadd.f32 %v8467, %v8491
      %v8494 = vadd.f32 %v8468, %v8492
      %v8496 = vunpack.c.l.s4 1985246804
      %v8497 = vunpack.c.0.s8 %v8496
      %v8498 = vlaneseq
      %v8499 = vshrl.u32 %v8498, 7
      %v8500 = vsub.s32 %v8497, %v8499
      %v8501 = vrot.slane %v5075, %v8500
      %8502 = vrot.lane.b32.xlu0 %v4882, 18
      %v8503 = vpop.permute.xlu0 %8502
      %8504 = vrot.lane.b32.xlu0 %v4883, 18
      %v8505 = vpop.permute.xlu0 %8504
      %8506 = vrot.lane.b32.xlu0 %v7826, 18
      %v8507 = vpop.permute.xlu0 %8506
      %v8508 = vrot.slane %v8503, 4
      %v8509 = vrot.slane %v8505, 4
      %v8510 = vrot.slane %v8507, 4
      %v8511 = vsel %vm4907, %v8508, %v8509
      %v8512 = vsel %vm8433, %v8503, %v8511
      %v8513 = vsel %vm4907, %v8509, %v8510
      %v8514 = vsel %vm8433, %v8505, %v8513
      %v8517 = vmul.f32 %v8501, %v8512
      %v8518 = vmul.f32 %v8501, %v8514
      %v8519 = vadd.f32 %v8493, %v8517
      %v8520 = vadd.f32 %v8494, %v8518
      %v8522 = vunpack.c.l.s4 1985246804
      %v8523 = vunpack.c.0.s8 %v8522
      %v8524 = vlaneseq
      %v8525 = vshrl.u32 %v8524, 7
      %v8526 = vsub.s32 %v8523, %v8525
      %v8527 = vrot.slane %v5101, %v8526
      %v8528 = vcombine.low %v4752, %v4756
      %v8529 = vcombine.low %v4760, %v7721
      %8530 = vrot.lane.b32.xlu0 %v8528, 126
      %v8531 = vpop.permute.xlu0 %8530
      %8532 = vrot.lane.b32.xlu0 %v8529, 126
      %v8533 = vpop.permute.xlu0 %8532
      %v8534 = vrot.slane %v8531, 4
      %v8535 = vrot.slane %v8533, 4
      %v8536 = vsel %vm4907, %v8534, %v8535
      %v8537 = vsel %vm734, %v8531, %v8536
      %v8538 = vsel %vm734, %v8533, %v8535
      %v8541 = vmul.f32 %v8527, %v8537
      %v8542 = vmul.f32 %v8527, %v8538
      %v8543 = vadd.f32 %v8519, %v8541
      %v8544 = vadd.f32 %v8520, %v8542
      %v8546 = vunpack.c.l.s4 1985246804
      %v8547 = vunpack.c.0.s8 %v8546
      %v8548 = vlaneseq
      %v8549 = vshrl.u32 %v8548, 7
      %v8550 = vsub.s32 %v8547, %v8549
      %v8551 = vrot.slane %v5127, %v8550
      %v8552 = vcombine.low %v4791, %v4795
      %v8553 = vcombine.low %v4799, %v7756
      %8554 = vrot.lane.b32.xlu0 %v8552, 126
      %v8555 = vpop.permute.xlu0 %8554
      %8556 = vrot.lane.b32.xlu0 %v8553, 126
      %v8557 = vpop.permute.xlu0 %8556
      %v8558 = vrot.slane %v8555, 4
      %v8559 = vrot.slane %v8557, 4
      %v8560 = vsel %vm4907, %v8558, %v8559
      %v8561 = vsel %vm734, %v8555, %v8560
      %v8562 = vsel %vm734, %v8557, %v8559
      %v8565 = vmul.f32 %v8551, %v8561
      %v8566 = vmul.f32 %v8551, %v8562
      %v8567 = vadd.f32 %v8543, %v8565
      %v8568 = vadd.f32 %v8544, %v8566
      %v8570 = vunpack.c.l.s4 1985246804
      %v8571 = vunpack.c.0.s8 %v8570
      %v8572 = vlaneseq
      %v8573 = vshrl.u32 %v8572, 7
      %v8574 = vsub.s32 %v8571, %v8573
      %v8575 = vrot.slane %v5153, %v8574
      %v8576 = vcombine.low %v4830, %v4834
      %v8577 = vcombine.low %v4838, %v7791
      %8578 = vrot.lane.b32.xlu0 %v8576, 126
      %v8579 = vpop.permute.xlu0 %8578
      %8580 = vrot.lane.b32.xlu0 %v8577, 126
      %v8581 = vpop.permute.xlu0 %8580
      %v8582 = vrot.slane %v8579, 4
      %v8583 = vrot.slane %v8581, 4
      %v8584 = vsel %vm4907, %v8582, %v8583
      %v8585 = vsel %vm734, %v8579, %v8584
      %v8586 = vsel %vm734, %v8581, %v8583
      %v8589 = vmul.f32 %v8575, %v8585
      %v8590 = vmul.f32 %v8575, %v8586
      %v8591 = vadd.f32 %v8567, %v8589
      %v8592 = vadd.f32 %v8568, %v8590
      %v8594 = vunpack.c.l.s4 1985246804
      %v8595 = vunpack.c.0.s8 %v8594
      %v8596 = vlaneseq
      %v8597 = vshrl.u32 %v8596, 7
      %v8598 = vsub.s32 %v8595, %v8597
      %v8599 = vrot.slane %v5179, %v8598
      %v8600 = vcombine.low %v4869, %v4873
      %v8601 = vcombine.low %v4877, %v7826
      %8602 = vrot.lane.b32.xlu0 %v8600, 126
      %v8603 = vpop.permute.xlu0 %8602
      %8604 = vrot.lane.b32.xlu0 %v8601, 126
      %v8605 = vpop.permute.xlu0 %8604
      %v8606 = vrot.slane %v8603, 4
      %v8607 = vrot.slane %v8605, 4
      %v8608 = vsel %vm4907, %v8606, %v8607
      %v8609 = vsel %vm734, %v8603, %v8608
      %v8610 = vsel %vm734, %v8605, %v8607
      %v8613 = vmul.f32 %v8599, %v8609
      %v8614 = vmul.f32 %v8599, %v8610
      %v8615 = vadd.f32 %v8591, %v8613
      %v8616 = vadd.f32 %v8592, %v8614
      %v8618 = vunpack.c.l.s4 1985246804
      %v8619 = vunpack.c.0.s8 %v8618
      %v8620 = vlaneseq
      %v8621 = vshrl.u32 %v8620, 7
      %v8622 = vsub.s32 %v8619, %v8621
      %v8623 = vrot.slane %v5205, %v8622
      %8624 = vrot.lane.b32.xlu0 %v8528, 125
      %v8625 = vpop.permute.xlu0 %8624
      %8626 = vrot.lane.b32.xlu0 %v8529, 125
      %v8627 = vpop.permute.xlu0 %8626
      %v8628 = vrot.slane %v8625, 4
      %v8629 = vrot.slane %v8627, 4
      %v8630 = vsel %vm4907, %v8628, %v8629
      %v8631 = vsel %vm907, %v8625, %v8630
      %v8632 = vsel %vm907, %v8627, %v8629
      %v8635 = vmul.f32 %v8623, %v8631
      %v8636 = vmul.f32 %v8623, %v8632
      %v8637 = vadd.f32 %v8615, %v8635
      %v8638 = vadd.f32 %v8616, %v8636
      %v8640 = vunpack.c.l.s4 1985246804
      %v8641 = vunpack.c.0.s8 %v8640
      %v8642 = vlaneseq
      %v8643 = vshrl.u32 %v8642, 7
      %v8644 = vsub.s32 %v8641, %v8643
      %v8645 = vrot.slane %v5231, %v8644
      %8646 = vrot.lane.b32.xlu0 %v8552, 125
      %v8647 = vpop.permute.xlu0 %8646
      %8648 = vrot.lane.b32.xlu0 %v8553, 125
      %v8649 = vpop.permute.xlu0 %8648
      %v8650 = vrot.slane %v8647, 4
      %v8651 = vrot.slane %v8649, 4
      %v8652 = vsel %vm4907, %v8650, %v8651
      %v8653 = vsel %vm907, %v8647, %v8652
      %v8654 = vsel %vm907, %v8649, %v8651
      %v8657 = vmul.f32 %v8645, %v8653
      %v8658 = vmul.f32 %v8645, %v8654
      %v8659 = vadd.f32 %v8637, %v8657
      %v8660 = vadd.f32 %v8638, %v8658
      %v8662 = vunpack.c.l.s4 1985246804
      %v8663 = vunpack.c.0.s8 %v8662
      %v8664 = vlaneseq
      %v8665 = vshrl.u32 %v8664, 7
      %v8666 = vsub.s32 %v8663, %v8665
      %v8667 = vrot.slane %v5257, %v8666
      %8668 = vrot.lane.b32.xlu0 %v8576, 125
      %v8669 = vpop.permute.xlu0 %8668
      %8670 = vrot.lane.b32.xlu0 %v8577, 125
      %v8671 = vpop.permute.xlu0 %8670
      %v8672 = vrot.slane %v8669, 4
      %v8673 = vrot.slane %v8671, 4
      %v8674 = vsel %vm4907, %v8672, %v8673
      %v8675 = vsel %vm907, %v8669, %v8674
      %v8676 = vsel %vm907, %v8671, %v8673
      %v8679 = vmul.f32 %v8667, %v8675
      %v8680 = vmul.f32 %v8667, %v8676
      %v8681 = vadd.f32 %v8659, %v8679
      %v8682 = vadd.f32 %v8660, %v8680
      %v8684 = vunpack.c.l.s4 1985246804
      %v8685 = vunpack.c.0.s8 %v8684
      %v8686 = vlaneseq
      %v8687 = vshrl.u32 %v8686, 7
      %v8688 = vsub.s32 %v8685, %v8687
      %v8689 = vrot.slane %v5283, %v8688
      %8690 = vrot.lane.b32.xlu0 %v8600, 125
      %v8691 = vpop.permute.xlu0 %8690
      %8692 = vrot.lane.b32.xlu0 %v8601, 125
      %v8693 = vpop.permute.xlu0 %8692
      %v8694 = vrot.slane %v8691, 4
      %v8695 = vrot.slane %v8693, 4
      %v8696 = vsel %vm4907, %v8694, %v8695
      %v8697 = vsel %vm907, %v8691, %v8696
      %v8698 = vsel %vm907, %v8693, %v8695
      %v8701 = vmul.f32 %v8689, %v8697
      %v8702 = vmul.f32 %v8689, %v8698
      %v8703 = vadd.f32 %v8681, %v8701
      %v8704 = vadd.f32 %v8682, %v8702
      %v8706 = vunpack.c.l.s4 1985246804
      %v8707 = vunpack.c.0.s8 %v8706
      %v8708 = vlaneseq
      %v8709 = vshrl.u32 %v8708, 7
      %v8710 = vsub.s32 %v8707, %v8709
      %v8711 = vrot.slane %v5309, %v8710
      %8712 = vrot.lane.b32.xlu0 %v8528, 124
      %v8713 = vpop.permute.xlu0 %8712
      %8714 = vrot.lane.b32.xlu0 %v8529, 124
      %v8715 = vpop.permute.xlu0 %8714
      %v8716 = vrot.slane %v8713, 4
      %v8717 = vrot.slane %v8715, 4
      %v8718 = vsel %vm4907, %v8716, %v8717
      %v8719 = vsel %vm1080, %v8713, %v8718
      %v8720 = vsel %vm1080, %v8715, %v8717
      %v8723 = vmul.f32 %v8711, %v8719
      %v8724 = vmul.f32 %v8711, %v8720
      %v8725 = vadd.f32 %v8703, %v8723
      %v8726 = vadd.f32 %v8704, %v8724
      %v8728 = vunpack.c.l.s4 1985246804
      %v8729 = vunpack.c.0.s8 %v8728
      %v8730 = vlaneseq
      %v8731 = vshrl.u32 %v8730, 7
      %v8732 = vsub.s32 %v8729, %v8731
      %v8733 = vrot.slane %v5336, %v8732
      %8734 = vrot.lane.b32.xlu0 %v8552, 124
      %v8735 = vpop.permute.xlu0 %8734
      %8736 = vrot.lane.b32.xlu0 %v8553, 124
      %v8737 = vpop.permute.xlu0 %8736
      %v8738 = vrot.slane %v8735, 4
      %v8739 = vrot.slane %v8737, 4
      %v8740 = vsel %vm4907, %v8738, %v8739
      %v8741 = vsel %vm1080, %v8735, %v8740
      %v8742 = vsel %vm1080, %v8737, %v8739
      %v8745 = vmul.f32 %v8733, %v8741
      %v8746 = vmul.f32 %v8733, %v8742
      %v8747 = vadd.f32 %v8725, %v8745
      %v8748 = vadd.f32 %v8726, %v8746
      %v8750 = vunpack.c.l.s4 1985246804
      %v8751 = vunpack.c.0.s8 %v8750
      %v8752 = vlaneseq
      %v8753 = vshrl.u32 %v8752, 7
      %v8754 = vsub.s32 %v8751, %v8753
      %v8755 = vrot.slane %v5362, %v8754
      %8756 = vrot.lane.b32.xlu0 %v8576, 124
      %v8757 = vpop.permute.xlu0 %8756
      %8758 = vrot.lane.b32.xlu0 %v8577, 124
      %v8759 = vpop.permute.xlu0 %8758
      %v8760 = vrot.slane %v8757, 4
      %v8761 = vrot.slane %v8759, 4
      %v8762 = vsel %vm4907, %v8760, %v8761
      %v8763 = vsel %vm1080, %v8757, %v8762
      %v8764 = vsel %vm1080, %v8759, %v8761
      %v8767 = vmul.f32 %v8755, %v8763
      %v8768 = vmul.f32 %v8755, %v8764
      %v8769 = vadd.f32 %v8747, %v8767
      %v8770 = vadd.f32 %v8748, %v8768
      %v8772 = vunpack.c.l.s4 1985246804
      %v8773 = vunpack.c.0.s8 %v8772
      %v8774 = vlaneseq
      %v8775 = vshrl.u32 %v8774, 7
      %v8776 = vsub.s32 %v8773, %v8775
      %v8777 = vrot.slane %v5388, %v8776
      %8778 = vrot.lane.b32.xlu0 %v8600, 124
      %v8779 = vpop.permute.xlu0 %8778
      %8780 = vrot.lane.b32.xlu0 %v8601, 124
      %v8781 = vpop.permute.xlu0 %8780
      %v8782 = vrot.slane %v8779, 4
      %v8783 = vrot.slane %v8781, 4
      %v8784 = vsel %vm4907, %v8782, %v8783
      %v8785 = vsel %vm1080, %v8779, %v8784
      %v8786 = vsel %vm1080, %v8781, %v8783
      %v8789 = vmul.f32 %v8777, %v8785
      %v8790 = vmul.f32 %v8777, %v8786
      %v8791 = vadd.f32 %v8769, %v8789
      %v8792 = vadd.f32 %v8770, %v8790
      %v8794 = vunpack.c.l.s4 1985246804
      %v8795 = vunpack.c.0.s8 %v8794
      %v8796 = vlaneseq
      %v8797 = vshrl.u32 %v8796, 7
      %v8798 = vsub.s32 %v8795, %v8797
      %v8799 = vrot.slane %v5414, %v8798
      %8800 = vrot.lane.b32.xlu0 %v8528, 123
      %v8801 = vpop.permute.xlu0 %8800
      %8802 = vrot.lane.b32.xlu0 %v8529, 123
      %v8803 = vpop.permute.xlu0 %8802
      %v8804 = vrot.slane %v8801, 4
      %v8805 = vrot.slane %v8803, 4
      %v8806 = vsel %vm4907, %v8804, %v8805
      %v8807 = vsel %vm5325, %v8801, %v8806
      %v8808 = vsel %vm5325, %v8803, %v8805
      %v8811 = vmul.f32 %v8799, %v8807
      %v8812 = vmul.f32 %v8799, %v8808
      %v8813 = vadd.f32 %v8791, %v8811
      %v8814 = vadd.f32 %v8792, %v8812
      %v8816 = vunpack.c.l.s4 1985246804
      %v8817 = vunpack.c.0.s8 %v8816
      %v8818 = vlaneseq
      %v8819 = vshrl.u32 %v8818, 7
      %v8820 = vsub.s32 %v8817, %v8819
      %v8821 = vrot.slane %v5441, %v8820
      %8822 = vrot.lane.b32.xlu0 %v8552, 123
      %v8823 = vpop.permute.xlu0 %8822
      %8824 = vrot.lane.b32.xlu0 %v8553, 123
      %v8825 = vpop.permute.xlu0 %8824
      %v8826 = vrot.slane %v8823, 4
      %v8827 = vrot.slane %v8825, 4
      %v8828 = vsel %vm4907, %v8826, %v8827
      %v8829 = vsel %vm5325, %v8823, %v8828
      %v8830 = vsel %vm5325, %v8825, %v8827
      %v8833 = vmul.f32 %v8821, %v8829
      %v8834 = vmul.f32 %v8821, %v8830
      %v8835 = vadd.f32 %v8813, %v8833
      %v8836 = vadd.f32 %v8814, %v8834
      %v8838 = vunpack.c.l.s4 1985246804
      %v8839 = vunpack.c.0.s8 %v8838
      %v8840 = vlaneseq
      %v8841 = vshrl.u32 %v8840, 7
      %v8842 = vsub.s32 %v8839, %v8841
      %v8843 = vrot.slane %v5467, %v8842
      %8844 = vrot.lane.b32.xlu0 %v8576, 123
      %v8845 = vpop.permute.xlu0 %8844
      %8846 = vrot.lane.b32.xlu0 %v8577, 123
      %v8847 = vpop.permute.xlu0 %8846
      %v8848 = vrot.slane %v8845, 4
      %v8849 = vrot.slane %v8847, 4
      %v8850 = vsel %vm4907, %v8848, %v8849
      %v8851 = vsel %vm5325, %v8845, %v8850
      %v8852 = vsel %vm5325, %v8847, %v8849
      %v8855 = vmul.f32 %v8843, %v8851
      %v8856 = vmul.f32 %v8843, %v8852
      %v8857 = vadd.f32 %v8835, %v8855
      %v8858 = vadd.f32 %v8836, %v8856
      %v8860 = vunpack.c.l.s4 1985246804
      %v8861 = vunpack.c.0.s8 %v8860
      %v8862 = vlaneseq
      %v8863 = vshrl.u32 %v8862, 7
      %v8864 = vsub.s32 %v8861, %v8863
      %v8865 = vrot.slane %v5493, %v8864
      %8866 = vrot.lane.b32.xlu0 %v8600, 123
      %v8867 = vpop.permute.xlu0 %8866
      %8868 = vrot.lane.b32.xlu0 %v8601, 123
      %v8869 = vpop.permute.xlu0 %8868
      %v8870 = vrot.slane %v8867, 4
      %v8871 = vrot.slane %v8869, 4
      %v8872 = vsel %vm4907, %v8870, %v8871
      %v8873 = vsel %vm5325, %v8867, %v8872
      %v8874 = vsel %vm5325, %v8869, %v8871
      %v8877 = vmul.f32 %v8865, %v8873
      %v8878 = vmul.f32 %v8865, %v8874
      %v8879 = vadd.f32 %v8857, %v8877
      %v8880 = vadd.f32 %v8858, %v8878
      %v8882 = vunpack.c.l.s4 1985246804
      %v8883 = vunpack.c.0.s8 %v8882
      %v8884 = vlaneseq
      %v8885 = vshrl.u32 %v8884, 7
      %v8886 = vsub.s32 %v8883, %v8885
      %v8887 = vrot.slane %v5519, %v8886
      %8888 = vrot.lane.b32.xlu0 %v8528, 122
      %v8889 = vpop.permute.xlu0 %8888
      %8890 = vrot.lane.b32.xlu0 %v8529, 122
      %v8891 = vpop.permute.xlu0 %8890
      %v8892 = vrot.slane %v8889, 4
      %v8893 = vrot.slane %v8891, 4
      %v8894 = vsel %vm4907, %v8892, %v8893
      %v8895 = vsel %vm5430, %v8889, %v8894
      %v8896 = vsel %vm5430, %v8891, %v8893
      %v8899 = vmul.f32 %v8887, %v8895
      %v8900 = vmul.f32 %v8887, %v8896
      %v8901 = vadd.f32 %v8879, %v8899
      %v8902 = vadd.f32 %v8880, %v8900
      %v8904 = vunpack.c.l.s4 1985246804
      %v8905 = vunpack.c.0.s8 %v8904
      %v8906 = vlaneseq
      %v8907 = vshrl.u32 %v8906, 7
      %v8908 = vsub.s32 %v8905, %v8907
      %v8909 = vrot.slane %v5545, %v8908
      %8910 = vrot.lane.b32.xlu0 %v8552, 122
      %v8911 = vpop.permute.xlu0 %8910
      %8912 = vrot.lane.b32.xlu0 %v8553, 122
      %v8913 = vpop.permute.xlu0 %8912
      %v8914 = vrot.slane %v8911, 4
      %v8915 = vrot.slane %v8913, 4
      %v8916 = vsel %vm4907, %v8914, %v8915
      %v8917 = vsel %vm5430, %v8911, %v8916
      %v8918 = vsel %vm5430, %v8913, %v8915
      %v8921 = vmul.f32 %v8909, %v8917
      %v8922 = vmul.f32 %v8909, %v8918
      %v8923 = vadd.f32 %v8901, %v8921
      %v8924 = vadd.f32 %v8902, %v8922
      %v8926 = vunpack.c.l.s4 1985246804
      %v8927 = vunpack.c.0.s8 %v8926
      %v8928 = vlaneseq
      %v8929 = vshrl.u32 %v8928, 7
      %v8930 = vsub.s32 %v8927, %v8929
      %v8931 = vrot.slane %v5571, %v8930
      %8932 = vrot.lane.b32.xlu0 %v8576, 122
      %v8933 = vpop.permute.xlu0 %8932
      %8934 = vrot.lane.b32.xlu0 %v8577, 122
      %v8935 = vpop.permute.xlu0 %8934
      %v8936 = vrot.slane %v8933, 4
      %v8937 = vrot.slane %v8935, 4
      %v8938 = vsel %vm4907, %v8936, %v8937
      %v8939 = vsel %vm5430, %v8933, %v8938
      %v8940 = vsel %vm5430, %v8935, %v8937
      %v8943 = vmul.f32 %v8931, %v8939
      %v8944 = vmul.f32 %v8931, %v8940
      %v8945 = vadd.f32 %v8923, %v8943
      %v8946 = vadd.f32 %v8924, %v8944
      %v8948 = vunpack.c.l.s4 1985246804
      %v8949 = vunpack.c.0.s8 %v8948
      %v8950 = vlaneseq
      %v8951 = vshrl.u32 %v8950, 7
      %v8952 = vsub.s32 %v8949, %v8951
      %v8953 = vrot.slane %v5597, %v8952
      %8954 = vrot.lane.b32.xlu0 %v8600, 122
      %v8955 = vpop.permute.xlu0 %8954
      %8956 = vrot.lane.b32.xlu0 %v8601, 122
      %v8957 = vpop.permute.xlu0 %8956
      %v8958 = vrot.slane %v8955, 4
      %v8959 = vrot.slane %v8957, 4
      %v8960 = vsel %vm4907, %v8958, %v8959
      %v8961 = vsel %vm5430, %v8955, %v8960
      %v8962 = vsel %vm5430, %v8957, %v8959
      %v8965 = vmul.f32 %v8953, %v8961
      %v8966 = vmul.f32 %v8953, %v8962
      %v8967 = vadd.f32 %v8945, %v8965
      %v8968 = vadd.f32 %v8946, %v8966
      %v8970 = vunpack.c.l.s4 1985246804
      %v8971 = vunpack.c.0.s8 %v8970
      %v8972 = vlaneseq
      %v8973 = vshrl.u32 %v8972, 7
      %v8974 = vsub.s32 %v8971, %v8973
      %v8975 = vrot.slane %v5623, %v8974
      %8976 = vrot.lane.b32.xlu0 %v8528, 121
      %v8977 = vpop.permute.xlu0 %8976
      %8978 = vrot.lane.b32.xlu0 %v8529, 121
      %v8979 = vpop.permute.xlu0 %8978
      %v8980 = vrot.slane %v8977, 4
      %v8981 = vrot.slane %v8979, 4
      %v8982 = vsel %vm4907, %v8980, %v8981
      %vm8983 = vcmask 990208
      %v8984 = vsel %vm8983, %v8977, %v8982
      %v8985 = vsel %vm8983, %v8979, %v8981
      %v8988 = vmul.f32 %v8975, %v8984
      %v8989 = vmul.f32 %v8975, %v8985
      %v8990 = vadd.f32 %v8967, %v8988
      %v8991 = vadd.f32 %v8968, %v8989
      %v8993 = vunpack.c.l.s4 1985246804
      %v8994 = vunpack.c.0.s8 %v8993
      %v8995 = vlaneseq
      %v8996 = vshrl.u32 %v8995, 7
      %v8997 = vsub.s32 %v8994, %v8996
      %v8998 = vrot.slane %v5649, %v8997
      %8999 = vrot.lane.b32.xlu0 %v8552, 121
      %v9000 = vpop.permute.xlu0 %8999
      %9001 = vrot.lane.b32.xlu0 %v8553, 121
      %v9002 = vpop.permute.xlu0 %9001
      %v9003 = vrot.slane %v9000, 4
      %v9004 = vrot.slane %v9002, 4
      %v9005 = vsel %vm4907, %v9003, %v9004
      %v9006 = vsel %vm8983, %v9000, %v9005
      %v9007 = vsel %vm8983, %v9002, %v9004
      %v9010 = vmul.f32 %v8998, %v9006
      %v9011 = vmul.f32 %v8998, %v9007
      %v9012 = vadd.f32 %v8990, %v9010
      %v9013 = vadd.f32 %v8991, %v9011
      %v9015 = vunpack.c.l.s4 1985246804
      %v9016 = vunpack.c.0.s8 %v9015
      %v9017 = vlaneseq
      %v9018 = vshrl.u32 %v9017, 7
      %v9019 = vsub.s32 %v9016, %v9018
      %v9020 = vrot.slane %v5675, %v9019
      %9021 = vrot.lane.b32.xlu0 %v8576, 121
      %v9022 = vpop.permute.xlu0 %9021
      %9023 = vrot.lane.b32.xlu0 %v8577, 121
      %v9024 = vpop.permute.xlu0 %9023
      %v9025 = vrot.slane %v9022, 4
      %v9026 = vrot.slane %v9024, 4
      %v9027 = vsel %vm4907, %v9025, %v9026
      %v9028 = vsel %vm8983, %v9022, %v9027
      %v9029 = vsel %vm8983, %v9024, %v9026
      %v9032 = vmul.f32 %v9020, %v9028
      %v9033 = vmul.f32 %v9020, %v9029
      %v9034 = vadd.f32 %v9012, %v9032
      %v9035 = vadd.f32 %v9013, %v9033
      %v9037 = vunpack.c.l.s4 1985246804
      %v9038 = vunpack.c.0.s8 %v9037
      %v9039 = vlaneseq
      %v9040 = vshrl.u32 %v9039, 7
      %v9041 = vsub.s32 %v9038, %v9040
      %v9042 = vrot.slane %v5701, %v9041
      %9043 = vrot.lane.b32.xlu0 %v8600, 121
      %v9044 = vpop.permute.xlu0 %9043
      %9045 = vrot.lane.b32.xlu0 %v8601, 121
      %v9046 = vpop.permute.xlu0 %9045
      %v9047 = vrot.slane %v9044, 4
      %v9048 = vrot.slane %v9046, 4
      %v9049 = vsel %vm4907, %v9047, %v9048
      %v9050 = vsel %vm8983, %v9044, %v9049
      %v9051 = vsel %vm8983, %v9046, %v9048
      %v9054 = vmul.f32 %v9042, %v9050
      %v9055 = vmul.f32 %v9042, %v9051
      %v9056 = vadd.f32 %v9034, %v9054
      %v9057 = vadd.f32 %v9035, %v9055
      %v9059 = vunpack.c.l.s4 1985246804
      %v9060 = vunpack.c.0.s8 %v9059
      %v9061 = vlaneseq
      %v9062 = vshrl.u32 %v9061, 7
      %v9063 = vsub.s32 %v9060, %v9062
      %v9064 = vrot.slane %v5727, %v9063
      %9065 = vrot.lane.b32.xlu0 %v8528, 120
      %v9066 = vpop.permute.xlu0 %9065
      %9067 = vrot.lane.b32.xlu0 %v8529, 120
      %v9068 = vpop.permute.xlu0 %9067
      %v9069 = vrot.slane %v9066, 4
      %v9070 = vrot.slane %v9068, 4
      %v9071 = vsel %vm4907, %v9069, %v9070
      %vm9072 = vcmask 982016
      %v9073 = vsel %vm9072, %v9066, %v9071
      %v9074 = vsel %vm9072, %v9068, %v9070
      %v9077 = vmul.f32 %v9064, %v9073
      %v9078 = vmul.f32 %v9064, %v9074
      %v9079 = vadd.f32 %v9056, %v9077
      %v9080 = vadd.f32 %v9057, %v9078
      %v9082 = vunpack.c.l.s4 1985246804
      %v9083 = vunpack.c.0.s8 %v9082
      %v9084 = vlaneseq
      %v9085 = vshrl.u32 %v9084, 7
      %v9086 = vsub.s32 %v9083, %v9085
      %v9087 = vrot.slane %v5753, %v9086
      %9088 = vrot.lane.b32.xlu0 %v8552, 120
      %v9089 = vpop.permute.xlu0 %9088
      %9090 = vrot.lane.b32.xlu0 %v8553, 120
      %v9091 = vpop.permute.xlu0 %9090
      %v9092 = vrot.slane %v9089, 4
      %v9093 = vrot.slane %v9091, 4
      %v9094 = vsel %vm4907, %v9092, %v9093
      %v9095 = vsel %vm9072, %v9089, %v9094
      %v9096 = vsel %vm9072, %v9091, %v9093
      %v9099 = vmul.f32 %v9087, %v9095
      %v9100 = vmul.f32 %v9087, %v9096
      %v9101 = vadd.f32 %v9079, %v9099
      %v9102 = vadd.f32 %v9080, %v9100
      %v9104 = vunpack.c.l.s4 1985246804
      %v9105 = vunpack.c.0.s8 %v9104
      %v9106 = vlaneseq
      %v9107 = vshrl.u32 %v9106, 7
      %v9108 = vsub.s32 %v9105, %v9107
      %v9109 = vrot.slane %v5779, %v9108
      %9110 = vrot.lane.b32.xlu0 %v8576, 120
      %v9111 = vpop.permute.xlu0 %9110
      %9112 = vrot.lane.b32.xlu0 %v8577, 120
      %v9113 = vpop.permute.xlu0 %9112
      %v9114 = vrot.slane %v9111, 4
      %v9115 = vrot.slane %v9113, 4
      %v9116 = vsel %vm4907, %v9114, %v9115
      %v9117 = vsel %vm9072, %v9111, %v9116
      %v9118 = vsel %vm9072, %v9113, %v9115
      %v9121 = vmul.f32 %v9109, %v9117
      %v9122 = vmul.f32 %v9109, %v9118
      %v9123 = vadd.f32 %v9101, %v9121
      %v9124 = vadd.f32 %v9102, %v9122
      %v9126 = vunpack.c.l.s4 1985246804
      %v9127 = vunpack.c.0.s8 %v9126
      %v9128 = vlaneseq
      %v9129 = vshrl.u32 %v9128, 7
      %v9130 = vsub.s32 %v9127, %v9129
      %v9131 = vrot.slane %v5805, %v9130
      %9132 = vrot.lane.b32.xlu0 %v8600, 120
      %v9133 = vpop.permute.xlu0 %9132
      %9134 = vrot.lane.b32.xlu0 %v8601, 120
      %v9135 = vpop.permute.xlu0 %9134
      %v9136 = vrot.slane %v9133, 4
      %v9137 = vrot.slane %v9135, 4
      %v9138 = vsel %vm4907, %v9136, %v9137
      %v9139 = vsel %vm9072, %v9133, %v9138
      %v9140 = vsel %vm9072, %v9135, %v9137
      %v9143 = vmul.f32 %v9131, %v9139
      %v9144 = vmul.f32 %v9131, %v9140
      %v9145 = vadd.f32 %v9123, %v9143
      %v9146 = vadd.f32 %v9124, %v9144
      %v9148 = vunpack.c.l.s4 1985246804
      %v9149 = vunpack.c.0.s8 %v9148
      %v9150 = vlaneseq
      %v9151 = vshrl.u32 %v9150, 7
      %v9152 = vsub.s32 %v9149, %v9151
      %v9153 = vrot.slane %v5831, %v9152
      %9154 = vrot.lane.b32.xlu0 %v8528, 100
      %v9155 = vpop.permute.xlu0 %9154
      %9156 = vrot.lane.b32.xlu0 %v8529, 100
      %v9157 = vpop.permute.xlu0 %9156
      %v9158 = vrot.slane %v9155, 4
      %v9159 = vrot.slane %v9157, 4
      %v9160 = vsel %vm4907, %v9158, %v9159
      %v9161 = vsel %vm1599, %v9155, %v9160
      %v9162 = vsel %vm1599, %v9157, %v9159
      %v9165 = vmul.f32 %v9153, %v9161
      %v9166 = vmul.f32 %v9153, %v9162
      %v9167 = vadd.f32 %v9145, %v9165
      %v9168 = vadd.f32 %v9146, %v9166
      %v9170 = vunpack.c.l.s4 1985246804
      %v9171 = vunpack.c.0.s8 %v9170
      %v9172 = vlaneseq
      %v9173 = vshrl.u32 %v9172, 7
      %v9174 = vsub.s32 %v9171, %v9173
      %v9175 = vrot.slane %v5857, %v9174
      %9176 = vrot.lane.b32.xlu0 %v8552, 100
      %v9177 = vpop.permute.xlu0 %9176
      %9178 = vrot.lane.b32.xlu0 %v8553, 100
      %v9179 = vpop.permute.xlu0 %9178
      %v9180 = vrot.slane %v9177, 4
      %v9181 = vrot.slane %v9179, 4
      %v9182 = vsel %vm4907, %v9180, %v9181
      %v9183 = vsel %vm1599, %v9177, %v9182
      %v9184 = vsel %vm1599, %v9179, %v9181
      %v9187 = vmul.f32 %v9175, %v9183
      %v9188 = vmul.f32 %v9175, %v9184
      %v9189 = vadd.f32 %v9167, %v9187
      %v9190 = vadd.f32 %v9168, %v9188
      %v9192 = vunpack.c.l.s4 1985246804
      %v9193 = vunpack.c.0.s8 %v9192
      %v9194 = vlaneseq
      %v9195 = vshrl.u32 %v9194, 7
      %v9196 = vsub.s32 %v9193, %v9195
      %v9197 = vrot.slane %v5883, %v9196
      %9198 = vrot.lane.b32.xlu0 %v8576, 100
      %v9199 = vpop.permute.xlu0 %9198
      %9200 = vrot.lane.b32.xlu0 %v8577, 100
      %v9201 = vpop.permute.xlu0 %9200
      %v9202 = vrot.slane %v9199, 4
      %v9203 = vrot.slane %v9201, 4
      %v9204 = vsel %vm4907, %v9202, %v9203
      %v9205 = vsel %vm1599, %v9199, %v9204
      %v9206 = vsel %vm1599, %v9201, %v9203
      %v9209 = vmul.f32 %v9197, %v9205
      %v9210 = vmul.f32 %v9197, %v9206
      %v9211 = vadd.f32 %v9189, %v9209
      %v9212 = vadd.f32 %v9190, %v9210
      %v9214 = vunpack.c.l.s4 1985246804
      %v9215 = vunpack.c.0.s8 %v9214
      %v9216 = vlaneseq
      %v9217 = vshrl.u32 %v9216, 7
      %v9218 = vsub.s32 %v9215, %v9217
      %v9219 = vrot.slane %v5909, %v9218
      %9220 = vrot.lane.b32.xlu0 %v8600, 100
      %v9221 = vpop.permute.xlu0 %9220
      %9222 = vrot.lane.b32.xlu0 %v8601, 100
      %v9223 = vpop.permute.xlu0 %9222
      %v9224 = vrot.slane %v9221, 4
      %v9225 = vrot.slane %v9223, 4
      %v9226 = vsel %vm4907, %v9224, %v9225
      %v9227 = vsel %vm1599, %v9221, %v9226
      %v9228 = vsel %vm1599, %v9223, %v9225
      %v9231 = vmul.f32 %v9219, %v9227
      %v9232 = vmul.f32 %v9219, %v9228
      %v9233 = vadd.f32 %v9211, %v9231
      %v9234 = vadd.f32 %v9212, %v9232
      %v9236 = vunpack.c.l.s4 1985246804
      %v9237 = vunpack.c.0.s8 %v9236
      %v9238 = vlaneseq
      %v9239 = vshrl.u32 %v9238, 7
      %v9240 = vsub.s32 %v9237, %v9239
      %v9241 = vrot.slane %v5935, %v9240
      %9242 = vrot.lane.b32.xlu0 %v8528, 99
      %v9243 = vpop.permute.xlu0 %9242
      %9244 = vrot.lane.b32.xlu0 %v8529, 99
      %v9245 = vpop.permute.xlu0 %9244
      %v9246 = vrot.slane %v9243, 4
      %v9247 = vrot.slane %v9245, 4
      %v9248 = vsel %vm4907, %v9246, %v9247
      %v9249 = vsel %vm1772, %v9243, %v9248
      %v9250 = vsel %vm1772, %v9245, %v9247
      %v9253 = vmul.f32 %v9241, %v9249
      %v9254 = vmul.f32 %v9241, %v9250
      %v9255 = vadd.f32 %v9233, %v9253
      %v9256 = vadd.f32 %v9234, %v9254
      %v9258 = vunpack.c.l.s4 1985246804
      %v9259 = vunpack.c.0.s8 %v9258
      %v9260 = vlaneseq
      %v9261 = vshrl.u32 %v9260, 7
      %v9262 = vsub.s32 %v9259, %v9261
      %v9263 = vrot.slane %v5961, %v9262
      %9264 = vrot.lane.b32.xlu0 %v8552, 99
      %v9265 = vpop.permute.xlu0 %9264
      %9266 = vrot.lane.b32.xlu0 %v8553, 99
      %v9267 = vpop.permute.xlu0 %9266
      %v9268 = vrot.slane %v9265, 4
      %v9269 = vrot.slane %v9267, 4
      %v9270 = vsel %vm4907, %v9268, %v9269
      %v9271 = vsel %vm1772, %v9265, %v9270
      %v9272 = vsel %vm1772, %v9267, %v9269
      %v9275 = vmul.f32 %v9263, %v9271
      %v9276 = vmul.f32 %v9263, %v9272
      %v9277 = vadd.f32 %v9255, %v9275
      %v9278 = vadd.f32 %v9256, %v9276
      %v9280 = vunpack.c.l.s4 1985246804
      %v9281 = vunpack.c.0.s8 %v9280
      %v9282 = vlaneseq
      %v9283 = vshrl.u32 %v9282, 7
      %v9284 = vsub.s32 %v9281, %v9283
      %v9285 = vrot.slane %v5987, %v9284
      %9286 = vrot.lane.b32.xlu0 %v8576, 99
      %v9287 = vpop.permute.xlu0 %9286
      %9288 = vrot.lane.b32.xlu0 %v8577, 99
      %v9289 = vpop.permute.xlu0 %9288
      %v9290 = vrot.slane %v9287, 4
      %v9291 = vrot.slane %v9289, 4
      %v9292 = vsel %vm4907, %v9290, %v9291
      %v9293 = vsel %vm1772, %v9287, %v9292
      %v9294 = vsel %vm1772, %v9289, %v9291
      %v9297 = vmul.f32 %v9285, %v9293
      %v9298 = vmul.f32 %v9285, %v9294
      %v9299 = vadd.f32 %v9277, %v9297
      %v9300 = vadd.f32 %v9278, %v9298
      %v9302 = vunpack.c.l.s4 1985246804
      %v9303 = vunpack.c.0.s8 %v9302
      %v9304 = vlaneseq
      %v9305 = vshrl.u32 %v9304, 7
      %v9306 = vsub.s32 %v9303, %v9305
      %v9307 = vrot.slane %v6013, %v9306
      %9308 = vrot.lane.b32.xlu0 %v8600, 99
      %v9309 = vpop.permute.xlu0 %9308
      %9310 = vrot.lane.b32.xlu0 %v8601, 99
      %v9311 = vpop.permute.xlu0 %9310
      %v9312 = vrot.slane %v9309, 4
      %v9313 = vrot.slane %v9311, 4
      %v9314 = vsel %vm4907, %v9312, %v9313
      %v9315 = vsel %vm1772, %v9309, %v9314
      %v9316 = vsel %vm1772, %v9311, %v9313
      %v9319 = vmul.f32 %v9307, %v9315
      %v9320 = vmul.f32 %v9307, %v9316
      %v9321 = vadd.f32 %v9299, %v9319
      %v9322 = vadd.f32 %v9300, %v9320
      %v9324 = vunpack.c.l.s4 1985246804
      %v9325 = vunpack.c.0.s8 %v9324
      %v9326 = vlaneseq
      %v9327 = vshrl.u32 %v9326, 7
      %v9328 = vsub.s32 %v9325, %v9327
      %v9329 = vrot.slane %v6039, %v9328
      %9330 = vrot.lane.b32.xlu0 %v8528, 98
      %v9331 = vpop.permute.xlu0 %9330
      %9332 = vrot.lane.b32.xlu0 %v8529, 98
      %v9333 = vpop.permute.xlu0 %9332
      %v9334 = vrot.slane %v9331, 4
      %v9335 = vrot.slane %v9333, 4
      %v9336 = vsel %vm4907, %v9334, %v9335
      %v9337 = vsel %vm1945, %v9331, %v9336
      %v9338 = vsel %vm1945, %v9333, %v9335
      %v9341 = vmul.f32 %v9329, %v9337
      %v9342 = vmul.f32 %v9329, %v9338
      %v9343 = vadd.f32 %v9321, %v9341
      %v9344 = vadd.f32 %v9322, %v9342
      %v9346 = vunpack.c.l.s4 1985246804
      %v9347 = vunpack.c.0.s8 %v9346
      %v9348 = vlaneseq
      %v9349 = vshrl.u32 %v9348, 7
      %v9350 = vsub.s32 %v9347, %v9349
      %v9351 = vrot.slane %v6066, %v9350
      %9352 = vrot.lane.b32.xlu0 %v8552, 98
      %v9353 = vpop.permute.xlu0 %9352
      %9354 = vrot.lane.b32.xlu0 %v8553, 98
      %v9355 = vpop.permute.xlu0 %9354
      %v9356 = vrot.slane %v9353, 4
      %v9357 = vrot.slane %v9355, 4
      %v9358 = vsel %vm4907, %v9356, %v9357
      %v9359 = vsel %vm1945, %v9353, %v9358
      %v9360 = vsel %vm1945, %v9355, %v9357
      %v9363 = vmul.f32 %v9351, %v9359
      %v9364 = vmul.f32 %v9351, %v9360
      %v9365 = vadd.f32 %v9343, %v9363
      %v9366 = vadd.f32 %v9344, %v9364
      %v9368 = vunpack.c.l.s4 1985246804
      %v9369 = vunpack.c.0.s8 %v9368
      %v9370 = vlaneseq
      %v9371 = vshrl.u32 %v9370, 7
      %v9372 = vsub.s32 %v9369, %v9371
      %v9373 = vrot.slane %v6092, %v9372
      %9374 = vrot.lane.b32.xlu0 %v8576, 98
      %v9375 = vpop.permute.xlu0 %9374
      %9376 = vrot.lane.b32.xlu0 %v8577, 98
      %v9377 = vpop.permute.xlu0 %9376
      %v9378 = vrot.slane %v9375, 4
      %v9379 = vrot.slane %v9377, 4
      %v9380 = vsel %vm4907, %v9378, %v9379
      %v9381 = vsel %vm1945, %v9375, %v9380
      %v9382 = vsel %vm1945, %v9377, %v9379
      %v9385 = vmul.f32 %v9373, %v9381
      %v9386 = vmul.f32 %v9373, %v9382
      %v9387 = vadd.f32 %v9365, %v9385
      %v9388 = vadd.f32 %v9366, %v9386
      %v9390 = vunpack.c.l.s4 1985246804
      %v9391 = vunpack.c.0.s8 %v9390
      %v9392 = vlaneseq
      %v9393 = vshrl.u32 %v9392, 7
      %v9394 = vsub.s32 %v9391, %v9393
      %v9395 = vrot.slane %v6118, %v9394
      %9396 = vrot.lane.b32.xlu0 %v8600, 98
      %v9397 = vpop.permute.xlu0 %9396
      %9398 = vrot.lane.b32.xlu0 %v8601, 98
      %v9399 = vpop.permute.xlu0 %9398
      %v9400 = vrot.slane %v9397, 4
      %v9401 = vrot.slane %v9399, 4
      %v9402 = vsel %vm4907, %v9400, %v9401
      %v9403 = vsel %vm1945, %v9397, %v9402
      %v9404 = vsel %vm1945, %v9399, %v9401
      %v9407 = vmul.f32 %v9395, %v9403
      %v9408 = vmul.f32 %v9395, %v9404
      %v9409 = vadd.f32 %v9387, %v9407
      %v9410 = vadd.f32 %v9388, %v9408
      %v9412 = vunpack.c.l.s4 1985246804
      %v9413 = vunpack.c.0.s8 %v9412
      %v9414 = vlaneseq
      %v9415 = vshrl.u32 %v9414, 7
      %v9416 = vsub.s32 %v9413, %v9415
      %v9417 = vrot.slane %v6144, %v9416
      %9418 = vrot.lane.b32.xlu0 %v8528, 97
      %v9419 = vpop.permute.xlu0 %9418
      %9420 = vrot.lane.b32.xlu0 %v8529, 97
      %v9421 = vpop.permute.xlu0 %9420
      %v9422 = vrot.slane %v9419, 4
      %v9423 = vrot.slane %v9421, 4
      %v9424 = vsel %vm4907, %v9422, %v9423
      %v9425 = vsel %vm6055, %v9419, %v9424
      %v9426 = vsel %vm6055, %v9421, %v9423
      %v9429 = vmul.f32 %v9417, %v9425
      %v9430 = vmul.f32 %v9417, %v9426
      %v9431 = vadd.f32 %v9409, %v9429
      %v9432 = vadd.f32 %v9410, %v9430
      %v9434 = vunpack.c.l.s4 1985246804
      %v9435 = vunpack.c.0.s8 %v9434
      %v9436 = vlaneseq
      %v9437 = vshrl.u32 %v9436, 7
      %v9438 = vsub.s32 %v9435, %v9437
      %v9439 = vrot.slane %v6171, %v9438
      %9440 = vrot.lane.b32.xlu0 %v8552, 97
      %v9441 = vpop.permute.xlu0 %9440
      %9442 = vrot.lane.b32.xlu0 %v8553, 97
      %v9443 = vpop.permute.xlu0 %9442
      %v9444 = vrot.slane %v9441, 4
      %v9445 = vrot.slane %v9443, 4
      %v9446 = vsel %vm4907, %v9444, %v9445
      %v9447 = vsel %vm6055, %v9441, %v9446
      %v9448 = vsel %vm6055, %v9443, %v9445
      %v9451 = vmul.f32 %v9439, %v9447
      %v9452 = vmul.f32 %v9439, %v9448
      %v9453 = vadd.f32 %v9431, %v9451
      %v9454 = vadd.f32 %v9432, %v9452
      %v9456 = vunpack.c.l.s4 1985246804
      %v9457 = vunpack.c.0.s8 %v9456
      %v9458 = vlaneseq
      %v9459 = vshrl.u32 %v9458, 7
      %v9460 = vsub.s32 %v9457, %v9459
      %v9461 = vrot.slane %v6197, %v9460
      %9462 = vrot.lane.b32.xlu0 %v8576, 97
      %v9463 = vpop.permute.xlu0 %9462
      %9464 = vrot.lane.b32.xlu0 %v8577, 97
      %v9465 = vpop.permute.xlu0 %9464
      %v9466 = vrot.slane %v9463, 4
      %v9467 = vrot.slane %v9465, 4
      %v9468 = vsel %vm4907, %v9466, %v9467
      %v9469 = vsel %vm6055, %v9463, %v9468
      %v9470 = vsel %vm6055, %v9465, %v9467
      %v9473 = vmul.f32 %v9461, %v9469
      %v9474 = vmul.f32 %v9461, %v9470
      %v9475 = vadd.f32 %v9453, %v9473
      %v9476 = vadd.f32 %v9454, %v9474
      %v9478 = vunpack.c.l.s4 1985246804
      %v9479 = vunpack.c.0.s8 %v9478
      %v9480 = vlaneseq
      %v9481 = vshrl.u32 %v9480, 7
      %v9482 = vsub.s32 %v9479, %v9481
      %v9483 = vrot.slane %v6223, %v9482
      %9484 = vrot.lane.b32.xlu0 %v8600, 97
      %v9485 = vpop.permute.xlu0 %9484
      %9486 = vrot.lane.b32.xlu0 %v8601, 97
      %v9487 = vpop.permute.xlu0 %9486
      %v9488 = vrot.slane %v9485, 4
      %v9489 = vrot.slane %v9487, 4
      %v9490 = vsel %vm4907, %v9488, %v9489
      %v9491 = vsel %vm6055, %v9485, %v9490
      %v9492 = vsel %vm6055, %v9487, %v9489
      %v9495 = vmul.f32 %v9483, %v9491
      %v9496 = vmul.f32 %v9483, %v9492
      %v9497 = vadd.f32 %v9475, %v9495
      %v9498 = vadd.f32 %v9476, %v9496
      %v9500 = vunpack.c.l.s4 1985246804
      %v9501 = vunpack.c.0.s8 %v9500
      %v9502 = vlaneseq
      %v9503 = vshrl.u32 %v9502, 7
      %v9504 = vsub.s32 %v9501, %v9503
      %v9505 = vrot.slane %v6249, %v9504
      %9506 = vrot.lane.b32.xlu0 %v8528, 96
      %v9507 = vpop.permute.xlu0 %9506
      %9508 = vrot.lane.b32.xlu0 %v8529, 96
      %v9509 = vpop.permute.xlu0 %9508
      %v9510 = vrot.slane %v9507, 4
      %v9511 = vrot.slane %v9509, 4
      %v9512 = vsel %vm4907, %v9510, %v9511
      %v9513 = vsel %vm6160, %v9507, %v9512
      %v9514 = vsel %vm6160, %v9509, %v9511
      %v9517 = vmul.f32 %v9505, %v9513
      %v9518 = vmul.f32 %v9505, %v9514
      %v9519 = vadd.f32 %v9497, %v9517
      %v9520 = vadd.f32 %v9498, %v9518
      %v9522 = vunpack.c.l.s4 1985246804
      %v9523 = vunpack.c.0.s8 %v9522
      %v9524 = vlaneseq
      %v9525 = vshrl.u32 %v9524, 7
      %v9526 = vsub.s32 %v9523, %v9525
      %v9527 = vrot.slane %v6275, %v9526
      %9528 = vrot.lane.b32.xlu0 %v8552, 96
      %v9529 = vpop.permute.xlu0 %9528
      %9530 = vrot.lane.b32.xlu0 %v8553, 96
      %v9531 = vpop.permute.xlu0 %9530
      %v9532 = vrot.slane %v9529, 4
      %v9533 = vrot.slane %v9531, 4
      %v9534 = vsel %vm4907, %v9532, %v9533
      %v9535 = vsel %vm6160, %v9529, %v9534
      %v9536 = vsel %vm6160, %v9531, %v9533
      %v9539 = vmul.f32 %v9527, %v9535
      %v9540 = vmul.f32 %v9527, %v9536
      %v9541 = vadd.f32 %v9519, %v9539
      %v9542 = vadd.f32 %v9520, %v9540
      %v9544 = vunpack.c.l.s4 1985246804
      %v9545 = vunpack.c.0.s8 %v9544
      %v9546 = vlaneseq
      %v9547 = vshrl.u32 %v9546, 7
      %v9548 = vsub.s32 %v9545, %v9547
      %v9549 = vrot.slane %v6301, %v9548
      %9550 = vrot.lane.b32.xlu0 %v8576, 96
      %v9551 = vpop.permute.xlu0 %9550
      %9552 = vrot.lane.b32.xlu0 %v8577, 96
      %v9553 = vpop.permute.xlu0 %9552
      %v9554 = vrot.slane %v9551, 4
      %v9555 = vrot.slane %v9553, 4
      %v9556 = vsel %vm4907, %v9554, %v9555
      %v9557 = vsel %vm6160, %v9551, %v9556
      %v9558 = vsel %vm6160, %v9553, %v9555
      %v9561 = vmul.f32 %v9549, %v9557
      %v9562 = vmul.f32 %v9549, %v9558
      %v9563 = vadd.f32 %v9541, %v9561
      %v9564 = vadd.f32 %v9542, %v9562
      %v9566 = vunpack.c.l.s4 1985246804
      %v9567 = vunpack.c.0.s8 %v9566
      %v9568 = vlaneseq
      %v9569 = vshrl.u32 %v9568, 7
      %v9570 = vsub.s32 %v9567, %v9569
      %v9571 = vrot.slane %v6327, %v9570
      %9572 = vrot.lane.b32.xlu0 %v8600, 96
      %v9573 = vpop.permute.xlu0 %9572
      %9574 = vrot.lane.b32.xlu0 %v8601, 96
      %v9575 = vpop.permute.xlu0 %9574
      %v9576 = vrot.slane %v9573, 4
      %v9577 = vrot.slane %v9575, 4
      %v9578 = vsel %vm4907, %v9576, %v9577
      %v9579 = vsel %vm6160, %v9573, %v9578
      %v9580 = vsel %vm6160, %v9575, %v9577
      %v9583 = vmul.f32 %v9571, %v9579
      %v9584 = vmul.f32 %v9571, %v9580
      %v9585 = vadd.f32 %v9563, %v9583
      %v9586 = vadd.f32 %v9564, %v9584
      %v9588 = vunpack.c.l.s4 1985246804
      %v9589 = vunpack.c.0.s8 %v9588
      %v9590 = vlaneseq
      %v9591 = vshrl.u32 %v9590, 7
      %v9592 = vsub.s32 %v9589, %v9591
      %v9593 = vrot.slane %v6353, %v9592
      %9594 = vrot.lane.b32.xlu0 %v8528, 95
      %v9595 = vpop.permute.xlu0 %9594
      %9596 = vrot.lane.b32.xlu0 %v8529, 95
      %v9597 = vpop.permute.xlu0 %9596
      %v9598 = vrot.slane %v9595, 4
      %v9599 = vrot.slane %v9597, 4
      %v9600 = vsel %vm4907, %v9598, %v9599
      %vm9601 = vcmask 777216
      %v9602 = vsel %vm9601, %v9595, %v9600
      %v9603 = vsel %vm9601, %v9597, %v9599
      %v9606 = vmul.f32 %v9593, %v9602
      %v9607 = vmul.f32 %v9593, %v9603
      %v9608 = vadd.f32 %v9585, %v9606
      %v9609 = vadd.f32 %v9586, %v9607
      %v9611 = vunpack.c.l.s4 1985246804
      %v9612 = vunpack.c.0.s8 %v9611
      %v9613 = vlaneseq
      %v9614 = vshrl.u32 %v9613, 7
      %v9615 = vsub.s32 %v9612, %v9614
      %v9616 = vrot.slane %v6379, %v9615
      %9617 = vrot.lane.b32.xlu0 %v8552, 95
      %v9618 = vpop.permute.xlu0 %9617
      %9619 = vrot.lane.b32.xlu0 %v8553, 95
      %v9620 = vpop.permute.xlu0 %9619
      %v9621 = vrot.slane %v9618, 4
      %v9622 = vrot.slane %v9620, 4
      %v9623 = vsel %vm4907, %v9621, %v9622
      %v9624 = vsel %vm9601, %v9618, %v9623
      %v9625 = vsel %vm9601, %v9620, %v9622
      %v9628 = vmul.f32 %v9616, %v9624
      %v9629 = vmul.f32 %v9616, %v9625
      %v9630 = vadd.f32 %v9608, %v9628
      %v9631 = vadd.f32 %v9609, %v9629
      %v9633 = vunpack.c.l.s4 1985246804
      %v9634 = vunpack.c.0.s8 %v9633
      %v9635 = vlaneseq
      %v9636 = vshrl.u32 %v9635, 7
      %v9637 = vsub.s32 %v9634, %v9636
      %v9638 = vrot.slane %v6405, %v9637
      %9639 = vrot.lane.b32.xlu0 %v8576, 95
      %v9640 = vpop.permute.xlu0 %9639
      %9641 = vrot.lane.b32.xlu0 %v8577, 95
      %v9642 = vpop.permute.xlu0 %9641
      %v9643 = vrot.slane %v9640, 4
      %v9644 = vrot.slane %v9642, 4
      %v9645 = vsel %vm4907, %v9643, %v9644
      %v9646 = vsel %vm9601, %v9640, %v9645
      %v9647 = vsel %vm9601, %v9642, %v9644
      %v9650 = vmul.f32 %v9638, %v9646
      %v9651 = vmul.f32 %v9638, %v9647
      %v9652 = vadd.f32 %v9630, %v9650
      %v9653 = vadd.f32 %v9631, %v9651
      %v9655 = vunpack.c.l.s4 1985246804
      %v9656 = vunpack.c.0.s8 %v9655
      %v9657 = vlaneseq
      %v9658 = vshrl.u32 %v9657, 7
      %v9659 = vsub.s32 %v9656, %v9658
      %v9660 = vrot.slane %v6431, %v9659
      %9661 = vrot.lane.b32.xlu0 %v8600, 95
      %v9662 = vpop.permute.xlu0 %9661
      %9663 = vrot.lane.b32.xlu0 %v8601, 95
      %v9664 = vpop.permute.xlu0 %9663
      %v9665 = vrot.slane %v9662, 4
      %v9666 = vrot.slane %v9664, 4
      %v9667 = vsel %vm4907, %v9665, %v9666
      %v9668 = vsel %vm9601, %v9662, %v9667
      %v9669 = vsel %vm9601, %v9664, %v9666
      %v9672 = vmul.f32 %v9660, %v9668
      %v9673 = vmul.f32 %v9660, %v9669
      %v9674 = vadd.f32 %v9652, %v9672
      %v9675 = vadd.f32 %v9653, %v9673
      %v9677 = vunpack.c.l.s4 1985246804
      %v9678 = vunpack.c.0.s8 %v9677
      %v9679 = vlaneseq
      %v9680 = vshrl.u32 %v9679, 7
      %v9681 = vsub.s32 %v9678, %v9680
      %v9682 = vrot.slane %v6457, %v9681
      %9683 = vrot.lane.b32.xlu0 %v8528, 94
      %v9684 = vpop.permute.xlu0 %9683
      %9685 = vrot.lane.b32.xlu0 %v8529, 94
      %v9686 = vpop.permute.xlu0 %9685
      %v9687 = vrot.slane %v9684, 4
      %v9688 = vrot.slane %v9686, 4
      %v9689 = vsel %vm4907, %v9687, %v9688
      %vm9690 = vcmask 769024
      %v9691 = vsel %vm9690, %v9684, %v9689
      %v9692 = vsel %vm9690, %v9686, %v9688
      %v9695 = vmul.f32 %v9682, %v9691
      %v9696 = vmul.f32 %v9682, %v9692
      %v9697 = vadd.f32 %v9674, %v9695
      %v9698 = vadd.f32 %v9675, %v9696
      %v9700 = vunpack.c.l.s4 1985246804
      %v9701 = vunpack.c.0.s8 %v9700
      %v9702 = vlaneseq
      %v9703 = vshrl.u32 %v9702, 7
      %v9704 = vsub.s32 %v9701, %v9703
      %v9705 = vrot.slane %v6483, %v9704
      %9706 = vrot.lane.b32.xlu0 %v8552, 94
      %v9707 = vpop.permute.xlu0 %9706
      %9708 = vrot.lane.b32.xlu0 %v8553, 94
      %v9709 = vpop.permute.xlu0 %9708
      %v9710 = vrot.slane %v9707, 4
      %v9711 = vrot.slane %v9709, 4
      %v9712 = vsel %vm4907, %v9710, %v9711
      %v9713 = vsel %vm9690, %v9707, %v9712
      %v9714 = vsel %vm9690, %v9709, %v9711
      %v9717 = vmul.f32 %v9705, %v9713
      %v9718 = vmul.f32 %v9705, %v9714
      %v9719 = vadd.f32 %v9697, %v9717
      %v9720 = vadd.f32 %v9698, %v9718
      %v9722 = vunpack.c.l.s4 1985246804
      %v9723 = vunpack.c.0.s8 %v9722
      %v9724 = vlaneseq
      %v9725 = vshrl.u32 %v9724, 7
      %v9726 = vsub.s32 %v9723, %v9725
      %v9727 = vrot.slane %v6509, %v9726
      %9728 = vrot.lane.b32.xlu0 %v8576, 94
      %v9729 = vpop.permute.xlu0 %9728
      %9730 = vrot.lane.b32.xlu0 %v8577, 94
      %v9731 = vpop.permute.xlu0 %9730
      %v9732 = vrot.slane %v9729, 4
      %v9733 = vrot.slane %v9731, 4
      %v9734 = vsel %vm4907, %v9732, %v9733
      %v9735 = vsel %vm9690, %v9729, %v9734
      %v9736 = vsel %vm9690, %v9731, %v9733
      %v9739 = vmul.f32 %v9727, %v9735
      %v9740 = vmul.f32 %v9727, %v9736
      %v9741 = vadd.f32 %v9719, %v9739
      %v9742 = vadd.f32 %v9720, %v9740
      %v9744 = vunpack.c.l.s4 1985246804
      %v9745 = vunpack.c.0.s8 %v9744
      %v9746 = vlaneseq
      %v9747 = vshrl.u32 %v9746, 7
      %v9748 = vsub.s32 %v9745, %v9747
      %v9749 = vrot.slane %v6535, %v9748
      %9750 = vrot.lane.b32.xlu0 %v8600, 94
      %v9751 = vpop.permute.xlu0 %9750
      %9752 = vrot.lane.b32.xlu0 %v8601, 94
      %v9753 = vpop.permute.xlu0 %9752
      %v9754 = vrot.slane %v9751, 4
      %v9755 = vrot.slane %v9753, 4
      %v9756 = vsel %vm4907, %v9754, %v9755
      %v9757 = vsel %vm9690, %v9751, %v9756
      %v9758 = vsel %vm9690, %v9753, %v9755
      %v9761 = vmul.f32 %v9749, %v9757
      %v9762 = vmul.f32 %v9749, %v9758
      %v9763 = vadd.f32 %v9741, %v9761
      %v9764 = vadd.f32 %v9742, %v9762
      %v9765 = vld [vmem:[%s4] sm:$0xf]
      %9767 = vset.pattern.permute.xlu0 0
      %9768 = vperm.xlu0 %9767, %v9765
      %v9769 = vpop.permute.xlu0 %9768
      %v9771 = vunpack.c.l.s4 839922192
      %v9772 = vunpack.c.0.s8 %v9771
      %v9773 = vlaneseq
      %v9774 = vshrl.u32 %v9773, 7
      %v9775 = vsub.s32 %v9772, %v9774
      %v9776 = vrot.slane %v9769, %v9775
      %v9778 = vadd.f32 %v9763, %v9776
      %v9779 = vadd.f32 %v9764, %v9776
      %9780 = vst [vmem:[%s251] sm:$0xff] %v9778
      %vm9781 = vcmask 261124
      %vm9782 = vmor %vm9781, %vm4907
      %9783 = vst.msk [vmem:[%s251 + $0x8] sm:$0xff] %vm9782, %v9779
      %p9784 = scmp.lt.s32.totalorder %s17, 1
      %s9785 = scalar_select %p9784, %s17, 1
      %s9786 = smul.addr %s9785, 4
      %s9787 = smul.addr %s9786, 4
      %s9788 = scalar_lea.vmem %s6, %s9787
      // Predicated region
      $region45: #{block_forward.1} parent=43 // pred_check
        %p9789 = pneg %p166
      $region46: #{block_forward.1} parent=43 // pred_check_branch
        %9791 = sbr.rel (%p9789) target = $region48
      $region47: #{block_forward.1} parent=43 // pred_region
        _
      $region48: #{block_forward.1} parent=43 // pred_fallthru
        _
    $region44: #{block_forward.1} parent=5 // pred_fallthru
      _
    %p9792 = scmp.le.s32.totalorder 2, %s12
    // Predicated region
    $region49: #{block_forward.1} parent=5 // pred_check
      %p9793 = pneg %p9792
    $region50: #{block_forward.1} parent=5 // pred_check_branch
      %9795 = sbr.rel (%p9793) target = $region52
    $region51: #{block_forward.1} parent=5 // pred_region
      %s9796 = ssub.s32 %s12, 2
      // Predicated region
      $region53: #{block_forward.1} parent=51 // pred_check
        %p9797 = pneg %p172
      $region54: #{block_forward.1} parent=51 // pred_check_branch
        %9799 = sbr.rel (%p9797) target = $region56
      $region55: #{block_forward.1} parent=51 // pred_region
        %p9800 = scmp.lt.s32.totalorder %s18, 1
        %s9801 = scalar_select %p9800, %s18, 1
        %s9802 = smul.addr %s9801, 4
        %s9803 = smul.addr %s9802, 4
        %s9804 = scalar_lea.vmem %s6, %s9803
      $region56: #{block_forward.1} parent=51 // pred_fallthru
        _
    $region52: #{block_forward.1} parent=5 // pred_fallthru
      _
  $region6: #{block_forward.1} parent=0 // loop_footer
    %s16 = sadd.s32 1, %s12
  $region7: #{block_forward.1} parent=0 // loop_footer_branch
    %11 = sbr.rel target = $region3
  $region8: #{block_forward.1} parent=0 // loop_exit
    _

</llo_original>
